<compile_context>
chip_gen: v7x
topology: tpu7x:2x2x1
jax: 0.10.0
libtpu: 0.0.40
codegen_flags: <defaults>
</compile_context>

<pallas_src>
import functools

import jax
import jax.numpy as jnp
from jax.experimental import pallas as pl
from jax.experimental.pallas import tpu as pltpu


# ----------------------------------------------------------------------------
# Small helpers
# ----------------------------------------------------------------------------
def _rotate_lanes(y, s):
    """z[:, p] = y[:, (p + s) % n]  (circular lane rotation, static shift).

    Implemented with two static lane slices + concat so the shift direction is
    unambiguous; Mosaic lowers this to XLU lane-rotate/select work.
    """
    n = y.shape[-1]
    s = s % n
    if s == 0:
        return y
    return jnp.concatenate([y[:, s:], y[:, :s]], axis=-1)


def _make_tap_masks(H, W):
    """(9, 1, H*W) float32 validity masks for the 3x3 taps (zero 'same' pad).

    Tap t = (dy+1)*3 + (dx+1); mask[t, 0, h*W + w] = 1 iff (h+dy, w+dx) lies
    inside the image.  Built once per forward (tiny) and DMA'd once per
    pallas_call (constant index_map).
    """
    hh = jnp.arange(H, dtype=jnp.int32).reshape(H, 1)
    ww = jnp.arange(W, dtype=jnp.int32).reshape(1, W)
    masks = []
    for dy in (-1, 0, 1):
        for dx in (-1, 0, 1):
            valid = ((hh + dy >= 0) & (hh + dy < H) &
                     (ww + dx >= 0) & (ww + dx < W))          # (H, W)
            masks.append(valid.reshape(1, H * W))
    return jnp.stack(masks, axis=0).astype(jnp.float32)       # (9, 1, H*W)


# ----------------------------------------------------------------------------
# Fused ResidualDenseBlock_5C kernel
# ----------------------------------------------------------------------------
def _rdb5c_kernel(*refs, H, W, fuse_outer):
    """Fused ResidualDenseBlock_5C on one image.

    Ref order: x, [outer residual if fuse_outer], tap masks, w1..w5, b1..b5,
    output, VMEM concat scratch.

    Shapes (HW = H*W):
      x_ref / x0_ref / o_ref : (1, nf, HW)        float32
      m_ref                  : (9, 1, HW)         float32
      w_refs[j]              : (9, Cout_j, Cin_j) bfloat16
      b_refs[j]              : (Cout_j, 1)        float32
      buf_ref                : (nf + 4*gc, HW)    float32   [x|x1|x2|x3|x4]
    """
    it = iter(refs)
    x_ref = next(it)
    x0_ref = next(it) if fuse_outer else None
    m_ref = next(it)
    w_refs = [next(it) for _ in range(5)]
    b_refs = [next(it) for _ in range(5)]
    o_ref = next(it)
    buf_ref = next(it)

    HW = H * W
    nf = x_ref.shape[1]

    x = x_ref[0]                                   # (nf, HW) f32
    buf_ref[0:nf, :] = x

    def conv3x3(w_ref, b_ref, apply_lrelu):
        cout, cin = w_ref.shape[1], w_ref.shape[2]
        # conv over the channel-concat == matmul against the first `cin` rows
        # of the VMEM concat buffer; cast to bf16 once per conv (MXU inputs).
        a = buf_ref[0:cin, :].astype(jnp.bfloat16)              # (cin, HW)
        acc = jnp.zeros((cout, HW), jnp.float32)
        for dy in (-1, 0, 1):
            for dx in (-1, 0, 1):
                t = (dy + 1) * 3 + (dx + 1)
                y = jnp.dot(w_ref[t], a,
                            preferred_element_type=jnp.float32)  # (cout, HW)
                if dy == 0 and dx == 0:
                    acc = acc + y
                else:
                    # out[:, p] += y[:, p + dy*W + dx] where the neighbour is
                    # in-bounds; boundary positions are zeroed by the mask
                    # (this *is* the zero 'same' padding).
                    z = _rotate_lanes(y, dy * W + dx)
                    acc = acc + z * m_ref[t]
        acc = acc + b_ref[...]                      # (cout, 1) broadcast
        if apply_lrelu:
            acc = jnp.where(acc >= 0.0, acc, 0.2 * acc)
        return acc                                  # (cout, HW) f32

    c = nf
    for j in range(4):                              # conv1..conv4 + LeakyReLU
        xj = conv3x3(w_refs[j], b_refs[j], True)
        cout = w_refs[j].shape[1]
        buf_ref[c:c + cout, :] = xj
        c += cout

    x5 = conv3x3(w_refs[4], b_refs[4], False)       # conv5, no activation

    out = x5 * 0.2 + x                              # fused block residual
    if fuse_outer:
        out = out * 0.2 + x0_ref[0]                 # fused outer RRDB residual
    o_ref[0] = out.astype(o_ref.dtype)


def rdb5c_block(x, x_outer, masks, pk, *, H, W, fuse_outer):
    """One ResidualDenseBlock_5C.  x: (N, nf, H*W) float32."""
    N, nf, HW = x.shape
    c_total = pk["w5"].shape[2]                     # nf + 4*gc

    kernel = functools.partial(_rdb5c_kernel, H=H, W=W, fuse_outer=fuse_outer)

    act_spec = pl.BlockSpec((1, nf, HW), lambda n: (n, 0, 0))
    in_specs = [act_spec]
    inputs = [x]
    if fuse_outer:
        in_specs.append(act_spec)
        inputs.append(x_outer)
    in_specs.append(pl.BlockSpec(masks.shape, lambda n: (0, 0, 0)))
    inputs.append(masks)
    for j in range(1, 6):
        w = pk[f"w{j}"]
        in_specs.append(pl.BlockSpec(w.shape, lambda n: (0, 0, 0)))
        inputs.append(w)
    for j in range(1, 6):
        b = pk[f"b{j}"]
        in_specs.append(pl.BlockSpec(b.shape, lambda n: (0, 0)))
        inputs.append(b)

    return pl.pallas_call(
        kernel,
        out_shape=jax.ShapeDtypeStruct((N, nf, HW), x.dtype),
        grid_spec=pltpu.PrefetchScalarGridSpec(
            num_scalar_prefetch=0,
            grid=(N,),
            in_specs=in_specs,
            out_specs=act_spec,
            scratch_shapes=[pltpu.VMEM((c_total, HW), jnp.float32)],
        ),
        compiler_params=pltpu.CompilerParams(
            dimension_semantics=("parallel",)),
    )(*inputs)


# ----------------------------------------------------------------------------
# RRDB forward (Pallas)
# ----------------------------------------------------------------------------
@jax.jit
def rrdb_forward(x_nchw, packed_blocks):
    """RRDB forward.  Input/output NCHW to match the PyTorch module."""
    N, C, H, W = x_nchw.shape
    x = x_nchw.reshape(N, C, H * W)                 # channel-major, flat spatial
    masks = _make_tap_masks(H, W)
    out = x
    last = len(packed_blocks) - 1
    for i, pk in enumerate(packed_blocks):
        out = rdb5c_block(out, x, masks, pk, H=H, W=W, fuse_outer=(i == last))
    return out.reshape(N, C, H, W)


# ----------------------------------------------------------------------------
# Parameter init (deterministic, synthetic) + one-time packing for the kernel
# ----------------------------------------------------------------------------
def init_rrdb_params(key, nf, gc, num_blocks):
    """Random conv weights in HWIO (3,3,Cin,Cout) + biases, matching Conv2d."""
    blocks = []
    for _ in range(num_blocks):
        p = {}
        in_chs = [nf, nf + gc, nf + 2 * gc, nf + 3 * gc, nf + 4 * gc]
        out_chs = [gc, gc, gc, gc, nf]
        for i, (ci, co) in enumerate(zip(in_chs, out_chs), start=1):
            key, kw, kb = jax.random.split(key, 3)
            p[f"w{i}"] = 0.1 * jax.random.normal(kw, (3, 3, ci, co), jnp.float32)
            p[f"b{i}"] = 0.1 * jax.random.normal(kb, (co,), jnp.float32)
        blocks.append(p)
    return blocks


def pack_rrdb_params(blocks):
    """One-time weight packing: (3,3,Cin,Cout) -> (9, Cout, Cin) bf16 (tap
    index t = i*3 + j), bias -> (Cout, 1) f32."""
    packed = []
    for p in blocks:
        q = {}
        for j in range(1, 6):
            w = p[f"w{j}"]
            cin, cout = w.shape[2], w.shape[3]
            q[f"w{j}"] = (jnp.transpose(w, (0, 1, 3, 2))
                          .reshape(9, cout, cin).astype(jnp.bfloat16))
            q[f"b{j}"] = p[f"b{j}"].reshape(cout, 1).astype(jnp.float32)
        packed.append(q)
    return packed


# ----------------------------------------------------------------------------
# Pure-JAX reference (module-faithful, f32 convs) for the correctness check
# ----------------------------------------------------------------------------
def _conv3x3_ref(x, w, b, apply_lrelu):
    y = jax.lax.conv_general_dilated(
        x, w, window_strides=(1, 1), padding="SAME",
        dimension_numbers=("NCHW", "HWIO", "NCHW"))
    y = y + b[None, :, None, None]
    if apply_lrelu:
        y = jnp.where(y >= 0, y, 0.2 * y)
    return y


def _rrdb_ref(x, blocks):
    out = x
    for p in blocks:
        r = out
        x1 = _conv3x3_ref(r, p["w1"], p["b1"], True)
        x2 = _conv3x3_ref(jnp.concatenate([r, x1], 1), p["w2"], p["b2"], True)
        x3 = _conv3x3_ref(jnp.concatenate([r, x1, x2], 1), p["w3"], p["b3"], True)
        x4 = _conv3x3_ref(jnp.concatenate([r, x1, x2, x3], 1), p["w4"], p["b4"], True)
        x5 = _conv3x3_ref(jnp.concatenate([r, x1, x2, x3, x4], 1), p["w5"], p["b5"], False)
        out = x5 * 0.2 + r
    return out * 0.2 + x


# ----------------------------------------------------------------------------
if __name__ == "__main__":
    # Small shapes: batch=2, nf=4 channels, 16x16 spatial, gc=4, 3 blocks.
    N, NF, H, W = 2, 4, 16, 16
    GC, NUM_BLOCKS = 4, 3

    key = jax.random.PRNGKey(0)
    key, kx = jax.random.split(key)
    x = jax.random.normal(kx, (N, NF, H, W), jnp.float32)   # NCHW, like PyTorch

    blocks = init_rrdb_params(key, NF, GC, NUM_BLOCKS)
    packed = pack_rrdb_params(blocks)                       # packed once, up front

    out = jax.block_until_ready(rrdb_forward(x, packed))
    ref = jax.block_until_ready(_rrdb_ref(x, blocks))

    assert out.shape == (N, NF, H, W)
    # Kernel uses bf16 MXU inputs (per perf review); reference is full f32,
    # so tolerance is loosened from 1e-4 accordingly.
    assert jnp.allclose(out, ref, atol=5e-2, rtol=5e-2), (
        float(jnp.max(jnp.abs(out - ref))))

    print("KERNEL_OK")
</pallas_src>

<mosaic_0001>
module attributes {stable_mosaic.version = 11 : i64} {
  func.func @_rdb5c_kernel(%arg0: i32, %arg1: memref<1x4x256xf32, #tpu.memory_space<vmem>>, %arg2: memref<1x4x256xf32, #tpu.memory_space<vmem>>, %arg3: memref<9x1x256xf32, #tpu.memory_space<vmem>>, %arg4: memref<9x4x4xbf16, #tpu.memory_space<vmem>>, %arg5: memref<9x4x8xbf16, #tpu.memory_space<vmem>>, %arg6: memref<9x4x12xbf16, #tpu.memory_space<vmem>>, %arg7: memref<9x4x16xbf16, #tpu.memory_space<vmem>>, %arg8: memref<9x4x20xbf16, #tpu.memory_space<vmem>>, %arg9: memref<4x1xf32, #tpu.memory_space<vmem>>, %arg10: memref<4x1xf32, #tpu.memory_space<vmem>>, %arg11: memref<4x1xf32, #tpu.memory_space<vmem>>, %arg12: memref<4x1xf32, #tpu.memory_space<vmem>>, %arg13: memref<4x1xf32, #tpu.memory_space<vmem>>, %arg14: memref<1x4x256xf32, #tpu.memory_space<vmem>>, %arg15: memref<20x256xf32, #tpu.memory_space<vmem>>) attributes {dimension_semantics = [#tpu.dimension_semantics<parallel>], iteration_bounds = array<i64: 2>, scalar_prefetch = 0 : i64, scratch_operands = 1 : i64, tpu.core_type = #tpu.core_type<tc>, window_params = [{transform_indices = @transform_0, window_bounds = array<i64: 1, 4, 256>}, {transform_indices = @transform_1, window_bounds = array<i64: 1, 4, 256>}, {pipeline_mode = #tpu.pipeline_mode<synchronous>, transform_indices = @transform_2, window_bounds = array<i64: 9, 1, 256>}, {pipeline_mode = #tpu.pipeline_mode<synchronous>, transform_indices = @transform_3, window_bounds = array<i64: 9, 4, 4>}, {pipeline_mode = #tpu.pipeline_mode<synchronous>, transform_indices = @transform_4, window_bounds = array<i64: 9, 4, 8>}, {pipeline_mode = #tpu.pipeline_mode<synchronous>, transform_indices = @transform_5, window_bounds = array<i64: 9, 4, 12>}, {pipeline_mode = #tpu.pipeline_mode<synchronous>, transform_indices = @transform_6, window_bounds = array<i64: 9, 4, 16>}, {pipeline_mode = #tpu.pipeline_mode<synchronous>, transform_indices = @transform_7, window_bounds = array<i64: 9, 4, 20>}, {pipeline_mode = #tpu.pipeline_mode<synchronous>, transform_indices = @transform_8, window_bounds = array<i64: 4, 1>}, {pipeline_mode = #tpu.pipeline_mode<synchronous>, transform_indices = @transform_9, window_bounds = array<i64: 4, 1>}, {pipeline_mode = #tpu.pipeline_mode<synchronous>, transform_indices = @transform_10, window_bounds = array<i64: 4, 1>}, {pipeline_mode = #tpu.pipeline_mode<synchronous>, transform_indices = @transform_11, window_bounds = array<i64: 4, 1>}, {pipeline_mode = #tpu.pipeline_mode<synchronous>, transform_indices = @transform_12, window_bounds = array<i64: 4, 1>}, {transform_indices = @transform_13, window_bounds = array<i64: 1, 4, 256>}]} {
    %c0 = arith.constant 0 : index
    %c0_0 = arith.constant 0 : index
    %c0_1 = arith.constant 0 : index
    %0 = vector.load %arg1[%c0, %c0_0, %c0_1] : memref<1x4x256xf32, #tpu.memory_space<vmem>>, vector<1x4x256xf32>
    %1 = vector.shape_cast %0 : vector<1x4x256xf32> to vector<4x256xf32>
    %c0_2 = arith.constant 0 : index
    %c0_3 = arith.constant 0 : index
    %2 = vector.load %arg15[%c0_2, %c0_3] : memref<20x256xf32, #tpu.memory_space<vmem>>, vector<4x256xf32>
    tpu.vector_store %arg15[%c0_2, %c0_3], %1 {strides = array<i32>} : memref<20x256xf32, #tpu.memory_space<vmem>>, vector<4x256xf32>,
    %c0_4 = arith.constant 0 : index
    %c0_5 = arith.constant 0 : index
    %3 = vector.load %arg15[%c0_4, %c0_5] : memref<20x256xf32, #tpu.memory_space<vmem>>, vector<4x256xf32>
    %4 = arith.truncf %3 : vector<4x256xf32> to vector<4x256xbf16>
    %cst = arith.constant 0.000000e+00 : f32
    %5 = vector.broadcast %cst : f32 to vector<4x256xf32>
    %c0_6 = arith.constant 0 : index
    %c0_7 = arith.constant 0 : index
    %c0_8 = arith.constant 0 : index
    %6 = vector.load %arg4[%c0_6, %c0_7, %c0_8] : memref<9x4x4xbf16, #tpu.memory_space<vmem>>, vector<1x4x4xbf16>
    %7 = vector.shape_cast %6 : vector<1x4x4xbf16> to vector<4x4xbf16>
    %cst_9 = arith.constant dense<0.000000e+00> : vector<4x256xf32>
    %8 = tpu.matmul %7, %4, %cst_9 {dimension_numbers = #tpu.dot_dimension_numbers<[1], [0], [0], [1], [0, 0, 1, 1], [], []>} : vector<4x4xbf16>, vector<4x256xbf16>, vector<4x256xf32> -> vector<4x256xf32>
    %9 = vector.extract_strided_slice %8 {offsets = [0, 239], sizes = [4, 17], strides = [1, 1]} : vector<4x256xf32> to vector<4x17xf32>
    %10 = vector.extract_strided_slice %8 {offsets = [0, 0], sizes = [4, 239], strides = [1, 1]} : vector<4x256xf32> to vector<4x239xf32>
    %11 = tpu.concatenate %9, %10 in 1 : vector<4x17xf32>, vector<4x239xf32> -> vector<4x256xf32>
    %c0_10 = arith.constant 0 : index
    %c0_11 = arith.constant 0 : index
    %c0_12 = arith.constant 0 : index
    %12 = vector.load %arg3[%c0_10, %c0_11, %c0_12] : memref<9x1x256xf32, #tpu.memory_space<vmem>>, vector<1x1x256xf32>
    %13 = vector.shape_cast %12 : vector<1x1x256xf32> to vector<1x256xf32>
    %14 = vector.broadcast %13 : vector<1x256xf32> to vector<4x256xf32>
    %15 = arith.mulf %11, %14 : vector<4x256xf32>
    %16 = arith.addf %5, %15 : vector<4x256xf32>
    %c1 = arith.constant 1 : index
    %c0_13 = arith.constant 0 : index
    %c0_14 = arith.constant 0 : index
    %17 = vector.load %arg4[%c1, %c0_13, %c0_14] : memref<9x4x4xbf16, #tpu.memory_space<vmem>>, vector<1x4x4xbf16>
    %18 = vector.shape_cast %17 : vector<1x4x4xbf16> to vector<4x4xbf16>
    %cst_15 = arith.constant dense<0.000000e+00> : vector<4x256xf32>
    %19 = tpu.matmul %18, %4, %cst_15 {dimension_numbers = #tpu.dot_dimension_numbers<[1], [0], [0], [1], [0, 0, 1, 1], [], []>} : vector<4x4xbf16>, vector<4x256xbf16>, vector<4x256xf32> -> vector<4x256xf32>
    %20 = vector.extract_strided_slice %19 {offsets = [0, 240], sizes = [4, 16], strides = [1, 1]} : vector<4x256xf32> to vector<4x16xf32>
    %21 = vector.extract_strided_slice %19 {offsets = [0, 0], sizes = [4, 240], strides = [1, 1]} : vector<4x256xf32> to vector<4x240xf32>
    %22 = tpu.concatenate %20, %21 in 1 : vector<4x16xf32>, vector<4x240xf32> -> vector<4x256xf32>
    %c1_16 = arith.constant 1 : index
    %c0_17 = arith.constant 0 : index
    %c0_18 = arith.constant 0 : index
    %23 = vector.load %arg3[%c1_16, %c0_17, %c0_18] : memref<9x1x256xf32, #tpu.memory_space<vmem>>, vector<1x1x256xf32>
    %24 = vector.shape_cast %23 : vector<1x1x256xf32> to vector<1x256xf32>
    %25 = vector.broadcast %24 : vector<1x256xf32> to vector<4x256xf32>
    %26 = arith.mulf %22, %25 : vector<4x256xf32>
    %27 = arith.addf %16, %26 : vector<4x256xf32>
    %c2 = arith.constant 2 : index
    %c0_19 = arith.constant 0 : index
    %c0_20 = arith.constant 0 : index
    %28 = vector.load %arg4[%c2, %c0_19, %c0_20] : memref<9x4x4xbf16, #tpu.memory_space<vmem>>, vector<1x4x4xbf16>
    %29 = vector.shape_cast %28 : vector<1x4x4xbf16> to vector<4x4xbf16>
    %cst_21 = arith.constant dense<0.000000e+00> : vector<4x256xf32>
    %30 = tpu.matmul %29, %4, %cst_21 {dimension_numbers = #tpu.dot_dimension_numbers<[1], [0], [0], [1], [0, 0, 1, 1], [], []>} : vector<4x4xbf16>, vector<4x256xbf16>, vector<4x256xf32> -> vector<4x256xf32>
    %31 = vector.extract_strided_slice %30 {offsets = [0, 241], sizes = [4, 15], strides = [1, 1]} : vector<4x256xf32> to vector<4x15xf32>
    %32 = vector.extract_strided_slice %30 {offsets = [0, 0], sizes = [4, 241], strides = [1, 1]} : vector<4x256xf32> to vector<4x241xf32>
    %33 = tpu.concatenate %31, %32 in 1 : vector<4x15xf32>, vector<4x241xf32> -> vector<4x256xf32>
    %c2_22 = arith.constant 2 : index
    %c0_23 = arith.constant 0 : index
    %c0_24 = arith.constant 0 : index
    %34 = vector.load %arg3[%c2_22, %c0_23, %c0_24] : memref<9x1x256xf32, #tpu.memory_space<vmem>>, vector<1x1x256xf32>
    %35 = vector.shape_cast %34 : vector<1x1x256xf32> to vector<1x256xf32>
    %36 = vector.broadcast %35 : vector<1x256xf32> to vector<4x256xf32>
    %37 = arith.mulf %33, %36 : vector<4x256xf32>
    %38 = arith.addf %27, %37 : vector<4x256xf32>
    %c3 = arith.constant 3 : index
    %c0_25 = arith.constant 0 : index
    %c0_26 = arith.constant 0 : index
    %39 = vector.load %arg4[%c3, %c0_25, %c0_26] : memref<9x4x4xbf16, #tpu.memory_space<vmem>>, vector<1x4x4xbf16>
    %40 = vector.shape_cast %39 : vector<1x4x4xbf16> to vector<4x4xbf16>
    %cst_27 = arith.constant dense<0.000000e+00> : vector<4x256xf32>
    %41 = tpu.matmul %40, %4, %cst_27 {dimension_numbers = #tpu.dot_dimension_numbers<[1], [0], [0], [1], [0, 0, 1, 1], [], []>} : vector<4x4xbf16>, vector<4x256xbf16>, vector<4x256xf32> -> vector<4x256xf32>
    %42 = vector.extract_strided_slice %41 {offsets = [0, 255], sizes = [4, 1], strides = [1, 1]} : vector<4x256xf32> to vector<4x1xf32>
    %43 = vector.extract_strided_slice %41 {offsets = [0, 0], sizes = [4, 255], strides = [1, 1]} : vector<4x256xf32> to vector<4x255xf32>
    %44 = tpu.concatenate %42, %43 in 1 : vector<4x1xf32>, vector<4x255xf32> -> vector<4x256xf32>
    %c3_28 = arith.constant 3 : index
    %c0_29 = arith.constant 0 : index
    %c0_30 = arith.constant 0 : index
    %45 = vector.load %arg3[%c3_28, %c0_29, %c0_30] : memref<9x1x256xf32, #tpu.memory_space<vmem>>, vector<1x1x256xf32>
    %46 = vector.shape_cast %45 : vector<1x1x256xf32> to vector<1x256xf32>
    %47 = vector.broadcast %46 : vector<1x256xf32> to vector<4x256xf32>
    %48 = arith.mulf %44, %47 : vector<4x256xf32>
    %49 = arith.addf %38, %48 : vector<4x256xf32>
    %c4 = arith.constant 4 : index
    %c0_31 = arith.constant 0 : index
    %c0_32 = arith.constant 0 : index
    %50 = vector.load %arg4[%c4, %c0_31, %c0_32] : memref<9x4x4xbf16, #tpu.memory_space<vmem>>, vector<1x4x4xbf16>
    %51 = vector.shape_cast %50 : vector<1x4x4xbf16> to vector<4x4xbf16>
    %cst_33 = arith.constant dense<0.000000e+00> : vector<4x256xf32>
    %52 = tpu.matmul %51, %4, %cst_33 {dimension_numbers = #tpu.dot_dimension_numbers<[1], [0], [0], [1], [0, 0, 1, 1], [], []>} : vector<4x4xbf16>, vector<4x256xbf16>, vector<4x256xf32> -> vector<4x256xf32>
    %53 = arith.addf %49, %52 : vector<4x256xf32>
    %c5 = arith.constant 5 : index
    %c0_34 = arith.constant 0 : index
    %c0_35 = arith.constant 0 : index
    %54 = vector.load %arg4[%c5, %c0_34, %c0_35] : memref<9x4x4xbf16, #tpu.memory_space<vmem>>, vector<1x4x4xbf16>
    %55 = vector.shape_cast %54 : vector<1x4x4xbf16> to vector<4x4xbf16>
    %cst_36 = arith.constant dense<0.000000e+00> : vector<4x256xf32>
    %56 = tpu.matmul %55, %4, %cst_36 {dimension_numbers = #tpu.dot_dimension_numbers<[1], [0], [0], [1], [0, 0, 1, 1], [], []>} : vector<4x4xbf16>, vector<4x256xbf16>, vector<4x256xf32> -> vector<4x256xf32>
    %57 = vector.extract_strided_slice %56 {offsets = [0, 1], sizes = [4, 255], strides = [1, 1]} : vector<4x256xf32> to vector<4x255xf32>
    %58 = vector.extract_strided_slice %56 {offsets = [0, 0], sizes = [4, 1], strides = [1, 1]} : vector<4x256xf32> to vector<4x1xf32>
    %59 = tpu.concatenate %57, %58 in 1 : vector<4x255xf32>, vector<4x1xf32> -> vector<4x256xf32>
    %c5_37 = arith.constant 5 : index
    %c0_38 = arith.constant 0 : index
    %c0_39 = arith.constant 0 : index
    %60 = vector.load %arg3[%c5_37, %c0_38, %c0_39] : memref<9x1x256xf32, #tpu.memory_space<vmem>>, vector<1x1x256xf32>
    %61 = vector.shape_cast %60 : vector<1x1x256xf32> to vector<1x256xf32>
    %62 = vector.broadcast %61 : vector<1x256xf32> to vector<4x256xf32>
    %63 = arith.mulf %59, %62 : vector<4x256xf32>
    %64 = arith.addf %53, %63 : vector<4x256xf32>
    %c6 = arith.constant 6 : index
    %c0_40 = arith.constant 0 : index
    %c0_41 = arith.constant 0 : index
    %65 = vector.load %arg4[%c6, %c0_40, %c0_41] : memref<9x4x4xbf16, #tpu.memory_space<vmem>>, vector<1x4x4xbf16>
    %66 = vector.shape_cast %65 : vector<1x4x4xbf16> to vector<4x4xbf16>
    %cst_42 = arith.constant dense<0.000000e+00> : vector<4x256xf32>
    %67 = tpu.matmul %66, %4, %cst_42 {dimension_numbers = #tpu.dot_dimension_numbers<[1], [0], [0], [1], [0, 0, 1, 1], [], []>} : vector<4x4xbf16>, vector<4x256xbf16>, vector<4x256xf32> -> vector<4x256xf32>
    %68 = vector.extract_strided_slice %67 {offsets = [0, 15], sizes = [4, 241], strides = [1, 1]} : vector<4x256xf32> to vector<4x241xf32>
    %69 = vector.extract_strided_slice %67 {offsets = [0, 0], sizes = [4, 15], strides = [1, 1]} : vector<4x256xf32> to vector<4x15xf32>
    %70 = tpu.concatenate %68, %69 in 1 : vector<4x241xf32>, vector<4x15xf32> -> vector<4x256xf32>
    %c6_43 = arith.constant 6 : index
    %c0_44 = arith.constant 0 : index
    %c0_45 = arith.constant 0 : index
    %71 = vector.load %arg3[%c6_43, %c0_44, %c0_45] : memref<9x1x256xf32, #tpu.memory_space<vmem>>, vector<1x1x256xf32>
    %72 = vector.shape_cast %71 : vector<1x1x256xf32> to vector<1x256xf32>
    %73 = vector.broadcast %72 : vector<1x256xf32> to vector<4x256xf32>
    %74 = arith.mulf %70, %73 : vector<4x256xf32>
    %75 = arith.addf %64, %74 : vector<4x256xf32>
    %c7 = arith.constant 7 : index
    %c0_46 = arith.constant 0 : index
    %c0_47 = arith.constant 0 : index
    %76 = vector.load %arg4[%c7, %c0_46, %c0_47] : memref<9x4x4xbf16, #tpu.memory_space<vmem>>, vector<1x4x4xbf16>
    %77 = vector.shape_cast %76 : vector<1x4x4xbf16> to vector<4x4xbf16>
    %cst_48 = arith.constant dense<0.000000e+00> : vector<4x256xf32>
    %78 = tpu.matmul %77, %4, %cst_48 {dimension_numbers = #tpu.dot_dimension_numbers<[1], [0], [0], [1], [0, 0, 1, 1], [], []>} : vector<4x4xbf16>, vector<4x256xbf16>, vector<4x256xf32> -> vector<4x256xf32>
    %79 = vector.extract_strided_slice %78 {offsets = [0, 16], sizes = [4, 240], strides = [1, 1]} : vector<4x256xf32> to vector<4x240xf32>
    %80 = vector.extract_strided_slice %78 {offsets = [0, 0], sizes = [4, 16], strides = [1, 1]} : vector<4x256xf32> to vector<4x16xf32>
    %81 = tpu.concatenate %79, %80 in 1 : vector<4x240xf32>, vector<4x16xf32> -> vector<4x256xf32>
    %c7_49 = arith.constant 7 : index
    %c0_50 = arith.constant 0 : index
    %c0_51 = arith.constant 0 : index
    %82 = vector.load %arg3[%c7_49, %c0_50, %c0_51] : memref<9x1x256xf32, #tpu.memory_space<vmem>>, vector<1x1x256xf32>
    %83 = vector.shape_cast %82 : vector<1x1x256xf32> to vector<1x256xf32>
    %84 = vector.broadcast %83 : vector<1x256xf32> to vector<4x256xf32>
    %85 = arith.mulf %81, %84 : vector<4x256xf32>
    %86 = arith.addf %75, %85 : vector<4x256xf32>
    %c8 = arith.constant 8 : index
    %c0_52 = arith.constant 0 : index
    %c0_53 = arith.constant 0 : index
    %87 = vector.load %arg4[%c8, %c0_52, %c0_53] : memref<9x4x4xbf16, #tpu.memory_space<vmem>>, vector<1x4x4xbf16>
    %88 = vector.shape_cast %87 : vector<1x4x4xbf16> to vector<4x4xbf16>
    %cst_54 = arith.constant dense<0.000000e+00> : vector<4x256xf32>
    %89 = tpu.matmul %88, %4, %cst_54 {dimension_numbers = #tpu.dot_dimension_numbers<[1], [0], [0], [1], [0, 0, 1, 1], [], []>} : vector<4x4xbf16>, vector<4x256xbf16>, vector<4x256xf32> -> vector<4x256xf32>
    %90 = vector.extract_strided_slice %89 {offsets = [0, 17], sizes = [4, 239], strides = [1, 1]} : vector<4x256xf32> to vector<4x239xf32>
    %91 = vector.extract_strided_slice %89 {offsets = [0, 0], sizes = [4, 17], strides = [1, 1]} : vector<4x256xf32> to vector<4x17xf32>
    %92 = tpu.concatenate %90, %91 in 1 : vector<4x239xf32>, vector<4x17xf32> -> vector<4x256xf32>
    %c8_55 = arith.constant 8 : index
    %c0_56 = arith.constant 0 : index
    %c0_57 = arith.constant 0 : index
    %93 = vector.load %arg3[%c8_55, %c0_56, %c0_57] : memref<9x1x256xf32, #tpu.memory_space<vmem>>, vector<1x1x256xf32>
    %94 = vector.shape_cast %93 : vector<1x1x256xf32> to vector<1x256xf32>
    %95 = vector.broadcast %94 : vector<1x256xf32> to vector<4x256xf32>
    %96 = arith.mulf %92, %95 : vector<4x256xf32>
    %97 = arith.addf %86, %96 : vector<4x256xf32>
    %c0_58 = arith.constant 0 : index
    %c0_59 = arith.constant 0 : index
    %98 = vector.load %arg9[%c0_58, %c0_59] : memref<4x1xf32, #tpu.memory_space<vmem>>, vector<4x1xf32>
    %99 = vector.broadcast %98 : vector<4x1xf32> to vector<4x256xf32>
    %100 = arith.addf %97, %99 : vector<4x256xf32>
    %cst_60 = arith.constant 0.000000e+00 : f32
    %101 = vector.broadcast %cst_60 : f32 to vector<4x256xf32>
    %102 = arith.cmpf oge, %100, %101 : vector<4x256xf32>
    %cst_61 = arith.constant 2.000000e-01 : f32
    %103 = vector.broadcast %cst_61 : f32 to vector<4x256xf32>
    %104 = arith.mulf %103, %100 : vector<4x256xf32>
    %105 = arith.select %102, %100, %104 : vector<4x256xi1>, vector<4x256xf32>
    %c4_62 = arith.constant 4 : index
    %c0_63 = arith.constant 0 : index
    %106 = vector.load %arg15[%c4_62, %c0_63] : memref<20x256xf32, #tpu.memory_space<vmem>>, vector<4x256xf32>
    tpu.vector_store %arg15[%c4_62, %c0_63], %105 {strides = array<i32>} : memref<20x256xf32, #tpu.memory_space<vmem>>, vector<4x256xf32>,
    %c0_64 = arith.constant 0 : index
    %c0_65 = arith.constant 0 : index
    %107 = vector.load %arg15[%c0_64, %c0_65] : memref<20x256xf32, #tpu.memory_space<vmem>>, vector<8x256xf32>
    %108 = arith.truncf %107 : vector<8x256xf32> to vector<8x256xbf16>
    %cst_66 = arith.constant 0.000000e+00 : f32
    %109 = vector.broadcast %cst_66 : f32 to vector<4x256xf32>
    %c0_67 = arith.constant 0 : index
    %c0_68 = arith.constant 0 : index
    %c0_69 = arith.constant 0 : index
    %110 = vector.load %arg5[%c0_67, %c0_68, %c0_69] : memref<9x4x8xbf16, #tpu.memory_space<vmem>>, vector<1x4x8xbf16>
    %111 = vector.shape_cast %110 : vector<1x4x8xbf16> to vector<4x8xbf16>
    %cst_70 = arith.constant dense<0.000000e+00> : vector<4x256xf32>
    %112 = tpu.matmul %111, %108, %cst_70 {dimension_numbers = #tpu.dot_dimension_numbers<[1], [0], [0], [1], [0, 0, 1, 1], [], []>} : vector<4x8xbf16>, vector<8x256xbf16>, vector<4x256xf32> -> vector<4x256xf32>
    %113 = vector.extract_strided_slice %112 {offsets = [0, 239], sizes = [4, 17], strides = [1, 1]} : vector<4x256xf32> to vector<4x17xf32>
    %114 = vector.extract_strided_slice %112 {offsets = [0, 0], sizes = [4, 239], strides = [1, 1]} : vector<4x256xf32> to vector<4x239xf32>
    %115 = tpu.concatenate %113, %114 in 1 : vector<4x17xf32>, vector<4x239xf32> -> vector<4x256xf32>
    %c0_71 = arith.constant 0 : index
    %c0_72 = arith.constant 0 : index
    %c0_73 = arith.constant 0 : index
    %116 = vector.load %arg3[%c0_71, %c0_72, %c0_73] : memref<9x1x256xf32, #tpu.memory_space<vmem>>, vector<1x1x256xf32>
    %117 = vector.shape_cast %116 : vector<1x1x256xf32> to vector<1x256xf32>
    %118 = vector.broadcast %117 : vector<1x256xf32> to vector<4x256xf32>
    %119 = arith.mulf %115, %118 : vector<4x256xf32>
    %120 = arith.addf %109, %119 : vector<4x256xf32>
    %c1_74 = arith.constant 1 : index
    %c0_75 = arith.constant 0 : index
    %c0_76 = arith.constant 0 : index
    %121 = vector.load %arg5[%c1_74, %c0_75, %c0_76] : memref<9x4x8xbf16, #tpu.memory_space<vmem>>, vector<1x4x8xbf16>
    %122 = vector.shape_cast %121 : vector<1x4x8xbf16> to vector<4x8xbf16>
    %cst_77 = arith.constant dense<0.000000e+00> : vector<4x256xf32>
    %123 = tpu.matmul %122, %108, %cst_77 {dimension_numbers = #tpu.dot_dimension_numbers<[1], [0], [0], [1], [0, 0, 1, 1], [], []>} : vector<4x8xbf16>, vector<8x256xbf16>, vector<4x256xf32> -> vector<4x256xf32>
    %124 = vector.extract_strided_slice %123 {offsets = [0, 240], sizes = [4, 16], strides = [1, 1]} : vector<4x256xf32> to vector<4x16xf32>
    %125 = vector.extract_strided_slice %123 {offsets = [0, 0], sizes = [4, 240], strides = [1, 1]} : vector<4x256xf32> to vector<4x240xf32>
    %126 = tpu.concatenate %124, %125 in 1 : vector<4x16xf32>, vector<4x240xf32> -> vector<4x256xf32>
    %c1_78 = arith.constant 1 : index
    %c0_79 = arith.constant 0 : index
    %c0_80 = arith.constant 0 : index
    %127 = vector.load %arg3[%c1_78, %c0_79, %c0_80] : memref<9x1x256xf32, #tpu.memory_space<vmem>>, vector<1x1x256xf32>
    %128 = vector.shape_cast %127 : vector<1x1x256xf32> to vector<1x256xf32>
    %129 = vector.broadcast %128 : vector<1x256xf32> to vector<4x256xf32>
    %130 = arith.mulf %126, %129 : vector<4x256xf32>
    %131 = arith.addf %120, %130 : vector<4x256xf32>
    %c2_81 = arith.constant 2 : index
    %c0_82 = arith.constant 0 : index
    %c0_83 = arith.constant 0 : index
    %132 = vector.load %arg5[%c2_81, %c0_82, %c0_83] : memref<9x4x8xbf16, #tpu.memory_space<vmem>>, vector<1x4x8xbf16>
    %133 = vector.shape_cast %132 : vector<1x4x8xbf16> to vector<4x8xbf16>
    %cst_84 = arith.constant dense<0.000000e+00> : vector<4x256xf32>
    %134 = tpu.matmul %133, %108, %cst_84 {dimension_numbers = #tpu.dot_dimension_numbers<[1], [0], [0], [1], [0, 0, 1, 1], [], []>} : vector<4x8xbf16>, vector<8x256xbf16>, vector<4x256xf32> -> vector<4x256xf32>
    %135 = vector.extract_strided_slice %134 {offsets = [0, 241], sizes = [4, 15], strides = [1, 1]} : vector<4x256xf32> to vector<4x15xf32>
    %136 = vector.extract_strided_slice %134 {offsets = [0, 0], sizes = [4, 241], strides = [1, 1]} : vector<4x256xf32> to vector<4x241xf32>
    %137 = tpu.concatenate %135, %136 in 1 : vector<4x15xf32>, vector<4x241xf32> -> vector<4x256xf32>
    %c2_85 = arith.constant 2 : index
    %c0_86 = arith.constant 0 : index
    %c0_87 = arith.constant 0 : index
    %138 = vector.load %arg3[%c2_85, %c0_86, %c0_87] : memref<9x1x256xf32, #tpu.memory_space<vmem>>, vector<1x1x256xf32>
    %139 = vector.shape_cast %138 : vector<1x1x256xf32> to vector<1x256xf32>
    %140 = vector.broadcast %139 : vector<1x256xf32> to vector<4x256xf32>
    %141 = arith.mulf %137, %140 : vector<4x256xf32>
    %142 = arith.addf %131, %141 : vector<4x256xf32>
    %c3_88 = arith.constant 3 : index
    %c0_89 = arith.constant 0 : index
    %c0_90 = arith.constant 0 : index
    %143 = vector.load %arg5[%c3_88, %c0_89, %c0_90] : memref<9x4x8xbf16, #tpu.memory_space<vmem>>, vector<1x4x8xbf16>
    %144 = vector.shape_cast %143 : vector<1x4x8xbf16> to vector<4x8xbf16>
    %cst_91 = arith.constant dense<0.000000e+00> : vector<4x256xf32>
    %145 = tpu.matmul %144, %108, %cst_91 {dimension_numbers = #tpu.dot_dimension_numbers<[1], [0], [0], [1], [0, 0, 1, 1], [], []>} : vector<4x8xbf16>, vector<8x256xbf16>, vector<4x256xf32> -> vector<4x256xf32>
    %146 = vector.extract_strided_slice %145 {offsets = [0, 255], sizes = [4, 1], strides = [1, 1]} : vector<4x256xf32> to vector<4x1xf32>
    %147 = vector.extract_strided_slice %145 {offsets = [0, 0], sizes = [4, 255], strides = [1, 1]} : vector<4x256xf32> to vector<4x255xf32>
    %148 = tpu.concatenate %146, %147 in 1 : vector<4x1xf32>, vector<4x255xf32> -> vector<4x256xf32>
    %c3_92 = arith.constant 3 : index
    %c0_93 = arith.constant 0 : index
    %c0_94 = arith.constant 0 : index
    %149 = vector.load %arg3[%c3_92, %c0_93, %c0_94] : memref<9x1x256xf32, #tpu.memory_space<vmem>>, vector<1x1x256xf32>
    %150 = vector.shape_cast %149 : vector<1x1x256xf32> to vector<1x256xf32>
    %151 = vector.broadcast %150 : vector<1x256xf32> to vector<4x256xf32>
    %152 = arith.mulf %148, %151 : vector<4x256xf32>
    %153 = arith.addf %142, %152 : vector<4x256xf32>
    %c4_95 = arith.constant 4 : index
    %c0_96 = arith.constant 0 : index
    %c0_97 = arith.constant 0 : index
    %154 = vector.load %arg5[%c4_95, %c0_96, %c0_97] : memref<9x4x8xbf16, #tpu.memory_space<vmem>>, vector<1x4x8xbf16>
    %155 = vector.shape_cast %154 : vector<1x4x8xbf16> to vector<4x8xbf16>
    %cst_98 = arith.constant dense<0.000000e+00> : vector<4x256xf32>
    %156 = tpu.matmul %155, %108, %cst_98 {dimension_numbers = #tpu.dot_dimension_numbers<[1], [0], [0], [1], [0, 0, 1, 1], [], []>} : vector<4x8xbf16>, vector<8x256xbf16>, vector<4x256xf32> -> vector<4x256xf32>
    %157 = arith.addf %153, %156 : vector<4x256xf32>
    %c5_99 = arith.constant 5 : index
    %c0_100 = arith.constant 0 : index
    %c0_101 = arith.constant 0 : index
    %158 = vector.load %arg5[%c5_99, %c0_100, %c0_101] : memref<9x4x8xbf16, #tpu.memory_space<vmem>>, vector<1x4x8xbf16>
    %159 = vector.shape_cast %158 : vector<1x4x8xbf16> to vector<4x8xbf16>
    %cst_102 = arith.constant dense<0.000000e+00> : vector<4x256xf32>
    %160 = tpu.matmul %159, %108, %cst_102 {dimension_numbers = #tpu.dot_dimension_numbers<[1], [0], [0], [1], [0, 0, 1, 1], [], []>} : vector<4x8xbf16>, vector<8x256xbf16>, vector<4x256xf32> -> vector<4x256xf32>
    %161 = vector.extract_strided_slice %160 {offsets = [0, 1], sizes = [4, 255], strides = [1, 1]} : vector<4x256xf32> to vector<4x255xf32>
    %162 = vector.extract_strided_slice %160 {offsets = [0, 0], sizes = [4, 1], strides = [1, 1]} : vector<4x256xf32> to vector<4x1xf32>
    %163 = tpu.concatenate %161, %162 in 1 : vector<4x255xf32>, vector<4x1xf32> -> vector<4x256xf32>
    %c5_103 = arith.constant 5 : index
    %c0_104 = arith.constant 0 : index
    %c0_105 = arith.constant 0 : index
    %164 = vector.load %arg3[%c5_103, %c0_104, %c0_105] : memref<9x1x256xf32, #tpu.memory_space<vmem>>, vector<1x1x256xf32>
    %165 = vector.shape_cast %164 : vector<1x1x256xf32> to vector<1x256xf32>
    %166 = vector.broadcast %165 : vector<1x256xf32> to vector<4x256xf32>
    %167 = arith.mulf %163, %166 : vector<4x256xf32>
    %168 = arith.addf %157, %167 : vector<4x256xf32>
    %c6_106 = arith.constant 6 : index
    %c0_107 = arith.constant 0 : index
    %c0_108 = arith.constant 0 : index
    %169 = vector.load %arg5[%c6_106, %c0_107, %c0_108] : memref<9x4x8xbf16, #tpu.memory_space<vmem>>, vector<1x4x8xbf16>
    %170 = vector.shape_cast %169 : vector<1x4x8xbf16> to vector<4x8xbf16>
    %cst_109 = arith.constant dense<0.000000e+00> : vector<4x256xf32>
    %171 = tpu.matmul %170, %108, %cst_109 {dimension_numbers = #tpu.dot_dimension_numbers<[1], [0], [0], [1], [0, 0, 1, 1], [], []>} : vector<4x8xbf16>, vector<8x256xbf16>, vector<4x256xf32> -> vector<4x256xf32>
    %172 = vector.extract_strided_slice %171 {offsets = [0, 15], sizes = [4, 241], strides = [1, 1]} : vector<4x256xf32> to vector<4x241xf32>
    %173 = vector.extract_strided_slice %171 {offsets = [0, 0], sizes = [4, 15], strides = [1, 1]} : vector<4x256xf32> to vector<4x15xf32>
    %174 = tpu.concatenate %172, %173 in 1 : vector<4x241xf32>, vector<4x15xf32> -> vector<4x256xf32>
    %c6_110 = arith.constant 6 : index
    %c0_111 = arith.constant 0 : index
    %c0_112 = arith.constant 0 : index
    %175 = vector.load %arg3[%c6_110, %c0_111, %c0_112] : memref<9x1x256xf32, #tpu.memory_space<vmem>>, vector<1x1x256xf32>
    %176 = vector.shape_cast %175 : vector<1x1x256xf32> to vector<1x256xf32>
    %177 = vector.broadcast %176 : vector<1x256xf32> to vector<4x256xf32>
    %178 = arith.mulf %174, %177 : vector<4x256xf32>
    %179 = arith.addf %168, %178 : vector<4x256xf32>
    %c7_113 = arith.constant 7 : index
    %c0_114 = arith.constant 0 : index
    %c0_115 = arith.constant 0 : index
    %180 = vector.load %arg5[%c7_113, %c0_114, %c0_115] : memref<9x4x8xbf16, #tpu.memory_space<vmem>>, vector<1x4x8xbf16>
    %181 = vector.shape_cast %180 : vector<1x4x8xbf16> to vector<4x8xbf16>
    %cst_116 = arith.constant dense<0.000000e+00> : vector<4x256xf32>
    %182 = tpu.matmul %181, %108, %cst_116 {dimension_numbers = #tpu.dot_dimension_numbers<[1], [0], [0], [1], [0, 0, 1, 1], [], []>} : vector<4x8xbf16>, vector<8x256xbf16>, vector<4x256xf32> -> vector<4x256xf32>
    %183 = vector.extract_strided_slice %182 {offsets = [0, 16], sizes = [4, 240], strides = [1, 1]} : vector<4x256xf32> to vector<4x240xf32>
    %184 = vector.extract_strided_slice %182 {offsets = [0, 0], sizes = [4, 16], strides = [1, 1]} : vector<4x256xf32> to vector<4x16xf32>
    %185 = tpu.concatenate %183, %184 in 1 : vector<4x240xf32>, vector<4x16xf32> -> vector<4x256xf32>
    %c7_117 = arith.constant 7 : index
    %c0_118 = arith.constant 0 : index
    %c0_119 = arith.constant 0 : index
    %186 = vector.load %arg3[%c7_117, %c0_118, %c0_119] : memref<9x1x256xf32, #tpu.memory_space<vmem>>, vector<1x1x256xf32>
    %187 = vector.shape_cast %186 : vector<1x1x256xf32> to vector<1x256xf32>
    %188 = vector.broadcast %187 : vector<1x256xf32> to vector<4x256xf32>
    %189 = arith.mulf %185, %188 : vector<4x256xf32>
    %190 = arith.addf %179, %189 : vector<4x256xf32>
    %c8_120 = arith.constant 8 : index
    %c0_121 = arith.constant 0 : index
    %c0_122 = arith.constant 0 : index
    %191 = vector.load %arg5[%c8_120, %c0_121, %c0_122] : memref<9x4x8xbf16, #tpu.memory_space<vmem>>, vector<1x4x8xbf16>
    %192 = vector.shape_cast %191 : vector<1x4x8xbf16> to vector<4x8xbf16>
    %cst_123 = arith.constant dense<0.000000e+00> : vector<4x256xf32>
    %193 = tpu.matmul %192, %108, %cst_123 {dimension_numbers = #tpu.dot_dimension_numbers<[1], [0], [0], [1], [0, 0, 1, 1], [], []>} : vector<4x8xbf16>, vector<8x256xbf16>, vector<4x256xf32> -> vector<4x256xf32>
    %194 = vector.extract_strided_slice %193 {offsets = [0, 17], sizes = [4, 239], strides = [1, 1]} : vector<4x256xf32> to vector<4x239xf32>
    %195 = vector.extract_strided_slice %193 {offsets = [0, 0], sizes = [4, 17], strides = [1, 1]} : vector<4x256xf32> to vector<4x17xf32>
    %196 = tpu.concatenate %194, %195 in 1 : vector<4x239xf32>, vector<4x17xf32> -> vector<4x256xf32>
    %c8_124 = arith.constant 8 : index
    %c0_125 = arith.constant 0 : index
    %c0_126 = arith.constant 0 : index
    %197 = vector.load %arg3[%c8_124, %c0_125, %c0_126] : memref<9x1x256xf32, #tpu.memory_space<vmem>>, vector<1x1x256xf32>
    %198 = vector.shape_cast %197 : vector<1x1x256xf32> to vector<1x256xf32>
    %199 = vector.broadcast %198 : vector<1x256xf32> to vector<4x256xf32>
    %200 = arith.mulf %196, %199 : vector<4x256xf32>
    %201 = arith.addf %190, %200 : vector<4x256xf32>
    %c0_127 = arith.constant 0 : index
    %c0_128 = arith.constant 0 : index
    %202 = vector.load %arg10[%c0_127, %c0_128] : memref<4x1xf32, #tpu.memory_space<vmem>>, vector<4x1xf32>
    %203 = vector.broadcast %202 : vector<4x1xf32> to vector<4x256xf32>
    %204 = arith.addf %201, %203 : vector<4x256xf32>
    %cst_129 = arith.constant 0.000000e+00 : f32
    %205 = vector.broadcast %cst_129 : f32 to vector<4x256xf32>
    %206 = arith.cmpf oge, %204, %205 : vector<4x256xf32>
    %cst_130 = arith.constant 2.000000e-01 : f32
    %207 = vector.broadcast %cst_130 : f32 to vector<4x256xf32>
    %208 = arith.mulf %207, %204 : vector<4x256xf32>
    %209 = arith.select %206, %204, %208 : vector<4x256xi1>, vector<4x256xf32>
    %c8_131 = arith.constant 8 : index
    %c0_132 = arith.constant 0 : index
    %210 = vector.load %arg15[%c8_131, %c0_132] : memref<20x256xf32, #tpu.memory_space<vmem>>, vector<4x256xf32>
    tpu.vector_store %arg15[%c8_131, %c0_132], %209 {strides = array<i32>} : memref<20x256xf32, #tpu.memory_space<vmem>>, vector<4x256xf32>,
    %c0_133 = arith.constant 0 : index
    %c0_134 = arith.constant 0 : index
    %211 = vector.load %arg15[%c0_133, %c0_134] : memref<20x256xf32, #tpu.memory_space<vmem>>, vector<12x256xf32>
    %212 = arith.truncf %211 : vector<12x256xf32> to vector<12x256xbf16>
    %cst_135 = arith.constant 0.000000e+00 : f32
    %213 = vector.broadcast %cst_135 : f32 to vector<4x256xf32>
    %c0_136 = arith.constant 0 : index
    %c0_137 = arith.constant 0 : index
    %c0_138 = arith.constant 0 : index
    %214 = vector.load %arg6[%c0_136, %c0_137, %c0_138] : memref<9x4x12xbf16, #tpu.memory_space<vmem>>, vector<1x4x12xbf16>
    %215 = vector.shape_cast %214 : vector<1x4x12xbf16> to vector<4x12xbf16>
    %cst_139 = arith.constant dense<0.000000e+00> : vector<4x256xf32>
    %216 = tpu.matmul %215, %212, %cst_139 {dimension_numbers = #tpu.dot_dimension_numbers<[1], [0], [0], [1], [0, 0, 1, 1], [], []>} : vector<4x12xbf16>, vector<12x256xbf16>, vector<4x256xf32> -> vector<4x256xf32>
    %217 = vector.extract_strided_slice %216 {offsets = [0, 239], sizes = [4, 17], strides = [1, 1]} : vector<4x256xf32> to vector<4x17xf32>
    %218 = vector.extract_strided_slice %216 {offsets = [0, 0], sizes = [4, 239], strides = [1, 1]} : vector<4x256xf32> to vector<4x239xf32>
    %219 = tpu.concatenate %217, %218 in 1 : vector<4x17xf32>, vector<4x239xf32> -> vector<4x256xf32>
    %c0_140 = arith.constant 0 : index
    %c0_141 = arith.constant 0 : index
    %c0_142 = arith.constant 0 : index
    %220 = vector.load %arg3[%c0_140, %c0_141, %c0_142] : memref<9x1x256xf32, #tpu.memory_space<vmem>>, vector<1x1x256xf32>
    %221 = vector.shape_cast %220 : vector<1x1x256xf32> to vector<1x256xf32>
    %222 = vector.broadcast %221 : vector<1x256xf32> to vector<4x256xf32>
    %223 = arith.mulf %219, %222 : vector<4x256xf32>
    %224 = arith.addf %213, %223 : vector<4x256xf32>
    %c1_143 = arith.constant 1 : index
    %c0_144 = arith.constant 0 : index
    %c0_145 = arith.constant 0 : index
    %225 = vector.load %arg6[%c1_143, %c0_144, %c0_145] : memref<9x4x12xbf16, #tpu.memory_space<vmem>>, vector<1x4x12xbf16>
    %226 = vector.shape_cast %225 : vector<1x4x12xbf16> to vector<4x12xbf16>
    %cst_146 = arith.constant dense<0.000000e+00> : vector<4x256xf32>
    %227 = tpu.matmul %226, %212, %cst_146 {dimension_numbers = #tpu.dot_dimension_numbers<[1], [0], [0], [1], [0, 0, 1, 1], [], []>} : vector<4x12xbf16>, vector<12x256xbf16>, vector<4x256xf32> -> vector<4x256xf32>
    %228 = vector.extract_strided_slice %227 {offsets = [0, 240], sizes = [4, 16], strides = [1, 1]} : vector<4x256xf32> to vector<4x16xf32>
    %229 = vector.extract_strided_slice %227 {offsets = [0, 0], sizes = [4, 240], strides = [1, 1]} : vector<4x256xf32> to vector<4x240xf32>
    %230 = tpu.concatenate %228, %229 in 1 : vector<4x16xf32>, vector<4x240xf32> -> vector<4x256xf32>
    %c1_147 = arith.constant 1 : index
    %c0_148 = arith.constant 0 : index
    %c0_149 = arith.constant 0 : index
    %231 = vector.load %arg3[%c1_147, %c0_148, %c0_149] : memref<9x1x256xf32, #tpu.memory_space<vmem>>, vector<1x1x256xf32>
    %232 = vector.shape_cast %231 : vector<1x1x256xf32> to vector<1x256xf32>
    %233 = vector.broadcast %232 : vector<1x256xf32> to vector<4x256xf32>
    %234 = arith.mulf %230, %233 : vector<4x256xf32>
    %235 = arith.addf %224, %234 : vector<4x256xf32>
    %c2_150 = arith.constant 2 : index
    %c0_151 = arith.constant 0 : index
    %c0_152 = arith.constant 0 : index
    %236 = vector.load %arg6[%c2_150, %c0_151, %c0_152] : memref<9x4x12xbf16, #tpu.memory_space<vmem>>, vector<1x4x12xbf16>
    %237 = vector.shape_cast %236 : vector<1x4x12xbf16> to vector<4x12xbf16>
    %cst_153 = arith.constant dense<0.000000e+00> : vector<4x256xf32>
    %238 = tpu.matmul %237, %212, %cst_153 {dimension_numbers = #tpu.dot_dimension_numbers<[1], [0], [0], [1], [0, 0, 1, 1], [], []>} : vector<4x12xbf16>, vector<12x256xbf16>, vector<4x256xf32> -> vector<4x256xf32>
    %239 = vector.extract_strided_slice %238 {offsets = [0, 241], sizes = [4, 15], strides = [1, 1]} : vector<4x256xf32> to vector<4x15xf32>
    %240 = vector.extract_strided_slice %238 {offsets = [0, 0], sizes = [4, 241], strides = [1, 1]} : vector<4x256xf32> to vector<4x241xf32>
    %241 = tpu.concatenate %239, %240 in 1 : vector<4x15xf32>, vector<4x241xf32> -> vector<4x256xf32>
    %c2_154 = arith.constant 2 : index
    %c0_155 = arith.constant 0 : index
    %c0_156 = arith.constant 0 : index
    %242 = vector.load %arg3[%c2_154, %c0_155, %c0_156] : memref<9x1x256xf32, #tpu.memory_space<vmem>>, vector<1x1x256xf32>
    %243 = vector.shape_cast %242 : vector<1x1x256xf32> to vector<1x256xf32>
    %244 = vector.broadcast %243 : vector<1x256xf32> to vector<4x256xf32>
    %245 = arith.mulf %241, %244 : vector<4x256xf32>
    %246 = arith.addf %235, %245 : vector<4x256xf32>
    %c3_157 = arith.constant 3 : index
    %c0_158 = arith.constant 0 : index
    %c0_159 = arith.constant 0 : index
    %247 = vector.load %arg6[%c3_157, %c0_158, %c0_159] : memref<9x4x12xbf16, #tpu.memory_space<vmem>>, vector<1x4x12xbf16>
    %248 = vector.shape_cast %247 : vector<1x4x12xbf16> to vector<4x12xbf16>
    %cst_160 = arith.constant dense<0.000000e+00> : vector<4x256xf32>
    %249 = tpu.matmul %248, %212, %cst_160 {dimension_numbers = #tpu.dot_dimension_numbers<[1], [0], [0], [1], [0, 0, 1, 1], [], []>} : vector<4x12xbf16>, vector<12x256xbf16>, vector<4x256xf32> -> vector<4x256xf32>
    %250 = vector.extract_strided_slice %249 {offsets = [0, 255], sizes = [4, 1], strides = [1, 1]} : vector<4x256xf32> to vector<4x1xf32>
    %251 = vector.extract_strided_slice %249 {offsets = [0, 0], sizes = [4, 255], strides = [1, 1]} : vector<4x256xf32> to vector<4x255xf32>
    %252 = tpu.concatenate %250, %251 in 1 : vector<4x1xf32>, vector<4x255xf32> -> vector<4x256xf32>
    %c3_161 = arith.constant 3 : index
    %c0_162 = arith.constant 0 : index
    %c0_163 = arith.constant 0 : index
    %253 = vector.load %arg3[%c3_161, %c0_162, %c0_163] : memref<9x1x256xf32, #tpu.memory_space<vmem>>, vector<1x1x256xf32>
    %254 = vector.shape_cast %253 : vector<1x1x256xf32> to vector<1x256xf32>
    %255 = vector.broadcast %254 : vector<1x256xf32> to vector<4x256xf32>
    %256 = arith.mulf %252, %255 : vector<4x256xf32>
    %257 = arith.addf %246, %256 : vector<4x256xf32>
    %c4_164 = arith.constant 4 : index
    %c0_165 = arith.constant 0 : index
    %c0_166 = arith.constant 0 : index
    %258 = vector.load %arg6[%c4_164, %c0_165, %c0_166] : memref<9x4x12xbf16, #tpu.memory_space<vmem>>, vector<1x4x12xbf16>
    %259 = vector.shape_cast %258 : vector<1x4x12xbf16> to vector<4x12xbf16>
    %cst_167 = arith.constant dense<0.000000e+00> : vector<4x256xf32>
    %260 = tpu.matmul %259, %212, %cst_167 {dimension_numbers = #tpu.dot_dimension_numbers<[1], [0], [0], [1], [0, 0, 1, 1], [], []>} : vector<4x12xbf16>, vector<12x256xbf16>, vector<4x256xf32> -> vector<4x256xf32>
    %261 = arith.addf %257, %260 : vector<4x256xf32>
    %c5_168 = arith.constant 5 : index
    %c0_169 = arith.constant 0 : index
    %c0_170 = arith.constant 0 : index
    %262 = vector.load %arg6[%c5_168, %c0_169, %c0_170] : memref<9x4x12xbf16, #tpu.memory_space<vmem>>, vector<1x4x12xbf16>
    %263 = vector.shape_cast %262 : vector<1x4x12xbf16> to vector<4x12xbf16>
    %cst_171 = arith.constant dense<0.000000e+00> : vector<4x256xf32>
    %264 = tpu.matmul %263, %212, %cst_171 {dimension_numbers = #tpu.dot_dimension_numbers<[1], [0], [0], [1], [0, 0, 1, 1], [], []>} : vector<4x12xbf16>, vector<12x256xbf16>, vector<4x256xf32> -> vector<4x256xf32>
    %265 = vector.extract_strided_slice %264 {offsets = [0, 1], sizes = [4, 255], strides = [1, 1]} : vector<4x256xf32> to vector<4x255xf32>
    %266 = vector.extract_strided_slice %264 {offsets = [0, 0], sizes = [4, 1], strides = [1, 1]} : vector<4x256xf32> to vector<4x1xf32>
    %267 = tpu.concatenate %265, %266 in 1 : vector<4x255xf32>, vector<4x1xf32> -> vector<4x256xf32>
    %c5_172 = arith.constant 5 : index
    %c0_173 = arith.constant 0 : index
    %c0_174 = arith.constant 0 : index
    %268 = vector.load %arg3[%c5_172, %c0_173, %c0_174] : memref<9x1x256xf32, #tpu.memory_space<vmem>>, vector<1x1x256xf32>
    %269 = vector.shape_cast %268 : vector<1x1x256xf32> to vector<1x256xf32>
    %270 = vector.broadcast %269 : vector<1x256xf32> to vector<4x256xf32>
    %271 = arith.mulf %267, %270 : vector<4x256xf32>
    %272 = arith.addf %261, %271 : vector<4x256xf32>
    %c6_175 = arith.constant 6 : index
    %c0_176 = arith.constant 0 : index
    %c0_177 = arith.constant 0 : index
    %273 = vector.load %arg6[%c6_175, %c0_176, %c0_177] : memref<9x4x12xbf16, #tpu.memory_space<vmem>>, vector<1x4x12xbf16>
    %274 = vector.shape_cast %273 : vector<1x4x12xbf16> to vector<4x12xbf16>
    %cst_178 = arith.constant dense<0.000000e+00> : vector<4x256xf32>
    %275 = tpu.matmul %274, %212, %cst_178 {dimension_numbers = #tpu.dot_dimension_numbers<[1], [0], [0], [1], [0, 0, 1, 1], [], []>} : vector<4x12xbf16>, vector<12x256xbf16>, vector<4x256xf32> -> vector<4x256xf32>
    %276 = vector.extract_strided_slice %275 {offsets = [0, 15], sizes = [4, 241], strides = [1, 1]} : vector<4x256xf32> to vector<4x241xf32>
    %277 = vector.extract_strided_slice %275 {offsets = [0, 0], sizes = [4, 15], strides = [1, 1]} : vector<4x256xf32> to vector<4x15xf32>
    %278 = tpu.concatenate %276, %277 in 1 : vector<4x241xf32>, vector<4x15xf32> -> vector<4x256xf32>
    %c6_179 = arith.constant 6 : index
    %c0_180 = arith.constant 0 : index
    %c0_181 = arith.constant 0 : index
    %279 = vector.load %arg3[%c6_179, %c0_180, %c0_181] : memref<9x1x256xf32, #tpu.memory_space<vmem>>, vector<1x1x256xf32>
    %280 = vector.shape_cast %279 : vector<1x1x256xf32> to vector<1x256xf32>
    %281 = vector.broadcast %280 : vector<1x256xf32> to vector<4x256xf32>
    %282 = arith.mulf %278, %281 : vector<4x256xf32>
    %283 = arith.addf %272, %282 : vector<4x256xf32>
    %c7_182 = arith.constant 7 : index
    %c0_183 = arith.constant 0 : index
    %c0_184 = arith.constant 0 : index
    %284 = vector.load %arg6[%c7_182, %c0_183, %c0_184] : memref<9x4x12xbf16, #tpu.memory_space<vmem>>, vector<1x4x12xbf16>
    %285 = vector.shape_cast %284 : vector<1x4x12xbf16> to vector<4x12xbf16>
    %cst_185 = arith.constant dense<0.000000e+00> : vector<4x256xf32>
    %286 = tpu.matmul %285, %212, %cst_185 {dimension_numbers = #tpu.dot_dimension_numbers<[1], [0], [0], [1], [0, 0, 1, 1], [], []>} : vector<4x12xbf16>, vector<12x256xbf16>, vector<4x256xf32> -> vector<4x256xf32>
    %287 = vector.extract_strided_slice %286 {offsets = [0, 16], sizes = [4, 240], strides = [1, 1]} : vector<4x256xf32> to vector<4x240xf32>
    %288 = vector.extract_strided_slice %286 {offsets = [0, 0], sizes = [4, 16], strides = [1, 1]} : vector<4x256xf32> to vector<4x16xf32>
    %289 = tpu.concatenate %287, %288 in 1 : vector<4x240xf32>, vector<4x16xf32> -> vector<4x256xf32>
    %c7_186 = arith.constant 7 : index
    %c0_187 = arith.constant 0 : index
    %c0_188 = arith.constant 0 : index
    %290 = vector.load %arg3[%c7_186, %c0_187, %c0_188] : memref<9x1x256xf32, #tpu.memory_space<vmem>>, vector<1x1x256xf32>
    %291 = vector.shape_cast %290 : vector<1x1x256xf32> to vector<1x256xf32>
    %292 = vector.broadcast %291 : vector<1x256xf32> to vector<4x256xf32>
    %293 = arith.mulf %289, %292 : vector<4x256xf32>
    %294 = arith.addf %283, %293 : vector<4x256xf32>
    %c8_189 = arith.constant 8 : index
    %c0_190 = arith.constant 0 : index
    %c0_191 = arith.constant 0 : index
    %295 = vector.load %arg6[%c8_189, %c0_190, %c0_191] : memref<9x4x12xbf16, #tpu.memory_space<vmem>>, vector<1x4x12xbf16>
    %296 = vector.shape_cast %295 : vector<1x4x12xbf16> to vector<4x12xbf16>
    %cst_192 = arith.constant dense<0.000000e+00> : vector<4x256xf32>
    %297 = tpu.matmul %296, %212, %cst_192 {dimension_numbers = #tpu.dot_dimension_numbers<[1], [0], [0], [1], [0, 0, 1, 1], [], []>} : vector<4x12xbf16>, vector<12x256xbf16>, vector<4x256xf32> -> vector<4x256xf32>
    %298 = vector.extract_strided_slice %297 {offsets = [0, 17], sizes = [4, 239], strides = [1, 1]} : vector<4x256xf32> to vector<4x239xf32>
    %299 = vector.extract_strided_slice %297 {offsets = [0, 0], sizes = [4, 17], strides = [1, 1]} : vector<4x256xf32> to vector<4x17xf32>
    %300 = tpu.concatenate %298, %299 in 1 : vector<4x239xf32>, vector<4x17xf32> -> vector<4x256xf32>
    %c8_193 = arith.constant 8 : index
    %c0_194 = arith.constant 0 : index
    %c0_195 = arith.constant 0 : index
    %301 = vector.load %arg3[%c8_193, %c0_194, %c0_195] : memref<9x1x256xf32, #tpu.memory_space<vmem>>, vector<1x1x256xf32>
    %302 = vector.shape_cast %301 : vector<1x1x256xf32> to vector<1x256xf32>
    %303 = vector.broadcast %302 : vector<1x256xf32> to vector<4x256xf32>
    %304 = arith.mulf %300, %303 : vector<4x256xf32>
    %305 = arith.addf %294, %304 : vector<4x256xf32>
    %c0_196 = arith.constant 0 : index
    %c0_197 = arith.constant 0 : index
    %306 = vector.load %arg11[%c0_196, %c0_197] : memref<4x1xf32, #tpu.memory_space<vmem>>, vector<4x1xf32>
    %307 = vector.broadcast %306 : vector<4x1xf32> to vector<4x256xf32>
    %308 = arith.addf %305, %307 : vector<4x256xf32>
    %cst_198 = arith.constant 0.000000e+00 : f32
    %309 = vector.broadcast %cst_198 : f32 to vector<4x256xf32>
    %310 = arith.cmpf oge, %308, %309 : vector<4x256xf32>
    %cst_199 = arith.constant 2.000000e-01 : f32
    %311 = vector.broadcast %cst_199 : f32 to vector<4x256xf32>
    %312 = arith.mulf %311, %308 : vector<4x256xf32>
    %313 = arith.select %310, %308, %312 : vector<4x256xi1>, vector<4x256xf32>
    %c12 = arith.constant 12 : index
    %c0_200 = arith.constant 0 : index
    %314 = vector.load %arg15[%c12, %c0_200] : memref<20x256xf32, #tpu.memory_space<vmem>>, vector<4x256xf32>
    tpu.vector_store %arg15[%c12, %c0_200], %313 {strides = array<i32>} : memref<20x256xf32, #tpu.memory_space<vmem>>, vector<4x256xf32>,
    %c0_201 = arith.constant 0 : index
    %c0_202 = arith.constant 0 : index
    %315 = vector.load %arg15[%c0_201, %c0_202] : memref<20x256xf32, #tpu.memory_space<vmem>>, vector<16x256xf32>
    %316 = arith.truncf %315 : vector<16x256xf32> to vector<16x256xbf16>
    %cst_203 = arith.constant 0.000000e+00 : f32
    %317 = vector.broadcast %cst_203 : f32 to vector<4x256xf32>
    %c0_204 = arith.constant 0 : index
    %c0_205 = arith.constant 0 : index
    %c0_206 = arith.constant 0 : index
    %318 = vector.load %arg7[%c0_204, %c0_205, %c0_206] : memref<9x4x16xbf16, #tpu.memory_space<vmem>>, vector<1x4x16xbf16>
    %319 = vector.shape_cast %318 : vector<1x4x16xbf16> to vector<4x16xbf16>
    %cst_207 = arith.constant dense<0.000000e+00> : vector<4x256xf32>
    %320 = tpu.matmul %319, %316, %cst_207 {dimension_numbers = #tpu.dot_dimension_numbers<[1], [0], [0], [1], [0, 0, 1, 1], [], []>} : vector<4x16xbf16>, vector<16x256xbf16>, vector<4x256xf32> -> vector<4x256xf32>
    %321 = vector.extract_strided_slice %320 {offsets = [0, 239], sizes = [4, 17], strides = [1, 1]} : vector<4x256xf32> to vector<4x17xf32>
    %322 = vector.extract_strided_slice %320 {offsets = [0, 0], sizes = [4, 239], strides = [1, 1]} : vector<4x256xf32> to vector<4x239xf32>
    %323 = tpu.concatenate %321, %322 in 1 : vector<4x17xf32>, vector<4x239xf32> -> vector<4x256xf32>
    %c0_208 = arith.constant 0 : index
    %c0_209 = arith.constant 0 : index
    %c0_210 = arith.constant 0 : index
    %324 = vector.load %arg3[%c0_208, %c0_209, %c0_210] : memref<9x1x256xf32, #tpu.memory_space<vmem>>, vector<1x1x256xf32>
    %325 = vector.shape_cast %324 : vector<1x1x256xf32> to vector<1x256xf32>
    %326 = vector.broadcast %325 : vector<1x256xf32> to vector<4x256xf32>
    %327 = arith.mulf %323, %326 : vector<4x256xf32>
    %328 = arith.addf %317, %327 : vector<4x256xf32>
    %c1_211 = arith.constant 1 : index
    %c0_212 = arith.constant 0 : index
    %c0_213 = arith.constant 0 : index
    %329 = vector.load %arg7[%c1_211, %c0_212, %c0_213] : memref<9x4x16xbf16, #tpu.memory_space<vmem>>, vector<1x4x16xbf16>
    %330 = vector.shape_cast %329 : vector<1x4x16xbf16> to vector<4x16xbf16>
    %cst_214 = arith.constant dense<0.000000e+00> : vector<4x256xf32>
    %331 = tpu.matmul %330, %316, %cst_214 {dimension_numbers = #tpu.dot_dimension_numbers<[1], [0], [0], [1], [0, 0, 1, 1], [], []>} : vector<4x16xbf16>, vector<16x256xbf16>, vector<4x256xf32> -> vector<4x256xf32>
    %332 = vector.extract_strided_slice %331 {offsets = [0, 240], sizes = [4, 16], strides = [1, 1]} : vector<4x256xf32> to vector<4x16xf32>
    %333 = vector.extract_strided_slice %331 {offsets = [0, 0], sizes = [4, 240], strides = [1, 1]} : vector<4x256xf32> to vector<4x240xf32>
    %334 = tpu.concatenate %332, %333 in 1 : vector<4x16xf32>, vector<4x240xf32> -> vector<4x256xf32>
    %c1_215 = arith.constant 1 : index
    %c0_216 = arith.constant 0 : index
    %c0_217 = arith.constant 0 : index
    %335 = vector.load %arg3[%c1_215, %c0_216, %c0_217] : memref<9x1x256xf32, #tpu.memory_space<vmem>>, vector<1x1x256xf32>
    %336 = vector.shape_cast %335 : vector<1x1x256xf32> to vector<1x256xf32>
    %337 = vector.broadcast %336 : vector<1x256xf32> to vector<4x256xf32>
    %338 = arith.mulf %334, %337 : vector<4x256xf32>
    %339 = arith.addf %328, %338 : vector<4x256xf32>
    %c2_218 = arith.constant 2 : index
    %c0_219 = arith.constant 0 : index
    %c0_220 = arith.constant 0 : index
    %340 = vector.load %arg7[%c2_218, %c0_219, %c0_220] : memref<9x4x16xbf16, #tpu.memory_space<vmem>>, vector<1x4x16xbf16>
    %341 = vector.shape_cast %340 : vector<1x4x16xbf16> to vector<4x16xbf16>
    %cst_221 = arith.constant dense<0.000000e+00> : vector<4x256xf32>
    %342 = tpu.matmul %341, %316, %cst_221 {dimension_numbers = #tpu.dot_dimension_numbers<[1], [0], [0], [1], [0, 0, 1, 1], [], []>} : vector<4x16xbf16>, vector<16x256xbf16>, vector<4x256xf32> -> vector<4x256xf32>
    %343 = vector.extract_strided_slice %342 {offsets = [0, 241], sizes = [4, 15], strides = [1, 1]} : vector<4x256xf32> to vector<4x15xf32>
    %344 = vector.extract_strided_slice %342 {offsets = [0, 0], sizes = [4, 241], strides = [1, 1]} : vector<4x256xf32> to vector<4x241xf32>
    %345 = tpu.concatenate %343, %344 in 1 : vector<4x15xf32>, vector<4x241xf32> -> vector<4x256xf32>
    %c2_222 = arith.constant 2 : index
    %c0_223 = arith.constant 0 : index
    %c0_224 = arith.constant 0 : index
    %346 = vector.load %arg3[%c2_222, %c0_223, %c0_224] : memref<9x1x256xf32, #tpu.memory_space<vmem>>, vector<1x1x256xf32>
    %347 = vector.shape_cast %346 : vector<1x1x256xf32> to vector<1x256xf32>
    %348 = vector.broadcast %347 : vector<1x256xf32> to vector<4x256xf32>
    %349 = arith.mulf %345, %348 : vector<4x256xf32>
    %350 = arith.addf %339, %349 : vector<4x256xf32>
    %c3_225 = arith.constant 3 : index
    %c0_226 = arith.constant 0 : index
    %c0_227 = arith.constant 0 : index
    %351 = vector.load %arg7[%c3_225, %c0_226, %c0_227] : memref<9x4x16xbf16, #tpu.memory_space<vmem>>, vector<1x4x16xbf16>
    %352 = vector.shape_cast %351 : vector<1x4x16xbf16> to vector<4x16xbf16>
    %cst_228 = arith.constant dense<0.000000e+00> : vector<4x256xf32>
    %353 = tpu.matmul %352, %316, %cst_228 {dimension_numbers = #tpu.dot_dimension_numbers<[1], [0], [0], [1], [0, 0, 1, 1], [], []>} : vector<4x16xbf16>, vector<16x256xbf16>, vector<4x256xf32> -> vector<4x256xf32>
    %354 = vector.extract_strided_slice %353 {offsets = [0, 255], sizes = [4, 1], strides = [1, 1]} : vector<4x256xf32> to vector<4x1xf32>
    %355 = vector.extract_strided_slice %353 {offsets = [0, 0], sizes = [4, 255], strides = [1, 1]} : vector<4x256xf32> to vector<4x255xf32>
    %356 = tpu.concatenate %354, %355 in 1 : vector<4x1xf32>, vector<4x255xf32> -> vector<4x256xf32>
    %c3_229 = arith.constant 3 : index
    %c0_230 = arith.constant 0 : index
    %c0_231 = arith.constant 0 : index
    %357 = vector.load %arg3[%c3_229, %c0_230, %c0_231] : memref<9x1x256xf32, #tpu.memory_space<vmem>>, vector<1x1x256xf32>
    %358 = vector.shape_cast %357 : vector<1x1x256xf32> to vector<1x256xf32>
    %359 = vector.broadcast %358 : vector<1x256xf32> to vector<4x256xf32>
    %360 = arith.mulf %356, %359 : vector<4x256xf32>
    %361 = arith.addf %350, %360 : vector<4x256xf32>
    %c4_232 = arith.constant 4 : index
    %c0_233 = arith.constant 0 : index
    %c0_234 = arith.constant 0 : index
    %362 = vector.load %arg7[%c4_232, %c0_233, %c0_234] : memref<9x4x16xbf16, #tpu.memory_space<vmem>>, vector<1x4x16xbf16>
    %363 = vector.shape_cast %362 : vector<1x4x16xbf16> to vector<4x16xbf16>
    %cst_235 = arith.constant dense<0.000000e+00> : vector<4x256xf32>
    %364 = tpu.matmul %363, %316, %cst_235 {dimension_numbers = #tpu.dot_dimension_numbers<[1], [0], [0], [1], [0, 0, 1, 1], [], []>} : vector<4x16xbf16>, vector<16x256xbf16>, vector<4x256xf32> -> vector<4x256xf32>
    %365 = arith.addf %361, %364 : vector<4x256xf32>
    %c5_236 = arith.constant 5 : index
    %c0_237 = arith.constant 0 : index
    %c0_238 = arith.constant 0 : index
    %366 = vector.load %arg7[%c5_236, %c0_237, %c0_238] : memref<9x4x16xbf16, #tpu.memory_space<vmem>>, vector<1x4x16xbf16>
    %367 = vector.shape_cast %366 : vector<1x4x16xbf16> to vector<4x16xbf16>
    %cst_239 = arith.constant dense<0.000000e+00> : vector<4x256xf32>
    %368 = tpu.matmul %367, %316, %cst_239 {dimension_numbers = #tpu.dot_dimension_numbers<[1], [0], [0], [1], [0, 0, 1, 1], [], []>} : vector<4x16xbf16>, vector<16x256xbf16>, vector<4x256xf32> -> vector<4x256xf32>
    %369 = vector.extract_strided_slice %368 {offsets = [0, 1], sizes = [4, 255], strides = [1, 1]} : vector<4x256xf32> to vector<4x255xf32>
    %370 = vector.extract_strided_slice %368 {offsets = [0, 0], sizes = [4, 1], strides = [1, 1]} : vector<4x256xf32> to vector<4x1xf32>
    %371 = tpu.concatenate %369, %370 in 1 : vector<4x255xf32>, vector<4x1xf32> -> vector<4x256xf32>
    %c5_240 = arith.constant 5 : index
    %c0_241 = arith.constant 0 : index
    %c0_242 = arith.constant 0 : index
    %372 = vector.load %arg3[%c5_240, %c0_241, %c0_242] : memref<9x1x256xf32, #tpu.memory_space<vmem>>, vector<1x1x256xf32>
    %373 = vector.shape_cast %372 : vector<1x1x256xf32> to vector<1x256xf32>
    %374 = vector.broadcast %373 : vector<1x256xf32> to vector<4x256xf32>
    %375 = arith.mulf %371, %374 : vector<4x256xf32>
    %376 = arith.addf %365, %375 : vector<4x256xf32>
    %c6_243 = arith.constant 6 : index
    %c0_244 = arith.constant 0 : index
    %c0_245 = arith.constant 0 : index
    %377 = vector.load %arg7[%c6_243, %c0_244, %c0_245] : memref<9x4x16xbf16, #tpu.memory_space<vmem>>, vector<1x4x16xbf16>
    %378 = vector.shape_cast %377 : vector<1x4x16xbf16> to vector<4x16xbf16>
    %cst_246 = arith.constant dense<0.000000e+00> : vector<4x256xf32>
    %379 = tpu.matmul %378, %316, %cst_246 {dimension_numbers = #tpu.dot_dimension_numbers<[1], [0], [0], [1], [0, 0, 1, 1], [], []>} : vector<4x16xbf16>, vector<16x256xbf16>, vector<4x256xf32> -> vector<4x256xf32>
    %380 = vector.extract_strided_slice %379 {offsets = [0, 15], sizes = [4, 241], strides = [1, 1]} : vector<4x256xf32> to vector<4x241xf32>
    %381 = vector.extract_strided_slice %379 {offsets = [0, 0], sizes = [4, 15], strides = [1, 1]} : vector<4x256xf32> to vector<4x15xf32>
    %382 = tpu.concatenate %380, %381 in 1 : vector<4x241xf32>, vector<4x15xf32> -> vector<4x256xf32>
    %c6_247 = arith.constant 6 : index
    %c0_248 = arith.constant 0 : index
    %c0_249 = arith.constant 0 : index
    %383 = vector.load %arg3[%c6_247, %c0_248, %c0_249] : memref<9x1x256xf32, #tpu.memory_space<vmem>>, vector<1x1x256xf32>
    %384 = vector.shape_cast %383 : vector<1x1x256xf32> to vector<1x256xf32>
    %385 = vector.broadcast %384 : vector<1x256xf32> to vector<4x256xf32>
    %386 = arith.mulf %382, %385 : vector<4x256xf32>
    %387 = arith.addf %376, %386 : vector<4x256xf32>
    %c7_250 = arith.constant 7 : index
    %c0_251 = arith.constant 0 : index
    %c0_252 = arith.constant 0 : index
    %388 = vector.load %arg7[%c7_250, %c0_251, %c0_252] : memref<9x4x16xbf16, #tpu.memory_space<vmem>>, vector<1x4x16xbf16>
    %389 = vector.shape_cast %388 : vector<1x4x16xbf16> to vector<4x16xbf16>
    %cst_253 = arith.constant dense<0.000000e+00> : vector<4x256xf32>
    %390 = tpu.matmul %389, %316, %cst_253 {dimension_numbers = #tpu.dot_dimension_numbers<[1], [0], [0], [1], [0, 0, 1, 1], [], []>} : vector<4x16xbf16>, vector<16x256xbf16>, vector<4x256xf32> -> vector<4x256xf32>
    %391 = vector.extract_strided_slice %390 {offsets = [0, 16], sizes = [4, 240], strides = [1, 1]} : vector<4x256xf32> to vector<4x240xf32>
    %392 = vector.extract_strided_slice %390 {offsets = [0, 0], sizes = [4, 16], strides = [1, 1]} : vector<4x256xf32> to vector<4x16xf32>
    %393 = tpu.concatenate %391, %392 in 1 : vector<4x240xf32>, vector<4x16xf32> -> vector<4x256xf32>
    %c7_254 = arith.constant 7 : index
    %c0_255 = arith.constant 0 : index
    %c0_256 = arith.constant 0 : index
    %394 = vector.load %arg3[%c7_254, %c0_255, %c0_256] : memref<9x1x256xf32, #tpu.memory_space<vmem>>, vector<1x1x256xf32>
    %395 = vector.shape_cast %394 : vector<1x1x256xf32> to vector<1x256xf32>
    %396 = vector.broadcast %395 : vector<1x256xf32> to vector<4x256xf32>
    %397 = arith.mulf %393, %396 : vector<4x256xf32>
    %398 = arith.addf %387, %397 : vector<4x256xf32>
    %c8_257 = arith.constant 8 : index
    %c0_258 = arith.constant 0 : index
    %c0_259 = arith.constant 0 : index
    %399 = vector.load %arg7[%c8_257, %c0_258, %c0_259] : memref<9x4x16xbf16, #tpu.memory_space<vmem>>, vector<1x4x16xbf16>
    %400 = vector.shape_cast %399 : vector<1x4x16xbf16> to vector<4x16xbf16>
    %cst_260 = arith.constant dense<0.000000e+00> : vector<4x256xf32>
    %401 = tpu.matmul %400, %316, %cst_260 {dimension_numbers = #tpu.dot_dimension_numbers<[1], [0], [0], [1], [0, 0, 1, 1], [], []>} : vector<4x16xbf16>, vector<16x256xbf16>, vector<4x256xf32> -> vector<4x256xf32>
    %402 = vector.extract_strided_slice %401 {offsets = [0, 17], sizes = [4, 239], strides = [1, 1]} : vector<4x256xf32> to vector<4x239xf32>
    %403 = vector.extract_strided_slice %401 {offsets = [0, 0], sizes = [4, 17], strides = [1, 1]} : vector<4x256xf32> to vector<4x17xf32>
    %404 = tpu.concatenate %402, %403 in 1 : vector<4x239xf32>, vector<4x17xf32> -> vector<4x256xf32>
    %c8_261 = arith.constant 8 : index
    %c0_262 = arith.constant 0 : index
    %c0_263 = arith.constant 0 : index
    %405 = vector.load %arg3[%c8_261, %c0_262, %c0_263] : memref<9x1x256xf32, #tpu.memory_space<vmem>>, vector<1x1x256xf32>
    %406 = vector.shape_cast %405 : vector<1x1x256xf32> to vector<1x256xf32>
    %407 = vector.broadcast %406 : vector<1x256xf32> to vector<4x256xf32>
    %408 = arith.mulf %404, %407 : vector<4x256xf32>
    %409 = arith.addf %398, %408 : vector<4x256xf32>
    %c0_264 = arith.constant 0 : index
    %c0_265 = arith.constant 0 : index
    %410 = vector.load %arg12[%c0_264, %c0_265] : memref<4x1xf32, #tpu.memory_space<vmem>>, vector<4x1xf32>
    %411 = vector.broadcast %410 : vector<4x1xf32> to vector<4x256xf32>
    %412 = arith.addf %409, %411 : vector<4x256xf32>
    %cst_266 = arith.constant 0.000000e+00 : f32
    %413 = vector.broadcast %cst_266 : f32 to vector<4x256xf32>
    %414 = arith.cmpf oge, %412, %413 : vector<4x256xf32>
    %cst_267 = arith.constant 2.000000e-01 : f32
    %415 = vector.broadcast %cst_267 : f32 to vector<4x256xf32>
    %416 = arith.mulf %415, %412 : vector<4x256xf32>
    %417 = arith.select %414, %412, %416 : vector<4x256xi1>, vector<4x256xf32>
    %c16 = arith.constant 16 : index
    %c0_268 = arith.constant 0 : index
    %418 = vector.load %arg15[%c16, %c0_268] : memref<20x256xf32, #tpu.memory_space<vmem>>, vector<4x256xf32>
    tpu.vector_store %arg15[%c16, %c0_268], %417 {strides = array<i32>} : memref<20x256xf32, #tpu.memory_space<vmem>>, vector<4x256xf32>,
    %c0_269 = arith.constant 0 : index
    %c0_270 = arith.constant 0 : index
    %419 = vector.load %arg15[%c0_269, %c0_270] : memref<20x256xf32, #tpu.memory_space<vmem>>, vector<20x256xf32>
    %420 = arith.truncf %419 : vector<20x256xf32> to vector<20x256xbf16>
    %cst_271 = arith.constant 0.000000e+00 : f32
    %421 = vector.broadcast %cst_271 : f32 to vector<4x256xf32>
    %c0_272 = arith.constant 0 : index
    %c0_273 = arith.constant 0 : index
    %c0_274 = arith.constant 0 : index
    %422 = vector.load %arg8[%c0_272, %c0_273, %c0_274] : memref<9x4x20xbf16, #tpu.memory_space<vmem>>, vector<1x4x20xbf16>
    %423 = vector.shape_cast %422 : vector<1x4x20xbf16> to vector<4x20xbf16>
    %cst_275 = arith.constant dense<0.000000e+00> : vector<4x256xf32>
    %424 = tpu.matmul %423, %420, %cst_275 {dimension_numbers = #tpu.dot_dimension_numbers<[1], [0], [0], [1], [0, 0, 1, 1], [], []>} : vector<4x20xbf16>, vector<20x256xbf16>, vector<4x256xf32> -> vector<4x256xf32>
    %425 = vector.extract_strided_slice %424 {offsets = [0, 239], sizes = [4, 17], strides = [1, 1]} : vector<4x256xf32> to vector<4x17xf32>
    %426 = vector.extract_strided_slice %424 {offsets = [0, 0], sizes = [4, 239], strides = [1, 1]} : vector<4x256xf32> to vector<4x239xf32>
    %427 = tpu.concatenate %425, %426 in 1 : vector<4x17xf32>, vector<4x239xf32> -> vector<4x256xf32>
    %c0_276 = arith.constant 0 : index
    %c0_277 = arith.constant 0 : index
    %c0_278 = arith.constant 0 : index
    %428 = vector.load %arg3[%c0_276, %c0_277, %c0_278] : memref<9x1x256xf32, #tpu.memory_space<vmem>>, vector<1x1x256xf32>
    %429 = vector.shape_cast %428 : vector<1x1x256xf32> to vector<1x256xf32>
    %430 = vector.broadcast %429 : vector<1x256xf32> to vector<4x256xf32>
    %431 = arith.mulf %427, %430 : vector<4x256xf32>
    %432 = arith.addf %421, %431 : vector<4x256xf32>
    %c1_279 = arith.constant 1 : index
    %c0_280 = arith.constant 0 : index
    %c0_281 = arith.constant 0 : index
    %433 = vector.load %arg8[%c1_279, %c0_280, %c0_281] : memref<9x4x20xbf16, #tpu.memory_space<vmem>>, vector<1x4x20xbf16>
    %434 = vector.shape_cast %433 : vector<1x4x20xbf16> to vector<4x20xbf16>
    %cst_282 = arith.constant dense<0.000000e+00> : vector<4x256xf32>
    %435 = tpu.matmul %434, %420, %cst_282 {dimension_numbers = #tpu.dot_dimension_numbers<[1], [0], [0], [1], [0, 0, 1, 1], [], []>} : vector<4x20xbf16>, vector<20x256xbf16>, vector<4x256xf32> -> vector<4x256xf32>
    %436 = vector.extract_strided_slice %435 {offsets = [0, 240], sizes = [4, 16], strides = [1, 1]} : vector<4x256xf32> to vector<4x16xf32>
    %437 = vector.extract_strided_slice %435 {offsets = [0, 0], sizes = [4, 240], strides = [1, 1]} : vector<4x256xf32> to vector<4x240xf32>
    %438 = tpu.concatenate %436, %437 in 1 : vector<4x16xf32>, vector<4x240xf32> -> vector<4x256xf32>
    %c1_283 = arith.constant 1 : index
    %c0_284 = arith.constant 0 : index
    %c0_285 = arith.constant 0 : index
    %439 = vector.load %arg3[%c1_283, %c0_284, %c0_285] : memref<9x1x256xf32, #tpu.memory_space<vmem>>, vector<1x1x256xf32>
    %440 = vector.shape_cast %439 : vector<1x1x256xf32> to vector<1x256xf32>
    %441 = vector.broadcast %440 : vector<1x256xf32> to vector<4x256xf32>
    %442 = arith.mulf %438, %441 : vector<4x256xf32>
    %443 = arith.addf %432, %442 : vector<4x256xf32>
    %c2_286 = arith.constant 2 : index
    %c0_287 = arith.constant 0 : index
    %c0_288 = arith.constant 0 : index
    %444 = vector.load %arg8[%c2_286, %c0_287, %c0_288] : memref<9x4x20xbf16, #tpu.memory_space<vmem>>, vector<1x4x20xbf16>
    %445 = vector.shape_cast %444 : vector<1x4x20xbf16> to vector<4x20xbf16>
    %cst_289 = arith.constant dense<0.000000e+00> : vector<4x256xf32>
    %446 = tpu.matmul %445, %420, %cst_289 {dimension_numbers = #tpu.dot_dimension_numbers<[1], [0], [0], [1], [0, 0, 1, 1], [], []>} : vector<4x20xbf16>, vector<20x256xbf16>, vector<4x256xf32> -> vector<4x256xf32>
    %447 = vector.extract_strided_slice %446 {offsets = [0, 241], sizes = [4, 15], strides = [1, 1]} : vector<4x256xf32> to vector<4x15xf32>
    %448 = vector.extract_strided_slice %446 {offsets = [0, 0], sizes = [4, 241], strides = [1, 1]} : vector<4x256xf32> to vector<4x241xf32>
    %449 = tpu.concatenate %447, %448 in 1 : vector<4x15xf32>, vector<4x241xf32> -> vector<4x256xf32>
    %c2_290 = arith.constant 2 : index
    %c0_291 = arith.constant 0 : index
    %c0_292 = arith.constant 0 : index
    %450 = vector.load %arg3[%c2_290, %c0_291, %c0_292] : memref<9x1x256xf32, #tpu.memory_space<vmem>>, vector<1x1x256xf32>
    %451 = vector.shape_cast %450 : vector<1x1x256xf32> to vector<1x256xf32>
    %452 = vector.broadcast %451 : vector<1x256xf32> to vector<4x256xf32>
    %453 = arith.mulf %449, %452 : vector<4x256xf32>
    %454 = arith.addf %443, %453 : vector<4x256xf32>
    %c3_293 = arith.constant 3 : index
    %c0_294 = arith.constant 0 : index
    %c0_295 = arith.constant 0 : index
    %455 = vector.load %arg8[%c3_293, %c0_294, %c0_295] : memref<9x4x20xbf16, #tpu.memory_space<vmem>>, vector<1x4x20xbf16>
    %456 = vector.shape_cast %455 : vector<1x4x20xbf16> to vector<4x20xbf16>
    %cst_296 = arith.constant dense<0.000000e+00> : vector<4x256xf32>
    %457 = tpu.matmul %456, %420, %cst_296 {dimension_numbers = #tpu.dot_dimension_numbers<[1], [0], [0], [1], [0, 0, 1, 1], [], []>} : vector<4x20xbf16>, vector<20x256xbf16>, vector<4x256xf32> -> vector<4x256xf32>
    %458 = vector.extract_strided_slice %457 {offsets = [0, 255], sizes = [4, 1], strides = [1, 1]} : vector<4x256xf32> to vector<4x1xf32>
    %459 = vector.extract_strided_slice %457 {offsets = [0, 0], sizes = [4, 255], strides = [1, 1]} : vector<4x256xf32> to vector<4x255xf32>
    %460 = tpu.concatenate %458, %459 in 1 : vector<4x1xf32>, vector<4x255xf32> -> vector<4x256xf32>
    %c3_297 = arith.constant 3 : index
    %c0_298 = arith.constant 0 : index
    %c0_299 = arith.constant 0 : index
    %461 = vector.load %arg3[%c3_297, %c0_298, %c0_299] : memref<9x1x256xf32, #tpu.memory_space<vmem>>, vector<1x1x256xf32>
    %462 = vector.shape_cast %461 : vector<1x1x256xf32> to vector<1x256xf32>
    %463 = vector.broadcast %462 : vector<1x256xf32> to vector<4x256xf32>
    %464 = arith.mulf %460, %463 : vector<4x256xf32>
    %465 = arith.addf %454, %464 : vector<4x256xf32>
    %c4_300 = arith.constant 4 : index
    %c0_301 = arith.constant 0 : index
    %c0_302 = arith.constant 0 : index
    %466 = vector.load %arg8[%c4_300, %c0_301, %c0_302] : memref<9x4x20xbf16, #tpu.memory_space<vmem>>, vector<1x4x20xbf16>
    %467 = vector.shape_cast %466 : vector<1x4x20xbf16> to vector<4x20xbf16>
    %cst_303 = arith.constant dense<0.000000e+00> : vector<4x256xf32>
    %468 = tpu.matmul %467, %420, %cst_303 {dimension_numbers = #tpu.dot_dimension_numbers<[1], [0], [0], [1], [0, 0, 1, 1], [], []>} : vector<4x20xbf16>, vector<20x256xbf16>, vector<4x256xf32> -> vector<4x256xf32>
    %469 = arith.addf %465, %468 : vector<4x256xf32>
    %c5_304 = arith.constant 5 : index
    %c0_305 = arith.constant 0 : index
    %c0_306 = arith.constant 0 : index
    %470 = vector.load %arg8[%c5_304, %c0_305, %c0_306] : memref<9x4x20xbf16, #tpu.memory_space<vmem>>, vector<1x4x20xbf16>
    %471 = vector.shape_cast %470 : vector<1x4x20xbf16> to vector<4x20xbf16>
    %cst_307 = arith.constant dense<0.000000e+00> : vector<4x256xf32>
    %472 = tpu.matmul %471, %420, %cst_307 {dimension_numbers = #tpu.dot_dimension_numbers<[1], [0], [0], [1], [0, 0, 1, 1], [], []>} : vector<4x20xbf16>, vector<20x256xbf16>, vector<4x256xf32> -> vector<4x256xf32>
    %473 = vector.extract_strided_slice %472 {offsets = [0, 1], sizes = [4, 255], strides = [1, 1]} : vector<4x256xf32> to vector<4x255xf32>
    %474 = vector.extract_strided_slice %472 {offsets = [0, 0], sizes = [4, 1], strides = [1, 1]} : vector<4x256xf32> to vector<4x1xf32>
    %475 = tpu.concatenate %473, %474 in 1 : vector<4x255xf32>, vector<4x1xf32> -> vector<4x256xf32>
    %c5_308 = arith.constant 5 : index
    %c0_309 = arith.constant 0 : index
    %c0_310 = arith.constant 0 : index
    %476 = vector.load %arg3[%c5_308, %c0_309, %c0_310] : memref<9x1x256xf32, #tpu.memory_space<vmem>>, vector<1x1x256xf32>
    %477 = vector.shape_cast %476 : vector<1x1x256xf32> to vector<1x256xf32>
    %478 = vector.broadcast %477 : vector<1x256xf32> to vector<4x256xf32>
    %479 = arith.mulf %475, %478 : vector<4x256xf32>
    %480 = arith.addf %469, %479 : vector<4x256xf32>
    %c6_311 = arith.constant 6 : index
    %c0_312 = arith.constant 0 : index
    %c0_313 = arith.constant 0 : index
    %481 = vector.load %arg8[%c6_311, %c0_312, %c0_313] : memref<9x4x20xbf16, #tpu.memory_space<vmem>>, vector<1x4x20xbf16>
    %482 = vector.shape_cast %481 : vector<1x4x20xbf16> to vector<4x20xbf16>
    %cst_314 = arith.constant dense<0.000000e+00> : vector<4x256xf32>
    %483 = tpu.matmul %482, %420, %cst_314 {dimension_numbers = #tpu.dot_dimension_numbers<[1], [0], [0], [1], [0, 0, 1, 1], [], []>} : vector<4x20xbf16>, vector<20x256xbf16>, vector<4x256xf32> -> vector<4x256xf32>
    %484 = vector.extract_strided_slice %483 {offsets = [0, 15], sizes = [4, 241], strides = [1, 1]} : vector<4x256xf32> to vector<4x241xf32>
    %485 = vector.extract_strided_slice %483 {offsets = [0, 0], sizes = [4, 15], strides = [1, 1]} : vector<4x256xf32> to vector<4x15xf32>
    %486 = tpu.concatenate %484, %485 in 1 : vector<4x241xf32>, vector<4x15xf32> -> vector<4x256xf32>
    %c6_315 = arith.constant 6 : index
    %c0_316 = arith.constant 0 : index
    %c0_317 = arith.constant 0 : index
    %487 = vector.load %arg3[%c6_315, %c0_316, %c0_317] : memref<9x1x256xf32, #tpu.memory_space<vmem>>, vector<1x1x256xf32>
    %488 = vector.shape_cast %487 : vector<1x1x256xf32> to vector<1x256xf32>
    %489 = vector.broadcast %488 : vector<1x256xf32> to vector<4x256xf32>
    %490 = arith.mulf %486, %489 : vector<4x256xf32>
    %491 = arith.addf %480, %490 : vector<4x256xf32>
    %c7_318 = arith.constant 7 : index
    %c0_319 = arith.constant 0 : index
    %c0_320 = arith.constant 0 : index
    %492 = vector.load %arg8[%c7_318, %c0_319, %c0_320] : memref<9x4x20xbf16, #tpu.memory_space<vmem>>, vector<1x4x20xbf16>
    %493 = vector.shape_cast %492 : vector<1x4x20xbf16> to vector<4x20xbf16>
    %cst_321 = arith.constant dense<0.000000e+00> : vector<4x256xf32>
    %494 = tpu.matmul %493, %420, %cst_321 {dimension_numbers = #tpu.dot_dimension_numbers<[1], [0], [0], [1], [0, 0, 1, 1], [], []>} : vector<4x20xbf16>, vector<20x256xbf16>, vector<4x256xf32> -> vector<4x256xf32>
    %495 = vector.extract_strided_slice %494 {offsets = [0, 16], sizes = [4, 240], strides = [1, 1]} : vector<4x256xf32> to vector<4x240xf32>
    %496 = vector.extract_strided_slice %494 {offsets = [0, 0], sizes = [4, 16], strides = [1, 1]} : vector<4x256xf32> to vector<4x16xf32>
    %497 = tpu.concatenate %495, %496 in 1 : vector<4x240xf32>, vector<4x16xf32> -> vector<4x256xf32>
    %c7_322 = arith.constant 7 : index
    %c0_323 = arith.constant 0 : index
    %c0_324 = arith.constant 0 : index
    %498 = vector.load %arg3[%c7_322, %c0_323, %c0_324] : memref<9x1x256xf32, #tpu.memory_space<vmem>>, vector<1x1x256xf32>
    %499 = vector.shape_cast %498 : vector<1x1x256xf32> to vector<1x256xf32>
    %500 = vector.broadcast %499 : vector<1x256xf32> to vector<4x256xf32>
    %501 = arith.mulf %497, %500 : vector<4x256xf32>
    %502 = arith.addf %491, %501 : vector<4x256xf32>
    %c8_325 = arith.constant 8 : index
    %c0_326 = arith.constant 0 : index
    %c0_327 = arith.constant 0 : index
    %503 = vector.load %arg8[%c8_325, %c0_326, %c0_327] : memref<9x4x20xbf16, #tpu.memory_space<vmem>>, vector<1x4x20xbf16>
    %504 = vector.shape_cast %503 : vector<1x4x20xbf16> to vector<4x20xbf16>
    %cst_328 = arith.constant dense<0.000000e+00> : vector<4x256xf32>
    %505 = tpu.matmul %504, %420, %cst_328 {dimension_numbers = #tpu.dot_dimension_numbers<[1], [0], [0], [1], [0, 0, 1, 1], [], []>} : vector<4x20xbf16>, vector<20x256xbf16>, vector<4x256xf32> -> vector<4x256xf32>
    %506 = vector.extract_strided_slice %505 {offsets = [0, 17], sizes = [4, 239], strides = [1, 1]} : vector<4x256xf32> to vector<4x239xf32>
    %507 = vector.extract_strided_slice %505 {offsets = [0, 0], sizes = [4, 17], strides = [1, 1]} : vector<4x256xf32> to vector<4x17xf32>
    %508 = tpu.concatenate %506, %507 in 1 : vector<4x239xf32>, vector<4x17xf32> -> vector<4x256xf32>
    %c8_329 = arith.constant 8 : index
    %c0_330 = arith.constant 0 : index
    %c0_331 = arith.constant 0 : index
    %509 = vector.load %arg3[%c8_329, %c0_330, %c0_331] : memref<9x1x256xf32, #tpu.memory_space<vmem>>, vector<1x1x256xf32>
    %510 = vector.shape_cast %509 : vector<1x1x256xf32> to vector<1x256xf32>
    %511 = vector.broadcast %510 : vector<1x256xf32> to vector<4x256xf32>
    %512 = arith.mulf %508, %511 : vector<4x256xf32>
    %513 = arith.addf %502, %512 : vector<4x256xf32>
    %c0_332 = arith.constant 0 : index
    %c0_333 = arith.constant 0 : index
    %514 = vector.load %arg13[%c0_332, %c0_333] : memref<4x1xf32, #tpu.memory_space<vmem>>, vector<4x1xf32>
    %515 = vector.broadcast %514 : vector<4x1xf32> to vector<4x256xf32>
    %516 = arith.addf %513, %515 : vector<4x256xf32>
    %cst_334 = arith.constant 2.000000e-01 : f32
    %517 = vector.broadcast %cst_334 : f32 to vector<4x256xf32>
    %518 = arith.mulf %516, %517 : vector<4x256xf32>
    %519 = arith.addf %518, %1 : vector<4x256xf32>
    %cst_335 = arith.constant 2.000000e-01 : f32
    %520 = vector.broadcast %cst_335 : f32 to vector<4x256xf32>
    %521 = arith.mulf %519, %520 : vector<4x256xf32>
    %c0_336 = arith.constant 0 : index
    %c0_337 = arith.constant 0 : index
    %c0_338 = arith.constant 0 : index
    %522 = vector.load %arg2[%c0_336, %c0_337, %c0_338] : memref<1x4x256xf32, #tpu.memory_space<vmem>>, vector<1x4x256xf32>
    %523 = vector.shape_cast %522 : vector<1x4x256xf32> to vector<4x256xf32>
    %524 = arith.addf %521, %523 : vector<4x256xf32>
    %c0_339 = arith.constant 0 : index
    %c0_340 = arith.constant 0 : index
    %c0_341 = arith.constant 0 : index
    %525 = vector.load %arg14[%c0_339, %c0_340, %c0_341] : memref<1x4x256xf32, #tpu.memory_space<vmem>>, vector<1x4x256xf32>
    %526 = vector.shape_cast %525 : vector<1x4x256xf32> to vector<4x256xf32>
    %527 = vector.shape_cast %524 : vector<4x256xf32> to vector<1x4x256xf32>
    tpu.vector_store %arg14[%c0_339, %c0_340, %c0_341], %527 {strides = array<i32>} : memref<1x4x256xf32, #tpu.memory_space<vmem>>, vector<1x4x256xf32>,
    return
  }
  func.func @transform_0(%arg0: i32) -> (i32, i32, i32) {
    %c0_i32 = arith.constant 0 : i32
    %c0_i32_0 = arith.constant 0 : i32
    %c0_i32_1 = arith.constant 0 : i32
    return %arg0, %c0_i32, %c0_i32_0 : i32, i32, i32
  }
  func.func @transform_1(%arg0: i32) -> (i32, i32, i32) {
    %c0_i32 = arith.constant 0 : i32
    %c0_i32_0 = arith.constant 0 : i32
    %c0_i32_1 = arith.constant 0 : i32
    return %arg0, %c0_i32, %c0_i32_0 : i32, i32, i32
  }
  func.func @transform_2(%arg0: i32) -> (i32, i32, i32) {
    %c0_i32 = arith.constant 0 : i32
    %c0_i32_0 = arith.constant 0 : i32
    %c0_i32_1 = arith.constant 0 : i32
    %c0_i32_2 = arith.constant 0 : i32
    return %c0_i32, %c0_i32_0, %c0_i32_1 : i32, i32, i32
  }
  func.func @transform_3(%arg0: i32) -> (i32, i32, i32) {
    %c0_i32 = arith.constant 0 : i32
    %c0_i32_0 = arith.constant 0 : i32
    %c0_i32_1 = arith.constant 0 : i32
    %c0_i32_2 = arith.constant 0 : i32
    return %c0_i32, %c0_i32_0, %c0_i32_1 : i32, i32, i32
  }
  func.func @transform_4(%arg0: i32) -> (i32, i32, i32) {
    %c0_i32 = arith.constant 0 : i32
    %c0_i32_0 = arith.constant 0 : i32
    %c0_i32_1 = arith.constant 0 : i32
    %c0_i32_2 = arith.constant 0 : i32
    return %c0_i32, %c0_i32_0, %c0_i32_1 : i32, i32, i32
  }
  func.func @transform_5(%arg0: i32) -> (i32, i32, i32) {
    %c0_i32 = arith.constant 0 : i32
    %c0_i32_0 = arith.constant 0 : i32
    %c0_i32_1 = arith.constant 0 : i32
    %c0_i32_2 = arith.constant 0 : i32
    return %c0_i32, %c0_i32_0, %c0_i32_1 : i32, i32, i32
  }
  func.func @transform_6(%arg0: i32) -> (i32, i32, i32) {
    %c0_i32 = arith.constant 0 : i32
    %c0_i32_0 = arith.constant 0 : i32
    %c0_i32_1 = arith.constant 0 : i32
    %c0_i32_2 = arith.constant 0 : i32
    return %c0_i32, %c0_i32_0, %c0_i32_1 : i32, i32, i32
  }
  func.func @transform_7(%arg0: i32) -> (i32, i32, i32) {
    %c0_i32 = arith.constant 0 : i32
    %c0_i32_0 = arith.constant 0 : i32
    %c0_i32_1 = arith.constant 0 : i32
    %c0_i32_2 = arith.constant 0 : i32
    return %c0_i32, %c0_i32_0, %c0_i32_1 : i32, i32, i32
  }
  func.func @transform_8(%arg0: i32) -> (i32, i32) {
    %c0_i32 = arith.constant 0 : i32
    %c0_i32_0 = arith.constant 0 : i32
    %c0_i32_1 = arith.constant 0 : i32
    return %c0_i32, %c0_i32_0 : i32, i32
  }
  func.func @transform_9(%arg0: i32) -> (i32, i32) {
    %c0_i32 = arith.constant 0 : i32
    %c0_i32_0 = arith.constant 0 : i32
    %c0_i32_1 = arith.constant 0 : i32
    return %c0_i32, %c0_i32_0 : i32, i32
  }
  func.func @transform_10(%arg0: i32) -> (i32, i32) {
    %c0_i32 = arith.constant 0 : i32
    %c0_i32_0 = arith.constant 0 : i32
    %c0_i32_1 = arith.constant 0 : i32
    return %c0_i32, %c0_i32_0 : i32, i32
  }
  func.func @transform_11(%arg0: i32) -> (i32, i32) {
    %c0_i32 = arith.constant 0 : i32
    %c0_i32_0 = arith.constant 0 : i32
    %c0_i32_1 = arith.constant 0 : i32
    return %c0_i32, %c0_i32_0 : i32, i32
  }
  func.func @transform_12(%arg0: i32) -> (i32, i32) {
    %c0_i32 = arith.constant 0 : i32
    %c0_i32_0 = arith.constant 0 : i32
    %c0_i32_1 = arith.constant 0 : i32
    return %c0_i32, %c0_i32_0 : i32, i32
  }
  func.func @transform_13(%arg0: i32) -> (i32, i32, i32) {
    %c0_i32 = arith.constant 0 : i32
    %c0_i32_0 = arith.constant 0 : i32
    %c0_i32_1 = arith.constant 0 : i32
    return %arg0, %c0_i32, %c0_i32_0 : i32, i32, i32
  }
}

module attributes {stable_mosaic.version = 11 : i64} {
  func.func @_rdb5c_kernel(%arg0: i32, %arg1: memref<1x4x256xf32, #tpu.memory_space<vmem>>, %arg2: memref<9x1x256xf32, #tpu.memory_space<vmem>>, %arg3: memref<9x4x4xbf16, #tpu.memory_space<vmem>>, %arg4: memref<9x4x8xbf16, #tpu.memory_space<vmem>>, %arg5: memref<9x4x12xbf16, #tpu.memory_space<vmem>>, %arg6: memref<9x4x16xbf16, #tpu.memory_space<vmem>>, %arg7: memref<9x4x20xbf16, #tpu.memory_space<vmem>>, %arg8: memref<4x1xf32, #tpu.memory_space<vmem>>, %arg9: memref<4x1xf32, #tpu.memory_space<vmem>>, %arg10: memref<4x1xf32, #tpu.memory_space<vmem>>, %arg11: memref<4x1xf32, #tpu.memory_space<vmem>>, %arg12: memref<4x1xf32, #tpu.memory_space<vmem>>, %arg13: memref<1x4x256xf32, #tpu.memory_space<vmem>>, %arg14: memref<20x256xf32, #tpu.memory_space<vmem>>) attributes {dimension_semantics = [#tpu.dimension_semantics<parallel>], iteration_bounds = array<i64: 2>, scalar_prefetch = 0 : i64, scratch_operands = 1 : i64, tpu.core_type = #tpu.core_type<tc>, window_params = [{transform_indices = @transform_0, window_bounds = array<i64: 1, 4, 256>}, {pipeline_mode = #tpu.pipeline_mode<synchronous>, transform_indices = @transform_1, window_bounds = array<i64: 9, 1, 256>}, {pipeline_mode = #tpu.pipeline_mode<synchronous>, transform_indices = @transform_2, window_bounds = array<i64: 9, 4, 4>}, {pipeline_mode = #tpu.pipeline_mode<synchronous>, transform_indices = @transform_3, window_bounds = array<i64: 9, 4, 8>}, {pipeline_mode = #tpu.pipeline_mode<synchronous>, transform_indices = @transform_4, window_bounds = array<i64: 9, 4, 12>}, {pipeline_mode = #tpu.pipeline_mode<synchronous>, transform_indices = @transform_5, window_bounds = array<i64: 9, 4, 16>}, {pipeline_mode = #tpu.pipeline_mode<synchronous>, transform_indices = @transform_6, window_bounds = array<i64: 9, 4, 20>}, {pipeline_mode = #tpu.pipeline_mode<synchronous>, transform_indices = @transform_7, window_bounds = array<i64: 4, 1>}, {pipeline_mode = #tpu.pipeline_mode<synchronous>, transform_indices = @transform_8, window_bounds = array<i64: 4, 1>}, {pipeline_mode = #tpu.pipeline_mode<synchronous>, transform_indices = @transform_9, window_bounds = array<i64: 4, 1>}, {pipeline_mode = #tpu.pipeline_mode<synchronous>, transform_indices = @transform_10, window_bounds = array<i64: 4, 1>}, {pipeline_mode = #tpu.pipeline_mode<synchronous>, transform_indices = @transform_11, window_bounds = array<i64: 4, 1>}, {transform_indices = @transform_12, window_bounds = array<i64: 1, 4, 256>}]} {
    %c0 = arith.constant 0 : index
    %c0_0 = arith.constant 0 : index
    %c0_1 = arith.constant 0 : index
    %0 = vector.load %arg1[%c0, %c0_0, %c0_1] : memref<1x4x256xf32, #tpu.memory_space<vmem>>, vector<1x4x256xf32>
    %1 = vector.shape_cast %0 : vector<1x4x256xf32> to vector<4x256xf32>
    %c0_2 = arith.constant 0 : index
    %c0_3 = arith.constant 0 : index
    %2 = vector.load %arg14[%c0_2, %c0_3] : memref<20x256xf32, #tpu.memory_space<vmem>>, vector<4x256xf32>
    tpu.vector_store %arg14[%c0_2, %c0_3], %1 {strides = array<i32>} : memref<20x256xf32, #tpu.memory_space<vmem>>, vector<4x256xf32>,
    %c0_4 = arith.constant 0 : index
    %c0_5 = arith.constant 0 : index
    %3 = vector.load %arg14[%c0_4, %c0_5] : memref<20x256xf32, #tpu.memory_space<vmem>>, vector<4x256xf32>
    %4 = arith.truncf %3 : vector<4x256xf32> to vector<4x256xbf16>
    %cst = arith.constant 0.000000e+00 : f32
    %5 = vector.broadcast %cst : f32 to vector<4x256xf32>
    %c0_6 = arith.constant 0 : index
    %c0_7 = arith.constant 0 : index
    %c0_8 = arith.constant 0 : index
    %6 = vector.load %arg3[%c0_6, %c0_7, %c0_8] : memref<9x4x4xbf16, #tpu.memory_space<vmem>>, vector<1x4x4xbf16>
    %7 = vector.shape_cast %6 : vector<1x4x4xbf16> to vector<4x4xbf16>
    %cst_9 = arith.constant dense<0.000000e+00> : vector<4x256xf32>
    %8 = tpu.matmul %7, %4, %cst_9 {dimension_numbers = #tpu.dot_dimension_numbers<[1], [0], [0], [1], [0, 0, 1, 1], [], []>} : vector<4x4xbf16>, vector<4x256xbf16>, vector<4x256xf32> -> vector<4x256xf32>
    %9 = vector.extract_strided_slice %8 {offsets = [0, 239], sizes = [4, 17], strides = [1, 1]} : vector<4x256xf32> to vector<4x17xf32>
    %10 = vector.extract_strided_slice %8 {offsets = [0, 0], sizes = [4, 239], strides = [1, 1]} : vector<4x256xf32> to vector<4x239xf32>
    %11 = tpu.concatenate %9, %10 in 1 : vector<4x17xf32>, vector<4x239xf32> -> vector<4x256xf32>
    %c0_10 = arith.constant 0 : index
    %c0_11 = arith.constant 0 : index
    %c0_12 = arith.constant 0 : index
    %12 = vector.load %arg2[%c0_10, %c0_11, %c0_12] : memref<9x1x256xf32, #tpu.memory_space<vmem>>, vector<1x1x256xf32>
    %13 = vector.shape_cast %12 : vector<1x1x256xf32> to vector<1x256xf32>
    %14 = vector.broadcast %13 : vector<1x256xf32> to vector<4x256xf32>
    %15 = arith.mulf %11, %14 : vector<4x256xf32>
    %16 = arith.addf %5, %15 : vector<4x256xf32>
    %c1 = arith.constant 1 : index
    %c0_13 = arith.constant 0 : index
    %c0_14 = arith.constant 0 : index
    %17 = vector.load %arg3[%c1, %c0_13, %c0_14] : memref<9x4x4xbf16, #tpu.memory_space<vmem>>, vector<1x4x4xbf16>
    %18 = vector.shape_cast %17 : vector<1x4x4xbf16> to vector<4x4xbf16>
    %cst_15 = arith.constant dense<0.000000e+00> : vector<4x256xf32>
    %19 = tpu.matmul %18, %4, %cst_15 {dimension_numbers = #tpu.dot_dimension_numbers<[1], [0], [0], [1], [0, 0, 1, 1], [], []>} : vector<4x4xbf16>, vector<4x256xbf16>, vector<4x256xf32> -> vector<4x256xf32>
    %20 = vector.extract_strided_slice %19 {offsets = [0, 240], sizes = [4, 16], strides = [1, 1]} : vector<4x256xf32> to vector<4x16xf32>
    %21 = vector.extract_strided_slice %19 {offsets = [0, 0], sizes = [4, 240], strides = [1, 1]} : vector<4x256xf32> to vector<4x240xf32>
    %22 = tpu.concatenate %20, %21 in 1 : vector<4x16xf32>, vector<4x240xf32> -> vector<4x256xf32>
    %c1_16 = arith.constant 1 : index
    %c0_17 = arith.constant 0 : index
    %c0_18 = arith.constant 0 : index
    %23 = vector.load %arg2[%c1_16, %c0_17, %c0_18] : memref<9x1x256xf32, #tpu.memory_space<vmem>>, vector<1x1x256xf32>
    %24 = vector.shape_cast %23 : vector<1x1x256xf32> to vector<1x256xf32>
    %25 = vector.broadcast %24 : vector<1x256xf32> to vector<4x256xf32>
    %26 = arith.mulf %22, %25 : vector<4x256xf32>
    %27 = arith.addf %16, %26 : vector<4x256xf32>
    %c2 = arith.constant 2 : index
    %c0_19 = arith.constant 0 : index
    %c0_20 = arith.constant 0 : index
    %28 = vector.load %arg3[%c2, %c0_19, %c0_20] : memref<9x4x4xbf16, #tpu.memory_space<vmem>>, vector<1x4x4xbf16>
    %29 = vector.shape_cast %28 : vector<1x4x4xbf16> to vector<4x4xbf16>
    %cst_21 = arith.constant dense<0.000000e+00> : vector<4x256xf32>
    %30 = tpu.matmul %29, %4, %cst_21 {dimension_numbers = #tpu.dot_dimension_numbers<[1], [0], [0], [1], [0, 0, 1, 1], [], []>} : vector<4x4xbf16>, vector<4x256xbf16>, vector<4x256xf32> -> vector<4x256xf32>
    %31 = vector.extract_strided_slice %30 {offsets = [0, 241], sizes = [4, 15], strides = [1, 1]} : vector<4x256xf32> to vector<4x15xf32>
    %32 = vector.extract_strided_slice %30 {offsets = [0, 0], sizes = [4, 241], strides = [1, 1]} : vector<4x256xf32> to vector<4x241xf32>
    %33 = tpu.concatenate %31, %32 in 1 : vector<4x15xf32>, vector<4x241xf32> -> vector<4x256xf32>
    %c2_22 = arith.constant 2 : index
    %c0_23 = arith.constant 0 : index
    %c0_24 = arith.constant 0 : index
    %34 = vector.load %arg2[%c2_22, %c0_23, %c0_24] : memref<9x1x256xf32, #tpu.memory_space<vmem>>, vector<1x1x256xf32>
    %35 = vector.shape_cast %34 : vector<1x1x256xf32> to vector<1x256xf32>
    %36 = vector.broadcast %35 : vector<1x256xf32> to vector<4x256xf32>
    %37 = arith.mulf %33, %36 : vector<4x256xf32>
    %38 = arith.addf %27, %37 : vector<4x256xf32>
    %c3 = arith.constant 3 : index
    %c0_25 = arith.constant 0 : index
    %c0_26 = arith.constant 0 : index
    %39 = vector.load %arg3[%c3, %c0_25, %c0_26] : memref<9x4x4xbf16, #tpu.memory_space<vmem>>, vector<1x4x4xbf16>
    %40 = vector.shape_cast %39 : vector<1x4x4xbf16> to vector<4x4xbf16>
    %cst_27 = arith.constant dense<0.000000e+00> : vector<4x256xf32>
    %41 = tpu.matmul %40, %4, %cst_27 {dimension_numbers = #tpu.dot_dimension_numbers<[1], [0], [0], [1], [0, 0, 1, 1], [], []>} : vector<4x4xbf16>, vector<4x256xbf16>, vector<4x256xf32> -> vector<4x256xf32>
    %42 = vector.extract_strided_slice %41 {offsets = [0, 255], sizes = [4, 1], strides = [1, 1]} : vector<4x256xf32> to vector<4x1xf32>
    %43 = vector.extract_strided_slice %41 {offsets = [0, 0], sizes = [4, 255], strides = [1, 1]} : vector<4x256xf32> to vector<4x255xf32>
    %44 = tpu.concatenate %42, %43 in 1 : vector<4x1xf32>, vector<4x255xf32> -> vector<4x256xf32>
    %c3_28 = arith.constant 3 : index
    %c0_29 = arith.constant 0 : index
    %c0_30 = arith.constant 0 : index
    %45 = vector.load %arg2[%c3_28, %c0_29, %c0_30] : memref<9x1x256xf32, #tpu.memory_space<vmem>>, vector<1x1x256xf32>
    %46 = vector.shape_cast %45 : vector<1x1x256xf32> to vector<1x256xf32>
    %47 = vector.broadcast %46 : vector<1x256xf32> to vector<4x256xf32>
    %48 = arith.mulf %44, %47 : vector<4x256xf32>
    %49 = arith.addf %38, %48 : vector<4x256xf32>
    %c4 = arith.constant 4 : index
    %c0_31 = arith.constant 0 : index
    %c0_32 = arith.constant 0 : index
    %50 = vector.load %arg3[%c4, %c0_31, %c0_32] : memref<9x4x4xbf16, #tpu.memory_space<vmem>>, vector<1x4x4xbf16>
    %51 = vector.shape_cast %50 : vector<1x4x4xbf16> to vector<4x4xbf16>
    %cst_33 = arith.constant dense<0.000000e+00> : vector<4x256xf32>
    %52 = tpu.matmul %51, %4, %cst_33 {dimension_numbers = #tpu.dot_dimension_numbers<[1], [0], [0], [1], [0, 0, 1, 1], [], []>} : vector<4x4xbf16>, vector<4x256xbf16>, vector<4x256xf32> -> vector<4x256xf32>
    %53 = arith.addf %49, %52 : vector<4x256xf32>
    %c5 = arith.constant 5 : index
    %c0_34 = arith.constant 0 : index
    %c0_35 = arith.constant 0 : index
    %54 = vector.load %arg3[%c5, %c0_34, %c0_35] : memref<9x4x4xbf16, #tpu.memory_space<vmem>>, vector<1x4x4xbf16>
    %55 = vector.shape_cast %54 : vector<1x4x4xbf16> to vector<4x4xbf16>
    %cst_36 = arith.constant dense<0.000000e+00> : vector<4x256xf32>
    %56 = tpu.matmul %55, %4, %cst_36 {dimension_numbers = #tpu.dot_dimension_numbers<[1], [0], [0], [1], [0, 0, 1, 1], [], []>} : vector<4x4xbf16>, vector<4x256xbf16>, vector<4x256xf32> -> vector<4x256xf32>
    %57 = vector.extract_strided_slice %56 {offsets = [0, 1], sizes = [4, 255], strides = [1, 1]} : vector<4x256xf32> to vector<4x255xf32>
    %58 = vector.extract_strided_slice %56 {offsets = [0, 0], sizes = [4, 1], strides = [1, 1]} : vector<4x256xf32> to vector<4x1xf32>
    %59 = tpu.concatenate %57, %58 in 1 : vector<4x255xf32>, vector<4x1xf32> -> vector<4x256xf32>
    %c5_37 = arith.constant 5 : index
    %c0_38 = arith.constant 0 : index
    %c0_39 = arith.constant 0 : index
    %60 = vector.load %arg2[%c5_37, %c0_38, %c0_39] : memref<9x1x256xf32, #tpu.memory_space<vmem>>, vector<1x1x256xf32>
    %61 = vector.shape_cast %60 : vector<1x1x256xf32> to vector<1x256xf32>
    %62 = vector.broadcast %61 : vector<1x256xf32> to vector<4x256xf32>
    %63 = arith.mulf %59, %62 : vector<4x256xf32>
    %64 = arith.addf %53, %63 : vector<4x256xf32>
    %c6 = arith.constant 6 : index
    %c0_40 = arith.constant 0 : index
    %c0_41 = arith.constant 0 : index
    %65 = vector.load %arg3[%c6, %c0_40, %c0_41] : memref<9x4x4xbf16, #tpu.memory_space<vmem>>, vector<1x4x4xbf16>
    %66 = vector.shape_cast %65 : vector<1x4x4xbf16> to vector<4x4xbf16>
    %cst_42 = arith.constant dense<0.000000e+00> : vector<4x256xf32>
    %67 = tpu.matmul %66, %4, %cst_42 {dimension_numbers = #tpu.dot_dimension_numbers<[1], [0], [0], [1], [0, 0, 1, 1], [], []>} : vector<4x4xbf16>, vector<4x256xbf16>, vector<4x256xf32> -> vector<4x256xf32>
    %68 = vector.extract_strided_slice %67 {offsets = [0, 15], sizes = [4, 241], strides = [1, 1]} : vector<4x256xf32> to vector<4x241xf32>
    %69 = vector.extract_strided_slice %67 {offsets = [0, 0], sizes = [4, 15], strides = [1, 1]} : vector<4x256xf32> to vector<4x15xf32>
    %70 = tpu.concatenate %68, %69 in 1 : vector<4x241xf32>, vector<4x15xf32> -> vector<4x256xf32>
    %c6_43 = arith.constant 6 : index
    %c0_44 = arith.constant 0 : index
    %c0_45 = arith.constant 0 : index
    %71 = vector.load %arg2[%c6_43, %c0_44, %c0_45] : memref<9x1x256xf32, #tpu.memory_space<vmem>>, vector<1x1x256xf32>
    %72 = vector.shape_cast %71 : vector<1x1x256xf32> to vector<1x256xf32>
    %73 = vector.broadcast %72 : vector<1x256xf32> to vector<4x256xf32>
    %74 = arith.mulf %70, %73 : vector<4x256xf32>
    %75 = arith.addf %64, %74 : vector<4x256xf32>
    %c7 = arith.constant 7 : index
    %c0_46 = arith.constant 0 : index
    %c0_47 = arith.constant 0 : index
    %76 = vector.load %arg3[%c7, %c0_46, %c0_47] : memref<9x4x4xbf16, #tpu.memory_space<vmem>>, vector<1x4x4xbf16>
    %77 = vector.shape_cast %76 : vector<1x4x4xbf16> to vector<4x4xbf16>
    %cst_48 = arith.constant dense<0.000000e+00> : vector<4x256xf32>
    %78 = tpu.matmul %77, %4, %cst_48 {dimension_numbers = #tpu.dot_dimension_numbers<[1], [0], [0], [1], [0, 0, 1, 1], [], []>} : vector<4x4xbf16>, vector<4x256xbf16>, vector<4x256xf32> -> vector<4x256xf32>
    %79 = vector.extract_strided_slice %78 {offsets = [0, 16], sizes = [4, 240], strides = [1, 1]} : vector<4x256xf32> to vector<4x240xf32>
    %80 = vector.extract_strided_slice %78 {offsets = [0, 0], sizes = [4, 16], strides = [1, 1]} : vector<4x256xf32> to vector<4x16xf32>
    %81 = tpu.concatenate %79, %80 in 1 : vector<4x240xf32>, vector<4x16xf32> -> vector<4x256xf32>
    %c7_49 = arith.constant 7 : index
    %c0_50 = arith.constant 0 : index
    %c0_51 = arith.constant 0 : index
    %82 = vector.load %arg2[%c7_49, %c0_50, %c0_51] : memref<9x1x256xf32, #tpu.memory_space<vmem>>, vector<1x1x256xf32>
    %83 = vector.shape_cast %82 : vector<1x1x256xf32> to vector<1x256xf32>
    %84 = vector.broadcast %83 : vector<1x256xf32> to vector<4x256xf32>
    %85 = arith.mulf %81, %84 : vector<4x256xf32>
    %86 = arith.addf %75, %85 : vector<4x256xf32>
    %c8 = arith.constant 8 : index
    %c0_52 = arith.constant 0 : index
    %c0_53 = arith.constant 0 : index
    %87 = vector.load %arg3[%c8, %c0_52, %c0_53] : memref<9x4x4xbf16, #tpu.memory_space<vmem>>, vector<1x4x4xbf16>
    %88 = vector.shape_cast %87 : vector<1x4x4xbf16> to vector<4x4xbf16>
    %cst_54 = arith.constant dense<0.000000e+00> : vector<4x256xf32>
    %89 = tpu.matmul %88, %4, %cst_54 {dimension_numbers = #tpu.dot_dimension_numbers<[1], [0], [0], [1], [0, 0, 1, 1], [], []>} : vector<4x4xbf16>, vector<4x256xbf16>, vector<4x256xf32> -> vector<4x256xf32>
    %90 = vector.extract_strided_slice %89 {offsets = [0, 17], sizes = [4, 239], strides = [1, 1]} : vector<4x256xf32> to vector<4x239xf32>
    %91 = vector.extract_strided_slice %89 {offsets = [0, 0], sizes = [4, 17], strides = [1, 1]} : vector<4x256xf32> to vector<4x17xf32>
    %92 = tpu.concatenate %90, %91 in 1 : vector<4x239xf32>, vector<4x17xf32> -> vector<4x256xf32>
    %c8_55 = arith.constant 8 : index
    %c0_56 = arith.constant 0 : index
    %c0_57 = arith.constant 0 : index
    %93 = vector.load %arg2[%c8_55, %c0_56, %c0_57] : memref<9x1x256xf32, #tpu.memory_space<vmem>>, vector<1x1x256xf32>
    %94 = vector.shape_cast %93 : vector<1x1x256xf32> to vector<1x256xf32>
    %95 = vector.broadcast %94 : vector<1x256xf32> to vector<4x256xf32>
    %96 = arith.mulf %92, %95 : vector<4x256xf32>
    %97 = arith.addf %86, %96 : vector<4x256xf32>
    %c0_58 = arith.constant 0 : index
    %c0_59 = arith.constant 0 : index
    %98 = vector.load %arg8[%c0_58, %c0_59] : memref<4x1xf32, #tpu.memory_space<vmem>>, vector<4x1xf32>
    %99 = vector.broadcast %98 : vector<4x1xf32> to vector<4x256xf32>
    %100 = arith.addf %97, %99 : vector<4x256xf32>
    %cst_60 = arith.constant 0.000000e+00 : f32
    %101 = vector.broadcast %cst_60 : f32 to vector<4x256xf32>
    %102 = arith.cmpf oge, %100, %101 : vector<4x256xf32>
    %cst_61 = arith.constant 2.000000e-01 : f32
    %103 = vector.broadcast %cst_61 : f32 to vector<4x256xf32>
    %104 = arith.mulf %103, %100 : vector<4x256xf32>
    %105 = arith.select %102, %100, %104 : vector<4x256xi1>, vector<4x256xf32>
    %c4_62 = arith.constant 4 : index
    %c0_63 = arith.constant 0 : index
    %106 = vector.load %arg14[%c4_62, %c0_63] : memref<20x256xf32, #tpu.memory_space<vmem>>, vector<4x256xf32>
    tpu.vector_store %arg14[%c4_62, %c0_63], %105 {strides = array<i32>} : memref<20x256xf32, #tpu.memory_space<vmem>>, vector<4x256xf32>,
    %c0_64 = arith.constant 0 : index
    %c0_65 = arith.constant 0 : index
    %107 = vector.load %arg14[%c0_64, %c0_65] : memref<20x256xf32, #tpu.memory_space<vmem>>, vector<8x256xf32>
    %108 = arith.truncf %107 : vector<8x256xf32> to vector<8x256xbf16>
    %cst_66 = arith.constant 0.000000e+00 : f32
    %109 = vector.broadcast %cst_66 : f32 to vector<4x256xf32>
    %c0_67 = arith.constant 0 : index
    %c0_68 = arith.constant 0 : index
    %c0_69 = arith.constant 0 : index
    %110 = vector.load %arg4[%c0_67, %c0_68, %c0_69] : memref<9x4x8xbf16, #tpu.memory_space<vmem>>, vector<1x4x8xbf16>
    %111 = vector.shape_cast %110 : vector<1x4x8xbf16> to vector<4x8xbf16>
    %cst_70 = arith.constant dense<0.000000e+00> : vector<4x256xf32>
    %112 = tpu.matmul %111, %108, %cst_70 {dimension_numbers = #tpu.dot_dimension_numbers<[1], [0], [0], [1], [0, 0, 1, 1], [], []>} : vector<4x8xbf16>, vector<8x256xbf16>, vector<4x256xf32> -> vector<4x256xf32>
    %113 = vector.extract_strided_slice %112 {offsets = [0, 239], sizes = [4, 17], strides = [1, 1]} : vector<4x256xf32> to vector<4x17xf32>
    %114 = vector.extract_strided_slice %112 {offsets = [0, 0], sizes = [4, 239], strides = [1, 1]} : vector<4x256xf32> to vector<4x239xf32>
    %115 = tpu.concatenate %113, %114 in 1 : vector<4x17xf32>, vector<4x239xf32> -> vector<4x256xf32>
    %c0_71 = arith.constant 0 : index
    %c0_72 = arith.constant 0 : index
    %c0_73 = arith.constant 0 : index
    %116 = vector.load %arg2[%c0_71, %c0_72, %c0_73] : memref<9x1x256xf32, #tpu.memory_space<vmem>>, vector<1x1x256xf32>
    %117 = vector.shape_cast %116 : vector<1x1x256xf32> to vector<1x256xf32>
    %118 = vector.broadcast %117 : vector<1x256xf32> to vector<4x256xf32>
    %119 = arith.mulf %115, %118 : vector<4x256xf32>
    %120 = arith.addf %109, %119 : vector<4x256xf32>
    %c1_74 = arith.constant 1 : index
    %c0_75 = arith.constant 0 : index
    %c0_76 = arith.constant 0 : index
    %121 = vector.load %arg4[%c1_74, %c0_75, %c0_76] : memref<9x4x8xbf16, #tpu.memory_space<vmem>>, vector<1x4x8xbf16>
    %122 = vector.shape_cast %121 : vector<1x4x8xbf16> to vector<4x8xbf16>
    %cst_77 = arith.constant dense<0.000000e+00> : vector<4x256xf32>
    %123 = tpu.matmul %122, %108, %cst_77 {dimension_numbers = #tpu.dot_dimension_numbers<[1], [0], [0], [1], [0, 0, 1, 1], [], []>} : vector<4x8xbf16>, vector<8x256xbf16>, vector<4x256xf32> -> vector<4x256xf32>
    %124 = vector.extract_strided_slice %123 {offsets = [0, 240], sizes = [4, 16], strides = [1, 1]} : vector<4x256xf32> to vector<4x16xf32>
    %125 = vector.extract_strided_slice %123 {offsets = [0, 0], sizes = [4, 240], strides = [1, 1]} : vector<4x256xf32> to vector<4x240xf32>
    %126 = tpu.concatenate %124, %125 in 1 : vector<4x16xf32>, vector<4x240xf32> -> vector<4x256xf32>
    %c1_78 = arith.constant 1 : index
    %c0_79 = arith.constant 0 : index
    %c0_80 = arith.constant 0 : index
    %127 = vector.load %arg2[%c1_78, %c0_79, %c0_80] : memref<9x1x256xf32, #tpu.memory_space<vmem>>, vector<1x1x256xf32>
    %128 = vector.shape_cast %127 : vector<1x1x256xf32> to vector<1x256xf32>
    %129 = vector.broadcast %128 : vector<1x256xf32> to vector<4x256xf32>
    %130 = arith.mulf %126, %129 : vector<4x256xf32>
    %131 = arith.addf %120, %130 : vector<4x256xf32>
    %c2_81 = arith.constant 2 : index
    %c0_82 = arith.constant 0 : index
    %c0_83 = arith.constant 0 : index
    %132 = vector.load %arg4[%c2_81, %c0_82, %c0_83] : memref<9x4x8xbf16, #tpu.memory_space<vmem>>, vector<1x4x8xbf16>
    %133 = vector.shape_cast %132 : vector<1x4x8xbf16> to vector<4x8xbf16>
    %cst_84 = arith.constant dense<0.000000e+00> : vector<4x256xf32>
    %134 = tpu.matmul %133, %108, %cst_84 {dimension_numbers = #tpu.dot_dimension_numbers<[1], [0], [0], [1], [0, 0, 1, 1], [], []>} : vector<4x8xbf16>, vector<8x256xbf16>, vector<4x256xf32> -> vector<4x256xf32>
    %135 = vector.extract_strided_slice %134 {offsets = [0, 241], sizes = [4, 15], strides = [1, 1]} : vector<4x256xf32> to vector<4x15xf32>
    %136 = vector.extract_strided_slice %134 {offsets = [0, 0], sizes = [4, 241], strides = [1, 1]} : vector<4x256xf32> to vector<4x241xf32>
    %137 = tpu.concatenate %135, %136 in 1 : vector<4x15xf32>, vector<4x241xf32> -> vector<4x256xf32>
    %c2_85 = arith.constant 2 : index
    %c0_86 = arith.constant 0 : index
    %c0_87 = arith.constant 0 : index
    %138 = vector.load %arg2[%c2_85, %c0_86, %c0_87] : memref<9x1x256xf32, #tpu.memory_space<vmem>>, vector<1x1x256xf32>
    %139 = vector.shape_cast %138 : vector<1x1x256xf32> to vector<1x256xf32>
    %140 = vector.broadcast %139 : vector<1x256xf32> to vector<4x256xf32>
    %141 = arith.mulf %137, %140 : vector<4x256xf32>
    %142 = arith.addf %131, %141 : vector<4x256xf32>
    %c3_88 = arith.constant 3 : index
    %c0_89 = arith.constant 0 : index
    %c0_90 = arith.constant 0 : index
    %143 = vector.load %arg4[%c3_88, %c0_89, %c0_90] : memref<9x4x8xbf16, #tpu.memory_space<vmem>>, vector<1x4x8xbf16>
    %144 = vector.shape_cast %143 : vector<1x4x8xbf16> to vector<4x8xbf16>
    %cst_91 = arith.constant dense<0.000000e+00> : vector<4x256xf32>
    %145 = tpu.matmul %144, %108, %cst_91 {dimension_numbers = #tpu.dot_dimension_numbers<[1], [0], [0], [1], [0, 0, 1, 1], [], []>} : vector<4x8xbf16>, vector<8x256xbf16>, vector<4x256xf32> -> vector<4x256xf32>
    %146 = vector.extract_strided_slice %145 {offsets = [0, 255], sizes = [4, 1], strides = [1, 1]} : vector<4x256xf32> to vector<4x1xf32>
    %147 = vector.extract_strided_slice %145 {offsets = [0, 0], sizes = [4, 255], strides = [1, 1]} : vector<4x256xf32> to vector<4x255xf32>
    %148 = tpu.concatenate %146, %147 in 1 : vector<4x1xf32>, vector<4x255xf32> -> vector<4x256xf32>
    %c3_92 = arith.constant 3 : index
    %c0_93 = arith.constant 0 : index
    %c0_94 = arith.constant 0 : index
    %149 = vector.load %arg2[%c3_92, %c0_93, %c0_94] : memref<9x1x256xf32, #tpu.memory_space<vmem>>, vector<1x1x256xf32>
    %150 = vector.shape_cast %149 : vector<1x1x256xf32> to vector<1x256xf32>
    %151 = vector.broadcast %150 : vector<1x256xf32> to vector<4x256xf32>
    %152 = arith.mulf %148, %151 : vector<4x256xf32>
    %153 = arith.addf %142, %152 : vector<4x256xf32>
    %c4_95 = arith.constant 4 : index
    %c0_96 = arith.constant 0 : index
    %c0_97 = arith.constant 0 : index
    %154 = vector.load %arg4[%c4_95, %c0_96, %c0_97] : memref<9x4x8xbf16, #tpu.memory_space<vmem>>, vector<1x4x8xbf16>
    %155 = vector.shape_cast %154 : vector<1x4x8xbf16> to vector<4x8xbf16>
    %cst_98 = arith.constant dense<0.000000e+00> : vector<4x256xf32>
    %156 = tpu.matmul %155, %108, %cst_98 {dimension_numbers = #tpu.dot_dimension_numbers<[1], [0], [0], [1], [0, 0, 1, 1], [], []>} : vector<4x8xbf16>, vector<8x256xbf16>, vector<4x256xf32> -> vector<4x256xf32>
    %157 = arith.addf %153, %156 : vector<4x256xf32>
    %c5_99 = arith.constant 5 : index
    %c0_100 = arith.constant 0 : index
    %c0_101 = arith.constant 0 : index
    %158 = vector.load %arg4[%c5_99, %c0_100, %c0_101] : memref<9x4x8xbf16, #tpu.memory_space<vmem>>, vector<1x4x8xbf16>
    %159 = vector.shape_cast %158 : vector<1x4x8xbf16> to vector<4x8xbf16>
    %cst_102 = arith.constant dense<0.000000e+00> : vector<4x256xf32>
    %160 = tpu.matmul %159, %108, %cst_102 {dimension_numbers = #tpu.dot_dimension_numbers<[1], [0], [0], [1], [0, 0, 1, 1], [], []>} : vector<4x8xbf16>, vector<8x256xbf16>, vector<4x256xf32> -> vector<4x256xf32>
    %161 = vector.extract_strided_slice %160 {offsets = [0, 1], sizes = [4, 255], strides = [1, 1]} : vector<4x256xf32> to vector<4x255xf32>
    %162 = vector.extract_strided_slice %160 {offsets = [0, 0], sizes = [4, 1], strides = [1, 1]} : vector<4x256xf32> to vector<4x1xf32>
    %163 = tpu.concatenate %161, %162 in 1 : vector<4x255xf32>, vector<4x1xf32> -> vector<4x256xf32>
    %c5_103 = arith.constant 5 : index
    %c0_104 = arith.constant 0 : index
    %c0_105 = arith.constant 0 : index
    %164 = vector.load %arg2[%c5_103, %c0_104, %c0_105] : memref<9x1x256xf32, #tpu.memory_space<vmem>>, vector<1x1x256xf32>
    %165 = vector.shape_cast %164 : vector<1x1x256xf32> to vector<1x256xf32>
    %166 = vector.broadcast %165 : vector<1x256xf32> to vector<4x256xf32>
    %167 = arith.mulf %163, %166 : vector<4x256xf32>
    %168 = arith.addf %157, %167 : vector<4x256xf32>
    %c6_106 = arith.constant 6 : index
    %c0_107 = arith.constant 0 : index
    %c0_108 = arith.constant 0 : index
    %169 = vector.load %arg4[%c6_106, %c0_107, %c0_108] : memref<9x4x8xbf16, #tpu.memory_space<vmem>>, vector<1x4x8xbf16>
    %170 = vector.shape_cast %169 : vector<1x4x8xbf16> to vector<4x8xbf16>
    %cst_109 = arith.constant dense<0.000000e+00> : vector<4x256xf32>
    %171 = tpu.matmul %170, %108, %cst_109 {dimension_numbers = #tpu.dot_dimension_numbers<[1], [0], [0], [1], [0, 0, 1, 1], [], []>} : vector<4x8xbf16>, vector<8x256xbf16>, vector<4x256xf32> -> vector<4x256xf32>
    %172 = vector.extract_strided_slice %171 {offsets = [0, 15], sizes = [4, 241], strides = [1, 1]} : vector<4x256xf32> to vector<4x241xf32>
    %173 = vector.extract_strided_slice %171 {offsets = [0, 0], sizes = [4, 15], strides = [1, 1]} : vector<4x256xf32> to vector<4x15xf32>
    %174 = tpu.concatenate %172, %173 in 1 : vector<4x241xf32>, vector<4x15xf32> -> vector<4x256xf32>
    %c6_110 = arith.constant 6 : index
    %c0_111 = arith.constant 0 : index
    %c0_112 = arith.constant 0 : index
    %175 = vector.load %arg2[%c6_110, %c0_111, %c0_112] : memref<9x1x256xf32, #tpu.memory_space<vmem>>, vector<1x1x256xf32>
    %176 = vector.shape_cast %175 : vector<1x1x256xf32> to vector<1x256xf32>
    %177 = vector.broadcast %176 : vector<1x256xf32> to vector<4x256xf32>
    %178 = arith.mulf %174, %177 : vector<4x256xf32>
    %179 = arith.addf %168, %178 : vector<4x256xf32>
    %c7_113 = arith.constant 7 : index
    %c0_114 = arith.constant 0 : index
    %c0_115 = arith.constant 0 : index
    %180 = vector.load %arg4[%c7_113, %c0_114, %c0_115] : memref<9x4x8xbf16, #tpu.memory_space<vmem>>, vector<1x4x8xbf16>
    %181 = vector.shape_cast %180 : vector<1x4x8xbf16> to vector<4x8xbf16>
    %cst_116 = arith.constant dense<0.000000e+00> : vector<4x256xf32>
    %182 = tpu.matmul %181, %108, %cst_116 {dimension_numbers = #tpu.dot_dimension_numbers<[1], [0], [0], [1], [0, 0, 1, 1], [], []>} : vector<4x8xbf16>, vector<8x256xbf16>, vector<4x256xf32> -> vector<4x256xf32>
    %183 = vector.extract_strided_slice %182 {offsets = [0, 16], sizes = [4, 240], strides = [1, 1]} : vector<4x256xf32> to vector<4x240xf32>
    %184 = vector.extract_strided_slice %182 {offsets = [0, 0], sizes = [4, 16], strides = [1, 1]} : vector<4x256xf32> to vector<4x16xf32>
    %185 = tpu.concatenate %183, %184 in 1 : vector<4x240xf32>, vector<4x16xf32> -> vector<4x256xf32>
    %c7_117 = arith.constant 7 : index
    %c0_118 = arith.constant 0 : index
    %c0_119 = arith.constant 0 : index
    %186 = vector.load %arg2[%c7_117, %c0_118, %c0_119] : memref<9x1x256xf32, #tpu.memory_space<vmem>>, vector<1x1x256xf32>
    %187 = vector.shape_cast %186 : vector<1x1x256xf32> to vector<1x256xf32>
    %188 = vector.broadcast %187 : vector<1x256xf32> to vector<4x256xf32>
    %189 = arith.mulf %185, %188 : vector<4x256xf32>
    %190 = arith.addf %179, %189 : vector<4x256xf32>
    %c8_120 = arith.constant 8 : index
    %c0_121 = arith.constant 0 : index
    %c0_122 = arith.constant 0 : index
    %191 = vector.load %arg4[%c8_120, %c0_121, %c0_122] : memref<9x4x8xbf16, #tpu.memory_space<vmem>>, vector<1x4x8xbf16>
    %192 = vector.shape_cast %191 : vector<1x4x8xbf16> to vector<4x8xbf16>
    %cst_123 = arith.constant dense<0.000000e+00> : vector<4x256xf32>
    %193 = tpu.matmul %192, %108, %cst_123 {dimension_numbers = #tpu.dot_dimension_numbers<[1], [0], [0], [1], [0, 0, 1, 1], [], []>} : vector<4x8xbf16>, vector<8x256xbf16>, vector<4x256xf32> -> vector<4x256xf32>
    %194 = vector.extract_strided_slice %193 {offsets = [0, 17], sizes = [4, 239], strides = [1, 1]} : vector<4x256xf32> to vector<4x239xf32>
    %195 = vector.extract_strided_slice %193 {offsets = [0, 0], sizes = [4, 17], strides = [1, 1]} : vector<4x256xf32> to vector<4x17xf32>
    %196 = tpu.concatenate %194, %195 in 1 : vector<4x239xf32>, vector<4x17xf32> -> vector<4x256xf32>
    %c8_124 = arith.constant 8 : index
    %c0_125 = arith.constant 0 : index
    %c0_126 = arith.constant 0 : index
    %197 = vector.load %arg2[%c8_124, %c0_125, %c0_126] : memref<9x1x256xf32, #tpu.memory_space<vmem>>, vector<1x1x256xf32>
    %198 = vector.shape_cast %197 : vector<1x1x256xf32> to vector<1x256xf32>
    %199 = vector.broadcast %198 : vector<1x256xf32> to vector<4x256xf32>
    %200 = arith.mulf %196, %199 : vector<4x256xf32>
    %201 = arith.addf %190, %200 : vector<4x256xf32>
    %c0_127 = arith.constant 0 : index
    %c0_128 = arith.constant 0 : index
    %202 = vector.load %arg9[%c0_127, %c0_128] : memref<4x1xf32, #tpu.memory_space<vmem>>, vector<4x1xf32>
    %203 = vector.broadcast %202 : vector<4x1xf32> to vector<4x256xf32>
    %204 = arith.addf %201, %203 : vector<4x256xf32>
    %cst_129 = arith.constant 0.000000e+00 : f32
    %205 = vector.broadcast %cst_129 : f32 to vector<4x256xf32>
    %206 = arith.cmpf oge, %204, %205 : vector<4x256xf32>
    %cst_130 = arith.constant 2.000000e-01 : f32
    %207 = vector.broadcast %cst_130 : f32 to vector<4x256xf32>
    %208 = arith.mulf %207, %204 : vector<4x256xf32>
    %209 = arith.select %206, %204, %208 : vector<4x256xi1>, vector<4x256xf32>
    %c8_131 = arith.constant 8 : index
    %c0_132 = arith.constant 0 : index
    %210 = vector.load %arg14[%c8_131, %c0_132] : memref<20x256xf32, #tpu.memory_space<vmem>>, vector<4x256xf32>
    tpu.vector_store %arg14[%c8_131, %c0_132], %209 {strides = array<i32>} : memref<20x256xf32, #tpu.memory_space<vmem>>, vector<4x256xf32>,
    %c0_133 = arith.constant 0 : index
    %c0_134 = arith.constant 0 : index
    %211 = vector.load %arg14[%c0_133, %c0_134] : memref<20x256xf32, #tpu.memory_space<vmem>>, vector<12x256xf32>
    %212 = arith.truncf %211 : vector<12x256xf32> to vector<12x256xbf16>
    %cst_135 = arith.constant 0.000000e+00 : f32
    %213 = vector.broadcast %cst_135 : f32 to vector<4x256xf32>
    %c0_136 = arith.constant 0 : index
    %c0_137 = arith.constant 0 : index
    %c0_138 = arith.constant 0 : index
    %214 = vector.load %arg5[%c0_136, %c0_137, %c0_138] : memref<9x4x12xbf16, #tpu.memory_space<vmem>>, vector<1x4x12xbf16>
    %215 = vector.shape_cast %214 : vector<1x4x12xbf16> to vector<4x12xbf16>
    %cst_139 = arith.constant dense<0.000000e+00> : vector<4x256xf32>
    %216 = tpu.matmul %215, %212, %cst_139 {dimension_numbers = #tpu.dot_dimension_numbers<[1], [0], [0], [1], [0, 0, 1, 1], [], []>} : vector<4x12xbf16>, vector<12x256xbf16>, vector<4x256xf32> -> vector<4x256xf32>
    %217 = vector.extract_strided_slice %216 {offsets = [0, 239], sizes = [4, 17], strides = [1, 1]} : vector<4x256xf32> to vector<4x17xf32>
    %218 = vector.extract_strided_slice %216 {offsets = [0, 0], sizes = [4, 239], strides = [1, 1]} : vector<4x256xf32> to vector<4x239xf32>
    %219 = tpu.concatenate %217, %218 in 1 : vector<4x17xf32>, vector<4x239xf32> -> vector<4x256xf32>
    %c0_140 = arith.constant 0 : index
    %c0_141 = arith.constant 0 : index
    %c0_142 = arith.constant 0 : index
    %220 = vector.load %arg2[%c0_140, %c0_141, %c0_142] : memref<9x1x256xf32, #tpu.memory_space<vmem>>, vector<1x1x256xf32>
    %221 = vector.shape_cast %220 : vector<1x1x256xf32> to vector<1x256xf32>
    %222 = vector.broadcast %221 : vector<1x256xf32> to vector<4x256xf32>
    %223 = arith.mulf %219, %222 : vector<4x256xf32>
    %224 = arith.addf %213, %223 : vector<4x256xf32>
    %c1_143 = arith.constant 1 : index
    %c0_144 = arith.constant 0 : index
    %c0_145 = arith.constant 0 : index
    %225 = vector.load %arg5[%c1_143, %c0_144, %c0_145] : memref<9x4x12xbf16, #tpu.memory_space<vmem>>, vector<1x4x12xbf16>
    %226 = vector.shape_cast %225 : vector<1x4x12xbf16> to vector<4x12xbf16>
    %cst_146 = arith.constant dense<0.000000e+00> : vector<4x256xf32>
    %227 = tpu.matmul %226, %212, %cst_146 {dimension_numbers = #tpu.dot_dimension_numbers<[1], [0], [0], [1], [0, 0, 1, 1], [], []>} : vector<4x12xbf16>, vector<12x256xbf16>, vector<4x256xf32> -> vector<4x256xf32>
    %228 = vector.extract_strided_slice %227 {offsets = [0, 240], sizes = [4, 16], strides = [1, 1]} : vector<4x256xf32> to vector<4x16xf32>
    %229 = vector.extract_strided_slice %227 {offsets = [0, 0], sizes = [4, 240], strides = [1, 1]} : vector<4x256xf32> to vector<4x240xf32>
    %230 = tpu.concatenate %228, %229 in 1 : vector<4x16xf32>, vector<4x240xf32> -> vector<4x256xf32>
    %c1_147 = arith.constant 1 : index
    %c0_148 = arith.constant 0 : index
    %c0_149 = arith.constant 0 : index
    %231 = vector.load %arg2[%c1_147, %c0_148, %c0_149] : memref<9x1x256xf32, #tpu.memory_space<vmem>>, vector<1x1x256xf32>
    %232 = vector.shape_cast %231 : vector<1x1x256xf32> to vector<1x256xf32>
    %233 = vector.broadcast %232 : vector<1x256xf32> to vector<4x256xf32>
    %234 = arith.mulf %230, %233 : vector<4x256xf32>
    %235 = arith.addf %224, %234 : vector<4x256xf32>
    %c2_150 = arith.constant 2 : index
    %c0_151 = arith.constant 0 : index
    %c0_152 = arith.constant 0 : index
    %236 = vector.load %arg5[%c2_150, %c0_151, %c0_152] : memref<9x4x12xbf16, #tpu.memory_space<vmem>>, vector<1x4x12xbf16>
    %237 = vector.shape_cast %236 : vector<1x4x12xbf16> to vector<4x12xbf16>
    %cst_153 = arith.constant dense<0.000000e+00> : vector<4x256xf32>
    %238 = tpu.matmul %237, %212, %cst_153 {dimension_numbers = #tpu.dot_dimension_numbers<[1], [0], [0], [1], [0, 0, 1, 1], [], []>} : vector<4x12xbf16>, vector<12x256xbf16>, vector<4x256xf32> -> vector<4x256xf32>
    %239 = vector.extract_strided_slice %238 {offsets = [0, 241], sizes = [4, 15], strides = [1, 1]} : vector<4x256xf32> to vector<4x15xf32>
    %240 = vector.extract_strided_slice %238 {offsets = [0, 0], sizes = [4, 241], strides = [1, 1]} : vector<4x256xf32> to vector<4x241xf32>
    %241 = tpu.concatenate %239, %240 in 1 : vector<4x15xf32>, vector<4x241xf32> -> vector<4x256xf32>
    %c2_154 = arith.constant 2 : index
    %c0_155 = arith.constant 0 : index
    %c0_156 = arith.constant 0 : index
    %242 = vector.load %arg2[%c2_154, %c0_155, %c0_156] : memref<9x1x256xf32, #tpu.memory_space<vmem>>, vector<1x1x256xf32>
    %243 = vector.shape_cast %242 : vector<1x1x256xf32> to vector<1x256xf32>
    %244 = vector.broadcast %243 : vector<1x256xf32> to vector<4x256xf32>
    %245 = arith.mulf %241, %244 : vector<4x256xf32>
    %246 = arith.addf %235, %245 : vector<4x256xf32>
    %c3_157 = arith.constant 3 : index
    %c0_158 = arith.constant 0 : index
    %c0_159 = arith.constant 0 : index
    %247 = vector.load %arg5[%c3_157, %c0_158, %c0_159] : memref<9x4x12xbf16, #tpu.memory_space<vmem>>, vector<1x4x12xbf16>
    %248 = vector.shape_cast %247 : vector<1x4x12xbf16> to vector<4x12xbf16>
    %cst_160 = arith.constant dense<0.000000e+00> : vector<4x256xf32>
    %249 = tpu.matmul %248, %212, %cst_160 {dimension_numbers = #tpu.dot_dimension_numbers<[1], [0], [0], [1], [0, 0, 1, 1], [], []>} : vector<4x12xbf16>, vector<12x256xbf16>, vector<4x256xf32> -> vector<4x256xf32>
    %250 = vector.extract_strided_slice %249 {offsets = [0, 255], sizes = [4, 1], strides = [1, 1]} : vector<4x256xf32> to vector<4x1xf32>
    %251 = vector.extract_strided_slice %249 {offsets = [0, 0], sizes = [4, 255], strides = [1, 1]} : vector<4x256xf32> to vector<4x255xf32>
    %252 = tpu.concatenate %250, %251 in 1 : vector<4x1xf32>, vector<4x255xf32> -> vector<4x256xf32>
    %c3_161 = arith.constant 3 : index
    %c0_162 = arith.constant 0 : index
    %c0_163 = arith.constant 0 : index
    %253 = vector.load %arg2[%c3_161, %c0_162, %c0_163] : memref<9x1x256xf32, #tpu.memory_space<vmem>>, vector<1x1x256xf32>
    %254 = vector.shape_cast %253 : vector<1x1x256xf32> to vector<1x256xf32>
    %255 = vector.broadcast %254 : vector<1x256xf32> to vector<4x256xf32>
    %256 = arith.mulf %252, %255 : vector<4x256xf32>
    %257 = arith.addf %246, %256 : vector<4x256xf32>
    %c4_164 = arith.constant 4 : index
    %c0_165 = arith.constant 0 : index
    %c0_166 = arith.constant 0 : index
    %258 = vector.load %arg5[%c4_164, %c0_165, %c0_166] : memref<9x4x12xbf16, #tpu.memory_space<vmem>>, vector<1x4x12xbf16>
    %259 = vector.shape_cast %258 : vector<1x4x12xbf16> to vector<4x12xbf16>
    %cst_167 = arith.constant dense<0.000000e+00> : vector<4x256xf32>
    %260 = tpu.matmul %259, %212, %cst_167 {dimension_numbers = #tpu.dot_dimension_numbers<[1], [0], [0], [1], [0, 0, 1, 1], [], []>} : vector<4x12xbf16>, vector<12x256xbf16>, vector<4x256xf32> -> vector<4x256xf32>
    %261 = arith.addf %257, %260 : vector<4x256xf32>
    %c5_168 = arith.constant 5 : index
    %c0_169 = arith.constant 0 : index
    %c0_170 = arith.constant 0 : index
    %262 = vector.load %arg5[%c5_168, %c0_169, %c0_170] : memref<9x4x12xbf16, #tpu.memory_space<vmem>>, vector<1x4x12xbf16>
    %263 = vector.shape_cast %262 : vector<1x4x12xbf16> to vector<4x12xbf16>
    %cst_171 = arith.constant dense<0.000000e+00> : vector<4x256xf32>
    %264 = tpu.matmul %263, %212, %cst_171 {dimension_numbers = #tpu.dot_dimension_numbers<[1], [0], [0], [1], [0, 0, 1, 1], [], []>} : vector<4x12xbf16>, vector<12x256xbf16>, vector<4x256xf32> -> vector<4x256xf32>
    %265 = vector.extract_strided_slice %264 {offsets = [0, 1], sizes = [4, 255], strides = [1, 1]} : vector<4x256xf32> to vector<4x255xf32>
    %266 = vector.extract_strided_slice %264 {offsets = [0, 0], sizes = [4, 1], strides = [1, 1]} : vector<4x256xf32> to vector<4x1xf32>
    %267 = tpu.concatenate %265, %266 in 1 : vector<4x255xf32>, vector<4x1xf32> -> vector<4x256xf32>
    %c5_172 = arith.constant 5 : index
    %c0_173 = arith.constant 0 : index
    %c0_174 = arith.constant 0 : index
    %268 = vector.load %arg2[%c5_172, %c0_173, %c0_174] : memref<9x1x256xf32, #tpu.memory_space<vmem>>, vector<1x1x256xf32>
    %269 = vector.shape_cast %268 : vector<1x1x256xf32> to vector<1x256xf32>
    %270 = vector.broadcast %269 : vector<1x256xf32> to vector<4x256xf32>
    %271 = arith.mulf %267, %270 : vector<4x256xf32>
    %272 = arith.addf %261, %271 : vector<4x256xf32>
    %c6_175 = arith.constant 6 : index
    %c0_176 = arith.constant 0 : index
    %c0_177 = arith.constant 0 : index
    %273 = vector.load %arg5[%c6_175, %c0_176, %c0_177] : memref<9x4x12xbf16, #tpu.memory_space<vmem>>, vector<1x4x12xbf16>
    %274 = vector.shape_cast %273 : vector<1x4x12xbf16> to vector<4x12xbf16>
    %cst_178 = arith.constant dense<0.000000e+00> : vector<4x256xf32>
    %275 = tpu.matmul %274, %212, %cst_178 {dimension_numbers = #tpu.dot_dimension_numbers<[1], [0], [0], [1], [0, 0, 1, 1], [], []>} : vector<4x12xbf16>, vector<12x256xbf16>, vector<4x256xf32> -> vector<4x256xf32>
    %276 = vector.extract_strided_slice %275 {offsets = [0, 15], sizes = [4, 241], strides = [1, 1]} : vector<4x256xf32> to vector<4x241xf32>
    %277 = vector.extract_strided_slice %275 {offsets = [0, 0], sizes = [4, 15], strides = [1, 1]} : vector<4x256xf32> to vector<4x15xf32>
    %278 = tpu.concatenate %276, %277 in 1 : vector<4x241xf32>, vector<4x15xf32> -> vector<4x256xf32>
    %c6_179 = arith.constant 6 : index
    %c0_180 = arith.constant 0 : index
    %c0_181 = arith.constant 0 : index
    %279 = vector.load %arg2[%c6_179, %c0_180, %c0_181] : memref<9x1x256xf32, #tpu.memory_space<vmem>>, vector<1x1x256xf32>
    %280 = vector.shape_cast %279 : vector<1x1x256xf32> to vector<1x256xf32>
    %281 = vector.broadcast %280 : vector<1x256xf32> to vector<4x256xf32>
    %282 = arith.mulf %278, %281 : vector<4x256xf32>
    %283 = arith.addf %272, %282 : vector<4x256xf32>
    %c7_182 = arith.constant 7 : index
    %c0_183 = arith.constant 0 : index
    %c0_184 = arith.constant 0 : index
    %284 = vector.load %arg5[%c7_182, %c0_183, %c0_184] : memref<9x4x12xbf16, #tpu.memory_space<vmem>>, vector<1x4x12xbf16>
    %285 = vector.shape_cast %284 : vector<1x4x12xbf16> to vector<4x12xbf16>
    %cst_185 = arith.constant dense<0.000000e+00> : vector<4x256xf32>
    %286 = tpu.matmul %285, %212, %cst_185 {dimension_numbers = #tpu.dot_dimension_numbers<[1], [0], [0], [1], [0, 0, 1, 1], [], []>} : vector<4x12xbf16>, vector<12x256xbf16>, vector<4x256xf32> -> vector<4x256xf32>
    %287 = vector.extract_strided_slice %286 {offsets = [0, 16], sizes = [4, 240], strides = [1, 1]} : vector<4x256xf32> to vector<4x240xf32>
    %288 = vector.extract_strided_slice %286 {offsets = [0, 0], sizes = [4, 16], strides = [1, 1]} : vector<4x256xf32> to vector<4x16xf32>
    %289 = tpu.concatenate %287, %288 in 1 : vector<4x240xf32>, vector<4x16xf32> -> vector<4x256xf32>
    %c7_186 = arith.constant 7 : index
    %c0_187 = arith.constant 0 : index
    %c0_188 = arith.constant 0 : index
    %290 = vector.load %arg2[%c7_186, %c0_187, %c0_188] : memref<9x1x256xf32, #tpu.memory_space<vmem>>, vector<1x1x256xf32>
    %291 = vector.shape_cast %290 : vector<1x1x256xf32> to vector<1x256xf32>
    %292 = vector.broadcast %291 : vector<1x256xf32> to vector<4x256xf32>
    %293 = arith.mulf %289, %292 : vector<4x256xf32>
    %294 = arith.addf %283, %293 : vector<4x256xf32>
    %c8_189 = arith.constant 8 : index
    %c0_190 = arith.constant 0 : index
    %c0_191 = arith.constant 0 : index
    %295 = vector.load %arg5[%c8_189, %c0_190, %c0_191] : memref<9x4x12xbf16, #tpu.memory_space<vmem>>, vector<1x4x12xbf16>
    %296 = vector.shape_cast %295 : vector<1x4x12xbf16> to vector<4x12xbf16>
    %cst_192 = arith.constant dense<0.000000e+00> : vector<4x256xf32>
    %297 = tpu.matmul %296, %212, %cst_192 {dimension_numbers = #tpu.dot_dimension_numbers<[1], [0], [0], [1], [0, 0, 1, 1], [], []>} : vector<4x12xbf16>, vector<12x256xbf16>, vector<4x256xf32> -> vector<4x256xf32>
    %298 = vector.extract_strided_slice %297 {offsets = [0, 17], sizes = [4, 239], strides = [1, 1]} : vector<4x256xf32> to vector<4x239xf32>
    %299 = vector.extract_strided_slice %297 {offsets = [0, 0], sizes = [4, 17], strides = [1, 1]} : vector<4x256xf32> to vector<4x17xf32>
    %300 = tpu.concatenate %298, %299 in 1 : vector<4x239xf32>, vector<4x17xf32> -> vector<4x256xf32>
    %c8_193 = arith.constant 8 : index
    %c0_194 = arith.constant 0 : index
    %c0_195 = arith.constant 0 : index
    %301 = vector.load %arg2[%c8_193, %c0_194, %c0_195] : memref<9x1x256xf32, #tpu.memory_space<vmem>>, vector<1x1x256xf32>
    %302 = vector.shape_cast %301 : vector<1x1x256xf32> to vector<1x256xf32>
    %303 = vector.broadcast %302 : vector<1x256xf32> to vector<4x256xf32>
    %304 = arith.mulf %300, %303 : vector<4x256xf32>
    %305 = arith.addf %294, %304 : vector<4x256xf32>
    %c0_196 = arith.constant 0 : index
    %c0_197 = arith.constant 0 : index
    %306 = vector.load %arg10[%c0_196, %c0_197] : memref<4x1xf32, #tpu.memory_space<vmem>>, vector<4x1xf32>
    %307 = vector.broadcast %306 : vector<4x1xf32> to vector<4x256xf32>
    %308 = arith.addf %305, %307 : vector<4x256xf32>
    %cst_198 = arith.constant 0.000000e+00 : f32
    %309 = vector.broadcast %cst_198 : f32 to vector<4x256xf32>
    %310 = arith.cmpf oge, %308, %309 : vector<4x256xf32>
    %cst_199 = arith.constant 2.000000e-01 : f32
    %311 = vector.broadcast %cst_199 : f32 to vector<4x256xf32>
    %312 = arith.mulf %311, %308 : vector<4x256xf32>
    %313 = arith.select %310, %308, %312 : vector<4x256xi1>, vector<4x256xf32>
    %c12 = arith.constant 12 : index
    %c0_200 = arith.constant 0 : index
    %314 = vector.load %arg14[%c12, %c0_200] : memref<20x256xf32, #tpu.memory_space<vmem>>, vector<4x256xf32>
    tpu.vector_store %arg14[%c12, %c0_200], %313 {strides = array<i32>} : memref<20x256xf32, #tpu.memory_space<vmem>>, vector<4x256xf32>,
    %c0_201 = arith.constant 0 : index
    %c0_202 = arith.constant 0 : index
    %315 = vector.load %arg14[%c0_201, %c0_202] : memref<20x256xf32, #tpu.memory_space<vmem>>, vector<16x256xf32>
    %316 = arith.truncf %315 : vector<16x256xf32> to vector<16x256xbf16>
    %cst_203 = arith.constant 0.000000e+00 : f32
    %317 = vector.broadcast %cst_203 : f32 to vector<4x256xf32>
    %c0_204 = arith.constant 0 : index
    %c0_205 = arith.constant 0 : index
    %c0_206 = arith.constant 0 : index
    %318 = vector.load %arg6[%c0_204, %c0_205, %c0_206] : memref<9x4x16xbf16, #tpu.memory_space<vmem>>, vector<1x4x16xbf16>
    %319 = vector.shape_cast %318 : vector<1x4x16xbf16> to vector<4x16xbf16>
    %cst_207 = arith.constant dense<0.000000e+00> : vector<4x256xf32>
    %320 = tpu.matmul %319, %316, %cst_207 {dimension_numbers = #tpu.dot_dimension_numbers<[1], [0], [0], [1], [0, 0, 1, 1], [], []>} : vector<4x16xbf16>, vector<16x256xbf16>, vector<4x256xf32> -> vector<4x256xf32>
    %321 = vector.extract_strided_slice %320 {offsets = [0, 239], sizes = [4, 17], strides = [1, 1]} : vector<4x256xf32> to vector<4x17xf32>
    %322 = vector.extract_strided_slice %320 {offsets = [0, 0], sizes = [4, 239], strides = [1, 1]} : vector<4x256xf32> to vector<4x239xf32>
    %323 = tpu.concatenate %321, %322 in 1 : vector<4x17xf32>, vector<4x239xf32> -> vector<4x256xf32>
    %c0_208 = arith.constant 0 : index
    %c0_209 = arith.constant 0 : index
    %c0_210 = arith.constant 0 : index
    %324 = vector.load %arg2[%c0_208, %c0_209, %c0_210] : memref<9x1x256xf32, #tpu.memory_space<vmem>>, vector<1x1x256xf32>
    %325 = vector.shape_cast %324 : vector<1x1x256xf32> to vector<1x256xf32>
    %326 = vector.broadcast %325 : vector<1x256xf32> to vector<4x256xf32>
    %327 = arith.mulf %323, %326 : vector<4x256xf32>
    %328 = arith.addf %317, %327 : vector<4x256xf32>
    %c1_211 = arith.constant 1 : index
    %c0_212 = arith.constant 0 : index
    %c0_213 = arith.constant 0 : index
    %329 = vector.load %arg6[%c1_211, %c0_212, %c0_213] : memref<9x4x16xbf16, #tpu.memory_space<vmem>>, vector<1x4x16xbf16>
    %330 = vector.shape_cast %329 : vector<1x4x16xbf16> to vector<4x16xbf16>
    %cst_214 = arith.constant dense<0.000000e+00> : vector<4x256xf32>
    %331 = tpu.matmul %330, %316, %cst_214 {dimension_numbers = #tpu.dot_dimension_numbers<[1], [0], [0], [1], [0, 0, 1, 1], [], []>} : vector<4x16xbf16>, vector<16x256xbf16>, vector<4x256xf32> -> vector<4x256xf32>
    %332 = vector.extract_strided_slice %331 {offsets = [0, 240], sizes = [4, 16], strides = [1, 1]} : vector<4x256xf32> to vector<4x16xf32>
    %333 = vector.extract_strided_slice %331 {offsets = [0, 0], sizes = [4, 240], strides = [1, 1]} : vector<4x256xf32> to vector<4x240xf32>
    %334 = tpu.concatenate %332, %333 in 1 : vector<4x16xf32>, vector<4x240xf32> -> vector<4x256xf32>
    %c1_215 = arith.constant 1 : index
    %c0_216 = arith.constant 0 : index
    %c0_217 = arith.constant 0 : index
    %335 = vector.load %arg2[%c1_215, %c0_216, %c0_217] : memref<9x1x256xf32, #tpu.memory_space<vmem>>, vector<1x1x256xf32>
    %336 = vector.shape_cast %335 : vector<1x1x256xf32> to vector<1x256xf32>
    %337 = vector.broadcast %336 : vector<1x256xf32> to vector<4x256xf32>
    %338 = arith.mulf %334, %337 : vector<4x256xf32>
    %339 = arith.addf %328, %338 : vector<4x256xf32>
    %c2_218 = arith.constant 2 : index
    %c0_219 = arith.constant 0 : index
    %c0_220 = arith.constant 0 : index
    %340 = vector.load %arg6[%c2_218, %c0_219, %c0_220] : memref<9x4x16xbf16, #tpu.memory_space<vmem>>, vector<1x4x16xbf16>
    %341 = vector.shape_cast %340 : vector<1x4x16xbf16> to vector<4x16xbf16>
    %cst_221 = arith.constant dense<0.000000e+00> : vector<4x256xf32>
    %342 = tpu.matmul %341, %316, %cst_221 {dimension_numbers = #tpu.dot_dimension_numbers<[1], [0], [0], [1], [0, 0, 1, 1], [], []>} : vector<4x16xbf16>, vector<16x256xbf16>, vector<4x256xf32> -> vector<4x256xf32>
    %343 = vector.extract_strided_slice %342 {offsets = [0, 241], sizes = [4, 15], strides = [1, 1]} : vector<4x256xf32> to vector<4x15xf32>
    %344 = vector.extract_strided_slice %342 {offsets = [0, 0], sizes = [4, 241], strides = [1, 1]} : vector<4x256xf32> to vector<4x241xf32>
    %345 = tpu.concatenate %343, %344 in 1 : vector<4x15xf32>, vector<4x241xf32> -> vector<4x256xf32>
    %c2_222 = arith.constant 2 : index
    %c0_223 = arith.constant 0 : index
    %c0_224 = arith.constant 0 : index
    %346 = vector.load %arg2[%c2_222, %c0_223, %c0_224] : memref<9x1x256xf32, #tpu.memory_space<vmem>>, vector<1x1x256xf32>
    %347 = vector.shape_cast %346 : vector<1x1x256xf32> to vector<1x256xf32>
    %348 = vector.broadcast %347 : vector<1x256xf32> to vector<4x256xf32>
    %349 = arith.mulf %345, %348 : vector<4x256xf32>
    %350 = arith.addf %339, %349 : vector<4x256xf32>
    %c3_225 = arith.constant 3 : index
    %c0_226 = arith.constant 0 : index
    %c0_227 = arith.constant 0 : index
    %351 = vector.load %arg6[%c3_225, %c0_226, %c0_227] : memref<9x4x16xbf16, #tpu.memory_space<vmem>>, vector<1x4x16xbf16>
    %352 = vector.shape_cast %351 : vector<1x4x16xbf16> to vector<4x16xbf16>
    %cst_228 = arith.constant dense<0.000000e+00> : vector<4x256xf32>
    %353 = tpu.matmul %352, %316, %cst_228 {dimension_numbers = #tpu.dot_dimension_numbers<[1], [0], [0], [1], [0, 0, 1, 1], [], []>} : vector<4x16xbf16>, vector<16x256xbf16>, vector<4x256xf32> -> vector<4x256xf32>
    %354 = vector.extract_strided_slice %353 {offsets = [0, 255], sizes = [4, 1], strides = [1, 1]} : vector<4x256xf32> to vector<4x1xf32>
    %355 = vector.extract_strided_slice %353 {offsets = [0, 0], sizes = [4, 255], strides = [1, 1]} : vector<4x256xf32> to vector<4x255xf32>
    %356 = tpu.concatenate %354, %355 in 1 : vector<4x1xf32>, vector<4x255xf32> -> vector<4x256xf32>
    %c3_229 = arith.constant 3 : index
    %c0_230 = arith.constant 0 : index
    %c0_231 = arith.constant 0 : index
    %357 = vector.load %arg2[%c3_229, %c0_230, %c0_231] : memref<9x1x256xf32, #tpu.memory_space<vmem>>, vector<1x1x256xf32>
    %358 = vector.shape_cast %357 : vector<1x1x256xf32> to vector<1x256xf32>
    %359 = vector.broadcast %358 : vector<1x256xf32> to vector<4x256xf32>
    %360 = arith.mulf %356, %359 : vector<4x256xf32>
    %361 = arith.addf %350, %360 : vector<4x256xf32>
    %c4_232 = arith.constant 4 : index
    %c0_233 = arith.constant 0 : index
    %c0_234 = arith.constant 0 : index
    %362 = vector.load %arg6[%c4_232, %c0_233, %c0_234] : memref<9x4x16xbf16, #tpu.memory_space<vmem>>, vector<1x4x16xbf16>
    %363 = vector.shape_cast %362 : vector<1x4x16xbf16> to vector<4x16xbf16>
    %cst_235 = arith.constant dense<0.000000e+00> : vector<4x256xf32>
    %364 = tpu.matmul %363, %316, %cst_235 {dimension_numbers = #tpu.dot_dimension_numbers<[1], [0], [0], [1], [0, 0, 1, 1], [], []>} : vector<4x16xbf16>, vector<16x256xbf16>, vector<4x256xf32> -> vector<4x256xf32>
    %365 = arith.addf %361, %364 : vector<4x256xf32>
    %c5_236 = arith.constant 5 : index
    %c0_237 = arith.constant 0 : index
    %c0_238 = arith.constant 0 : index
    %366 = vector.load %arg6[%c5_236, %c0_237, %c0_238] : memref<9x4x16xbf16, #tpu.memory_space<vmem>>, vector<1x4x16xbf16>
    %367 = vector.shape_cast %366 : vector<1x4x16xbf16> to vector<4x16xbf16>
    %cst_239 = arith.constant dense<0.000000e+00> : vector<4x256xf32>
    %368 = tpu.matmul %367, %316, %cst_239 {dimension_numbers = #tpu.dot_dimension_numbers<[1], [0], [0], [1], [0, 0, 1, 1], [], []>} : vector<4x16xbf16>, vector<16x256xbf16>, vector<4x256xf32> -> vector<4x256xf32>
    %369 = vector.extract_strided_slice %368 {offsets = [0, 1], sizes = [4, 255], strides = [1, 1]} : vector<4x256xf32> to vector<4x255xf32>
    %370 = vector.extract_strided_slice %368 {offsets = [0, 0], sizes = [4, 1], strides = [1, 1]} : vector<4x256xf32> to vector<4x1xf32>
    %371 = tpu.concatenate %369, %370 in 1 : vector<4x255xf32>, vector<4x1xf32> -> vector<4x256xf32>
    %c5_240 = arith.constant 5 : index
    %c0_241 = arith.constant 0 : index
    %c0_242 = arith.constant 0 : index
    %372 = vector.load %arg2[%c5_240, %c0_241, %c0_242] : memref<9x1x256xf32, #tpu.memory_space<vmem>>, vector<1x1x256xf32>
    %373 = vector.shape_cast %372 : vector<1x1x256xf32> to vector<1x256xf32>
    %374 = vector.broadcast %373 : vector<1x256xf32> to vector<4x256xf32>
    %375 = arith.mulf %371, %374 : vector<4x256xf32>
    %376 = arith.addf %365, %375 : vector<4x256xf32>
    %c6_243 = arith.constant 6 : index
    %c0_244 = arith.constant 0 : index
    %c0_245 = arith.constant 0 : index
    %377 = vector.load %arg6[%c6_243, %c0_244, %c0_245] : memref<9x4x16xbf16, #tpu.memory_space<vmem>>, vector<1x4x16xbf16>
    %378 = vector.shape_cast %377 : vector<1x4x16xbf16> to vector<4x16xbf16>
    %cst_246 = arith.constant dense<0.000000e+00> : vector<4x256xf32>
    %379 = tpu.matmul %378, %316, %cst_246 {dimension_numbers = #tpu.dot_dimension_numbers<[1], [0], [0], [1], [0, 0, 1, 1], [], []>} : vector<4x16xbf16>, vector<16x256xbf16>, vector<4x256xf32> -> vector<4x256xf32>
    %380 = vector.extract_strided_slice %379 {offsets = [0, 15], sizes = [4, 241], strides = [1, 1]} : vector<4x256xf32> to vector<4x241xf32>
    %381 = vector.extract_strided_slice %379 {offsets = [0, 0], sizes = [4, 15], strides = [1, 1]} : vector<4x256xf32> to vector<4x15xf32>
    %382 = tpu.concatenate %380, %381 in 1 : vector<4x241xf32>, vector<4x15xf32> -> vector<4x256xf32>
    %c6_247 = arith.constant 6 : index
    %c0_248 = arith.constant 0 : index
    %c0_249 = arith.constant 0 : index
    %383 = vector.load %arg2[%c6_247, %c0_248, %c0_249] : memref<9x1x256xf32, #tpu.memory_space<vmem>>, vector<1x1x256xf32>
    %384 = vector.shape_cast %383 : vector<1x1x256xf32> to vector<1x256xf32>
    %385 = vector.broadcast %384 : vector<1x256xf32> to vector<4x256xf32>
    %386 = arith.mulf %382, %385 : vector<4x256xf32>
    %387 = arith.addf %376, %386 : vector<4x256xf32>
    %c7_250 = arith.constant 7 : index
    %c0_251 = arith.constant 0 : index
    %c0_252 = arith.constant 0 : index
    %388 = vector.load %arg6[%c7_250, %c0_251, %c0_252] : memref<9x4x16xbf16, #tpu.memory_space<vmem>>, vector<1x4x16xbf16>
    %389 = vector.shape_cast %388 : vector<1x4x16xbf16> to vector<4x16xbf16>
    %cst_253 = arith.constant dense<0.000000e+00> : vector<4x256xf32>
    %390 = tpu.matmul %389, %316, %cst_253 {dimension_numbers = #tpu.dot_dimension_numbers<[1], [0], [0], [1], [0, 0, 1, 1], [], []>} : vector<4x16xbf16>, vector<16x256xbf16>, vector<4x256xf32> -> vector<4x256xf32>
    %391 = vector.extract_strided_slice %390 {offsets = [0, 16], sizes = [4, 240], strides = [1, 1]} : vector<4x256xf32> to vector<4x240xf32>
    %392 = vector.extract_strided_slice %390 {offsets = [0, 0], sizes = [4, 16], strides = [1, 1]} : vector<4x256xf32> to vector<4x16xf32>
    %393 = tpu.concatenate %391, %392 in 1 : vector<4x240xf32>, vector<4x16xf32> -> vector<4x256xf32>
    %c7_254 = arith.constant 7 : index
    %c0_255 = arith.constant 0 : index
    %c0_256 = arith.constant 0 : index
    %394 = vector.load %arg2[%c7_254, %c0_255, %c0_256] : memref<9x1x256xf32, #tpu.memory_space<vmem>>, vector<1x1x256xf32>
    %395 = vector.shape_cast %394 : vector<1x1x256xf32> to vector<1x256xf32>
    %396 = vector.broadcast %395 : vector<1x256xf32> to vector<4x256xf32>
    %397 = arith.mulf %393, %396 : vector<4x256xf32>
    %398 = arith.addf %387, %397 : vector<4x256xf32>
    %c8_257 = arith.constant 8 : index
    %c0_258 = arith.constant 0 : index
    %c0_259 = arith.constant 0 : index
    %399 = vector.load %arg6[%c8_257, %c0_258, %c0_259] : memref<9x4x16xbf16, #tpu.memory_space<vmem>>, vector<1x4x16xbf16>
    %400 = vector.shape_cast %399 : vector<1x4x16xbf16> to vector<4x16xbf16>
    %cst_260 = arith.constant dense<0.000000e+00> : vector<4x256xf32>
    %401 = tpu.matmul %400, %316, %cst_260 {dimension_numbers = #tpu.dot_dimension_numbers<[1], [0], [0], [1], [0, 0, 1, 1], [], []>} : vector<4x16xbf16>, vector<16x256xbf16>, vector<4x256xf32> -> vector<4x256xf32>
    %402 = vector.extract_strided_slice %401 {offsets = [0, 17], sizes = [4, 239], strides = [1, 1]} : vector<4x256xf32> to vector<4x239xf32>
    %403 = vector.extract_strided_slice %401 {offsets = [0, 0], sizes = [4, 17], strides = [1, 1]} : vector<4x256xf32> to vector<4x17xf32>
    %404 = tpu.concatenate %402, %403 in 1 : vector<4x239xf32>, vector<4x17xf32> -> vector<4x256xf32>
    %c8_261 = arith.constant 8 : index
    %c0_262 = arith.constant 0 : index
    %c0_263 = arith.constant 0 : index
    %405 = vector.load %arg2[%c8_261, %c0_262, %c0_263] : memref<9x1x256xf32, #tpu.memory_space<vmem>>, vector<1x1x256xf32>
    %406 = vector.shape_cast %405 : vector<1x1x256xf32> to vector<1x256xf32>
    %407 = vector.broadcast %406 : vector<1x256xf32> to vector<4x256xf32>
    %408 = arith.mulf %404, %407 : vector<4x256xf32>
    %409 = arith.addf %398, %408 : vector<4x256xf32>
    %c0_264 = arith.constant 0 : index
    %c0_265 = arith.constant 0 : index
    %410 = vector.load %arg11[%c0_264, %c0_265] : memref<4x1xf32, #tpu.memory_space<vmem>>, vector<4x1xf32>
    %411 = vector.broadcast %410 : vector<4x1xf32> to vector<4x256xf32>
    %412 = arith.addf %409, %411 : vector<4x256xf32>
    %cst_266 = arith.constant 0.000000e+00 : f32
    %413 = vector.broadcast %cst_266 : f32 to vector<4x256xf32>
    %414 = arith.cmpf oge, %412, %413 : vector<4x256xf32>
    %cst_267 = arith.constant 2.000000e-01 : f32
    %415 = vector.broadcast %cst_267 : f32 to vector<4x256xf32>
    %416 = arith.mulf %415, %412 : vector<4x256xf32>
    %417 = arith.select %414, %412, %416 : vector<4x256xi1>, vector<4x256xf32>
    %c16 = arith.constant 16 : index
    %c0_268 = arith.constant 0 : index
    %418 = vector.load %arg14[%c16, %c0_268] : memref<20x256xf32, #tpu.memory_space<vmem>>, vector<4x256xf32>
    tpu.vector_store %arg14[%c16, %c0_268], %417 {strides = array<i32>} : memref<20x256xf32, #tpu.memory_space<vmem>>, vector<4x256xf32>,
    %c0_269 = arith.constant 0 : index
    %c0_270 = arith.constant 0 : index
    %419 = vector.load %arg14[%c0_269, %c0_270] : memref<20x256xf32, #tpu.memory_space<vmem>>, vector<20x256xf32>
    %420 = arith.truncf %419 : vector<20x256xf32> to vector<20x256xbf16>
    %cst_271 = arith.constant 0.000000e+00 : f32
    %421 = vector.broadcast %cst_271 : f32 to vector<4x256xf32>
    %c0_272 = arith.constant 0 : index
    %c0_273 = arith.constant 0 : index
    %c0_274 = arith.constant 0 : index
    %422 = vector.load %arg7[%c0_272, %c0_273, %c0_274] : memref<9x4x20xbf16, #tpu.memory_space<vmem>>, vector<1x4x20xbf16>
    %423 = vector.shape_cast %422 : vector<1x4x20xbf16> to vector<4x20xbf16>
    %cst_275 = arith.constant dense<0.000000e+00> : vector<4x256xf32>
    %424 = tpu.matmul %423, %420, %cst_275 {dimension_numbers = #tpu.dot_dimension_numbers<[1], [0], [0], [1], [0, 0, 1, 1], [], []>} : vector<4x20xbf16>, vector<20x256xbf16>, vector<4x256xf32> -> vector<4x256xf32>
    %425 = vector.extract_strided_slice %424 {offsets = [0, 239], sizes = [4, 17], strides = [1, 1]} : vector<4x256xf32> to vector<4x17xf32>
    %426 = vector.extract_strided_slice %424 {offsets = [0, 0], sizes = [4, 239], strides = [1, 1]} : vector<4x256xf32> to vector<4x239xf32>
    %427 = tpu.concatenate %425, %426 in 1 : vector<4x17xf32>, vector<4x239xf32> -> vector<4x256xf32>
    %c0_276 = arith.constant 0 : index
    %c0_277 = arith.constant 0 : index
    %c0_278 = arith.constant 0 : index
    %428 = vector.load %arg2[%c0_276, %c0_277, %c0_278] : memref<9x1x256xf32, #tpu.memory_space<vmem>>, vector<1x1x256xf32>
    %429 = vector.shape_cast %428 : vector<1x1x256xf32> to vector<1x256xf32>
    %430 = vector.broadcast %429 : vector<1x256xf32> to vector<4x256xf32>
    %431 = arith.mulf %427, %430 : vector<4x256xf32>
    %432 = arith.addf %421, %431 : vector<4x256xf32>
    %c1_279 = arith.constant 1 : index
    %c0_280 = arith.constant 0 : index
    %c0_281 = arith.constant 0 : index
    %433 = vector.load %arg7[%c1_279, %c0_280, %c0_281] : memref<9x4x20xbf16, #tpu.memory_space<vmem>>, vector<1x4x20xbf16>
    %434 = vector.shape_cast %433 : vector<1x4x20xbf16> to vector<4x20xbf16>
    %cst_282 = arith.constant dense<0.000000e+00> : vector<4x256xf32>
    %435 = tpu.matmul %434, %420, %cst_282 {dimension_numbers = #tpu.dot_dimension_numbers<[1], [0], [0], [1], [0, 0, 1, 1], [], []>} : vector<4x20xbf16>, vector<20x256xbf16>, vector<4x256xf32> -> vector<4x256xf32>
    %436 = vector.extract_strided_slice %435 {offsets = [0, 240], sizes = [4, 16], strides = [1, 1]} : vector<4x256xf32> to vector<4x16xf32>
    %437 = vector.extract_strided_slice %435 {offsets = [0, 0], sizes = [4, 240], strides = [1, 1]} : vector<4x256xf32> to vector<4x240xf32>
    %438 = tpu.concatenate %436, %437 in 1 : vector<4x16xf32>, vector<4x240xf32> -> vector<4x256xf32>
    %c1_283 = arith.constant 1 : index
    %c0_284 = arith.constant 0 : index
    %c0_285 = arith.constant 0 : index
    %439 = vector.load %arg2[%c1_283, %c0_284, %c0_285] : memref<9x1x256xf32, #tpu.memory_space<vmem>>, vector<1x1x256xf32>
    %440 = vector.shape_cast %439 : vector<1x1x256xf32> to vector<1x256xf32>
    %441 = vector.broadcast %440 : vector<1x256xf32> to vector<4x256xf32>
    %442 = arith.mulf %438, %441 : vector<4x256xf32>
    %443 = arith.addf %432, %442 : vector<4x256xf32>
    %c2_286 = arith.constant 2 : index
    %c0_287 = arith.constant 0 : index
    %c0_288 = arith.constant 0 : index
    %444 = vector.load %arg7[%c2_286, %c0_287, %c0_288] : memref<9x4x20xbf16, #tpu.memory_space<vmem>>, vector<1x4x20xbf16>
    %445 = vector.shape_cast %444 : vector<1x4x20xbf16> to vector<4x20xbf16>
    %cst_289 = arith.constant dense<0.000000e+00> : vector<4x256xf32>
    %446 = tpu.matmul %445, %420, %cst_289 {dimension_numbers = #tpu.dot_dimension_numbers<[1], [0], [0], [1], [0, 0, 1, 1], [], []>} : vector<4x20xbf16>, vector<20x256xbf16>, vector<4x256xf32> -> vector<4x256xf32>
    %447 = vector.extract_strided_slice %446 {offsets = [0, 241], sizes = [4, 15], strides = [1, 1]} : vector<4x256xf32> to vector<4x15xf32>
    %448 = vector.extract_strided_slice %446 {offsets = [0, 0], sizes = [4, 241], strides = [1, 1]} : vector<4x256xf32> to vector<4x241xf32>
    %449 = tpu.concatenate %447, %448 in 1 : vector<4x15xf32>, vector<4x241xf32> -> vector<4x256xf32>
    %c2_290 = arith.constant 2 : index
    %c0_291 = arith.constant 0 : index
    %c0_292 = arith.constant 0 : index
    %450 = vector.load %arg2[%c2_290, %c0_291, %c0_292] : memref<9x1x256xf32, #tpu.memory_space<vmem>>, vector<1x1x256xf32>
    %451 = vector.shape_cast %450 : vector<1x1x256xf32> to vector<1x256xf32>
    %452 = vector.broadcast %451 : vector<1x256xf32> to vector<4x256xf32>
    %453 = arith.mulf %449, %452 : vector<4x256xf32>
    %454 = arith.addf %443, %453 : vector<4x256xf32>
    %c3_293 = arith.constant 3 : index
    %c0_294 = arith.constant 0 : index
    %c0_295 = arith.constant 0 : index
    %455 = vector.load %arg7[%c3_293, %c0_294, %c0_295] : memref<9x4x20xbf16, #tpu.memory_space<vmem>>, vector<1x4x20xbf16>
    %456 = vector.shape_cast %455 : vector<1x4x20xbf16> to vector<4x20xbf16>
    %cst_296 = arith.constant dense<0.000000e+00> : vector<4x256xf32>
    %457 = tpu.matmul %456, %420, %cst_296 {dimension_numbers = #tpu.dot_dimension_numbers<[1], [0], [0], [1], [0, 0, 1, 1], [], []>} : vector<4x20xbf16>, vector<20x256xbf16>, vector<4x256xf32> -> vector<4x256xf32>
    %458 = vector.extract_strided_slice %457 {offsets = [0, 255], sizes = [4, 1], strides = [1, 1]} : vector<4x256xf32> to vector<4x1xf32>
    %459 = vector.extract_strided_slice %457 {offsets = [0, 0], sizes = [4, 255], strides = [1, 1]} : vector<4x256xf32> to vector<4x255xf32>
    %460 = tpu.concatenate %458, %459 in 1 : vector<4x1xf32>, vector<4x255xf32> -> vector<4x256xf32>
    %c3_297 = arith.constant 3 : index
    %c0_298 = arith.constant 0 : index
    %c0_299 = arith.constant 0 : index
    %461 = vector.load %arg2[%c3_297, %c0_298, %c0_299] : memref<9x1x256xf32, #tpu.memory_space<vmem>>, vector<1x1x256xf32>
    %462 = vector.shape_cast %461 : vector<1x1x256xf32> to vector<1x256xf32>
    %463 = vector.broadcast %462 : vector<1x256xf32> to vector<4x256xf32>
    %464 = arith.mulf %460, %463 : vector<4x256xf32>
    %465 = arith.addf %454, %464 : vector<4x256xf32>
    %c4_300 = arith.constant 4 : index
    %c0_301 = arith.constant 0 : index
    %c0_302 = arith.constant 0 : index
    %466 = vector.load %arg7[%c4_300, %c0_301, %c0_302] : memref<9x4x20xbf16, #tpu.memory_space<vmem>>, vector<1x4x20xbf16>
    %467 = vector.shape_cast %466 : vector<1x4x20xbf16> to vector<4x20xbf16>
    %cst_303 = arith.constant dense<0.000000e+00> : vector<4x256xf32>
    %468 = tpu.matmul %467, %420, %cst_303 {dimension_numbers = #tpu.dot_dimension_numbers<[1], [0], [0], [1], [0, 0, 1, 1], [], []>} : vector<4x20xbf16>, vector<20x256xbf16>, vector<4x256xf32> -> vector<4x256xf32>
    %469 = arith.addf %465, %468 : vector<4x256xf32>
    %c5_304 = arith.constant 5 : index
    %c0_305 = arith.constant 0 : index
    %c0_306 = arith.constant 0 : index
    %470 = vector.load %arg7[%c5_304, %c0_305, %c0_306] : memref<9x4x20xbf16, #tpu.memory_space<vmem>>, vector<1x4x20xbf16>
    %471 = vector.shape_cast %470 : vector<1x4x20xbf16> to vector<4x20xbf16>
    %cst_307 = arith.constant dense<0.000000e+00> : vector<4x256xf32>
    %472 = tpu.matmul %471, %420, %cst_307 {dimension_numbers = #tpu.dot_dimension_numbers<[1], [0], [0], [1], [0, 0, 1, 1], [], []>} : vector<4x20xbf16>, vector<20x256xbf16>, vector<4x256xf32> -> vector<4x256xf32>
    %473 = vector.extract_strided_slice %472 {offsets = [0, 1], sizes = [4, 255], strides = [1, 1]} : vector<4x256xf32> to vector<4x255xf32>
    %474 = vector.extract_strided_slice %472 {offsets = [0, 0], sizes = [4, 1], strides = [1, 1]} : vector<4x256xf32> to vector<4x1xf32>
    %475 = tpu.concatenate %473, %474 in 1 : vector<4x255xf32>, vector<4x1xf32> -> vector<4x256xf32>
    %c5_308 = arith.constant 5 : index
    %c0_309 = arith.constant 0 : index
    %c0_310 = arith.constant 0 : index
    %476 = vector.load %arg2[%c5_308, %c0_309, %c0_310] : memref<9x1x256xf32, #tpu.memory_space<vmem>>, vector<1x1x256xf32>
    %477 = vector.shape_cast %476 : vector<1x1x256xf32> to vector<1x256xf32>
    %478 = vector.broadcast %477 : vector<1x256xf32> to vector<4x256xf32>
    %479 = arith.mulf %475, %478 : vector<4x256xf32>
    %480 = arith.addf %469, %479 : vector<4x256xf32>
    %c6_311 = arith.constant 6 : index
    %c0_312 = arith.constant 0 : index
    %c0_313 = arith.constant 0 : index
    %481 = vector.load %arg7[%c6_311, %c0_312, %c0_313] : memref<9x4x20xbf16, #tpu.memory_space<vmem>>, vector<1x4x20xbf16>
    %482 = vector.shape_cast %481 : vector<1x4x20xbf16> to vector<4x20xbf16>
    %cst_314 = arith.constant dense<0.000000e+00> : vector<4x256xf32>
    %483 = tpu.matmul %482, %420, %cst_314 {dimension_numbers = #tpu.dot_dimension_numbers<[1], [0], [0], [1], [0, 0, 1, 1], [], []>} : vector<4x20xbf16>, vector<20x256xbf16>, vector<4x256xf32> -> vector<4x256xf32>
    %484 = vector.extract_strided_slice %483 {offsets = [0, 15], sizes = [4, 241], strides = [1, 1]} : vector<4x256xf32> to vector<4x241xf32>
    %485 = vector.extract_strided_slice %483 {offsets = [0, 0], sizes = [4, 15], strides = [1, 1]} : vector<4x256xf32> to vector<4x15xf32>
    %486 = tpu.concatenate %484, %485 in 1 : vector<4x241xf32>, vector<4x15xf32> -> vector<4x256xf32>
    %c6_315 = arith.constant 6 : index
    %c0_316 = arith.constant 0 : index
    %c0_317 = arith.constant 0 : index
    %487 = vector.load %arg2[%c6_315, %c0_316, %c0_317] : memref<9x1x256xf32, #tpu.memory_space<vmem>>, vector<1x1x256xf32>
    %488 = vector.shape_cast %487 : vector<1x1x256xf32> to vector<1x256xf32>
    %489 = vector.broadcast %488 : vector<1x256xf32> to vector<4x256xf32>
    %490 = arith.mulf %486, %489 : vector<4x256xf32>
    %491 = arith.addf %480, %490 : vector<4x256xf32>
    %c7_318 = arith.constant 7 : index
    %c0_319 = arith.constant 0 : index
    %c0_320 = arith.constant 0 : index
    %492 = vector.load %arg7[%c7_318, %c0_319, %c0_320] : memref<9x4x20xbf16, #tpu.memory_space<vmem>>, vector<1x4x20xbf16>
    %493 = vector.shape_cast %492 : vector<1x4x20xbf16> to vector<4x20xbf16>
    %cst_321 = arith.constant dense<0.000000e+00> : vector<4x256xf32>
    %494 = tpu.matmul %493, %420, %cst_321 {dimension_numbers = #tpu.dot_dimension_numbers<[1], [0], [0], [1], [0, 0, 1, 1], [], []>} : vector<4x20xbf16>, vector<20x256xbf16>, vector<4x256xf32> -> vector<4x256xf32>
    %495 = vector.extract_strided_slice %494 {offsets = [0, 16], sizes = [4, 240], strides = [1, 1]} : vector<4x256xf32> to vector<4x240xf32>
    %496 = vector.extract_strided_slice %494 {offsets = [0, 0], sizes = [4, 16], strides = [1, 1]} : vector<4x256xf32> to vector<4x16xf32>
    %497 = tpu.concatenate %495, %496 in 1 : vector<4x240xf32>, vector<4x16xf32> -> vector<4x256xf32>
    %c7_322 = arith.constant 7 : index
    %c0_323 = arith.constant 0 : index
    %c0_324 = arith.constant 0 : index
    %498 = vector.load %arg2[%c7_322, %c0_323, %c0_324] : memref<9x1x256xf32, #tpu.memory_space<vmem>>, vector<1x1x256xf32>
    %499 = vector.shape_cast %498 : vector<1x1x256xf32> to vector<1x256xf32>
    %500 = vector.broadcast %499 : vector<1x256xf32> to vector<4x256xf32>
    %501 = arith.mulf %497, %500 : vector<4x256xf32>
    %502 = arith.addf %491, %501 : vector<4x256xf32>
    %c8_325 = arith.constant 8 : index
    %c0_326 = arith.constant 0 : index
    %c0_327 = arith.constant 0 : index
    %503 = vector.load %arg7[%c8_325, %c0_326, %c0_327] : memref<9x4x20xbf16, #tpu.memory_space<vmem>>, vector<1x4x20xbf16>
    %504 = vector.shape_cast %503 : vector<1x4x20xbf16> to vector<4x20xbf16>
    %cst_328 = arith.constant dense<0.000000e+00> : vector<4x256xf32>
    %505 = tpu.matmul %504, %420, %cst_328 {dimension_numbers = #tpu.dot_dimension_numbers<[1], [0], [0], [1], [0, 0, 1, 1], [], []>} : vector<4x20xbf16>, vector<20x256xbf16>, vector<4x256xf32> -> vector<4x256xf32>
    %506 = vector.extract_strided_slice %505 {offsets = [0, 17], sizes = [4, 239], strides = [1, 1]} : vector<4x256xf32> to vector<4x239xf32>
    %507 = vector.extract_strided_slice %505 {offsets = [0, 0], sizes = [4, 17], strides = [1, 1]} : vector<4x256xf32> to vector<4x17xf32>
    %508 = tpu.concatenate %506, %507 in 1 : vector<4x239xf32>, vector<4x17xf32> -> vector<4x256xf32>
    %c8_329 = arith.constant 8 : index
    %c0_330 = arith.constant 0 : index
    %c0_331 = arith.constant 0 : index
    %509 = vector.load %arg2[%c8_329, %c0_330, %c0_331] : memref<9x1x256xf32, #tpu.memory_space<vmem>>, vector<1x1x256xf32>
    %510 = vector.shape_cast %509 : vector<1x1x256xf32> to vector<1x256xf32>
    %511 = vector.broadcast %510 : vector<1x256xf32> to vector<4x256xf32>
    %512 = arith.mulf %508, %511 : vector<4x256xf32>
    %513 = arith.addf %502, %512 : vector<4x256xf32>
    %c0_332 = arith.constant 0 : index
    %c0_333 = arith.constant 0 : index
    %514 = vector.load %arg12[%c0_332, %c0_333] : memref<4x1xf32, #tpu.memory_space<vmem>>, vector<4x1xf32>
    %515 = vector.broadcast %514 : vector<4x1xf32> to vector<4x256xf32>
    %516 = arith.addf %513, %515 : vector<4x256xf32>
    %cst_334 = arith.constant 2.000000e-01 : f32
    %517 = vector.broadcast %cst_334 : f32 to vector<4x256xf32>
    %518 = arith.mulf %516, %517 : vector<4x256xf32>
    %519 = arith.addf %518, %1 : vector<4x256xf32>
    %c0_335 = arith.constant 0 : index
    %c0_336 = arith.constant 0 : index
    %c0_337 = arith.constant 0 : index
    %520 = vector.load %arg13[%c0_335, %c0_336, %c0_337] : memref<1x4x256xf32, #tpu.memory_space<vmem>>, vector<1x4x256xf32>
    %521 = vector.shape_cast %520 : vector<1x4x256xf32> to vector<4x256xf32>
    %522 = vector.shape_cast %519 : vector<4x256xf32> to vector<1x4x256xf32>
    tpu.vector_store %arg13[%c0_335, %c0_336, %c0_337], %522 {strides = array<i32>} : memref<1x4x256xf32, #tpu.memory_space<vmem>>, vector<1x4x256xf32>,
    return
  }
  func.func @transform_0(%arg0: i32) -> (i32, i32, i32) {
    %c0_i32 = arith.constant 0 : i32
    %c0_i32_0 = arith.constant 0 : i32
    %c0_i32_1 = arith.constant 0 : i32
    return %arg0, %c0_i32, %c0_i32_0 : i32, i32, i32
  }
  func.func @transform_1(%arg0: i32) -> (i32, i32, i32) {
    %c0_i32 = arith.constant 0 : i32
    %c0_i32_0 = arith.constant 0 : i32
    %c0_i32_1 = arith.constant 0 : i32
    %c0_i32_2 = arith.constant 0 : i32
    return %c0_i32, %c0_i32_0, %c0_i32_1 : i32, i32, i32
  }
  func.func @transform_2(%arg0: i32) -> (i32, i32, i32) {
    %c0_i32 = arith.constant 0 : i32
    %c0_i32_0 = arith.constant 0 : i32
    %c0_i32_1 = arith.constant 0 : i32
    %c0_i32_2 = arith.constant 0 : i32
    return %c0_i32, %c0_i32_0, %c0_i32_1 : i32, i32, i32
  }
  func.func @transform_3(%arg0: i32) -> (i32, i32, i32) {
    %c0_i32 = arith.constant 0 : i32
    %c0_i32_0 = arith.constant 0 : i32
    %c0_i32_1 = arith.constant 0 : i32
    %c0_i32_2 = arith.constant 0 : i32
    return %c0_i32, %c0_i32_0, %c0_i32_1 : i32, i32, i32
  }
  func.func @transform_4(%arg0: i32) -> (i32, i32, i32) {
    %c0_i32 = arith.constant 0 : i32
    %c0_i32_0 = arith.constant 0 : i32
    %c0_i32_1 = arith.constant 0 : i32
    %c0_i32_2 = arith.constant 0 : i32
    return %c0_i32, %c0_i32_0, %c0_i32_1 : i32, i32, i32
  }
  func.func @transform_5(%arg0: i32) -> (i32, i32, i32) {
    %c0_i32 = arith.constant 0 : i32
    %c0_i32_0 = arith.constant 0 : i32
    %c0_i32_1 = arith.constant 0 : i32
    %c0_i32_2 = arith.constant 0 : i32
    return %c0_i32, %c0_i32_0, %c0_i32_1 : i32, i32, i32
  }
  func.func @transform_6(%arg0: i32) -> (i32, i32, i32) {
    %c0_i32 = arith.constant 0 : i32
    %c0_i32_0 = arith.constant 0 : i32
    %c0_i32_1 = arith.constant 0 : i32
    %c0_i32_2 = arith.constant 0 : i32
    return %c0_i32, %c0_i32_0, %c0_i32_1 : i32, i32, i32
  }
  func.func @transform_7(%arg0: i32) -> (i32, i32) {
    %c0_i32 = arith.constant 0 : i32
    %c0_i32_0 = arith.constant 0 : i32
    %c0_i32_1 = arith.constant 0 : i32
    return %c0_i32, %c0_i32_0 : i32, i32
  }
  func.func @transform_8(%arg0: i32) -> (i32, i32) {
    %c0_i32 = arith.constant 0 : i32
    %c0_i32_0 = arith.constant 0 : i32
    %c0_i32_1 = arith.constant 0 : i32
    return %c0_i32, %c0_i32_0 : i32, i32
  }
  func.func @transform_9(%arg0: i32) -> (i32, i32) {
    %c0_i32 = arith.constant 0 : i32
    %c0_i32_0 = arith.constant 0 : i32
    %c0_i32_1 = arith.constant 0 : i32
    return %c0_i32, %c0_i32_0 : i32, i32
  }
  func.func @transform_10(%arg0: i32) -> (i32, i32) {
    %c0_i32 = arith.constant 0 : i32
    %c0_i32_0 = arith.constant 0 : i32
    %c0_i32_1 = arith.constant 0 : i32
    return %c0_i32, %c0_i32_0 : i32, i32
  }
  func.func @transform_11(%arg0: i32) -> (i32, i32) {
    %c0_i32 = arith.constant 0 : i32
    %c0_i32_0 = arith.constant 0 : i32
    %c0_i32_1 = arith.constant 0 : i32
    return %c0_i32, %c0_i32_0 : i32, i32
  }
  func.func @transform_12(%arg0: i32) -> (i32, i32, i32) {
    %c0_i32 = arith.constant 0 : i32
    %c0_i32_0 = arith.constant 0 : i32
    %c0_i32_1 = arith.constant 0 : i32
    return %arg0, %c0_i32, %c0_i32_0 : i32, i32, i32
  }
}

</mosaic_0001>

<llo_original>
// kernel: rrdb_forward.3
$region0: #{rrdb_forward.3}
  #allocation0 [shape = 'u32[]', space=smem, size = 0x4, offset = 0x4, fixed_abs, tag = 'smem constant byte address 0x4 - core index']
  #allocation1 [shape = 'u32[144,128]{1,0:T(1,128)}', space=vmem, size = 0x12000, scoped, tag = 'internal scratch']
  #allocation2 [shape = 'f32[20,256]{1,0:T(8,128)}', space=vmem, size = 0x6000, scoped, tag = 'scratch operand']
  %s0 = inlined_call_operand.vmem [shape: f32[2,4,256], index: 0, kind: input, shape index: {}]
  %s1 = inlined_call_operand.vmem [shape: f32[9,1,256], index: 1, kind: input, shape index: {}]
  %s2 = inlined_call_operand.vmem [shape: bf16[9,4,4], index: 2, kind: input, shape index: {}]
  %s3 = inlined_call_operand.vmem [shape: bf16[9,4,8], index: 3, kind: input, shape index: {}]
  %s4 = inlined_call_operand.vmem [shape: bf16[9,4,12], index: 4, kind: input, shape index: {}]
  %s5 = inlined_call_operand.vmem [shape: bf16[9,4,16], index: 5, kind: input, shape index: {}]
  %s6 = inlined_call_operand.vmem [shape: bf16[9,4,20], index: 6, kind: input, shape index: {}]
  %s7 = inlined_call_operand.vmem [shape: f32[4,1], index: 7, kind: input, shape index: {}]
  %s8 = inlined_call_operand.vmem [shape: f32[4,1], index: 8, kind: input, shape index: {}]
  %s9 = inlined_call_operand.vmem [shape: f32[4,1], index: 9, kind: input, shape index: {}]
  %s10 = inlined_call_operand.vmem [shape: f32[4,1], index: 10, kind: input, shape index: {}]
  %s11 = inlined_call_operand.vmem [shape: f32[4,1], index: 11, kind: input, shape index: {}]
  %s12 = inlined_call_operand.vmem [shape: f32[2,4,256], index: 12, kind: output, shape index: {}]
  %s13 = sld [smem:[#allocation0]]
  $region81: #{rrdb_forward.3} parent=0
    _
  %s15 = ssub.s32 1, %s13
  %s16 = scalar_select 0, %s15, %s13
  loop: start=0, step=1, limit=4
  $region2: #{rrdb_forward.3} parent=0 // loop_pre_header
    _
  $region3: #{rrdb_forward.3} parent=0 // loop_header
    %s18 = sphi 0, %s22
    %p19 = scmp.ge.s32.totalorder %s18, 4
    %s28 = sphi 0, %s30
    %s31 = sphi 0, %s28
    %s32 = sphi 0, %s31
    %s48 = sphi 0, %s32
    %s52 = sphi 0, %s52
    %s54 = sphi 0, %s52
    %s55 = sphi 0, %s54
    %s69 = sphi 0, %s55
    %s73 = sphi 0, %s73
    %s75 = sphi 0, %s73
    %s76 = sphi 0, %s75
    %s90 = sphi 0, %s76
    %s94 = sphi 0, %s94
    %s96 = sphi 0, %s94
    %s97 = sphi 0, %s96
    %s111 = sphi 0, %s97
    %s115 = sphi 0, %s115
    %s117 = sphi 0, %s115
    %s118 = sphi 0, %s117
    %s132 = sphi 0, %s118
    %s136 = sphi 0, %s136
    %s138 = sphi 0, %s136
    %s139 = sphi 0, %s138
    %s153 = sphi 0, %s139
    %s157 = sphi 0, %s157
    %s159 = sphi 0, %s157
    %s160 = sphi 0, %s159
    %s174 = sphi 0, %s160
    %s178 = sphi 0, %s178
    %s180 = sphi 0, %s178
    %s181 = sphi 0, %s180
    %s195 = sphi 0, %s181
    %s199 = sphi 0, %s199
    %s201 = sphi 0, %s199
    %s202 = sphi 0, %s201
    %s216 = sphi 0, %s202
    %s220 = sphi 0, %s220
    %s222 = sphi 0, %s220
    %s223 = sphi 0, %s222
    %s237 = sphi 0, %s223
    %s241 = sphi 0, %s241
    %s243 = sphi 0, %s241
    %s244 = sphi 0, %s243
    %s258 = sphi 0, %s244
    %s262 = sphi 0, %s262
    %s264 = sphi 0, %s262
    %s265 = sphi 0, %s264
    %s279 = sphi 0, %s265
    %s285 = sphi 0, %s287
    %s288 = sphi 0, %s285
    %s289 = sphi 0, %s288
    %s305 = sphi 0, %s289
  $region4: #{rrdb_forward.3} parent=0 // loop_header_branch
    %21 = sbr.rel (%p19) target = $region8
  $region5: #{rrdb_forward.3} parent=0 // loop_body
    %s23 = ssub.s32 %s18, 1
    %s24 = ssub.s32 %s18, 2
    %s25 = sadd.s32 %s18, 1
    %s26 = ssub.s32 %s18, %s25
    %p27 = scmp.eq.s32.totalorder %s26, 0
    %s29 = sadd.s32 %s28, 1
    %s30 = scalar_select %p27, %s28, %s29
    %p33 = pneg %p27
    %p34 = scmp.eq.s32.totalorder %s18, 1
    %p35 = por %p33, %p34
    %p36 = scmp.ne.s32.totalorder %s28, %s31
    %p37 = scmp.eq.s32.totalorder %s18, 0
    %p38 = por %p36, %p37
    %p39 = scmp.ne.s32.totalorder %s28, %s31
    %p40 = scmp.eq.s32.totalorder %s23, 1
    %p41 = por %p39, %p40
    %p42 = scmp.ne.s32.totalorder %s31, %s32
    %p43 = scmp.eq.s32.totalorder %s23, 0
    %p44 = por %p42, %p43
    %p45 = scmp.ne.s32.totalorder %s31, %s32
    %p46 = scmp.eq.s32.totalorder %s24, 1
    %p47 = por %p45, %p46
    %p49 = scmp.ne.s32.totalorder %s32, %s48
    %p50 = scmp.eq.s32.totalorder %s24, 0
    %p51 = por %p49, %p50
    %s53 = sadd.s32 %s52, 1
    %p56 = scmp.eq.s32.totalorder %s18, 1
    %p57 = scmp.ne.s32.totalorder %s52, %s54
    %p58 = scmp.eq.s32.totalorder %s18, 0
    %p59 = por %p57, %p58
    %p60 = scmp.ne.s32.totalorder %s52, %s54
    %p61 = scmp.eq.s32.totalorder %s23, 1
    %p62 = por %p60, %p61
    %p63 = scmp.ne.s32.totalorder %s54, %s55
    %p64 = scmp.eq.s32.totalorder %s23, 0
    %p65 = por %p63, %p64
    %p66 = scmp.ne.s32.totalorder %s54, %s55
    %p67 = scmp.eq.s32.totalorder %s24, 1
    %p68 = por %p66, %p67
    %p70 = scmp.ne.s32.totalorder %s55, %s69
    %p71 = scmp.eq.s32.totalorder %s24, 0
    %p72 = por %p70, %p71
    %s74 = sadd.s32 %s73, 1
    %p77 = scmp.eq.s32.totalorder %s18, 1
    %p78 = scmp.ne.s32.totalorder %s73, %s75
    %p79 = scmp.eq.s32.totalorder %s18, 0
    %p80 = por %p78, %p79
    %p81 = scmp.ne.s32.totalorder %s73, %s75
    %p82 = scmp.eq.s32.totalorder %s23, 1
    %p83 = por %p81, %p82
    %p84 = scmp.ne.s32.totalorder %s75, %s76
    %p85 = scmp.eq.s32.totalorder %s23, 0
    %p86 = por %p84, %p85
    %p87 = scmp.ne.s32.totalorder %s75, %s76
    %p88 = scmp.eq.s32.totalorder %s24, 1
    %p89 = por %p87, %p88
    %p91 = scmp.ne.s32.totalorder %s76, %s90
    %p92 = scmp.eq.s32.totalorder %s24, 0
    %p93 = por %p91, %p92
    %s95 = sadd.s32 %s94, 1
    %p98 = scmp.eq.s32.totalorder %s18, 1
    %p99 = scmp.ne.s32.totalorder %s94, %s96
    %p100 = scmp.eq.s32.totalorder %s18, 0
    %p101 = por %p99, %p100
    %p102 = scmp.ne.s32.totalorder %s94, %s96
    %p103 = scmp.eq.s32.totalorder %s23, 1
    %p104 = por %p102, %p103
    %p105 = scmp.ne.s32.totalorder %s96, %s97
    %p106 = scmp.eq.s32.totalorder %s23, 0
    %p107 = por %p105, %p106
    %p108 = scmp.ne.s32.totalorder %s96, %s97
    %p109 = scmp.eq.s32.totalorder %s24, 1
    %p110 = por %p108, %p109
    %p112 = scmp.ne.s32.totalorder %s97, %s111
    %p113 = scmp.eq.s32.totalorder %s24, 0
    %p114 = por %p112, %p113
    %s116 = sadd.s32 %s115, 1
    %p119 = scmp.eq.s32.totalorder %s18, 1
    %p120 = scmp.ne.s32.totalorder %s115, %s117
    %p121 = scmp.eq.s32.totalorder %s18, 0
    %p122 = por %p120, %p121
    %p123 = scmp.ne.s32.totalorder %s115, %s117
    %p124 = scmp.eq.s32.totalorder %s23, 1
    %p125 = por %p123, %p124
    %p126 = scmp.ne.s32.totalorder %s117, %s118
    %p127 = scmp.eq.s32.totalorder %s23, 0
    %p128 = por %p126, %p127
    %p129 = scmp.ne.s32.totalorder %s117, %s118
    %p130 = scmp.eq.s32.totalorder %s24, 1
    %p131 = por %p129, %p130
    %p133 = scmp.ne.s32.totalorder %s118, %s132
    %p134 = scmp.eq.s32.totalorder %s24, 0
    %p135 = por %p133, %p134
    %s137 = sadd.s32 %s136, 1
    %p140 = scmp.eq.s32.totalorder %s18, 1
    %p141 = scmp.ne.s32.totalorder %s136, %s138
    %p142 = scmp.eq.s32.totalorder %s18, 0
    %p143 = por %p141, %p142
    %p144 = scmp.ne.s32.totalorder %s136, %s138
    %p145 = scmp.eq.s32.totalorder %s23, 1
    %p146 = por %p144, %p145
    %p147 = scmp.ne.s32.totalorder %s138, %s139
    %p148 = scmp.eq.s32.totalorder %s23, 0
    %p149 = por %p147, %p148
    %p150 = scmp.ne.s32.totalorder %s138, %s139
    %p151 = scmp.eq.s32.totalorder %s24, 1
    %p152 = por %p150, %p151
    %p154 = scmp.ne.s32.totalorder %s139, %s153
    %p155 = scmp.eq.s32.totalorder %s24, 0
    %p156 = por %p154, %p155
    %s158 = sadd.s32 %s157, 1
    %p161 = scmp.eq.s32.totalorder %s18, 1
    %p162 = scmp.ne.s32.totalorder %s157, %s159
    %p163 = scmp.eq.s32.totalorder %s18, 0
    %p164 = por %p162, %p163
    %p165 = scmp.ne.s32.totalorder %s157, %s159
    %p166 = scmp.eq.s32.totalorder %s23, 1
    %p167 = por %p165, %p166
    %p168 = scmp.ne.s32.totalorder %s159, %s160
    %p169 = scmp.eq.s32.totalorder %s23, 0
    %p170 = por %p168, %p169
    %p171 = scmp.ne.s32.totalorder %s159, %s160
    %p172 = scmp.eq.s32.totalorder %s24, 1
    %p173 = por %p171, %p172
    %p175 = scmp.ne.s32.totalorder %s160, %s174
    %p176 = scmp.eq.s32.totalorder %s24, 0
    %p177 = por %p175, %p176
    %s179 = sadd.s32 %s178, 1
    %p182 = scmp.eq.s32.totalorder %s18, 1
    %p183 = scmp.ne.s32.totalorder %s178, %s180
    %p184 = scmp.eq.s32.totalorder %s18, 0
    %p185 = por %p183, %p184
    %p186 = scmp.ne.s32.totalorder %s178, %s180
    %p187 = scmp.eq.s32.totalorder %s23, 1
    %p188 = por %p186, %p187
    %p189 = scmp.ne.s32.totalorder %s180, %s181
    %p190 = scmp.eq.s32.totalorder %s23, 0
    %p191 = por %p189, %p190
    %p192 = scmp.ne.s32.totalorder %s180, %s181
    %p193 = scmp.eq.s32.totalorder %s24, 1
    %p194 = por %p192, %p193
    %p196 = scmp.ne.s32.totalorder %s181, %s195
    %p197 = scmp.eq.s32.totalorder %s24, 0
    %p198 = por %p196, %p197
    %s200 = sadd.s32 %s199, 1
    %p203 = scmp.eq.s32.totalorder %s18, 1
    %p204 = scmp.ne.s32.totalorder %s199, %s201
    %p205 = scmp.eq.s32.totalorder %s18, 0
    %p206 = por %p204, %p205
    %p207 = scmp.ne.s32.totalorder %s199, %s201
    %p208 = scmp.eq.s32.totalorder %s23, 1
    %p209 = por %p207, %p208
    %p210 = scmp.ne.s32.totalorder %s201, %s202
    %p211 = scmp.eq.s32.totalorder %s23, 0
    %p212 = por %p210, %p211
    %p213 = scmp.ne.s32.totalorder %s201, %s202
    %p214 = scmp.eq.s32.totalorder %s24, 1
    %p215 = por %p213, %p214
    %p217 = scmp.ne.s32.totalorder %s202, %s216
    %p218 = scmp.eq.s32.totalorder %s24, 0
    %p219 = por %p217, %p218
    %s221 = sadd.s32 %s220, 1
    %p224 = scmp.eq.s32.totalorder %s18, 1
    %p225 = scmp.ne.s32.totalorder %s220, %s222
    %p226 = scmp.eq.s32.totalorder %s18, 0
    %p227 = por %p225, %p226
    %p228 = scmp.ne.s32.totalorder %s220, %s222
    %p229 = scmp.eq.s32.totalorder %s23, 1
    %p230 = por %p228, %p229
    %p231 = scmp.ne.s32.totalorder %s222, %s223
    %p232 = scmp.eq.s32.totalorder %s23, 0
    %p233 = por %p231, %p232
    %p234 = scmp.ne.s32.totalorder %s222, %s223
    %p235 = scmp.eq.s32.totalorder %s24, 1
    %p236 = por %p234, %p235
    %p238 = scmp.ne.s32.totalorder %s223, %s237
    %p239 = scmp.eq.s32.totalorder %s24, 0
    %p240 = por %p238, %p239
    %s242 = sadd.s32 %s241, 1
    %p245 = scmp.eq.s32.totalorder %s18, 1
    %p246 = scmp.ne.s32.totalorder %s241, %s243
    %p247 = scmp.eq.s32.totalorder %s18, 0
    %p248 = por %p246, %p247
    %p249 = scmp.ne.s32.totalorder %s241, %s243
    %p250 = scmp.eq.s32.totalorder %s23, 1
    %p251 = por %p249, %p250
    %p252 = scmp.ne.s32.totalorder %s243, %s244
    %p253 = scmp.eq.s32.totalorder %s23, 0
    %p254 = por %p252, %p253
    %p255 = scmp.ne.s32.totalorder %s243, %s244
    %p256 = scmp.eq.s32.totalorder %s24, 1
    %p257 = por %p255, %p256
    %p259 = scmp.ne.s32.totalorder %s244, %s258
    %p260 = scmp.eq.s32.totalorder %s24, 0
    %p261 = por %p259, %p260
    %s263 = sadd.s32 %s262, 1
    %p266 = scmp.eq.s32.totalorder %s18, 1
    %p267 = scmp.ne.s32.totalorder %s262, %s264
    %p268 = scmp.eq.s32.totalorder %s18, 0
    %p269 = por %p267, %p268
    %p270 = scmp.ne.s32.totalorder %s262, %s264
    %p271 = scmp.eq.s32.totalorder %s23, 1
    %p272 = por %p270, %p271
    %p273 = scmp.ne.s32.totalorder %s264, %s265
    %p274 = scmp.eq.s32.totalorder %s23, 0
    %p275 = por %p273, %p274
    %p276 = scmp.ne.s32.totalorder %s264, %s265
    %p277 = scmp.eq.s32.totalorder %s24, 1
    %p278 = por %p276, %p277
    %p280 = scmp.ne.s32.totalorder %s265, %s279
    %p281 = scmp.eq.s32.totalorder %s24, 0
    %p282 = por %p280, %p281
    %s283 = ssub.s32 %s18, %s25
    %p284 = scmp.eq.s32.totalorder %s283, 0
    %s286 = sadd.s32 %s285, 1
    %s287 = scalar_select %p284, %s285, %s286
    %p290 = pneg %p284
    %p291 = scmp.eq.s32.totalorder %s18, 1
    %p292 = por %p290, %p291
    %p293 = scmp.ne.s32.totalorder %s285, %s288
    %p294 = scmp.eq.s32.totalorder %s18, 0
    %p295 = por %p293, %p294
    %p296 = scmp.ne.s32.totalorder %s285, %s288
    %p297 = scmp.eq.s32.totalorder %s23, 1
    %p298 = por %p296, %p297
    %p299 = scmp.ne.s32.totalorder %s288, %s289
    %p300 = scmp.eq.s32.totalorder %s23, 0
    %p301 = por %p299, %p300
    %p302 = scmp.ne.s32.totalorder %s288, %s289
    %p303 = scmp.eq.s32.totalorder %s24, 1
    %p304 = por %p302, %p303
    %p306 = scmp.ne.s32.totalorder %s289, %s305
    %p307 = scmp.eq.s32.totalorder %s24, 0
    %p308 = por %p306, %p307
    %p309 = scmp.le.s32.totalorder 1, %s18
    %p310 = scmp.lt.s32.totalorder %s18, 3
    %p311 = pnand %p309, %p310
    %p312 = pneg %p311
    // Predicated region
    $region9: #{rrdb_forward.3} parent=5 // pred_check
      _
    $region10: #{rrdb_forward.3} parent=5 // pred_check_branch
      %314 = sbr.rel (%p311) target = $region12
    $region11: #{rrdb_forward.3} parent=5 // pred_region
      %s315 = ssub.s32 %s18, 1
      // Predicated region
      $region13: #{rrdb_forward.3} parent=11 // pred_check
        %p316 = pneg %p65
      $region14: #{rrdb_forward.3} parent=11 // pred_check_branch
        %318 = sbr.rel (%p316) target = $region16
      $region15: #{rrdb_forward.3} parent=11 // pred_region
        _
      $region16: #{rrdb_forward.3} parent=11 // pred_fallthru
        _
      // Predicated region
      $region17: #{rrdb_forward.3} parent=11 // pred_check
        %p319 = pneg %p86
      $region18: #{rrdb_forward.3} parent=11 // pred_check_branch
        %321 = sbr.rel (%p319) target = $region20
      $region19: #{rrdb_forward.3} parent=11 // pred_region
        _
      $region20: #{rrdb_forward.3} parent=11 // pred_fallthru
        _
      // Predicated region
      $region21: #{rrdb_forward.3} parent=11 // pred_check
        %p322 = pneg %p107
      $region22: #{rrdb_forward.3} parent=11 // pred_check_branch
        %324 = sbr.rel (%p322) target = $region24
      $region23: #{rrdb_forward.3} parent=11 // pred_region
        _
      $region24: #{rrdb_forward.3} parent=11 // pred_fallthru
        _
      // Predicated region
      $region25: #{rrdb_forward.3} parent=11 // pred_check
        %p325 = pneg %p128
      $region26: #{rrdb_forward.3} parent=11 // pred_check_branch
        %327 = sbr.rel (%p325) target = $region28
      $region27: #{rrdb_forward.3} parent=11 // pred_region
        _
      $region28: #{rrdb_forward.3} parent=11 // pred_fallthru
        _
      // Predicated region
      $region29: #{rrdb_forward.3} parent=11 // pred_check
        %p328 = pneg %p149
      $region30: #{rrdb_forward.3} parent=11 // pred_check_branch
        %330 = sbr.rel (%p328) target = $region32
      $region31: #{rrdb_forward.3} parent=11 // pred_region
        _
      $region32: #{rrdb_forward.3} parent=11 // pred_fallthru
        _
      // Predicated region
      $region33: #{rrdb_forward.3} parent=11 // pred_check
        %p331 = pneg %p170
      $region34: #{rrdb_forward.3} parent=11 // pred_check_branch
        %333 = sbr.rel (%p331) target = $region36
      $region35: #{rrdb_forward.3} parent=11 // pred_region
        _
      $region36: #{rrdb_forward.3} parent=11 // pred_fallthru
        _
      // Predicated region
      $region37: #{rrdb_forward.3} parent=11 // pred_check
        %p334 = pneg %p191
      $region38: #{rrdb_forward.3} parent=11 // pred_check_branch
        %336 = sbr.rel (%p334) target = $region40
      $region39: #{rrdb_forward.3} parent=11 // pred_region
        _
      $region40: #{rrdb_forward.3} parent=11 // pred_fallthru
        _
      // Predicated region
      $region41: #{rrdb_forward.3} parent=11 // pred_check
        %p337 = pneg %p212
      $region42: #{rrdb_forward.3} parent=11 // pred_check_branch
        %339 = sbr.rel (%p337) target = $region44
      $region43: #{rrdb_forward.3} parent=11 // pred_region
        _
      $region44: #{rrdb_forward.3} parent=11 // pred_fallthru
        _
      // Predicated region
      $region45: #{rrdb_forward.3} parent=11 // pred_check
        %p340 = pneg %p233
      $region46: #{rrdb_forward.3} parent=11 // pred_check_branch
        %342 = sbr.rel (%p340) target = $region48
      $region47: #{rrdb_forward.3} parent=11 // pred_region
        _
      $region48: #{rrdb_forward.3} parent=11 // pred_fallthru
        _
      // Predicated region
      $region49: #{rrdb_forward.3} parent=11 // pred_check
        %p343 = pneg %p254
      $region50: #{rrdb_forward.3} parent=11 // pred_check_branch
        %345 = sbr.rel (%p343) target = $region52
      $region51: #{rrdb_forward.3} parent=11 // pred_region
        _
      $region52: #{rrdb_forward.3} parent=11 // pred_fallthru
        _
      // Predicated region
      $region53: #{rrdb_forward.3} parent=11 // pred_check
        %p346 = pneg %p275
      $region54: #{rrdb_forward.3} parent=11 // pred_check_branch
        %348 = sbr.rel (%p346) target = $region56
      $region55: #{rrdb_forward.3} parent=11 // pred_region
        _
      $region56: #{rrdb_forward.3} parent=11 // pred_fallthru
        _
    $region12: #{rrdb_forward.3} parent=5 // pred_fallthru
      _
    %p349 = scmp.lt.s32.totalorder %s18, 2
    // Predicated region
    $region57: #{rrdb_forward.3} parent=5 // pred_check
      %p350 = pneg %p349
    $region58: #{rrdb_forward.3} parent=5 // pred_check_branch
      %352 = sbr.rel (%p350) target = $region60
    $region59: #{rrdb_forward.3} parent=5 // pred_region
      // Predicated region
      $region61: #{rrdb_forward.3} parent=59 // pred_check
        %p353 = pneg %p38
      $region62: #{rrdb_forward.3} parent=59 // pred_check_branch
        %355 = sbr.rel (%p353) target = $region64
      $region63: #{rrdb_forward.3} parent=59 // pred_region
        %p356 = scmp.lt.s32.totalorder %s18, 1
        %s357 = scalar_select %p356, %s18, 1
        %s358 = smul.addr %s357, 2
        %s359 = smul.addr %s358, 4
        %s360 = scalar_lea.vmem %s0, %s359
      $region64: #{rrdb_forward.3} parent=59 // pred_fallthru
        _
    $region60: #{rrdb_forward.3} parent=5 // pred_fallthru
      _
    %p361 = scmp.le.s32.totalorder 1, %s18
    %p362 = scmp.lt.s32.totalorder %s18, 3
    %p363 = pnand %p361, %p362
    %p364 = pneg %p363
    // Predicated region
    $region65: #{rrdb_forward.3} parent=5 // pred_check
      _
    $region66: #{rrdb_forward.3} parent=5 // pred_check_branch
      %366 = sbr.rel (%p363) target = $region68
    $region67: #{rrdb_forward.3} parent=5 // pred_region
      %s367 = ssub.s32 %s18, 1
      %p368 = scmp.lt.s32.totalorder %s23, 1
      %s369 = scalar_select %p368, %s23, 1
      %s370 = smul.addr %s369, 2
      %s371 = smul.addr %s370, 4
      %s372 = scalar_lea.vmem %s0, %s371
      %p373 = pneg %p44
      %p374 = pneg %p41
      %p375 = pneg %p65
      %p376 = pneg %p62
      %p377 = pneg %p86
      %p378 = pneg %p83
      %p379 = pneg %p107
      %p380 = pneg %p104
      %p381 = pneg %p128
      %p382 = pneg %p125
      %p383 = pneg %p149
      %p384 = pneg %p146
      %p385 = pneg %p170
      %p386 = pneg %p167
      %p387 = pneg %p191
      %p388 = pneg %p188
      %p389 = pneg %p212
      %p390 = pneg %p209
      %p391 = pneg %p233
      %p392 = pneg %p230
      %p393 = pneg %p254
      %p394 = pneg %p251
      %p395 = pneg %p275
      %p396 = pneg %p272
      %p397 = pneg %p301
      %p398 = pneg %p298
      %p399 = scmp.lt.s32.totalorder %s23, 1
      %s400 = scalar_select %p399, %s23, 1
      %s401 = smul.addr %s400, 2
      %s402 = smul.addr %s401, 4
      %s403 = scalar_lea.vmem %s12, %s402
      %p404 = scmp.lt.s32.totalorder %s23, 1
      %s405 = scalar_select %p404, %s23, 1
      %s406 = smul.addr %s405, 2
      %s407 = smul.addr %s406, 4
      %s408 = scalar_lea.vmem %s0, %s407
      %p409 = scmp.lt.s32.totalorder %s23, 1
      %s410 = scalar_select %p409, %s23, 1
      %s411 = smul.addr %s410, 2
      %s412 = smul.addr %s411, 4
      %s413 = scalar_lea.vmem %s12, %s412
      %v415 = vld [vmem:[%s408] sm:$0xff]
      %v417 = vcombine.high %v415, %v415
      %419 = vst [vmem:[#allocation2] sm:$0xf] %v415
      %420 = vst [vmem:[#allocation2 + $0x8] sm:$0xf] %v417
      %v421 = vld [vmem:[#allocation2] sm:$0xf]
      %v422 = vld [vmem:[#allocation2 + $0x8] sm:$0xf]
      %v423 = vpack.c.bf16 %v421, %v421
      %v424 = vpack.c.bf16 %v422, %v422
      %v425 = vld [vmem:[%s2] sm:$0x3]
      %vm426 = vcmask 31744
      %v428 = vsel %vm426, %v425, 0
      %vm430 = vcmask 1041408
      %v432 = vsel %vm430, %v423, 0
      %v435 = vsel %vm430, %v424, 0
      %437 = vmatprep.subr.bf16.mxu0 %v435
      %438 = vmatpush1.bf16.msra.mxu0 %v432
      %439 = vmatprep.subr.bf16.mxu0 0
      %440 = vmatpush1.bf16.msra.mxu0 0
      %441 = vmatprep.subr.bf16.mxu0 0
      %442 = vmatpush1.bf16.msra.mxu0 0
      %443 = vmatprep.subr.bf16.mxu0 0
      %444 = vmatpush1.bf16.msra.mxu0 0
      %445 = vmatprep.subr.bf16.mxu0 0
      %446 = vmatpush1.bf16.msra.mxu0 0
      %447 = vmatprep.subr.bf16.mxu0 0
      %448 = vmatpush1.bf16.msra.mxu0 0
      %449 = vmatprep.subr.bf16.mxu0 0
      %450 = vmatpush1.bf16.msra.mxu0 0
      %451 = vmatprep.subr.bf16.mxu0 0
      %452 = vmatpush1.bf16.msra.mxu0 0
      %453 = vmatprep.subr.bf16.mxu0 0
      %454 = vmatpush1.bf16.msra.mxu0 0
      %455 = vmatprep.subr.bf16.mxu0 0
      %456 = vmatpush1.bf16.msra.mxu0 0
      %457 = vmatprep.subr.bf16.mxu0 0
      %458 = vmatpush1.bf16.msra.mxu0 0
      %459 = vmatprep.subr.bf16.mxu0 0
      %460 = vmatpush1.bf16.msra.mxu0 0
      %461 = vmatprep.subr.bf16.mxu0 0
      %462 = vmatpush1.bf16.msra.mxu0 0
      %463 = vmatprep.subr.bf16.mxu0 0
      %464 = vmatpush1.bf16.msra.mxu0 0
      %465 = vmatprep.subr.bf16.mxu0 0
      %466 = vmatpush1.bf16.msra.mxu0 0
      %467 = vmatprep.subr.bf16.mxu0 0
      %468 = vmatpush1.bf16.msra.mxu0 0
      %469 = vmatprep.mubr.bf16.mxu0 0
      %470 = vmatmul.mubr.bf16.gmra.mrb[0].mxu0 %v428
      %v471 = vpop.f32.mrb[0].mxu0
      %v472 = vadd.f32 0.0, %v471
      %v473 = vpop.f32.mrb[0].mxu0
      %v474 = vadd.f32 0.0, %v473
      %v475 = vpop.f32.mrb[0].mxu0
      %v476 = vpop.f32.mrb[0].mxu0
      %477 = vdwg.mxu0
      %479 = vrot.lane.b32.xlu0 %v474, 17
      %v480 = vpop.permute.xlu0 %479
      %483 = vrot.lane.b32.xlu0 %v472, 17
      %v484 = vpop.permute.xlu0 %483
      %vm485 = vcmask 138240
      %v486 = vsel %vm485, %v484, %v480
      %v489 = vsel %vm485, %v480, %v484
      %v490 = vld [vmem:[%s1] sm:$0x3]
      %v492 = vlaneseq
      %v493 = vshrl.u32 %v492, 7
      %v494 = vsub.s32 0, %v493
      %v495 = vrot.slane %v490, %v494
      %v496 = vlaneseq
      %v497 = vshrl.u32 %v496, 7
      %v498 = vsub.s32 1, %v497
      %v499 = vrot.slane %v490, %v498
      %v502 = vmul.f32 %v489, %v495
      %v503 = vmul.f32 %v486, %v499
      %v504 = vadd.f32 %v502, 0.0
      %v505 = vadd.f32 %v503, 0.0
      %s506 = scalar_lea.vmem %s2, 2
      %v507 = vld [vmem:[%s506] sm:$0x3]
      %v509 = vsel %vm426, %v507, 0
      %511 = vmatprep.subr.bf16.mxu0 %v435
      %512 = vmatpush1.bf16.msra.mxu0 %v432
      %513 = vmatprep.subr.bf16.mxu0 0
      %514 = vmatpush1.bf16.msra.mxu0 0
      %515 = vmatprep.subr.bf16.mxu0 0
      %516 = vmatpush1.bf16.msra.mxu0 0
      %517 = vmatprep.subr.bf16.mxu0 0
      %518 = vmatpush1.bf16.msra.mxu0 0
      %519 = vmatprep.subr.bf16.mxu0 0
      %520 = vmatpush1.bf16.msra.mxu0 0
      %521 = vmatprep.subr.bf16.mxu0 0
      %522 = vmatpush1.bf16.msra.mxu0 0
      %523 = vmatprep.subr.bf16.mxu0 0
      %524 = vmatpush1.bf16.msra.mxu0 0
      %525 = vmatprep.subr.bf16.mxu0 0
      %526 = vmatpush1.bf16.msra.mxu0 0
      %527 = vmatprep.subr.bf16.mxu0 0
      %528 = vmatpush1.bf16.msra.mxu0 0
      %529 = vmatprep.subr.bf16.mxu0 0
      %530 = vmatpush1.bf16.msra.mxu0 0
      %531 = vmatprep.subr.bf16.mxu0 0
      %532 = vmatpush1.bf16.msra.mxu0 0
      %533 = vmatprep.subr.bf16.mxu0 0
      %534 = vmatpush1.bf16.msra.mxu0 0
      %535 = vmatprep.subr.bf16.mxu0 0
      %536 = vmatpush1.bf16.msra.mxu0 0
      %537 = vmatprep.subr.bf16.mxu0 0
      %538 = vmatpush1.bf16.msra.mxu0 0
      %539 = vmatprep.subr.bf16.mxu0 0
      %540 = vmatpush1.bf16.msra.mxu0 0
      %541 = vmatprep.subr.bf16.mxu0 0
      %542 = vmatpush1.bf16.msra.mxu0 0
      %543 = vmatprep.mubr.bf16.mxu0 0
      %544 = vmatmul.mubr.bf16.gmra.mrb[0].mxu0 %v509
      %v545 = vpop.f32.mrb[0].mxu0
      %v546 = vadd.f32 0.0, %v545
      %v547 = vpop.f32.mrb[0].mxu0
      %v548 = vadd.f32 0.0, %v547
      %v549 = vpop.f32.mrb[0].mxu0
      %v550 = vpop.f32.mrb[0].mxu0
      %551 = vdwg.mxu0
      %553 = vrot.lane.b32.xlu0 %v548, 16
      %v554 = vpop.permute.xlu0 %553
      %557 = vrot.lane.b32.xlu0 %v546, 16
      %v558 = vpop.permute.xlu0 %557
      %vm559 = vcmask 130048
      %v560 = vsel %vm559, %v558, %v554
      %v563 = vsel %vm559, %v554, %v558
      %s564 = scalar_lea.vmem %s1, 2
      %v565 = vld [vmem:[%s564] sm:$0x3]
      %v567 = vlaneseq
      %v568 = vshrl.u32 %v567, 7
      %v569 = vsub.s32 0, %v568
      %v570 = vrot.slane %v565, %v569
      %v571 = vlaneseq
      %v572 = vshrl.u32 %v571, 7
      %v573 = vsub.s32 1, %v572
      %v574 = vrot.slane %v565, %v573
      %v577 = vmul.f32 %v563, %v570
      %v578 = vmul.f32 %v560, %v574
      %v579 = vadd.f32 %v504, %v577
      %v580 = vadd.f32 %v505, %v578
      %s581 = scalar_lea.vmem %s2, 4
      %v582 = vld [vmem:[%s581] sm:$0x3]
      %v584 = vsel %vm426, %v582, 0
      %586 = vmatprep.subr.bf16.mxu0 %v435
      %587 = vmatpush1.bf16.msra.mxu0 %v432
      %588 = vmatprep.subr.bf16.mxu0 0
      %589 = vmatpush1.bf16.msra.mxu0 0
      %590 = vmatprep.subr.bf16.mxu0 0
      %591 = vmatpush1.bf16.msra.mxu0 0
      %592 = vmatprep.subr.bf16.mxu0 0
      %593 = vmatpush1.bf16.msra.mxu0 0
      %594 = vmatprep.subr.bf16.mxu0 0
      %595 = vmatpush1.bf16.msra.mxu0 0
      %596 = vmatprep.subr.bf16.mxu0 0
      %597 = vmatpush1.bf16.msra.mxu0 0
      %598 = vmatprep.subr.bf16.mxu0 0
      %599 = vmatpush1.bf16.msra.mxu0 0
      %600 = vmatprep.subr.bf16.mxu0 0
      %601 = vmatpush1.bf16.msra.mxu0 0
      %602 = vmatprep.subr.bf16.mxu0 0
      %603 = vmatpush1.bf16.msra.mxu0 0
      %604 = vmatprep.subr.bf16.mxu0 0
      %605 = vmatpush1.bf16.msra.mxu0 0
      %606 = vmatprep.subr.bf16.mxu0 0
      %607 = vmatpush1.bf16.msra.mxu0 0
      %608 = vmatprep.subr.bf16.mxu0 0
      %609 = vmatpush1.bf16.msra.mxu0 0
      %610 = vmatprep.subr.bf16.mxu0 0
      %611 = vmatpush1.bf16.msra.mxu0 0
      %612 = vmatprep.subr.bf16.mxu0 0
      %613 = vmatpush1.bf16.msra.mxu0 0
      %614 = vmatprep.subr.bf16.mxu0 0
      %615 = vmatpush1.bf16.msra.mxu0 0
      %616 = vmatprep.subr.bf16.mxu0 0
      %617 = vmatpush1.bf16.msra.mxu0 0
      %618 = vmatprep.mubr.bf16.mxu0 0
      %619 = vmatmul.mubr.bf16.gmra.mrb[0].mxu0 %v584
      %v620 = vpop.f32.mrb[0].mxu0
      %v621 = vadd.f32 0.0, %v620
      %v622 = vpop.f32.mrb[0].mxu0
      %v623 = vadd.f32 0.0, %v622
      %v624 = vpop.f32.mrb[0].mxu0
      %v625 = vpop.f32.mrb[0].mxu0
      %626 = vdwg.mxu0
      %628 = vrot.lane.b32.xlu0 %v623, 15
      %v629 = vpop.permute.xlu0 %628
      %632 = vrot.lane.b32.xlu0 %v621, 15
      %v633 = vpop.permute.xlu0 %632
      %vm634 = vcmask 121856
      %v635 = vsel %vm634, %v633, %v629
      %v638 = vsel %vm634, %v629, %v633
      %s639 = scalar_lea.vmem %s1, 4
      %v640 = vld [vmem:[%s639] sm:$0x3]
      %v642 = vlaneseq
      %v643 = vshrl.u32 %v642, 7
      %v644 = vsub.s32 0, %v643
      %v645 = vrot.slane %v640, %v644
      %v646 = vlaneseq
      %v647 = vshrl.u32 %v646, 7
      %v648 = vsub.s32 1, %v647
      %v649 = vrot.slane %v640, %v648
      %v652 = vmul.f32 %v638, %v645
      %v653 = vmul.f32 %v635, %v649
      %v654 = vadd.f32 %v579, %v652
      %v655 = vadd.f32 %v580, %v653
      %s656 = scalar_lea.vmem %s2, 6
      %v657 = vld [vmem:[%s656] sm:$0x3]
      %v659 = vsel %vm426, %v657, 0
      %661 = vmatprep.subr.bf16.mxu0 %v435
      %662 = vmatpush1.bf16.msra.mxu0 %v432
      %663 = vmatprep.subr.bf16.mxu0 0
      %664 = vmatpush1.bf16.msra.mxu0 0
      %665 = vmatprep.subr.bf16.mxu0 0
      %666 = vmatpush1.bf16.msra.mxu0 0
      %667 = vmatprep.subr.bf16.mxu0 0
      %668 = vmatpush1.bf16.msra.mxu0 0
      %669 = vmatprep.subr.bf16.mxu0 0
      %670 = vmatpush1.bf16.msra.mxu0 0
      %671 = vmatprep.subr.bf16.mxu0 0
      %672 = vmatpush1.bf16.msra.mxu0 0
      %673 = vmatprep.subr.bf16.mxu0 0
      %674 = vmatpush1.bf16.msra.mxu0 0
      %675 = vmatprep.subr.bf16.mxu0 0
      %676 = vmatpush1.bf16.msra.mxu0 0
      %677 = vmatprep.subr.bf16.mxu0 0
      %678 = vmatpush1.bf16.msra.mxu0 0
      %679 = vmatprep.subr.bf16.mxu0 0
      %680 = vmatpush1.bf16.msra.mxu0 0
      %681 = vmatprep.subr.bf16.mxu0 0
      %682 = vmatpush1.bf16.msra.mxu0 0
      %683 = vmatprep.subr.bf16.mxu0 0
      %684 = vmatpush1.bf16.msra.mxu0 0
      %685 = vmatprep.subr.bf16.mxu0 0
      %686 = vmatpush1.bf16.msra.mxu0 0
      %687 = vmatprep.subr.bf16.mxu0 0
      %688 = vmatpush1.bf16.msra.mxu0 0
      %689 = vmatprep.subr.bf16.mxu0 0
      %690 = vmatpush1.bf16.msra.mxu0 0
      %691 = vmatprep.subr.bf16.mxu0 0
      %692 = vmatpush1.bf16.msra.mxu0 0
      %693 = vmatprep.mubr.bf16.mxu0 0
      %694 = vmatmul.mubr.bf16.gmra.mrb[0].mxu0 %v659
      %v695 = vpop.f32.mrb[0].mxu0
      %v696 = vadd.f32 0.0, %v695
      %v697 = vpop.f32.mrb[0].mxu0
      %v698 = vadd.f32 0.0, %v697
      %v699 = vpop.f32.mrb[0].mxu0
      %v700 = vpop.f32.mrb[0].mxu0
      %701 = vdwg.mxu0
      %703 = vrot.lane.b32.xlu0 %v698, 1
      %v704 = vpop.permute.xlu0 %703
      %707 = vrot.lane.b32.xlu0 %v696, 1
      %v708 = vpop.permute.xlu0 %707
      %vm709 = vcmask 7168
      %v710 = vsel %vm709, %v708, %v704
      %v713 = vsel %vm709, %v704, %v708
      %s714 = scalar_lea.vmem %s1, 6
      %v715 = vld [vmem:[%s714] sm:$0x3]
      %v717 = vlaneseq
      %v718 = vshrl.u32 %v717, 7
      %v719 = vsub.s32 0, %v718
      %v720 = vrot.slane %v715, %v719
      %v721 = vlaneseq
      %v722 = vshrl.u32 %v721, 7
      %v723 = vsub.s32 1, %v722
      %v724 = vrot.slane %v715, %v723
      %v727 = vmul.f32 %v713, %v720
      %v728 = vmul.f32 %v710, %v724
      %v729 = vadd.f32 %v654, %v727
      %v730 = vadd.f32 %v655, %v728
      %s731 = scalar_lea.vmem %s2, 8
      %v732 = vld [vmem:[%s731] sm:$0x3]
      %v734 = vsel %vm426, %v732, 0
      %736 = vmatprep.subr.bf16.mxu0 %v435
      %737 = vmatpush1.bf16.msra.mxu0 %v432
      %738 = vmatprep.subr.bf16.mxu0 0
      %739 = vmatpush1.bf16.msra.mxu0 0
      %740 = vmatprep.subr.bf16.mxu0 0
      %741 = vmatpush1.bf16.msra.mxu0 0
      %742 = vmatprep.subr.bf16.mxu0 0
      %743 = vmatpush1.bf16.msra.mxu0 0
      %744 = vmatprep.subr.bf16.mxu0 0
      %745 = vmatpush1.bf16.msra.mxu0 0
      %746 = vmatprep.subr.bf16.mxu0 0
      %747 = vmatpush1.bf16.msra.mxu0 0
      %748 = vmatprep.subr.bf16.mxu0 0
      %749 = vmatpush1.bf16.msra.mxu0 0
      %750 = vmatprep.subr.bf16.mxu0 0
      %751 = vmatpush1.bf16.msra.mxu0 0
      %752 = vmatprep.subr.bf16.mxu0 0
      %753 = vmatpush1.bf16.msra.mxu0 0
      %754 = vmatprep.subr.bf16.mxu0 0
      %755 = vmatpush1.bf16.msra.mxu0 0
      %756 = vmatprep.subr.bf16.mxu0 0
      %757 = vmatpush1.bf16.msra.mxu0 0
      %758 = vmatprep.subr.bf16.mxu0 0
      %759 = vmatpush1.bf16.msra.mxu0 0
      %760 = vmatprep.subr.bf16.mxu0 0
      %761 = vmatpush1.bf16.msra.mxu0 0
      %762 = vmatprep.subr.bf16.mxu0 0
      %763 = vmatpush1.bf16.msra.mxu0 0
      %764 = vmatprep.subr.bf16.mxu0 0
      %765 = vmatpush1.bf16.msra.mxu0 0
      %766 = vmatprep.subr.bf16.mxu0 0
      %767 = vmatpush1.bf16.msra.mxu0 0
      %768 = vmatprep.mubr.bf16.mxu0 0
      %769 = vmatmul.mubr.bf16.gmra.mrb[0].mxu0 %v734
      %v770 = vpop.f32.mrb[0].mxu0
      %v771 = vadd.f32 0.0, %v770
      %v772 = vpop.f32.mrb[0].mxu0
      %v773 = vadd.f32 0.0, %v772
      %v774 = vpop.f32.mrb[0].mxu0
      %v775 = vpop.f32.mrb[0].mxu0
      %776 = vdwg.mxu0
      %v777 = vadd.f32 %v729, %v771
      %v778 = vadd.f32 %v730, %v773
      %s779 = scalar_lea.vmem %s2, 10
      %v780 = vld [vmem:[%s779] sm:$0x3]
      %v782 = vsel %vm426, %v780, 0
      %784 = vmatprep.subr.bf16.mxu0 %v435
      %785 = vmatpush1.bf16.msra.mxu0 %v432
      %786 = vmatprep.subr.bf16.mxu0 0
      %787 = vmatpush1.bf16.msra.mxu0 0
      %788 = vmatprep.subr.bf16.mxu0 0
      %789 = vmatpush1.bf16.msra.mxu0 0
      %790 = vmatprep.subr.bf16.mxu0 0
      %791 = vmatpush1.bf16.msra.mxu0 0
      %792 = vmatprep.subr.bf16.mxu0 0
      %793 = vmatpush1.bf16.msra.mxu0 0
      %794 = vmatprep.subr.bf16.mxu0 0
      %795 = vmatpush1.bf16.msra.mxu0 0
      %796 = vmatprep.subr.bf16.mxu0 0
      %797 = vmatpush1.bf16.msra.mxu0 0
      %798 = vmatprep.subr.bf16.mxu0 0
      %799 = vmatpush1.bf16.msra.mxu0 0
      %800 = vmatprep.subr.bf16.mxu0 0
      %801 = vmatpush1.bf16.msra.mxu0 0
      %802 = vmatprep.subr.bf16.mxu0 0
      %803 = vmatpush1.bf16.msra.mxu0 0
      %804 = vmatprep.subr.bf16.mxu0 0
      %805 = vmatpush1.bf16.msra.mxu0 0
      %806 = vmatprep.subr.bf16.mxu0 0
      %807 = vmatpush1.bf16.msra.mxu0 0
      %808 = vmatprep.subr.bf16.mxu0 0
      %809 = vmatpush1.bf16.msra.mxu0 0
      %810 = vmatprep.subr.bf16.mxu0 0
      %811 = vmatpush1.bf16.msra.mxu0 0
      %812 = vmatprep.subr.bf16.mxu0 0
      %813 = vmatpush1.bf16.msra.mxu0 0
      %814 = vmatprep.subr.bf16.mxu0 0
      %815 = vmatpush1.bf16.msra.mxu0 0
      %816 = vmatprep.mubr.bf16.mxu0 0
      %817 = vmatmul.mubr.bf16.gmra.mrb[0].mxu0 %v782
      %v818 = vpop.f32.mrb[0].mxu0
      %v819 = vadd.f32 0.0, %v818
      %v820 = vpop.f32.mrb[0].mxu0
      %v821 = vadd.f32 0.0, %v820
      %v822 = vpop.f32.mrb[0].mxu0
      %v823 = vpop.f32.mrb[0].mxu0
      %824 = vdwg.mxu0
      %827 = vrot.lane.b32.xlu0 %v819, 127
      %v828 = vpop.permute.xlu0 %827
      %829 = vrot.lane.b32.xlu0 %v821, 127
      %v830 = vpop.permute.xlu0 %829
      %vm831 = vcmask 1039360
      %v832 = vsel %vm831, %v828, %v830
      %v836 = vsel %vm831, %v830, %v828
      %s837 = scalar_lea.vmem %s1, 10
      %v838 = vld [vmem:[%s837] sm:$0x3]
      %v840 = vlaneseq
      %v841 = vshrl.u32 %v840, 7
      %v842 = vsub.s32 0, %v841
      %v843 = vrot.slane %v838, %v842
      %v844 = vlaneseq
      %v845 = vshrl.u32 %v844, 7
      %v846 = vsub.s32 1, %v845
      %v847 = vrot.slane %v838, %v846
      %v850 = vmul.f32 %v832, %v843
      %v851 = vmul.f32 %v836, %v847
      %v852 = vadd.f32 %v777, %v850
      %v853 = vadd.f32 %v778, %v851
      %s854 = scalar_lea.vmem %s2, 12
      %v855 = vld [vmem:[%s854] sm:$0x3]
      %v857 = vsel %vm426, %v855, 0
      %859 = vmatprep.subr.bf16.mxu0 %v435
      %860 = vmatpush1.bf16.msra.mxu0 %v432
      %861 = vmatprep.subr.bf16.mxu0 0
      %862 = vmatpush1.bf16.msra.mxu0 0
      %863 = vmatprep.subr.bf16.mxu0 0
      %864 = vmatpush1.bf16.msra.mxu0 0
      %865 = vmatprep.subr.bf16.mxu0 0
      %866 = vmatpush1.bf16.msra.mxu0 0
      %867 = vmatprep.subr.bf16.mxu0 0
      %868 = vmatpush1.bf16.msra.mxu0 0
      %869 = vmatprep.subr.bf16.mxu0 0
      %870 = vmatpush1.bf16.msra.mxu0 0
      %871 = vmatprep.subr.bf16.mxu0 0
      %872 = vmatpush1.bf16.msra.mxu0 0
      %873 = vmatprep.subr.bf16.mxu0 0
      %874 = vmatpush1.bf16.msra.mxu0 0
      %875 = vmatprep.subr.bf16.mxu0 0
      %876 = vmatpush1.bf16.msra.mxu0 0
      %877 = vmatprep.subr.bf16.mxu0 0
      %878 = vmatpush1.bf16.msra.mxu0 0
      %879 = vmatprep.subr.bf16.mxu0 0
      %880 = vmatpush1.bf16.msra.mxu0 0
      %881 = vmatprep.subr.bf16.mxu0 0
      %882 = vmatpush1.bf16.msra.mxu0 0
      %883 = vmatprep.subr.bf16.mxu0 0
      %884 = vmatpush1.bf16.msra.mxu0 0
      %885 = vmatprep.subr.bf16.mxu0 0
      %886 = vmatpush1.bf16.msra.mxu0 0
      %887 = vmatprep.subr.bf16.mxu0 0
      %888 = vmatpush1.bf16.msra.mxu0 0
      %889 = vmatprep.subr.bf16.mxu0 0
      %890 = vmatpush1.bf16.msra.mxu0 0
      %891 = vmatprep.mubr.bf16.mxu0 0
      %892 = vmatmul.mubr.bf16.gmra.mrb[0].mxu0 %v857
      %v893 = vpop.f32.mrb[0].mxu0
      %v894 = vadd.f32 0.0, %v893
      %v895 = vpop.f32.mrb[0].mxu0
      %v896 = vadd.f32 0.0, %v895
      %v897 = vpop.f32.mrb[0].mxu0
      %v898 = vpop.f32.mrb[0].mxu0
      %899 = vdwg.mxu0
      %902 = vrot.lane.b32.xlu0 %v894, 113
      %v903 = vpop.permute.xlu0 %902
      %904 = vrot.lane.b32.xlu0 %v896, 113
      %v905 = vpop.permute.xlu0 %904
      %vm906 = vcmask 924672
      %v907 = vsel %vm906, %v903, %v905
      %v911 = vsel %vm906, %v905, %v903
      %s912 = scalar_lea.vmem %s1, 12
      %v913 = vld [vmem:[%s912] sm:$0x3]
      %v915 = vlaneseq
      %v916 = vshrl.u32 %v915, 7
      %v917 = vsub.s32 0, %v916
      %v918 = vrot.slane %v913, %v917
      %v919 = vlaneseq
      %v920 = vshrl.u32 %v919, 7
      %v921 = vsub.s32 1, %v920
      %v922 = vrot.slane %v913, %v921
      %v925 = vmul.f32 %v907, %v918
      %v926 = vmul.f32 %v911, %v922
      %v927 = vadd.f32 %v852, %v925
      %v928 = vadd.f32 %v853, %v926
      %s929 = scalar_lea.vmem %s2, 14
      %v930 = vld [vmem:[%s929] sm:$0x3]
      %v932 = vsel %vm426, %v930, 0
      %934 = vmatprep.subr.bf16.mxu0 %v435
      %935 = vmatpush1.bf16.msra.mxu0 %v432
      %936 = vmatprep.subr.bf16.mxu0 0
      %937 = vmatpush1.bf16.msra.mxu0 0
      %938 = vmatprep.subr.bf16.mxu0 0
      %939 = vmatpush1.bf16.msra.mxu0 0
      %940 = vmatprep.subr.bf16.mxu0 0
      %941 = vmatpush1.bf16.msra.mxu0 0
      %942 = vmatprep.subr.bf16.mxu0 0
      %943 = vmatpush1.bf16.msra.mxu0 0
      %944 = vmatprep.subr.bf16.mxu0 0
      %945 = vmatpush1.bf16.msra.mxu0 0
      %946 = vmatprep.subr.bf16.mxu0 0
      %947 = vmatpush1.bf16.msra.mxu0 0
      %948 = vmatprep.subr.bf16.mxu0 0
      %949 = vmatpush1.bf16.msra.mxu0 0
      %950 = vmatprep.subr.bf16.mxu0 0
      %951 = vmatpush1.bf16.msra.mxu0 0
      %952 = vmatprep.subr.bf16.mxu0 0
      %953 = vmatpush1.bf16.msra.mxu0 0
      %954 = vmatprep.subr.bf16.mxu0 0
      %955 = vmatpush1.bf16.msra.mxu0 0
      %956 = vmatprep.subr.bf16.mxu0 0
      %957 = vmatpush1.bf16.msra.mxu0 0
      %958 = vmatprep.subr.bf16.mxu0 0
      %959 = vmatpush1.bf16.msra.mxu0 0
      %960 = vmatprep.subr.bf16.mxu0 0
      %961 = vmatpush1.bf16.msra.mxu0 0
      %962 = vmatprep.subr.bf16.mxu0 0
      %963 = vmatpush1.bf16.msra.mxu0 0
      %964 = vmatprep.subr.bf16.mxu0 0
      %965 = vmatpush1.bf16.msra.mxu0 0
      %966 = vmatprep.mubr.bf16.mxu0 0
      %967 = vmatmul.mubr.bf16.gmra.mrb[0].mxu0 %v932
      %v968 = vpop.f32.mrb[0].mxu0
      %v969 = vadd.f32 0.0, %v968
      %v970 = vpop.f32.mrb[0].mxu0
      %v971 = vadd.f32 0.0, %v970
      %v972 = vpop.f32.mrb[0].mxu0
      %v973 = vpop.f32.mrb[0].mxu0
      %974 = vdwg.mxu0
      %977 = vrot.lane.b32.xlu0 %v969, 112
      %v978 = vpop.permute.xlu0 %977
      %979 = vrot.lane.b32.xlu0 %v971, 112
      %v980 = vpop.permute.xlu0 %979
      %vm981 = vcmask 916480
      %v982 = vsel %vm981, %v978, %v980
      %v986 = vsel %vm981, %v980, %v978
      %s987 = scalar_lea.vmem %s1, 14
      %v988 = vld [vmem:[%s987] sm:$0x3]
      %v990 = vlaneseq
      %v991 = vshrl.u32 %v990, 7
      %v992 = vsub.s32 0, %v991
      %v993 = vrot.slane %v988, %v992
      %v994 = vlaneseq
      %v995 = vshrl.u32 %v994, 7
      %v996 = vsub.s32 1, %v995
      %v997 = vrot.slane %v988, %v996
      %v1000 = vmul.f32 %v982, %v993
      %v1001 = vmul.f32 %v986, %v997
      %v1002 = vadd.f32 %v927, %v1000
      %v1003 = vadd.f32 %v928, %v1001
      %s1004 = scalar_lea.vmem %s2, 16
      %v1005 = vld [vmem:[%s1004] sm:$0x3]
      %v1007 = vsel %vm426, %v1005, 0
      %1009 = vmatprep.subr.bf16.mxu0 %v435
      %1010 = vmatpush1.bf16.msra.mxu0 %v432
      %1011 = vmatprep.subr.bf16.mxu0 0
      %1012 = vmatpush1.bf16.msra.mxu0 0
      %1013 = vmatprep.subr.bf16.mxu0 0
      %1014 = vmatpush1.bf16.msra.mxu0 0
      %1015 = vmatprep.subr.bf16.mxu0 0
      %1016 = vmatpush1.bf16.msra.mxu0 0
      %1017 = vmatprep.subr.bf16.mxu0 0
      %1018 = vmatpush1.bf16.msra.mxu0 0
      %1019 = vmatprep.subr.bf16.mxu0 0
      %1020 = vmatpush1.bf16.msra.mxu0 0
      %1021 = vmatprep.subr.bf16.mxu0 0
      %1022 = vmatpush1.bf16.msra.mxu0 0
      %1023 = vmatprep.subr.bf16.mxu0 0
      %1024 = vmatpush1.bf16.msra.mxu0 0
      %1025 = vmatprep.subr.bf16.mxu0 0
      %1026 = vmatpush1.bf16.msra.mxu0 0
      %1027 = vmatprep.subr.bf16.mxu0 0
      %1028 = vmatpush1.bf16.msra.mxu0 0
      %1029 = vmatprep.subr.bf16.mxu0 0
      %1030 = vmatpush1.bf16.msra.mxu0 0
      %1031 = vmatprep.subr.bf16.mxu0 0
      %1032 = vmatpush1.bf16.msra.mxu0 0
      %1033 = vmatprep.subr.bf16.mxu0 0
      %1034 = vmatpush1.bf16.msra.mxu0 0
      %1035 = vmatprep.subr.bf16.mxu0 0
      %1036 = vmatpush1.bf16.msra.mxu0 0
      %1037 = vmatprep.subr.bf16.mxu0 0
      %1038 = vmatpush1.bf16.msra.mxu0 0
      %1039 = vmatprep.subr.bf16.mxu0 0
      %1040 = vmatpush1.bf16.msra.mxu0 0
      %1041 = vmatprep.mubr.bf16.mxu0 0
      %1042 = vmatmul.mubr.bf16.gmra.mrb[0].mxu0 %v1007
      %v1043 = vpop.f32.mrb[0].mxu0
      %v1044 = vadd.f32 0.0, %v1043
      %v1045 = vpop.f32.mrb[0].mxu0
      %v1046 = vadd.f32 0.0, %v1045
      %v1047 = vpop.f32.mrb[0].mxu0
      %v1048 = vpop.f32.mrb[0].mxu0
      %1049 = vdwg.mxu0
      %1052 = vrot.lane.b32.xlu0 %v1044, 111
      %v1053 = vpop.permute.xlu0 %1052
      %1054 = vrot.lane.b32.xlu0 %v1046, 111
      %v1055 = vpop.permute.xlu0 %1054
      %vm1056 = vcmask 908288
      %v1057 = vsel %vm1056, %v1053, %v1055
      %v1061 = vsel %vm1056, %v1055, %v1053
      %s1062 = scalar_lea.vmem %s1, 16
      %v1063 = vld [vmem:[%s1062] sm:$0x3]
      %v1065 = vlaneseq
      %v1066 = vshrl.u32 %v1065, 7
      %v1067 = vsub.s32 0, %v1066
      %v1068 = vrot.slane %v1063, %v1067
      %v1069 = vlaneseq
      %v1070 = vshrl.u32 %v1069, 7
      %v1071 = vsub.s32 1, %v1070
      %v1072 = vrot.slane %v1063, %v1071
      %v1075 = vmul.f32 %v1057, %v1068
      %v1076 = vmul.f32 %v1061, %v1072
      %v1077 = vadd.f32 %v1002, %v1075
      %v1078 = vadd.f32 %v1003, %v1076
      %v1079 = vld [vmem:[%s7] sm:$0xf]
      %1081 = vset.pattern.permute.xlu0 0
      %1082 = vperm.xlu0 %1081, %v1079
      %v1083 = vpop.permute.xlu0 %1082
      %v1085 = vadd.f32 %v1077, %v1083
      %v1086 = vadd.f32 %v1078, %v1083
      %vm1087 = vcmp.ge.f32.partialorder %v1085, 0.0
      %vm1088 = vcmp.ge.f32.partialorder %v1086, 0.0
      %v1089 = vmul.f32 %v1085, 0.2
      %v1090 = vmul.f32 %v1086, 0.2
      %v1091 = vsel %vm1087, %v1085, %v1089
      %v1092 = vsel %vm1088, %v1086, %v1090
      %v1095 = vrot.slane %v1091, 4
      %v1096 = vrot.slane %v1092, 4
      %1099 = vst [vmem:[#allocation2] sm:$0xf0] %v1095
      %1100 = vst [vmem:[#allocation2 + $0x8] sm:$0xf0] %v1096
      %v1101 = vld [vmem:[#allocation2] sm:$0xff]
      %v1102 = vld [vmem:[#allocation2 + $0x8] sm:$0xff]
      %v1103 = vpack.c.bf16 %v1101, %v1101
      %v1104 = vpack.c.bf16 %v1102, %v1102
      %v1105 = vld [vmem:[%s3] sm:$0x3]
      %vm1106 = vcmask 64512
      %v1108 = vsel %vm1106, %v1105, 0
      %vm1110 = vcmask 1043456
      %v1112 = vsel %vm1110, %v1103, 0
      %v1115 = vsel %vm1110, %v1104, 0
      %1117 = vmatprep.subr.bf16.mxu0 %v1115
      %1118 = vmatpush1.bf16.msra.mxu0 %v1112
      %1119 = vmatprep.subr.bf16.mxu0 0
      %1120 = vmatpush1.bf16.msra.mxu0 0
      %1121 = vmatprep.subr.bf16.mxu0 0
      %1122 = vmatpush1.bf16.msra.mxu0 0
      %1123 = vmatprep.subr.bf16.mxu0 0
      %1124 = vmatpush1.bf16.msra.mxu0 0
      %1125 = vmatprep.subr.bf16.mxu0 0
      %1126 = vmatpush1.bf16.msra.mxu0 0
      %1127 = vmatprep.subr.bf16.mxu0 0
      %1128 = vmatpush1.bf16.msra.mxu0 0
      %1129 = vmatprep.subr.bf16.mxu0 0
      %1130 = vmatpush1.bf16.msra.mxu0 0
      %1131 = vmatprep.subr.bf16.mxu0 0
      %1132 = vmatpush1.bf16.msra.mxu0 0
      %1133 = vmatprep.subr.bf16.mxu0 0
      %1134 = vmatpush1.bf16.msra.mxu0 0
      %1135 = vmatprep.subr.bf16.mxu0 0
      %1136 = vmatpush1.bf16.msra.mxu0 0
      %1137 = vmatprep.subr.bf16.mxu0 0
      %1138 = vmatpush1.bf16.msra.mxu0 0
      %1139 = vmatprep.subr.bf16.mxu0 0
      %1140 = vmatpush1.bf16.msra.mxu0 0
      %1141 = vmatprep.subr.bf16.mxu0 0
      %1142 = vmatpush1.bf16.msra.mxu0 0
      %1143 = vmatprep.subr.bf16.mxu0 0
      %1144 = vmatpush1.bf16.msra.mxu0 0
      %1145 = vmatprep.subr.bf16.mxu0 0
      %1146 = vmatpush1.bf16.msra.mxu0 0
      %1147 = vmatprep.subr.bf16.mxu0 0
      %1148 = vmatpush1.bf16.msra.mxu0 0
      %1149 = vmatprep.mubr.bf16.mxu0 0
      %1150 = vmatmul.mubr.bf16.gmra.mrb[0].mxu0 %v1108
      %v1151 = vpop.f32.mrb[0].mxu0
      %v1152 = vadd.f32 0.0, %v1151
      %v1153 = vpop.f32.mrb[0].mxu0
      %v1154 = vadd.f32 0.0, %v1153
      %v1155 = vpop.f32.mrb[0].mxu0
      %v1156 = vpop.f32.mrb[0].mxu0
      %1157 = vdwg.mxu0
      %1159 = vrot.lane.b32.xlu0 %v1154, 17
      %v1160 = vpop.permute.xlu0 %1159
      %1163 = vrot.lane.b32.xlu0 %v1152, 17
      %v1164 = vpop.permute.xlu0 %1163
      %v1165 = vsel %vm485, %v1164, %v1160
      %v1168 = vsel %vm485, %v1160, %v1164
      %v1169 = vld [vmem:[%s1] sm:$0x3]
      %v1171 = vlaneseq
      %v1172 = vshrl.u32 %v1171, 7
      %v1173 = vsub.s32 0, %v1172
      %v1174 = vrot.slane %v1169, %v1173
      %v1175 = vlaneseq
      %v1176 = vshrl.u32 %v1175, 7
      %v1177 = vsub.s32 1, %v1176
      %v1178 = vrot.slane %v1169, %v1177
      %v1181 = vmul.f32 %v1168, %v1174
      %v1182 = vmul.f32 %v1165, %v1178
      %v1183 = vadd.f32 %v1181, 0.0
      %v1184 = vadd.f32 %v1182, 0.0
      %s1185 = scalar_lea.vmem %s3, 2
      %v1186 = vld [vmem:[%s1185] sm:$0x3]
      %v1188 = vsel %vm1106, %v1186, 0
      %1190 = vmatprep.subr.bf16.mxu0 %v1115
      %1191 = vmatpush1.bf16.msra.mxu0 %v1112
      %1192 = vmatprep.subr.bf16.mxu0 0
      %1193 = vmatpush1.bf16.msra.mxu0 0
      %1194 = vmatprep.subr.bf16.mxu0 0
      %1195 = vmatpush1.bf16.msra.mxu0 0
      %1196 = vmatprep.subr.bf16.mxu0 0
      %1197 = vmatpush1.bf16.msra.mxu0 0
      %1198 = vmatprep.subr.bf16.mxu0 0
      %1199 = vmatpush1.bf16.msra.mxu0 0
      %1200 = vmatprep.subr.bf16.mxu0 0
      %1201 = vmatpush1.bf16.msra.mxu0 0
      %1202 = vmatprep.subr.bf16.mxu0 0
      %1203 = vmatpush1.bf16.msra.mxu0 0
      %1204 = vmatprep.subr.bf16.mxu0 0
      %1205 = vmatpush1.bf16.msra.mxu0 0
      %1206 = vmatprep.subr.bf16.mxu0 0
      %1207 = vmatpush1.bf16.msra.mxu0 0
      %1208 = vmatprep.subr.bf16.mxu0 0
      %1209 = vmatpush1.bf16.msra.mxu0 0
      %1210 = vmatprep.subr.bf16.mxu0 0
      %1211 = vmatpush1.bf16.msra.mxu0 0
      %1212 = vmatprep.subr.bf16.mxu0 0
      %1213 = vmatpush1.bf16.msra.mxu0 0
      %1214 = vmatprep.subr.bf16.mxu0 0
      %1215 = vmatpush1.bf16.msra.mxu0 0
      %1216 = vmatprep.subr.bf16.mxu0 0
      %1217 = vmatpush1.bf16.msra.mxu0 0
      %1218 = vmatprep.subr.bf16.mxu0 0
      %1219 = vmatpush1.bf16.msra.mxu0 0
      %1220 = vmatprep.subr.bf16.mxu0 0
      %1221 = vmatpush1.bf16.msra.mxu0 0
      %1222 = vmatprep.mubr.bf16.mxu0 0
      %1223 = vmatmul.mubr.bf16.gmra.mrb[0].mxu0 %v1188
      %v1224 = vpop.f32.mrb[0].mxu0
      %v1225 = vadd.f32 0.0, %v1224
      %v1226 = vpop.f32.mrb[0].mxu0
      %v1227 = vadd.f32 0.0, %v1226
      %v1228 = vpop.f32.mrb[0].mxu0
      %v1229 = vpop.f32.mrb[0].mxu0
      %1230 = vdwg.mxu0
      %1232 = vrot.lane.b32.xlu0 %v1227, 16
      %v1233 = vpop.permute.xlu0 %1232
      %1236 = vrot.lane.b32.xlu0 %v1225, 16
      %v1237 = vpop.permute.xlu0 %1236
      %v1238 = vsel %vm559, %v1237, %v1233
      %v1241 = vsel %vm559, %v1233, %v1237
      %v1242 = vld [vmem:[%s564] sm:$0x3]
      %v1244 = vlaneseq
      %v1245 = vshrl.u32 %v1244, 7
      %v1246 = vsub.s32 0, %v1245
      %v1247 = vrot.slane %v1242, %v1246
      %v1248 = vlaneseq
      %v1249 = vshrl.u32 %v1248, 7
      %v1250 = vsub.s32 1, %v1249
      %v1251 = vrot.slane %v1242, %v1250
      %v1254 = vmul.f32 %v1241, %v1247
      %v1255 = vmul.f32 %v1238, %v1251
      %v1256 = vadd.f32 %v1183, %v1254
      %v1257 = vadd.f32 %v1184, %v1255
      %s1258 = scalar_lea.vmem %s3, 4
      %v1259 = vld [vmem:[%s1258] sm:$0x3]
      %v1261 = vsel %vm1106, %v1259, 0
      %1263 = vmatprep.subr.bf16.mxu0 %v1115
      %1264 = vmatpush1.bf16.msra.mxu0 %v1112
      %1265 = vmatprep.subr.bf16.mxu0 0
      %1266 = vmatpush1.bf16.msra.mxu0 0
      %1267 = vmatprep.subr.bf16.mxu0 0
      %1268 = vmatpush1.bf16.msra.mxu0 0
      %1269 = vmatprep.subr.bf16.mxu0 0
      %1270 = vmatpush1.bf16.msra.mxu0 0
      %1271 = vmatprep.subr.bf16.mxu0 0
      %1272 = vmatpush1.bf16.msra.mxu0 0
      %1273 = vmatprep.subr.bf16.mxu0 0
      %1274 = vmatpush1.bf16.msra.mxu0 0
      %1275 = vmatprep.subr.bf16.mxu0 0
      %1276 = vmatpush1.bf16.msra.mxu0 0
      %1277 = vmatprep.subr.bf16.mxu0 0
      %1278 = vmatpush1.bf16.msra.mxu0 0
      %1279 = vmatprep.subr.bf16.mxu0 0
      %1280 = vmatpush1.bf16.msra.mxu0 0
      %1281 = vmatprep.subr.bf16.mxu0 0
      %1282 = vmatpush1.bf16.msra.mxu0 0
      %1283 = vmatprep.subr.bf16.mxu0 0
      %1284 = vmatpush1.bf16.msra.mxu0 0
      %1285 = vmatprep.subr.bf16.mxu0 0
      %1286 = vmatpush1.bf16.msra.mxu0 0
      %1287 = vmatprep.subr.bf16.mxu0 0
      %1288 = vmatpush1.bf16.msra.mxu0 0
      %1289 = vmatprep.subr.bf16.mxu0 0
      %1290 = vmatpush1.bf16.msra.mxu0 0
      %1291 = vmatprep.subr.bf16.mxu0 0
      %1292 = vmatpush1.bf16.msra.mxu0 0
      %1293 = vmatprep.subr.bf16.mxu0 0
      %1294 = vmatpush1.bf16.msra.mxu0 0
      %1295 = vmatprep.mubr.bf16.mxu0 0
      %1296 = vmatmul.mubr.bf16.gmra.mrb[0].mxu0 %v1261
      %v1297 = vpop.f32.mrb[0].mxu0
      %v1298 = vadd.f32 0.0, %v1297
      %v1299 = vpop.f32.mrb[0].mxu0
      %v1300 = vadd.f32 0.0, %v1299
      %v1301 = vpop.f32.mrb[0].mxu0
      %v1302 = vpop.f32.mrb[0].mxu0
      %1303 = vdwg.mxu0
      %1305 = vrot.lane.b32.xlu0 %v1300, 15
      %v1306 = vpop.permute.xlu0 %1305
      %1309 = vrot.lane.b32.xlu0 %v1298, 15
      %v1310 = vpop.permute.xlu0 %1309
      %v1311 = vsel %vm634, %v1310, %v1306
      %v1314 = vsel %vm634, %v1306, %v1310
      %v1315 = vld [vmem:[%s639] sm:$0x3]
      %v1317 = vlaneseq
      %v1318 = vshrl.u32 %v1317, 7
      %v1319 = vsub.s32 0, %v1318
      %v1320 = vrot.slane %v1315, %v1319
      %v1321 = vlaneseq
      %v1322 = vshrl.u32 %v1321, 7
      %v1323 = vsub.s32 1, %v1322
      %v1324 = vrot.slane %v1315, %v1323
      %v1327 = vmul.f32 %v1314, %v1320
      %v1328 = vmul.f32 %v1311, %v1324
      %v1329 = vadd.f32 %v1256, %v1327
      %v1330 = vadd.f32 %v1257, %v1328
      %s1331 = scalar_lea.vmem %s3, 6
      %v1332 = vld [vmem:[%s1331] sm:$0x3]
      %v1334 = vsel %vm1106, %v1332, 0
      %1336 = vmatprep.subr.bf16.mxu0 %v1115
      %1337 = vmatpush1.bf16.msra.mxu0 %v1112
      %1338 = vmatprep.subr.bf16.mxu0 0
      %1339 = vmatpush1.bf16.msra.mxu0 0
      %1340 = vmatprep.subr.bf16.mxu0 0
      %1341 = vmatpush1.bf16.msra.mxu0 0
      %1342 = vmatprep.subr.bf16.mxu0 0
      %1343 = vmatpush1.bf16.msra.mxu0 0
      %1344 = vmatprep.subr.bf16.mxu0 0
      %1345 = vmatpush1.bf16.msra.mxu0 0
      %1346 = vmatprep.subr.bf16.mxu0 0
      %1347 = vmatpush1.bf16.msra.mxu0 0
      %1348 = vmatprep.subr.bf16.mxu0 0
      %1349 = vmatpush1.bf16.msra.mxu0 0
      %1350 = vmatprep.subr.bf16.mxu0 0
      %1351 = vmatpush1.bf16.msra.mxu0 0
      %1352 = vmatprep.subr.bf16.mxu0 0
      %1353 = vmatpush1.bf16.msra.mxu0 0
      %1354 = vmatprep.subr.bf16.mxu0 0
      %1355 = vmatpush1.bf16.msra.mxu0 0
      %1356 = vmatprep.subr.bf16.mxu0 0
      %1357 = vmatpush1.bf16.msra.mxu0 0
      %1358 = vmatprep.subr.bf16.mxu0 0
      %1359 = vmatpush1.bf16.msra.mxu0 0
      %1360 = vmatprep.subr.bf16.mxu0 0
      %1361 = vmatpush1.bf16.msra.mxu0 0
      %1362 = vmatprep.subr.bf16.mxu0 0
      %1363 = vmatpush1.bf16.msra.mxu0 0
      %1364 = vmatprep.subr.bf16.mxu0 0
      %1365 = vmatpush1.bf16.msra.mxu0 0
      %1366 = vmatprep.subr.bf16.mxu0 0
      %1367 = vmatpush1.bf16.msra.mxu0 0
      %1368 = vmatprep.mubr.bf16.mxu0 0
      %1369 = vmatmul.mubr.bf16.gmra.mrb[0].mxu0 %v1334
      %v1370 = vpop.f32.mrb[0].mxu0
      %v1371 = vadd.f32 0.0, %v1370
      %v1372 = vpop.f32.mrb[0].mxu0
      %v1373 = vadd.f32 0.0, %v1372
      %v1374 = vpop.f32.mrb[0].mxu0
      %v1375 = vpop.f32.mrb[0].mxu0
      %1376 = vdwg.mxu0
      %1378 = vrot.lane.b32.xlu0 %v1373, 1
      %v1379 = vpop.permute.xlu0 %1378
      %1382 = vrot.lane.b32.xlu0 %v1371, 1
      %v1383 = vpop.permute.xlu0 %1382
      %v1384 = vsel %vm709, %v1383, %v1379
      %v1387 = vsel %vm709, %v1379, %v1383
      %v1388 = vld [vmem:[%s714] sm:$0x3]
      %v1390 = vlaneseq
      %v1391 = vshrl.u32 %v1390, 7
      %v1392 = vsub.s32 0, %v1391
      %v1393 = vrot.slane %v1388, %v1392
      %v1394 = vlaneseq
      %v1395 = vshrl.u32 %v1394, 7
      %v1396 = vsub.s32 1, %v1395
      %v1397 = vrot.slane %v1388, %v1396
      %v1400 = vmul.f32 %v1387, %v1393
      %v1401 = vmul.f32 %v1384, %v1397
      %v1402 = vadd.f32 %v1329, %v1400
      %v1403 = vadd.f32 %v1330, %v1401
      %s1404 = scalar_lea.vmem %s3, 8
      %v1405 = vld [vmem:[%s1404] sm:$0x3]
      %v1407 = vsel %vm1106, %v1405, 0
      %1409 = vmatprep.subr.bf16.mxu0 %v1115
      %1410 = vmatpush1.bf16.msra.mxu0 %v1112
      %1411 = vmatprep.subr.bf16.mxu0 0
      %1412 = vmatpush1.bf16.msra.mxu0 0
      %1413 = vmatprep.subr.bf16.mxu0 0
      %1414 = vmatpush1.bf16.msra.mxu0 0
      %1415 = vmatprep.subr.bf16.mxu0 0
      %1416 = vmatpush1.bf16.msra.mxu0 0
      %1417 = vmatprep.subr.bf16.mxu0 0
      %1418 = vmatpush1.bf16.msra.mxu0 0
      %1419 = vmatprep.subr.bf16.mxu0 0
      %1420 = vmatpush1.bf16.msra.mxu0 0
      %1421 = vmatprep.subr.bf16.mxu0 0
      %1422 = vmatpush1.bf16.msra.mxu0 0
      %1423 = vmatprep.subr.bf16.mxu0 0
      %1424 = vmatpush1.bf16.msra.mxu0 0
      %1425 = vmatprep.subr.bf16.mxu0 0
      %1426 = vmatpush1.bf16.msra.mxu0 0
      %1427 = vmatprep.subr.bf16.mxu0 0
      %1428 = vmatpush1.bf16.msra.mxu0 0
      %1429 = vmatprep.subr.bf16.mxu0 0
      %1430 = vmatpush1.bf16.msra.mxu0 0
      %1431 = vmatprep.subr.bf16.mxu0 0
      %1432 = vmatpush1.bf16.msra.mxu0 0
      %1433 = vmatprep.subr.bf16.mxu0 0
      %1434 = vmatpush1.bf16.msra.mxu0 0
      %1435 = vmatprep.subr.bf16.mxu0 0
      %1436 = vmatpush1.bf16.msra.mxu0 0
      %1437 = vmatprep.subr.bf16.mxu0 0
      %1438 = vmatpush1.bf16.msra.mxu0 0
      %1439 = vmatprep.subr.bf16.mxu0 0
      %1440 = vmatpush1.bf16.msra.mxu0 0
      %1441 = vmatprep.mubr.bf16.mxu0 0
      %1442 = vmatmul.mubr.bf16.gmra.mrb[0].mxu0 %v1407
      %v1443 = vpop.f32.mrb[0].mxu0
      %v1444 = vadd.f32 0.0, %v1443
      %v1445 = vpop.f32.mrb[0].mxu0
      %v1446 = vadd.f32 0.0, %v1445
      %v1447 = vpop.f32.mrb[0].mxu0
      %v1448 = vpop.f32.mrb[0].mxu0
      %1449 = vdwg.mxu0
      %v1450 = vadd.f32 %v1402, %v1444
      %v1451 = vadd.f32 %v1403, %v1446
      %s1452 = scalar_lea.vmem %s3, 10
      %v1453 = vld [vmem:[%s1452] sm:$0x3]
      %v1455 = vsel %vm1106, %v1453, 0
      %1457 = vmatprep.subr.bf16.mxu0 %v1115
      %1458 = vmatpush1.bf16.msra.mxu0 %v1112
      %1459 = vmatprep.subr.bf16.mxu0 0
      %1460 = vmatpush1.bf16.msra.mxu0 0
      %1461 = vmatprep.subr.bf16.mxu0 0
      %1462 = vmatpush1.bf16.msra.mxu0 0
      %1463 = vmatprep.subr.bf16.mxu0 0
      %1464 = vmatpush1.bf16.msra.mxu0 0
      %1465 = vmatprep.subr.bf16.mxu0 0
      %1466 = vmatpush1.bf16.msra.mxu0 0
      %1467 = vmatprep.subr.bf16.mxu0 0
      %1468 = vmatpush1.bf16.msra.mxu0 0
      %1469 = vmatprep.subr.bf16.mxu0 0
      %1470 = vmatpush1.bf16.msra.mxu0 0
      %1471 = vmatprep.subr.bf16.mxu0 0
      %1472 = vmatpush1.bf16.msra.mxu0 0
      %1473 = vmatprep.subr.bf16.mxu0 0
      %1474 = vmatpush1.bf16.msra.mxu0 0
      %1475 = vmatprep.subr.bf16.mxu0 0
      %1476 = vmatpush1.bf16.msra.mxu0 0
      %1477 = vmatprep.subr.bf16.mxu0 0
      %1478 = vmatpush1.bf16.msra.mxu0 0
      %1479 = vmatprep.subr.bf16.mxu0 0
      %1480 = vmatpush1.bf16.msra.mxu0 0
      %1481 = vmatprep.subr.bf16.mxu0 0
      %1482 = vmatpush1.bf16.msra.mxu0 0
      %1483 = vmatprep.subr.bf16.mxu0 0
      %1484 = vmatpush1.bf16.msra.mxu0 0
      %1485 = vmatprep.subr.bf16.mxu0 0
      %1486 = vmatpush1.bf16.msra.mxu0 0
      %1487 = vmatprep.subr.bf16.mxu0 0
      %1488 = vmatpush1.bf16.msra.mxu0 0
      %1489 = vmatprep.mubr.bf16.mxu0 0
      %1490 = vmatmul.mubr.bf16.gmra.mrb[0].mxu0 %v1455
      %v1491 = vpop.f32.mrb[0].mxu0
      %v1492 = vadd.f32 0.0, %v1491
      %v1493 = vpop.f32.mrb[0].mxu0
      %v1494 = vadd.f32 0.0, %v1493
      %v1495 = vpop.f32.mrb[0].mxu0
      %v1496 = vpop.f32.mrb[0].mxu0
      %1497 = vdwg.mxu0
      %1500 = vrot.lane.b32.xlu0 %v1492, 127
      %v1501 = vpop.permute.xlu0 %1500
      %1502 = vrot.lane.b32.xlu0 %v1494, 127
      %v1503 = vpop.permute.xlu0 %1502
      %v1504 = vsel %vm831, %v1501, %v1503
      %v1508 = vsel %vm831, %v1503, %v1501
      %v1509 = vld [vmem:[%s837] sm:$0x3]
      %v1511 = vlaneseq
      %v1512 = vshrl.u32 %v1511, 7
      %v1513 = vsub.s32 0, %v1512
      %v1514 = vrot.slane %v1509, %v1513
      %v1515 = vlaneseq
      %v1516 = vshrl.u32 %v1515, 7
      %v1517 = vsub.s32 1, %v1516
      %v1518 = vrot.slane %v1509, %v1517
      %v1521 = vmul.f32 %v1504, %v1514
      %v1522 = vmul.f32 %v1508, %v1518
      %v1523 = vadd.f32 %v1450, %v1521
      %v1524 = vadd.f32 %v1451, %v1522
      %s1525 = scalar_lea.vmem %s3, 12
      %v1526 = vld [vmem:[%s1525] sm:$0x3]
      %v1528 = vsel %vm1106, %v1526, 0
      %1530 = vmatprep.subr.bf16.mxu0 %v1115
      %1531 = vmatpush1.bf16.msra.mxu0 %v1112
      %1532 = vmatprep.subr.bf16.mxu0 0
      %1533 = vmatpush1.bf16.msra.mxu0 0
      %1534 = vmatprep.subr.bf16.mxu0 0
      %1535 = vmatpush1.bf16.msra.mxu0 0
      %1536 = vmatprep.subr.bf16.mxu0 0
      %1537 = vmatpush1.bf16.msra.mxu0 0
      %1538 = vmatprep.subr.bf16.mxu0 0
      %1539 = vmatpush1.bf16.msra.mxu0 0
      %1540 = vmatprep.subr.bf16.mxu0 0
      %1541 = vmatpush1.bf16.msra.mxu0 0
      %1542 = vmatprep.subr.bf16.mxu0 0
      %1543 = vmatpush1.bf16.msra.mxu0 0
      %1544 = vmatprep.subr.bf16.mxu0 0
      %1545 = vmatpush1.bf16.msra.mxu0 0
      %1546 = vmatprep.subr.bf16.mxu0 0
      %1547 = vmatpush1.bf16.msra.mxu0 0
      %1548 = vmatprep.subr.bf16.mxu0 0
      %1549 = vmatpush1.bf16.msra.mxu0 0
      %1550 = vmatprep.subr.bf16.mxu0 0
      %1551 = vmatpush1.bf16.msra.mxu0 0
      %1552 = vmatprep.subr.bf16.mxu0 0
      %1553 = vmatpush1.bf16.msra.mxu0 0
      %1554 = vmatprep.subr.bf16.mxu0 0
      %1555 = vmatpush1.bf16.msra.mxu0 0
      %1556 = vmatprep.subr.bf16.mxu0 0
      %1557 = vmatpush1.bf16.msra.mxu0 0
      %1558 = vmatprep.subr.bf16.mxu0 0
      %1559 = vmatpush1.bf16.msra.mxu0 0
      %1560 = vmatprep.subr.bf16.mxu0 0
      %1561 = vmatpush1.bf16.msra.mxu0 0
      %1562 = vmatprep.mubr.bf16.mxu0 0
      %1563 = vmatmul.mubr.bf16.gmra.mrb[0].mxu0 %v1528
      %v1564 = vpop.f32.mrb[0].mxu0
      %v1565 = vadd.f32 0.0, %v1564
      %v1566 = vpop.f32.mrb[0].mxu0
      %v1567 = vadd.f32 0.0, %v1566
      %v1568 = vpop.f32.mrb[0].mxu0
      %v1569 = vpop.f32.mrb[0].mxu0
      %1570 = vdwg.mxu0
      %1573 = vrot.lane.b32.xlu0 %v1565, 113
      %v1574 = vpop.permute.xlu0 %1573
      %1575 = vrot.lane.b32.xlu0 %v1567, 113
      %v1576 = vpop.permute.xlu0 %1575
      %v1577 = vsel %vm906, %v1574, %v1576
      %v1581 = vsel %vm906, %v1576, %v1574
      %v1582 = vld [vmem:[%s912] sm:$0x3]
      %v1584 = vlaneseq
      %v1585 = vshrl.u32 %v1584, 7
      %v1586 = vsub.s32 0, %v1585
      %v1587 = vrot.slane %v1582, %v1586
      %v1588 = vlaneseq
      %v1589 = vshrl.u32 %v1588, 7
      %v1590 = vsub.s32 1, %v1589
      %v1591 = vrot.slane %v1582, %v1590
      %v1594 = vmul.f32 %v1577, %v1587
      %v1595 = vmul.f32 %v1581, %v1591
      %v1596 = vadd.f32 %v1523, %v1594
      %v1597 = vadd.f32 %v1524, %v1595
      %s1598 = scalar_lea.vmem %s3, 14
      %v1599 = vld [vmem:[%s1598] sm:$0x3]
      %v1601 = vsel %vm1106, %v1599, 0
      %1603 = vmatprep.subr.bf16.mxu0 %v1115
      %1604 = vmatpush1.bf16.msra.mxu0 %v1112
      %1605 = vmatprep.subr.bf16.mxu0 0
      %1606 = vmatpush1.bf16.msra.mxu0 0
      %1607 = vmatprep.subr.bf16.mxu0 0
      %1608 = vmatpush1.bf16.msra.mxu0 0
      %1609 = vmatprep.subr.bf16.mxu0 0
      %1610 = vmatpush1.bf16.msra.mxu0 0
      %1611 = vmatprep.subr.bf16.mxu0 0
      %1612 = vmatpush1.bf16.msra.mxu0 0
      %1613 = vmatprep.subr.bf16.mxu0 0
      %1614 = vmatpush1.bf16.msra.mxu0 0
      %1615 = vmatprep.subr.bf16.mxu0 0
      %1616 = vmatpush1.bf16.msra.mxu0 0
      %1617 = vmatprep.subr.bf16.mxu0 0
      %1618 = vmatpush1.bf16.msra.mxu0 0
      %1619 = vmatprep.subr.bf16.mxu0 0
      %1620 = vmatpush1.bf16.msra.mxu0 0
      %1621 = vmatprep.subr.bf16.mxu0 0
      %1622 = vmatpush1.bf16.msra.mxu0 0
      %1623 = vmatprep.subr.bf16.mxu0 0
      %1624 = vmatpush1.bf16.msra.mxu0 0
      %1625 = vmatprep.subr.bf16.mxu0 0
      %1626 = vmatpush1.bf16.msra.mxu0 0
      %1627 = vmatprep.subr.bf16.mxu0 0
      %1628 = vmatpush1.bf16.msra.mxu0 0
      %1629 = vmatprep.subr.bf16.mxu0 0
      %1630 = vmatpush1.bf16.msra.mxu0 0
      %1631 = vmatprep.subr.bf16.mxu0 0
      %1632 = vmatpush1.bf16.msra.mxu0 0
      %1633 = vmatprep.subr.bf16.mxu0 0
      %1634 = vmatpush1.bf16.msra.mxu0 0
      %1635 = vmatprep.mubr.bf16.mxu0 0
      %1636 = vmatmul.mubr.bf16.gmra.mrb[0].mxu0 %v1601
      %v1637 = vpop.f32.mrb[0].mxu0
      %v1638 = vadd.f32 0.0, %v1637
      %v1639 = vpop.f32.mrb[0].mxu0
      %v1640 = vadd.f32 0.0, %v1639
      %v1641 = vpop.f32.mrb[0].mxu0
      %v1642 = vpop.f32.mrb[0].mxu0
      %1643 = vdwg.mxu0
      %1646 = vrot.lane.b32.xlu0 %v1638, 112
      %v1647 = vpop.permute.xlu0 %1646
      %1648 = vrot.lane.b32.xlu0 %v1640, 112
      %v1649 = vpop.permute.xlu0 %1648
      %v1650 = vsel %vm981, %v1647, %v1649
      %v1654 = vsel %vm981, %v1649, %v1647
      %v1655 = vld [vmem:[%s987] sm:$0x3]
      %v1657 = vlaneseq
      %v1658 = vshrl.u32 %v1657, 7
      %v1659 = vsub.s32 0, %v1658
      %v1660 = vrot.slane %v1655, %v1659
      %v1661 = vlaneseq
      %v1662 = vshrl.u32 %v1661, 7
      %v1663 = vsub.s32 1, %v1662
      %v1664 = vrot.slane %v1655, %v1663
      %v1667 = vmul.f32 %v1650, %v1660
      %v1668 = vmul.f32 %v1654, %v1664
      %v1669 = vadd.f32 %v1596, %v1667
      %v1670 = vadd.f32 %v1597, %v1668
      %s1671 = scalar_lea.vmem %s3, 16
      %v1672 = vld [vmem:[%s1671] sm:$0x3]
      %v1674 = vsel %vm1106, %v1672, 0
      %1676 = vmatprep.subr.bf16.mxu0 %v1115
      %1677 = vmatpush1.bf16.msra.mxu0 %v1112
      %1678 = vmatprep.subr.bf16.mxu0 0
      %1679 = vmatpush1.bf16.msra.mxu0 0
      %1680 = vmatprep.subr.bf16.mxu0 0
      %1681 = vmatpush1.bf16.msra.mxu0 0
      %1682 = vmatprep.subr.bf16.mxu0 0
      %1683 = vmatpush1.bf16.msra.mxu0 0
      %1684 = vmatprep.subr.bf16.mxu0 0
      %1685 = vmatpush1.bf16.msra.mxu0 0
      %1686 = vmatprep.subr.bf16.mxu0 0
      %1687 = vmatpush1.bf16.msra.mxu0 0
      %1688 = vmatprep.subr.bf16.mxu0 0
      %1689 = vmatpush1.bf16.msra.mxu0 0
      %1690 = vmatprep.subr.bf16.mxu0 0
      %1691 = vmatpush1.bf16.msra.mxu0 0
      %1692 = vmatprep.subr.bf16.mxu0 0
      %1693 = vmatpush1.bf16.msra.mxu0 0
      %1694 = vmatprep.subr.bf16.mxu0 0
      %1695 = vmatpush1.bf16.msra.mxu0 0
      %1696 = vmatprep.subr.bf16.mxu0 0
      %1697 = vmatpush1.bf16.msra.mxu0 0
      %1698 = vmatprep.subr.bf16.mxu0 0
      %1699 = vmatpush1.bf16.msra.mxu0 0
      %1700 = vmatprep.subr.bf16.mxu0 0
      %1701 = vmatpush1.bf16.msra.mxu0 0
      %1702 = vmatprep.subr.bf16.mxu0 0
      %1703 = vmatpush1.bf16.msra.mxu0 0
      %1704 = vmatprep.subr.bf16.mxu0 0
      %1705 = vmatpush1.bf16.msra.mxu0 0
      %1706 = vmatprep.subr.bf16.mxu0 0
      %1707 = vmatpush1.bf16.msra.mxu0 0
      %1708 = vmatprep.mubr.bf16.mxu0 0
      %1709 = vmatmul.mubr.bf16.gmra.mrb[0].mxu0 %v1674
      %v1710 = vpop.f32.mrb[0].mxu0
      %v1711 = vadd.f32 0.0, %v1710
      %v1712 = vpop.f32.mrb[0].mxu0
      %v1713 = vadd.f32 0.0, %v1712
      %v1714 = vpop.f32.mrb[0].mxu0
      %v1715 = vpop.f32.mrb[0].mxu0
      %1716 = vdwg.mxu0
      %1719 = vrot.lane.b32.xlu0 %v1711, 111
      %v1720 = vpop.permute.xlu0 %1719
      %1721 = vrot.lane.b32.xlu0 %v1713, 111
      %v1722 = vpop.permute.xlu0 %1721
      %v1723 = vsel %vm1056, %v1720, %v1722
      %v1727 = vsel %vm1056, %v1722, %v1720
      %v1728 = vld [vmem:[%s1062] sm:$0x3]
      %v1730 = vlaneseq
      %v1731 = vshrl.u32 %v1730, 7
      %v1732 = vsub.s32 0, %v1731
      %v1733 = vrot.slane %v1728, %v1732
      %v1734 = vlaneseq
      %v1735 = vshrl.u32 %v1734, 7
      %v1736 = vsub.s32 1, %v1735
      %v1737 = vrot.slane %v1728, %v1736
      %v1740 = vmul.f32 %v1723, %v1733
      %v1741 = vmul.f32 %v1727, %v1737
      %v1742 = vadd.f32 %v1669, %v1740
      %v1743 = vadd.f32 %v1670, %v1741
      %v1744 = vld [vmem:[%s8] sm:$0xf]
      %1746 = vset.pattern.permute.xlu0 0
      %1747 = vperm.xlu0 %1746, %v1744
      %v1748 = vpop.permute.xlu0 %1747
      %v1750 = vadd.f32 %v1742, %v1748
      %v1751 = vadd.f32 %v1743, %v1748
      %vm1752 = vcmp.ge.f32.partialorder %v1750, 0.0
      %vm1753 = vcmp.ge.f32.partialorder %v1751, 0.0
      %v1754 = vmul.f32 %v1750, 0.2
      %v1755 = vmul.f32 %v1751, 0.2
      %v1756 = vsel %vm1752, %v1750, %v1754
      %v1757 = vsel %vm1753, %v1751, %v1755
      %1758 = vst [vmem:[#allocation2 + $0x10] sm:$0xf] %v1756
      %1759 = vst [vmem:[#allocation2 + $0x18] sm:$0xf] %v1757
      %v1760 = vld [vmem:[#allocation2] sm:$0xff]
      %v1761 = vld [vmem:[#allocation2 + $0x8] sm:$0xff]
      %v1762 = vld [vmem:[#allocation2 + $0x10] sm:$0xf]
      %v1763 = vld [vmem:[#allocation2 + $0x18] sm:$0xf]
      %v1764 = vpack.c.bf16 %v1762, %v1760
      %v1765 = vpack.c.bf16 %v1763, %v1761
      %v1766 = vld [vmem:[%s4] sm:$0x3]
      %vm1767 = vcmask 97280
      %v1769 = vsel %vm1767, %v1766, 0
      %vm1771 = vcmask 1045504
      %v1773 = vsel %vm1771, %v1764, 0
      %v1776 = vsel %vm1771, %v1765, 0
      %1778 = vmatprep.subr.bf16.mxu0 %v1776
      %1779 = vmatpush1.bf16.msra.mxu0 %v1773
      %1780 = vmatprep.subr.bf16.mxu0 0
      %1781 = vmatpush1.bf16.msra.mxu0 0
      %1782 = vmatprep.subr.bf16.mxu0 0
      %1783 = vmatpush1.bf16.msra.mxu0 0
      %1784 = vmatprep.subr.bf16.mxu0 0
      %1785 = vmatpush1.bf16.msra.mxu0 0
      %1786 = vmatprep.subr.bf16.mxu0 0
      %1787 = vmatpush1.bf16.msra.mxu0 0
      %1788 = vmatprep.subr.bf16.mxu0 0
      %1789 = vmatpush1.bf16.msra.mxu0 0
      %1790 = vmatprep.subr.bf16.mxu0 0
      %1791 = vmatpush1.bf16.msra.mxu0 0
      %1792 = vmatprep.subr.bf16.mxu0 0
      %1793 = vmatpush1.bf16.msra.mxu0 0
      %1794 = vmatprep.subr.bf16.mxu0 0
      %1795 = vmatpush1.bf16.msra.mxu0 0
      %1796 = vmatprep.subr.bf16.mxu0 0
      %1797 = vmatpush1.bf16.msra.mxu0 0
      %1798 = vmatprep.subr.bf16.mxu0 0
      %1799 = vmatpush1.bf16.msra.mxu0 0
      %1800 = vmatprep.subr.bf16.mxu0 0
      %1801 = vmatpush1.bf16.msra.mxu0 0
      %1802 = vmatprep.subr.bf16.mxu0 0
      %1803 = vmatpush1.bf16.msra.mxu0 0
      %1804 = vmatprep.subr.bf16.mxu0 0
      %1805 = vmatpush1.bf16.msra.mxu0 0
      %1806 = vmatprep.subr.bf16.mxu0 0
      %1807 = vmatpush1.bf16.msra.mxu0 0
      %1808 = vmatprep.subr.bf16.mxu0 0
      %1809 = vmatpush1.bf16.msra.mxu0 0
      %1810 = vmatprep.mubr.bf16.mxu0 0
      %1811 = vmatmul.mubr.bf16.gmra.mrb[0].mxu0 %v1769
      %v1812 = vpop.f32.mrb[0].mxu0
      %v1813 = vadd.f32 0.0, %v1812
      %v1814 = vpop.f32.mrb[0].mxu0
      %v1815 = vadd.f32 0.0, %v1814
      %v1816 = vpop.f32.mrb[0].mxu0
      %v1817 = vpop.f32.mrb[0].mxu0
      %1818 = vdwg.mxu0
      %1820 = vrot.lane.b32.xlu0 %v1815, 17
      %v1821 = vpop.permute.xlu0 %1820
      %1824 = vrot.lane.b32.xlu0 %v1813, 17
      %v1825 = vpop.permute.xlu0 %1824
      %v1826 = vsel %vm485, %v1825, %v1821
      %v1829 = vsel %vm485, %v1821, %v1825
      %v1830 = vld [vmem:[%s1] sm:$0x3]
      %v1832 = vlaneseq
      %v1833 = vshrl.u32 %v1832, 7
      %v1834 = vsub.s32 0, %v1833
      %v1835 = vrot.slane %v1830, %v1834
      %v1836 = vlaneseq
      %v1837 = vshrl.u32 %v1836, 7
      %v1838 = vsub.s32 1, %v1837
      %v1839 = vrot.slane %v1830, %v1838
      %v1842 = vmul.f32 %v1829, %v1835
      %v1843 = vmul.f32 %v1826, %v1839
      %v1844 = vadd.f32 %v1842, 0.0
      %v1845 = vadd.f32 %v1843, 0.0
      %s1846 = scalar_lea.vmem %s4, 2
      %v1847 = vld [vmem:[%s1846] sm:$0x3]
      %v1849 = vsel %vm1767, %v1847, 0
      %1851 = vmatprep.subr.bf16.mxu0 %v1776
      %1852 = vmatpush1.bf16.msra.mxu0 %v1773
      %1853 = vmatprep.subr.bf16.mxu0 0
      %1854 = vmatpush1.bf16.msra.mxu0 0
      %1855 = vmatprep.subr.bf16.mxu0 0
      %1856 = vmatpush1.bf16.msra.mxu0 0
      %1857 = vmatprep.subr.bf16.mxu0 0
      %1858 = vmatpush1.bf16.msra.mxu0 0
      %1859 = vmatprep.subr.bf16.mxu0 0
      %1860 = vmatpush1.bf16.msra.mxu0 0
      %1861 = vmatprep.subr.bf16.mxu0 0
      %1862 = vmatpush1.bf16.msra.mxu0 0
      %1863 = vmatprep.subr.bf16.mxu0 0
      %1864 = vmatpush1.bf16.msra.mxu0 0
      %1865 = vmatprep.subr.bf16.mxu0 0
      %1866 = vmatpush1.bf16.msra.mxu0 0
      %1867 = vmatprep.subr.bf16.mxu0 0
      %1868 = vmatpush1.bf16.msra.mxu0 0
      %1869 = vmatprep.subr.bf16.mxu0 0
      %1870 = vmatpush1.bf16.msra.mxu0 0
      %1871 = vmatprep.subr.bf16.mxu0 0
      %1872 = vmatpush1.bf16.msra.mxu0 0
      %1873 = vmatprep.subr.bf16.mxu0 0
      %1874 = vmatpush1.bf16.msra.mxu0 0
      %1875 = vmatprep.subr.bf16.mxu0 0
      %1876 = vmatpush1.bf16.msra.mxu0 0
      %1877 = vmatprep.subr.bf16.mxu0 0
      %1878 = vmatpush1.bf16.msra.mxu0 0
      %1879 = vmatprep.subr.bf16.mxu0 0
      %1880 = vmatpush1.bf16.msra.mxu0 0
      %1881 = vmatprep.subr.bf16.mxu0 0
      %1882 = vmatpush1.bf16.msra.mxu0 0
      %1883 = vmatprep.mubr.bf16.mxu0 0
      %1884 = vmatmul.mubr.bf16.gmra.mrb[0].mxu0 %v1849
      %v1885 = vpop.f32.mrb[0].mxu0
      %v1886 = vadd.f32 0.0, %v1885
      %v1887 = vpop.f32.mrb[0].mxu0
      %v1888 = vadd.f32 0.0, %v1887
      %v1889 = vpop.f32.mrb[0].mxu0
      %v1890 = vpop.f32.mrb[0].mxu0
      %1891 = vdwg.mxu0
      %1893 = vrot.lane.b32.xlu0 %v1888, 16
      %v1894 = vpop.permute.xlu0 %1893
      %1897 = vrot.lane.b32.xlu0 %v1886, 16
      %v1898 = vpop.permute.xlu0 %1897
      %v1899 = vsel %vm559, %v1898, %v1894
      %v1902 = vsel %vm559, %v1894, %v1898
      %v1903 = vld [vmem:[%s564] sm:$0x3]
      %v1905 = vlaneseq
      %v1906 = vshrl.u32 %v1905, 7
      %v1907 = vsub.s32 0, %v1906
      %v1908 = vrot.slane %v1903, %v1907
      %v1909 = vlaneseq
      %v1910 = vshrl.u32 %v1909, 7
      %v1911 = vsub.s32 1, %v1910
      %v1912 = vrot.slane %v1903, %v1911
      %v1915 = vmul.f32 %v1902, %v1908
      %v1916 = vmul.f32 %v1899, %v1912
      %v1917 = vadd.f32 %v1844, %v1915
      %v1918 = vadd.f32 %v1845, %v1916
      %s1919 = scalar_lea.vmem %s4, 4
      %v1920 = vld [vmem:[%s1919] sm:$0x3]
      %v1922 = vsel %vm1767, %v1920, 0
      %1924 = vmatprep.subr.bf16.mxu0 %v1776
      %1925 = vmatpush1.bf16.msra.mxu0 %v1773
      %1926 = vmatprep.subr.bf16.mxu0 0
      %1927 = vmatpush1.bf16.msra.mxu0 0
      %1928 = vmatprep.subr.bf16.mxu0 0
      %1929 = vmatpush1.bf16.msra.mxu0 0
      %1930 = vmatprep.subr.bf16.mxu0 0
      %1931 = vmatpush1.bf16.msra.mxu0 0
      %1932 = vmatprep.subr.bf16.mxu0 0
      %1933 = vmatpush1.bf16.msra.mxu0 0
      %1934 = vmatprep.subr.bf16.mxu0 0
      %1935 = vmatpush1.bf16.msra.mxu0 0
      %1936 = vmatprep.subr.bf16.mxu0 0
      %1937 = vmatpush1.bf16.msra.mxu0 0
      %1938 = vmatprep.subr.bf16.mxu0 0
      %1939 = vmatpush1.bf16.msra.mxu0 0
      %1940 = vmatprep.subr.bf16.mxu0 0
      %1941 = vmatpush1.bf16.msra.mxu0 0
      %1942 = vmatprep.subr.bf16.mxu0 0
      %1943 = vmatpush1.bf16.msra.mxu0 0
      %1944 = vmatprep.subr.bf16.mxu0 0
      %1945 = vmatpush1.bf16.msra.mxu0 0
      %1946 = vmatprep.subr.bf16.mxu0 0
      %1947 = vmatpush1.bf16.msra.mxu0 0
      %1948 = vmatprep.subr.bf16.mxu0 0
      %1949 = vmatpush1.bf16.msra.mxu0 0
      %1950 = vmatprep.subr.bf16.mxu0 0
      %1951 = vmatpush1.bf16.msra.mxu0 0
      %1952 = vmatprep.subr.bf16.mxu0 0
      %1953 = vmatpush1.bf16.msra.mxu0 0
      %1954 = vmatprep.subr.bf16.mxu0 0
      %1955 = vmatpush1.bf16.msra.mxu0 0
      %1956 = vmatprep.mubr.bf16.mxu0 0
      %1957 = vmatmul.mubr.bf16.gmra.mrb[0].mxu0 %v1922
      %v1958 = vpop.f32.mrb[0].mxu0
      %v1959 = vadd.f32 0.0, %v1958
      %v1960 = vpop.f32.mrb[0].mxu0
      %v1961 = vadd.f32 0.0, %v1960
      %v1962 = vpop.f32.mrb[0].mxu0
      %v1963 = vpop.f32.mrb[0].mxu0
      %1964 = vdwg.mxu0
      %1966 = vrot.lane.b32.xlu0 %v1961, 15
      %v1967 = vpop.permute.xlu0 %1966
      %1970 = vrot.lane.b32.xlu0 %v1959, 15
      %v1971 = vpop.permute.xlu0 %1970
      %v1972 = vsel %vm634, %v1971, %v1967
      %v1975 = vsel %vm634, %v1967, %v1971
      %v1976 = vld [vmem:[%s639] sm:$0x3]
      %v1978 = vlaneseq
      %v1979 = vshrl.u32 %v1978, 7
      %v1980 = vsub.s32 0, %v1979
      %v1981 = vrot.slane %v1976, %v1980
      %v1982 = vlaneseq
      %v1983 = vshrl.u32 %v1982, 7
      %v1984 = vsub.s32 1, %v1983
      %v1985 = vrot.slane %v1976, %v1984
      %v1988 = vmul.f32 %v1975, %v1981
      %v1989 = vmul.f32 %v1972, %v1985
      %v1990 = vadd.f32 %v1917, %v1988
      %v1991 = vadd.f32 %v1918, %v1989
      %s1992 = scalar_lea.vmem %s4, 6
      %v1993 = vld [vmem:[%s1992] sm:$0x3]
      %v1995 = vsel %vm1767, %v1993, 0
      %1997 = vmatprep.subr.bf16.mxu0 %v1776
      %1998 = vmatpush1.bf16.msra.mxu0 %v1773
      %1999 = vmatprep.subr.bf16.mxu0 0
      %2000 = vmatpush1.bf16.msra.mxu0 0
      %2001 = vmatprep.subr.bf16.mxu0 0
      %2002 = vmatpush1.bf16.msra.mxu0 0
      %2003 = vmatprep.subr.bf16.mxu0 0
      %2004 = vmatpush1.bf16.msra.mxu0 0
      %2005 = vmatprep.subr.bf16.mxu0 0
      %2006 = vmatpush1.bf16.msra.mxu0 0
      %2007 = vmatprep.subr.bf16.mxu0 0
      %2008 = vmatpush1.bf16.msra.mxu0 0
      %2009 = vmatprep.subr.bf16.mxu0 0
      %2010 = vmatpush1.bf16.msra.mxu0 0
      %2011 = vmatprep.subr.bf16.mxu0 0
      %2012 = vmatpush1.bf16.msra.mxu0 0
      %2013 = vmatprep.subr.bf16.mxu0 0
      %2014 = vmatpush1.bf16.msra.mxu0 0
      %2015 = vmatprep.subr.bf16.mxu0 0
      %2016 = vmatpush1.bf16.msra.mxu0 0
      %2017 = vmatprep.subr.bf16.mxu0 0
      %2018 = vmatpush1.bf16.msra.mxu0 0
      %2019 = vmatprep.subr.bf16.mxu0 0
      %2020 = vmatpush1.bf16.msra.mxu0 0
      %2021 = vmatprep.subr.bf16.mxu0 0
      %2022 = vmatpush1.bf16.msra.mxu0 0
      %2023 = vmatprep.subr.bf16.mxu0 0
      %2024 = vmatpush1.bf16.msra.mxu0 0
      %2025 = vmatprep.subr.bf16.mxu0 0
      %2026 = vmatpush1.bf16.msra.mxu0 0
      %2027 = vmatprep.subr.bf16.mxu0 0
      %2028 = vmatpush1.bf16.msra.mxu0 0
      %2029 = vmatprep.mubr.bf16.mxu0 0
      %2030 = vmatmul.mubr.bf16.gmra.mrb[0].mxu0 %v1995
      %v2031 = vpop.f32.mrb[0].mxu0
      %v2032 = vadd.f32 0.0, %v2031
      %v2033 = vpop.f32.mrb[0].mxu0
      %v2034 = vadd.f32 0.0, %v2033
      %v2035 = vpop.f32.mrb[0].mxu0
      %v2036 = vpop.f32.mrb[0].mxu0
      %2037 = vdwg.mxu0
      %2039 = vrot.lane.b32.xlu0 %v2034, 1
      %v2040 = vpop.permute.xlu0 %2039
      %2043 = vrot.lane.b32.xlu0 %v2032, 1
      %v2044 = vpop.permute.xlu0 %2043
      %v2045 = vsel %vm709, %v2044, %v2040
      %v2048 = vsel %vm709, %v2040, %v2044
      %v2049 = vld [vmem:[%s714] sm:$0x3]
      %v2051 = vlaneseq
      %v2052 = vshrl.u32 %v2051, 7
      %v2053 = vsub.s32 0, %v2052
      %v2054 = vrot.slane %v2049, %v2053
      %v2055 = vlaneseq
      %v2056 = vshrl.u32 %v2055, 7
      %v2057 = vsub.s32 1, %v2056
      %v2058 = vrot.slane %v2049, %v2057
      %v2061 = vmul.f32 %v2048, %v2054
      %v2062 = vmul.f32 %v2045, %v2058
      %v2063 = vadd.f32 %v1990, %v2061
      %v2064 = vadd.f32 %v1991, %v2062
      %s2065 = scalar_lea.vmem %s4, 8
      %v2066 = vld [vmem:[%s2065] sm:$0x3]
      %v2068 = vsel %vm1767, %v2066, 0
      %2070 = vmatprep.subr.bf16.mxu0 %v1776
      %2071 = vmatpush1.bf16.msra.mxu0 %v1773
      %2072 = vmatprep.subr.bf16.mxu0 0
      %2073 = vmatpush1.bf16.msra.mxu0 0
      %2074 = vmatprep.subr.bf16.mxu0 0
      %2075 = vmatpush1.bf16.msra.mxu0 0
      %2076 = vmatprep.subr.bf16.mxu0 0
      %2077 = vmatpush1.bf16.msra.mxu0 0
      %2078 = vmatprep.subr.bf16.mxu0 0
      %2079 = vmatpush1.bf16.msra.mxu0 0
      %2080 = vmatprep.subr.bf16.mxu0 0
      %2081 = vmatpush1.bf16.msra.mxu0 0
      %2082 = vmatprep.subr.bf16.mxu0 0
      %2083 = vmatpush1.bf16.msra.mxu0 0
      %2084 = vmatprep.subr.bf16.mxu0 0
      %2085 = vmatpush1.bf16.msra.mxu0 0
      %2086 = vmatprep.subr.bf16.mxu0 0
      %2087 = vmatpush1.bf16.msra.mxu0 0
      %2088 = vmatprep.subr.bf16.mxu0 0
      %2089 = vmatpush1.bf16.msra.mxu0 0
      %2090 = vmatprep.subr.bf16.mxu0 0
      %2091 = vmatpush1.bf16.msra.mxu0 0
      %2092 = vmatprep.subr.bf16.mxu0 0
      %2093 = vmatpush1.bf16.msra.mxu0 0
      %2094 = vmatprep.subr.bf16.mxu0 0
      %2095 = vmatpush1.bf16.msra.mxu0 0
      %2096 = vmatprep.subr.bf16.mxu0 0
      %2097 = vmatpush1.bf16.msra.mxu0 0
      %2098 = vmatprep.subr.bf16.mxu0 0
      %2099 = vmatpush1.bf16.msra.mxu0 0
      %2100 = vmatprep.subr.bf16.mxu0 0
      %2101 = vmatpush1.bf16.msra.mxu0 0
      %2102 = vmatprep.mubr.bf16.mxu0 0
      %2103 = vmatmul.mubr.bf16.gmra.mrb[0].mxu0 %v2068
      %v2104 = vpop.f32.mrb[0].mxu0
      %v2105 = vadd.f32 0.0, %v2104
      %v2106 = vpop.f32.mrb[0].mxu0
      %v2107 = vadd.f32 0.0, %v2106
      %v2108 = vpop.f32.mrb[0].mxu0
      %v2109 = vpop.f32.mrb[0].mxu0
      %2110 = vdwg.mxu0
      %v2111 = vadd.f32 %v2063, %v2105
      %v2112 = vadd.f32 %v2064, %v2107
      %s2113 = scalar_lea.vmem %s4, 10
      %v2114 = vld [vmem:[%s2113] sm:$0x3]
      %v2116 = vsel %vm1767, %v2114, 0
      %2118 = vmatprep.subr.bf16.mxu0 %v1776
      %2119 = vmatpush1.bf16.msra.mxu0 %v1773
      %2120 = vmatprep.subr.bf16.mxu0 0
      %2121 = vmatpush1.bf16.msra.mxu0 0
      %2122 = vmatprep.subr.bf16.mxu0 0
      %2123 = vmatpush1.bf16.msra.mxu0 0
      %2124 = vmatprep.subr.bf16.mxu0 0
      %2125 = vmatpush1.bf16.msra.mxu0 0
      %2126 = vmatprep.subr.bf16.mxu0 0
      %2127 = vmatpush1.bf16.msra.mxu0 0
      %2128 = vmatprep.subr.bf16.mxu0 0
      %2129 = vmatpush1.bf16.msra.mxu0 0
      %2130 = vmatprep.subr.bf16.mxu0 0
      %2131 = vmatpush1.bf16.msra.mxu0 0
      %2132 = vmatprep.subr.bf16.mxu0 0
      %2133 = vmatpush1.bf16.msra.mxu0 0
      %2134 = vmatprep.subr.bf16.mxu0 0
      %2135 = vmatpush1.bf16.msra.mxu0 0
      %2136 = vmatprep.subr.bf16.mxu0 0
      %2137 = vmatpush1.bf16.msra.mxu0 0
      %2138 = vmatprep.subr.bf16.mxu0 0
      %2139 = vmatpush1.bf16.msra.mxu0 0
      %2140 = vmatprep.subr.bf16.mxu0 0
      %2141 = vmatpush1.bf16.msra.mxu0 0
      %2142 = vmatprep.subr.bf16.mxu0 0
      %2143 = vmatpush1.bf16.msra.mxu0 0
      %2144 = vmatprep.subr.bf16.mxu0 0
      %2145 = vmatpush1.bf16.msra.mxu0 0
      %2146 = vmatprep.subr.bf16.mxu0 0
      %2147 = vmatpush1.bf16.msra.mxu0 0
      %2148 = vmatprep.subr.bf16.mxu0 0
      %2149 = vmatpush1.bf16.msra.mxu0 0
      %2150 = vmatprep.mubr.bf16.mxu0 0
      %2151 = vmatmul.mubr.bf16.gmra.mrb[0].mxu0 %v2116
      %v2152 = vpop.f32.mrb[0].mxu0
      %v2153 = vadd.f32 0.0, %v2152
      %v2154 = vpop.f32.mrb[0].mxu0
      %v2155 = vadd.f32 0.0, %v2154
      %v2156 = vpop.f32.mrb[0].mxu0
      %v2157 = vpop.f32.mrb[0].mxu0
      %2158 = vdwg.mxu0
      %2161 = vrot.lane.b32.xlu0 %v2153, 127
      %v2162 = vpop.permute.xlu0 %2161
      %2163 = vrot.lane.b32.xlu0 %v2155, 127
      %v2164 = vpop.permute.xlu0 %2163
      %v2165 = vsel %vm831, %v2162, %v2164
      %v2169 = vsel %vm831, %v2164, %v2162
      %v2170 = vld [vmem:[%s837] sm:$0x3]
      %v2172 = vlaneseq
      %v2173 = vshrl.u32 %v2172, 7
      %v2174 = vsub.s32 0, %v2173
      %v2175 = vrot.slane %v2170, %v2174
      %v2176 = vlaneseq
      %v2177 = vshrl.u32 %v2176, 7
      %v2178 = vsub.s32 1, %v2177
      %v2179 = vrot.slane %v2170, %v2178
      %v2182 = vmul.f32 %v2165, %v2175
      %v2183 = vmul.f32 %v2169, %v2179
      %v2184 = vadd.f32 %v2111, %v2182
      %v2185 = vadd.f32 %v2112, %v2183
      %s2186 = scalar_lea.vmem %s4, 12
      %v2187 = vld [vmem:[%s2186] sm:$0x3]
      %v2189 = vsel %vm1767, %v2187, 0
      %2191 = vmatprep.subr.bf16.mxu0 %v1776
      %2192 = vmatpush1.bf16.msra.mxu0 %v1773
      %2193 = vmatprep.subr.bf16.mxu0 0
      %2194 = vmatpush1.bf16.msra.mxu0 0
      %2195 = vmatprep.subr.bf16.mxu0 0
      %2196 = vmatpush1.bf16.msra.mxu0 0
      %2197 = vmatprep.subr.bf16.mxu0 0
      %2198 = vmatpush1.bf16.msra.mxu0 0
      %2199 = vmatprep.subr.bf16.mxu0 0
      %2200 = vmatpush1.bf16.msra.mxu0 0
      %2201 = vmatprep.subr.bf16.mxu0 0
      %2202 = vmatpush1.bf16.msra.mxu0 0
      %2203 = vmatprep.subr.bf16.mxu0 0
      %2204 = vmatpush1.bf16.msra.mxu0 0
      %2205 = vmatprep.subr.bf16.mxu0 0
      %2206 = vmatpush1.bf16.msra.mxu0 0
      %2207 = vmatprep.subr.bf16.mxu0 0
      %2208 = vmatpush1.bf16.msra.mxu0 0
      %2209 = vmatprep.subr.bf16.mxu0 0
      %2210 = vmatpush1.bf16.msra.mxu0 0
      %2211 = vmatprep.subr.bf16.mxu0 0
      %2212 = vmatpush1.bf16.msra.mxu0 0
      %2213 = vmatprep.subr.bf16.mxu0 0
      %2214 = vmatpush1.bf16.msra.mxu0 0
      %2215 = vmatprep.subr.bf16.mxu0 0
      %2216 = vmatpush1.bf16.msra.mxu0 0
      %2217 = vmatprep.subr.bf16.mxu0 0
      %2218 = vmatpush1.bf16.msra.mxu0 0
      %2219 = vmatprep.subr.bf16.mxu0 0
      %2220 = vmatpush1.bf16.msra.mxu0 0
      %2221 = vmatprep.subr.bf16.mxu0 0
      %2222 = vmatpush1.bf16.msra.mxu0 0
      %2223 = vmatprep.mubr.bf16.mxu0 0
      %2224 = vmatmul.mubr.bf16.gmra.mrb[0].mxu0 %v2189
      %v2225 = vpop.f32.mrb[0].mxu0
      %v2226 = vadd.f32 0.0, %v2225
      %v2227 = vpop.f32.mrb[0].mxu0
      %v2228 = vadd.f32 0.0, %v2227
      %v2229 = vpop.f32.mrb[0].mxu0
      %v2230 = vpop.f32.mrb[0].mxu0
      %2231 = vdwg.mxu0
      %2234 = vrot.lane.b32.xlu0 %v2226, 113
      %v2235 = vpop.permute.xlu0 %2234
      %2236 = vrot.lane.b32.xlu0 %v2228, 113
      %v2237 = vpop.permute.xlu0 %2236
      %v2238 = vsel %vm906, %v2235, %v2237
      %v2242 = vsel %vm906, %v2237, %v2235
      %v2243 = vld [vmem:[%s912] sm:$0x3]
      %v2245 = vlaneseq
      %v2246 = vshrl.u32 %v2245, 7
      %v2247 = vsub.s32 0, %v2246
      %v2248 = vrot.slane %v2243, %v2247
      %v2249 = vlaneseq
      %v2250 = vshrl.u32 %v2249, 7
      %v2251 = vsub.s32 1, %v2250
      %v2252 = vrot.slane %v2243, %v2251
      %v2255 = vmul.f32 %v2238, %v2248
      %v2256 = vmul.f32 %v2242, %v2252
      %v2257 = vadd.f32 %v2184, %v2255
      %v2258 = vadd.f32 %v2185, %v2256
      %s2259 = scalar_lea.vmem %s4, 14
      %v2260 = vld [vmem:[%s2259] sm:$0x3]
      %v2262 = vsel %vm1767, %v2260, 0
      %2264 = vmatprep.subr.bf16.mxu0 %v1776
      %2265 = vmatpush1.bf16.msra.mxu0 %v1773
      %2266 = vmatprep.subr.bf16.mxu0 0
      %2267 = vmatpush1.bf16.msra.mxu0 0
      %2268 = vmatprep.subr.bf16.mxu0 0
      %2269 = vmatpush1.bf16.msra.mxu0 0
      %2270 = vmatprep.subr.bf16.mxu0 0
      %2271 = vmatpush1.bf16.msra.mxu0 0
      %2272 = vmatprep.subr.bf16.mxu0 0
      %2273 = vmatpush1.bf16.msra.mxu0 0
      %2274 = vmatprep.subr.bf16.mxu0 0
      %2275 = vmatpush1.bf16.msra.mxu0 0
      %2276 = vmatprep.subr.bf16.mxu0 0
      %2277 = vmatpush1.bf16.msra.mxu0 0
      %2278 = vmatprep.subr.bf16.mxu0 0
      %2279 = vmatpush1.bf16.msra.mxu0 0
      %2280 = vmatprep.subr.bf16.mxu0 0
      %2281 = vmatpush1.bf16.msra.mxu0 0
      %2282 = vmatprep.subr.bf16.mxu0 0
      %2283 = vmatpush1.bf16.msra.mxu0 0
      %2284 = vmatprep.subr.bf16.mxu0 0
      %2285 = vmatpush1.bf16.msra.mxu0 0
      %2286 = vmatprep.subr.bf16.mxu0 0
      %2287 = vmatpush1.bf16.msra.mxu0 0
      %2288 = vmatprep.subr.bf16.mxu0 0
      %2289 = vmatpush1.bf16.msra.mxu0 0
      %2290 = vmatprep.subr.bf16.mxu0 0
      %2291 = vmatpush1.bf16.msra.mxu0 0
      %2292 = vmatprep.subr.bf16.mxu0 0
      %2293 = vmatpush1.bf16.msra.mxu0 0
      %2294 = vmatprep.subr.bf16.mxu0 0
      %2295 = vmatpush1.bf16.msra.mxu0 0
      %2296 = vmatprep.mubr.bf16.mxu0 0
      %2297 = vmatmul.mubr.bf16.gmra.mrb[0].mxu0 %v2262
      %v2298 = vpop.f32.mrb[0].mxu0
      %v2299 = vadd.f32 0.0, %v2298
      %v2300 = vpop.f32.mrb[0].mxu0
      %v2301 = vadd.f32 0.0, %v2300
      %v2302 = vpop.f32.mrb[0].mxu0
      %v2303 = vpop.f32.mrb[0].mxu0
      %2304 = vdwg.mxu0
      %2307 = vrot.lane.b32.xlu0 %v2299, 112
      %v2308 = vpop.permute.xlu0 %2307
      %2309 = vrot.lane.b32.xlu0 %v2301, 112
      %v2310 = vpop.permute.xlu0 %2309
      %v2311 = vsel %vm981, %v2308, %v2310
      %v2315 = vsel %vm981, %v2310, %v2308
      %v2316 = vld [vmem:[%s987] sm:$0x3]
      %v2318 = vlaneseq
      %v2319 = vshrl.u32 %v2318, 7
      %v2320 = vsub.s32 0, %v2319
      %v2321 = vrot.slane %v2316, %v2320
      %v2322 = vlaneseq
      %v2323 = vshrl.u32 %v2322, 7
      %v2324 = vsub.s32 1, %v2323
      %v2325 = vrot.slane %v2316, %v2324
      %v2328 = vmul.f32 %v2311, %v2321
      %v2329 = vmul.f32 %v2315, %v2325
      %v2330 = vadd.f32 %v2257, %v2328
      %v2331 = vadd.f32 %v2258, %v2329
      %s2332 = scalar_lea.vmem %s4, 16
      %v2333 = vld [vmem:[%s2332] sm:$0x3]
      %v2335 = vsel %vm1767, %v2333, 0
      %2337 = vmatprep.subr.bf16.mxu0 %v1776
      %2338 = vmatpush1.bf16.msra.mxu0 %v1773
      %2339 = vmatprep.subr.bf16.mxu0 0
      %2340 = vmatpush1.bf16.msra.mxu0 0
      %2341 = vmatprep.subr.bf16.mxu0 0
      %2342 = vmatpush1.bf16.msra.mxu0 0
      %2343 = vmatprep.subr.bf16.mxu0 0
      %2344 = vmatpush1.bf16.msra.mxu0 0
      %2345 = vmatprep.subr.bf16.mxu0 0
      %2346 = vmatpush1.bf16.msra.mxu0 0
      %2347 = vmatprep.subr.bf16.mxu0 0
      %2348 = vmatpush1.bf16.msra.mxu0 0
      %2349 = vmatprep.subr.bf16.mxu0 0
      %2350 = vmatpush1.bf16.msra.mxu0 0
      %2351 = vmatprep.subr.bf16.mxu0 0
      %2352 = vmatpush1.bf16.msra.mxu0 0
      %2353 = vmatprep.subr.bf16.mxu0 0
      %2354 = vmatpush1.bf16.msra.mxu0 0
      %2355 = vmatprep.subr.bf16.mxu0 0
      %2356 = vmatpush1.bf16.msra.mxu0 0
      %2357 = vmatprep.subr.bf16.mxu0 0
      %2358 = vmatpush1.bf16.msra.mxu0 0
      %2359 = vmatprep.subr.bf16.mxu0 0
      %2360 = vmatpush1.bf16.msra.mxu0 0
      %2361 = vmatprep.subr.bf16.mxu0 0
      %2362 = vmatpush1.bf16.msra.mxu0 0
      %2363 = vmatprep.subr.bf16.mxu0 0
      %2364 = vmatpush1.bf16.msra.mxu0 0
      %2365 = vmatprep.subr.bf16.mxu0 0
      %2366 = vmatpush1.bf16.msra.mxu0 0
      %2367 = vmatprep.subr.bf16.mxu0 0
      %2368 = vmatpush1.bf16.msra.mxu0 0
      %2369 = vmatprep.mubr.bf16.mxu0 0
      %2370 = vmatmul.mubr.bf16.gmra.mrb[0].mxu0 %v2335
      %v2371 = vpop.f32.mrb[0].mxu0
      %v2372 = vadd.f32 0.0, %v2371
      %v2373 = vpop.f32.mrb[0].mxu0
      %v2374 = vadd.f32 0.0, %v2373
      %v2375 = vpop.f32.mrb[0].mxu0
      %v2376 = vpop.f32.mrb[0].mxu0
      %2377 = vdwg.mxu0
      %2380 = vrot.lane.b32.xlu0 %v2372, 111
      %v2381 = vpop.permute.xlu0 %2380
      %2382 = vrot.lane.b32.xlu0 %v2374, 111
      %v2383 = vpop.permute.xlu0 %2382
      %v2384 = vsel %vm1056, %v2381, %v2383
      %v2388 = vsel %vm1056, %v2383, %v2381
      %v2389 = vld [vmem:[%s1062] sm:$0x3]
      %v2391 = vlaneseq
      %v2392 = vshrl.u32 %v2391, 7
      %v2393 = vsub.s32 0, %v2392
      %v2394 = vrot.slane %v2389, %v2393
      %v2395 = vlaneseq
      %v2396 = vshrl.u32 %v2395, 7
      %v2397 = vsub.s32 1, %v2396
      %v2398 = vrot.slane %v2389, %v2397
      %v2401 = vmul.f32 %v2384, %v2394
      %v2402 = vmul.f32 %v2388, %v2398
      %v2403 = vadd.f32 %v2330, %v2401
      %v2404 = vadd.f32 %v2331, %v2402
      %v2405 = vld [vmem:[%s9] sm:$0xf]
      %2407 = vset.pattern.permute.xlu0 0
      %2408 = vperm.xlu0 %2407, %v2405
      %v2409 = vpop.permute.xlu0 %2408
      %v2411 = vadd.f32 %v2403, %v2409
      %v2412 = vadd.f32 %v2404, %v2409
      %vm2413 = vcmp.ge.f32.partialorder %v2411, 0.0
      %vm2414 = vcmp.ge.f32.partialorder %v2412, 0.0
      %v2415 = vmul.f32 %v2411, 0.2
      %v2416 = vmul.f32 %v2412, 0.2
      %v2417 = vsel %vm2413, %v2411, %v2415
      %v2418 = vsel %vm2414, %v2412, %v2416
      %v2421 = vrot.slane %v2417, 4
      %v2422 = vrot.slane %v2418, 4
      %2425 = vst [vmem:[#allocation2 + $0x10] sm:$0xf0] %v2421
      %2426 = vst [vmem:[#allocation2 + $0x18] sm:$0xf0] %v2422
      %v2427 = vld [vmem:[#allocation2] sm:$0xff]
      %v2428 = vld [vmem:[#allocation2 + $0x8] sm:$0xff]
      %v2429 = vld [vmem:[#allocation2 + $0x10] sm:$0xff]
      %v2430 = vld [vmem:[#allocation2 + $0x18] sm:$0xff]
      %v2431 = vpack.c.bf16 %v2429, %v2427
      %v2432 = vpack.c.bf16 %v2430, %v2428
      %v2433 = vld [vmem:[%s5] sm:$0x3]
      %v2435 = vsel %vm559, %v2433, 0
      %2437 = vmatprep.subr.bf16.mxu0 %v2432
      %2438 = vmatpush1.bf16.msra.mxu0 %v2431
      %2439 = vmatprep.subr.bf16.mxu0 0
      %2440 = vmatpush1.bf16.msra.mxu0 0
      %2441 = vmatprep.subr.bf16.mxu0 0
      %2442 = vmatpush1.bf16.msra.mxu0 0
      %2443 = vmatprep.subr.bf16.mxu0 0
      %2444 = vmatpush1.bf16.msra.mxu0 0
      %2445 = vmatprep.subr.bf16.mxu0 0
      %2446 = vmatpush1.bf16.msra.mxu0 0
      %2447 = vmatprep.subr.bf16.mxu0 0
      %2448 = vmatpush1.bf16.msra.mxu0 0
      %2449 = vmatprep.subr.bf16.mxu0 0
      %2450 = vmatpush1.bf16.msra.mxu0 0
      %2451 = vmatprep.subr.bf16.mxu0 0
      %2452 = vmatpush1.bf16.msra.mxu0 0
      %2453 = vmatprep.subr.bf16.mxu0 0
      %2454 = vmatpush1.bf16.msra.mxu0 0
      %2455 = vmatprep.subr.bf16.mxu0 0
      %2456 = vmatpush1.bf16.msra.mxu0 0
      %2457 = vmatprep.subr.bf16.mxu0 0
      %2458 = vmatpush1.bf16.msra.mxu0 0
      %2459 = vmatprep.subr.bf16.mxu0 0
      %2460 = vmatpush1.bf16.msra.mxu0 0
      %2461 = vmatprep.subr.bf16.mxu0 0
      %2462 = vmatpush1.bf16.msra.mxu0 0
      %2463 = vmatprep.subr.bf16.mxu0 0
      %2464 = vmatpush1.bf16.msra.mxu0 0
      %2465 = vmatprep.subr.bf16.mxu0 0
      %2466 = vmatpush1.bf16.msra.mxu0 0
      %2467 = vmatprep.subr.bf16.mxu0 0
      %2468 = vmatpush1.bf16.msra.mxu0 0
      %2469 = vmatprep.mubr.bf16.mxu0 0
      %2470 = vmatmul.mubr.bf16.gmra.mrb[0].mxu0 %v2435
      %v2471 = vpop.f32.mrb[0].mxu0
      %v2472 = vadd.f32 0.0, %v2471
      %v2473 = vpop.f32.mrb[0].mxu0
      %v2474 = vadd.f32 0.0, %v2473
      %v2475 = vpop.f32.mrb[0].mxu0
      %v2476 = vpop.f32.mrb[0].mxu0
      %2477 = vdwg.mxu0
      %2479 = vrot.lane.b32.xlu0 %v2474, 17
      %v2480 = vpop.permute.xlu0 %2479
      %2483 = vrot.lane.b32.xlu0 %v2472, 17
      %v2484 = vpop.permute.xlu0 %2483
      %v2485 = vsel %vm485, %v2484, %v2480
      %v2488 = vsel %vm485, %v2480, %v2484
      %v2489 = vld [vmem:[%s1] sm:$0x3]
      %v2491 = vlaneseq
      %v2492 = vshrl.u32 %v2491, 7
      %v2493 = vsub.s32 0, %v2492
      %v2494 = vrot.slane %v2489, %v2493
      %v2495 = vlaneseq
      %v2496 = vshrl.u32 %v2495, 7
      %v2497 = vsub.s32 1, %v2496
      %v2498 = vrot.slane %v2489, %v2497
      %v2501 = vmul.f32 %v2488, %v2494
      %v2502 = vmul.f32 %v2485, %v2498
      %v2503 = vadd.f32 %v2501, 0.0
      %v2504 = vadd.f32 %v2502, 0.0
      %s2505 = scalar_lea.vmem %s5, 2
      %v2506 = vld [vmem:[%s2505] sm:$0x3]
      %v2508 = vsel %vm559, %v2506, 0
      %2510 = vmatprep.subr.bf16.mxu0 %v2432
      %2511 = vmatpush1.bf16.msra.mxu0 %v2431
      %2512 = vmatprep.subr.bf16.mxu0 0
      %2513 = vmatpush1.bf16.msra.mxu0 0
      %2514 = vmatprep.subr.bf16.mxu0 0
      %2515 = vmatpush1.bf16.msra.mxu0 0
      %2516 = vmatprep.subr.bf16.mxu0 0
      %2517 = vmatpush1.bf16.msra.mxu0 0
      %2518 = vmatprep.subr.bf16.mxu0 0
      %2519 = vmatpush1.bf16.msra.mxu0 0
      %2520 = vmatprep.subr.bf16.mxu0 0
      %2521 = vmatpush1.bf16.msra.mxu0 0
      %2522 = vmatprep.subr.bf16.mxu0 0
      %2523 = vmatpush1.bf16.msra.mxu0 0
      %2524 = vmatprep.subr.bf16.mxu0 0
      %2525 = vmatpush1.bf16.msra.mxu0 0
      %2526 = vmatprep.subr.bf16.mxu0 0
      %2527 = vmatpush1.bf16.msra.mxu0 0
      %2528 = vmatprep.subr.bf16.mxu0 0
      %2529 = vmatpush1.bf16.msra.mxu0 0
      %2530 = vmatprep.subr.bf16.mxu0 0
      %2531 = vmatpush1.bf16.msra.mxu0 0
      %2532 = vmatprep.subr.bf16.mxu0 0
      %2533 = vmatpush1.bf16.msra.mxu0 0
      %2534 = vmatprep.subr.bf16.mxu0 0
      %2535 = vmatpush1.bf16.msra.mxu0 0
      %2536 = vmatprep.subr.bf16.mxu0 0
      %2537 = vmatpush1.bf16.msra.mxu0 0
      %2538 = vmatprep.subr.bf16.mxu0 0
      %2539 = vmatpush1.bf16.msra.mxu0 0
      %2540 = vmatprep.subr.bf16.mxu0 0
      %2541 = vmatpush1.bf16.msra.mxu0 0
      %2542 = vmatprep.mubr.bf16.mxu0 0
      %2543 = vmatmul.mubr.bf16.gmra.mrb[0].mxu0 %v2508
      %v2544 = vpop.f32.mrb[0].mxu0
      %v2545 = vadd.f32 0.0, %v2544
      %v2546 = vpop.f32.mrb[0].mxu0
      %v2547 = vadd.f32 0.0, %v2546
      %v2548 = vpop.f32.mrb[0].mxu0
      %v2549 = vpop.f32.mrb[0].mxu0
      %2550 = vdwg.mxu0
      %2552 = vrot.lane.b32.xlu0 %v2547, 16
      %v2553 = vpop.permute.xlu0 %2552
      %2556 = vrot.lane.b32.xlu0 %v2545, 16
      %v2557 = vpop.permute.xlu0 %2556
      %v2558 = vsel %vm559, %v2557, %v2553
      %v2561 = vsel %vm559, %v2553, %v2557
      %v2562 = vld [vmem:[%s564] sm:$0x3]
      %v2564 = vlaneseq
      %v2565 = vshrl.u32 %v2564, 7
      %v2566 = vsub.s32 0, %v2565
      %v2567 = vrot.slane %v2562, %v2566
      %v2568 = vlaneseq
      %v2569 = vshrl.u32 %v2568, 7
      %v2570 = vsub.s32 1, %v2569
      %v2571 = vrot.slane %v2562, %v2570
      %v2574 = vmul.f32 %v2561, %v2567
      %v2575 = vmul.f32 %v2558, %v2571
      %v2576 = vadd.f32 %v2503, %v2574
      %v2577 = vadd.f32 %v2504, %v2575
      %s2578 = scalar_lea.vmem %s5, 4
      %v2579 = vld [vmem:[%s2578] sm:$0x3]
      %v2581 = vsel %vm559, %v2579, 0
      %2583 = vmatprep.subr.bf16.mxu0 %v2432
      %2584 = vmatpush1.bf16.msra.mxu0 %v2431
      %2585 = vmatprep.subr.bf16.mxu0 0
      %2586 = vmatpush1.bf16.msra.mxu0 0
      %2587 = vmatprep.subr.bf16.mxu0 0
      %2588 = vmatpush1.bf16.msra.mxu0 0
      %2589 = vmatprep.subr.bf16.mxu0 0
      %2590 = vmatpush1.bf16.msra.mxu0 0
      %2591 = vmatprep.subr.bf16.mxu0 0
      %2592 = vmatpush1.bf16.msra.mxu0 0
      %2593 = vmatprep.subr.bf16.mxu0 0
      %2594 = vmatpush1.bf16.msra.mxu0 0
      %2595 = vmatprep.subr.bf16.mxu0 0
      %2596 = vmatpush1.bf16.msra.mxu0 0
      %2597 = vmatprep.subr.bf16.mxu0 0
      %2598 = vmatpush1.bf16.msra.mxu0 0
      %2599 = vmatprep.subr.bf16.mxu0 0
      %2600 = vmatpush1.bf16.msra.mxu0 0
      %2601 = vmatprep.subr.bf16.mxu0 0
      %2602 = vmatpush1.bf16.msra.mxu0 0
      %2603 = vmatprep.subr.bf16.mxu0 0
      %2604 = vmatpush1.bf16.msra.mxu0 0
      %2605 = vmatprep.subr.bf16.mxu0 0
      %2606 = vmatpush1.bf16.msra.mxu0 0
      %2607 = vmatprep.subr.bf16.mxu0 0
      %2608 = vmatpush1.bf16.msra.mxu0 0
      %2609 = vmatprep.subr.bf16.mxu0 0
      %2610 = vmatpush1.bf16.msra.mxu0 0
      %2611 = vmatprep.subr.bf16.mxu0 0
      %2612 = vmatpush1.bf16.msra.mxu0 0
      %2613 = vmatprep.subr.bf16.mxu0 0
      %2614 = vmatpush1.bf16.msra.mxu0 0
      %2615 = vmatprep.mubr.bf16.mxu0 0
      %2616 = vmatmul.mubr.bf16.gmra.mrb[0].mxu0 %v2581
      %v2617 = vpop.f32.mrb[0].mxu0
      %v2618 = vadd.f32 0.0, %v2617
      %v2619 = vpop.f32.mrb[0].mxu0
      %v2620 = vadd.f32 0.0, %v2619
      %v2621 = vpop.f32.mrb[0].mxu0
      %v2622 = vpop.f32.mrb[0].mxu0
      %2623 = vdwg.mxu0
      %2625 = vrot.lane.b32.xlu0 %v2620, 15
      %v2626 = vpop.permute.xlu0 %2625
      %2629 = vrot.lane.b32.xlu0 %v2618, 15
      %v2630 = vpop.permute.xlu0 %2629
      %v2631 = vsel %vm634, %v2630, %v2626
      %v2634 = vsel %vm634, %v2626, %v2630
      %v2635 = vld [vmem:[%s639] sm:$0x3]
      %v2637 = vlaneseq
      %v2638 = vshrl.u32 %v2637, 7
      %v2639 = vsub.s32 0, %v2638
      %v2640 = vrot.slane %v2635, %v2639
      %v2641 = vlaneseq
      %v2642 = vshrl.u32 %v2641, 7
      %v2643 = vsub.s32 1, %v2642
      %v2644 = vrot.slane %v2635, %v2643
      %v2647 = vmul.f32 %v2634, %v2640
      %v2648 = vmul.f32 %v2631, %v2644
      %v2649 = vadd.f32 %v2576, %v2647
      %v2650 = vadd.f32 %v2577, %v2648
      %s2651 = scalar_lea.vmem %s5, 6
      %v2652 = vld [vmem:[%s2651] sm:$0x3]
      %v2654 = vsel %vm559, %v2652, 0
      %2656 = vmatprep.subr.bf16.mxu0 %v2432
      %2657 = vmatpush1.bf16.msra.mxu0 %v2431
      %2658 = vmatprep.subr.bf16.mxu0 0
      %2659 = vmatpush1.bf16.msra.mxu0 0
      %2660 = vmatprep.subr.bf16.mxu0 0
      %2661 = vmatpush1.bf16.msra.mxu0 0
      %2662 = vmatprep.subr.bf16.mxu0 0
      %2663 = vmatpush1.bf16.msra.mxu0 0
      %2664 = vmatprep.subr.bf16.mxu0 0
      %2665 = vmatpush1.bf16.msra.mxu0 0
      %2666 = vmatprep.subr.bf16.mxu0 0
      %2667 = vmatpush1.bf16.msra.mxu0 0
      %2668 = vmatprep.subr.bf16.mxu0 0
      %2669 = vmatpush1.bf16.msra.mxu0 0
      %2670 = vmatprep.subr.bf16.mxu0 0
      %2671 = vmatpush1.bf16.msra.mxu0 0
      %2672 = vmatprep.subr.bf16.mxu0 0
      %2673 = vmatpush1.bf16.msra.mxu0 0
      %2674 = vmatprep.subr.bf16.mxu0 0
      %2675 = vmatpush1.bf16.msra.mxu0 0
      %2676 = vmatprep.subr.bf16.mxu0 0
      %2677 = vmatpush1.bf16.msra.mxu0 0
      %2678 = vmatprep.subr.bf16.mxu0 0
      %2679 = vmatpush1.bf16.msra.mxu0 0
      %2680 = vmatprep.subr.bf16.mxu0 0
      %2681 = vmatpush1.bf16.msra.mxu0 0
      %2682 = vmatprep.subr.bf16.mxu0 0
      %2683 = vmatpush1.bf16.msra.mxu0 0
      %2684 = vmatprep.subr.bf16.mxu0 0
      %2685 = vmatpush1.bf16.msra.mxu0 0
      %2686 = vmatprep.subr.bf16.mxu0 0
      %2687 = vmatpush1.bf16.msra.mxu0 0
      %2688 = vmatprep.mubr.bf16.mxu0 0
      %2689 = vmatmul.mubr.bf16.gmra.mrb[0].mxu0 %v2654
      %v2690 = vpop.f32.mrb[0].mxu0
      %v2691 = vadd.f32 0.0, %v2690
      %v2692 = vpop.f32.mrb[0].mxu0
      %v2693 = vadd.f32 0.0, %v2692
      %v2694 = vpop.f32.mrb[0].mxu0
      %v2695 = vpop.f32.mrb[0].mxu0
      %2696 = vdwg.mxu0
      %2698 = vrot.lane.b32.xlu0 %v2693, 1
      %v2699 = vpop.permute.xlu0 %2698
      %2702 = vrot.lane.b32.xlu0 %v2691, 1
      %v2703 = vpop.permute.xlu0 %2702
      %v2704 = vsel %vm709, %v2703, %v2699
      %v2707 = vsel %vm709, %v2699, %v2703
      %v2708 = vld [vmem:[%s714] sm:$0x3]
      %v2710 = vlaneseq
      %v2711 = vshrl.u32 %v2710, 7
      %v2712 = vsub.s32 0, %v2711
      %v2713 = vrot.slane %v2708, %v2712
      %v2714 = vlaneseq
      %v2715 = vshrl.u32 %v2714, 7
      %v2716 = vsub.s32 1, %v2715
      %v2717 = vrot.slane %v2708, %v2716
      %v2720 = vmul.f32 %v2707, %v2713
      %v2721 = vmul.f32 %v2704, %v2717
      %v2722 = vadd.f32 %v2649, %v2720
      %v2723 = vadd.f32 %v2650, %v2721
      %s2724 = scalar_lea.vmem %s5, 8
      %v2725 = vld [vmem:[%s2724] sm:$0x3]
      %v2727 = vsel %vm559, %v2725, 0
      %2729 = vmatprep.subr.bf16.mxu0 %v2432
      %2730 = vmatpush1.bf16.msra.mxu0 %v2431
      %2731 = vmatprep.subr.bf16.mxu0 0
      %2732 = vmatpush1.bf16.msra.mxu0 0
      %2733 = vmatprep.subr.bf16.mxu0 0
      %2734 = vmatpush1.bf16.msra.mxu0 0
      %2735 = vmatprep.subr.bf16.mxu0 0
      %2736 = vmatpush1.bf16.msra.mxu0 0
      %2737 = vmatprep.subr.bf16.mxu0 0
      %2738 = vmatpush1.bf16.msra.mxu0 0
      %2739 = vmatprep.subr.bf16.mxu0 0
      %2740 = vmatpush1.bf16.msra.mxu0 0
      %2741 = vmatprep.subr.bf16.mxu0 0
      %2742 = vmatpush1.bf16.msra.mxu0 0
      %2743 = vmatprep.subr.bf16.mxu0 0
      %2744 = vmatpush1.bf16.msra.mxu0 0
      %2745 = vmatprep.subr.bf16.mxu0 0
      %2746 = vmatpush1.bf16.msra.mxu0 0
      %2747 = vmatprep.subr.bf16.mxu0 0
      %2748 = vmatpush1.bf16.msra.mxu0 0
      %2749 = vmatprep.subr.bf16.mxu0 0
      %2750 = vmatpush1.bf16.msra.mxu0 0
      %2751 = vmatprep.subr.bf16.mxu0 0
      %2752 = vmatpush1.bf16.msra.mxu0 0
      %2753 = vmatprep.subr.bf16.mxu0 0
      %2754 = vmatpush1.bf16.msra.mxu0 0
      %2755 = vmatprep.subr.bf16.mxu0 0
      %2756 = vmatpush1.bf16.msra.mxu0 0
      %2757 = vmatprep.subr.bf16.mxu0 0
      %2758 = vmatpush1.bf16.msra.mxu0 0
      %2759 = vmatprep.subr.bf16.mxu0 0
      %2760 = vmatpush1.bf16.msra.mxu0 0
      %2761 = vmatprep.mubr.bf16.mxu0 0
      %2762 = vmatmul.mubr.bf16.gmra.mrb[0].mxu0 %v2727
      %v2763 = vpop.f32.mrb[0].mxu0
      %v2764 = vadd.f32 0.0, %v2763
      %v2765 = vpop.f32.mrb[0].mxu0
      %v2766 = vadd.f32 0.0, %v2765
      %v2767 = vpop.f32.mrb[0].mxu0
      %v2768 = vpop.f32.mrb[0].mxu0
      %2769 = vdwg.mxu0
      %v2770 = vadd.f32 %v2722, %v2764
      %v2771 = vadd.f32 %v2723, %v2766
      %s2772 = scalar_lea.vmem %s5, 10
      %v2773 = vld [vmem:[%s2772] sm:$0x3]
      %v2775 = vsel %vm559, %v2773, 0
      %2777 = vmatprep.subr.bf16.mxu0 %v2432
      %2778 = vmatpush1.bf16.msra.mxu0 %v2431
      %2779 = vmatprep.subr.bf16.mxu0 0
      %2780 = vmatpush1.bf16.msra.mxu0 0
      %2781 = vmatprep.subr.bf16.mxu0 0
      %2782 = vmatpush1.bf16.msra.mxu0 0
      %2783 = vmatprep.subr.bf16.mxu0 0
      %2784 = vmatpush1.bf16.msra.mxu0 0
      %2785 = vmatprep.subr.bf16.mxu0 0
      %2786 = vmatpush1.bf16.msra.mxu0 0
      %2787 = vmatprep.subr.bf16.mxu0 0
      %2788 = vmatpush1.bf16.msra.mxu0 0
      %2789 = vmatprep.subr.bf16.mxu0 0
      %2790 = vmatpush1.bf16.msra.mxu0 0
      %2791 = vmatprep.subr.bf16.mxu0 0
      %2792 = vmatpush1.bf16.msra.mxu0 0
      %2793 = vmatprep.subr.bf16.mxu0 0
      %2794 = vmatpush1.bf16.msra.mxu0 0
      %2795 = vmatprep.subr.bf16.mxu0 0
      %2796 = vmatpush1.bf16.msra.mxu0 0
      %2797 = vmatprep.subr.bf16.mxu0 0
      %2798 = vmatpush1.bf16.msra.mxu0 0
      %2799 = vmatprep.subr.bf16.mxu0 0
      %2800 = vmatpush1.bf16.msra.mxu0 0
      %2801 = vmatprep.subr.bf16.mxu0 0
      %2802 = vmatpush1.bf16.msra.mxu0 0
      %2803 = vmatprep.subr.bf16.mxu0 0
      %2804 = vmatpush1.bf16.msra.mxu0 0
      %2805 = vmatprep.subr.bf16.mxu0 0
      %2806 = vmatpush1.bf16.msra.mxu0 0
      %2807 = vmatprep.subr.bf16.mxu0 0
      %2808 = vmatpush1.bf16.msra.mxu0 0
      %2809 = vmatprep.mubr.bf16.mxu0 0
      %2810 = vmatmul.mubr.bf16.gmra.mrb[0].mxu0 %v2775
      %v2811 = vpop.f32.mrb[0].mxu0
      %v2812 = vadd.f32 0.0, %v2811
      %v2813 = vpop.f32.mrb[0].mxu0
      %v2814 = vadd.f32 0.0, %v2813
      %v2815 = vpop.f32.mrb[0].mxu0
      %v2816 = vpop.f32.mrb[0].mxu0
      %2817 = vdwg.mxu0
      %2820 = vrot.lane.b32.xlu0 %v2812, 127
      %v2821 = vpop.permute.xlu0 %2820
      %2822 = vrot.lane.b32.xlu0 %v2814, 127
      %v2823 = vpop.permute.xlu0 %2822
      %v2824 = vsel %vm831, %v2821, %v2823
      %v2828 = vsel %vm831, %v2823, %v2821
      %v2829 = vld [vmem:[%s837] sm:$0x3]
      %v2831 = vlaneseq
      %v2832 = vshrl.u32 %v2831, 7
      %v2833 = vsub.s32 0, %v2832
      %v2834 = vrot.slane %v2829, %v2833
      %v2835 = vlaneseq
      %v2836 = vshrl.u32 %v2835, 7
      %v2837 = vsub.s32 1, %v2836
      %v2838 = vrot.slane %v2829, %v2837
      %v2841 = vmul.f32 %v2824, %v2834
      %v2842 = vmul.f32 %v2828, %v2838
      %v2843 = vadd.f32 %v2770, %v2841
      %v2844 = vadd.f32 %v2771, %v2842
      %s2845 = scalar_lea.vmem %s5, 12
      %v2846 = vld [vmem:[%s2845] sm:$0x3]
      %v2848 = vsel %vm559, %v2846, 0
      %2850 = vmatprep.subr.bf16.mxu0 %v2432
      %2851 = vmatpush1.bf16.msra.mxu0 %v2431
      %2852 = vmatprep.subr.bf16.mxu0 0
      %2853 = vmatpush1.bf16.msra.mxu0 0
      %2854 = vmatprep.subr.bf16.mxu0 0
      %2855 = vmatpush1.bf16.msra.mxu0 0
      %2856 = vmatprep.subr.bf16.mxu0 0
      %2857 = vmatpush1.bf16.msra.mxu0 0
      %2858 = vmatprep.subr.bf16.mxu0 0
      %2859 = vmatpush1.bf16.msra.mxu0 0
      %2860 = vmatprep.subr.bf16.mxu0 0
      %2861 = vmatpush1.bf16.msra.mxu0 0
      %2862 = vmatprep.subr.bf16.mxu0 0
      %2863 = vmatpush1.bf16.msra.mxu0 0
      %2864 = vmatprep.subr.bf16.mxu0 0
      %2865 = vmatpush1.bf16.msra.mxu0 0
      %2866 = vmatprep.subr.bf16.mxu0 0
      %2867 = vmatpush1.bf16.msra.mxu0 0
      %2868 = vmatprep.subr.bf16.mxu0 0
      %2869 = vmatpush1.bf16.msra.mxu0 0
      %2870 = vmatprep.subr.bf16.mxu0 0
      %2871 = vmatpush1.bf16.msra.mxu0 0
      %2872 = vmatprep.subr.bf16.mxu0 0
      %2873 = vmatpush1.bf16.msra.mxu0 0
      %2874 = vmatprep.subr.bf16.mxu0 0
      %2875 = vmatpush1.bf16.msra.mxu0 0
      %2876 = vmatprep.subr.bf16.mxu0 0
      %2877 = vmatpush1.bf16.msra.mxu0 0
      %2878 = vmatprep.subr.bf16.mxu0 0
      %2879 = vmatpush1.bf16.msra.mxu0 0
      %2880 = vmatprep.subr.bf16.mxu0 0
      %2881 = vmatpush1.bf16.msra.mxu0 0
      %2882 = vmatprep.mubr.bf16.mxu0 0
      %2883 = vmatmul.mubr.bf16.gmra.mrb[0].mxu0 %v2848
      %v2884 = vpop.f32.mrb[0].mxu0
      %v2885 = vadd.f32 0.0, %v2884
      %v2886 = vpop.f32.mrb[0].mxu0
      %v2887 = vadd.f32 0.0, %v2886
      %v2888 = vpop.f32.mrb[0].mxu0
      %v2889 = vpop.f32.mrb[0].mxu0
      %2890 = vdwg.mxu0
      %2893 = vrot.lane.b32.xlu0 %v2885, 113
      %v2894 = vpop.permute.xlu0 %2893
      %2895 = vrot.lane.b32.xlu0 %v2887, 113
      %v2896 = vpop.permute.xlu0 %2895
      %v2897 = vsel %vm906, %v2894, %v2896
      %v2901 = vsel %vm906, %v2896, %v2894
      %v2902 = vld [vmem:[%s912] sm:$0x3]
      %v2904 = vlaneseq
      %v2905 = vshrl.u32 %v2904, 7
      %v2906 = vsub.s32 0, %v2905
      %v2907 = vrot.slane %v2902, %v2906
      %v2908 = vlaneseq
      %v2909 = vshrl.u32 %v2908, 7
      %v2910 = vsub.s32 1, %v2909
      %v2911 = vrot.slane %v2902, %v2910
      %v2914 = vmul.f32 %v2897, %v2907
      %v2915 = vmul.f32 %v2901, %v2911
      %v2916 = vadd.f32 %v2843, %v2914
      %v2917 = vadd.f32 %v2844, %v2915
      %s2918 = scalar_lea.vmem %s5, 14
      %v2919 = vld [vmem:[%s2918] sm:$0x3]
      %v2921 = vsel %vm559, %v2919, 0
      %2923 = vmatprep.subr.bf16.mxu0 %v2432
      %2924 = vmatpush1.bf16.msra.mxu0 %v2431
      %2925 = vmatprep.subr.bf16.mxu0 0
      %2926 = vmatpush1.bf16.msra.mxu0 0
      %2927 = vmatprep.subr.bf16.mxu0 0
      %2928 = vmatpush1.bf16.msra.mxu0 0
      %2929 = vmatprep.subr.bf16.mxu0 0
      %2930 = vmatpush1.bf16.msra.mxu0 0
      %2931 = vmatprep.subr.bf16.mxu0 0
      %2932 = vmatpush1.bf16.msra.mxu0 0
      %2933 = vmatprep.subr.bf16.mxu0 0
      %2934 = vmatpush1.bf16.msra.mxu0 0
      %2935 = vmatprep.subr.bf16.mxu0 0
      %2936 = vmatpush1.bf16.msra.mxu0 0
      %2937 = vmatprep.subr.bf16.mxu0 0
      %2938 = vmatpush1.bf16.msra.mxu0 0
      %2939 = vmatprep.subr.bf16.mxu0 0
      %2940 = vmatpush1.bf16.msra.mxu0 0
      %2941 = vmatprep.subr.bf16.mxu0 0
      %2942 = vmatpush1.bf16.msra.mxu0 0
      %2943 = vmatprep.subr.bf16.mxu0 0
      %2944 = vmatpush1.bf16.msra.mxu0 0
      %2945 = vmatprep.subr.bf16.mxu0 0
      %2946 = vmatpush1.bf16.msra.mxu0 0
      %2947 = vmatprep.subr.bf16.mxu0 0
      %2948 = vmatpush1.bf16.msra.mxu0 0
      %2949 = vmatprep.subr.bf16.mxu0 0
      %2950 = vmatpush1.bf16.msra.mxu0 0
      %2951 = vmatprep.subr.bf16.mxu0 0
      %2952 = vmatpush1.bf16.msra.mxu0 0
      %2953 = vmatprep.subr.bf16.mxu0 0
      %2954 = vmatpush1.bf16.msra.mxu0 0
      %2955 = vmatprep.mubr.bf16.mxu0 0
      %2956 = vmatmul.mubr.bf16.gmra.mrb[0].mxu0 %v2921
      %v2957 = vpop.f32.mrb[0].mxu0
      %v2958 = vadd.f32 0.0, %v2957
      %v2959 = vpop.f32.mrb[0].mxu0
      %v2960 = vadd.f32 0.0, %v2959
      %v2961 = vpop.f32.mrb[0].mxu0
      %v2962 = vpop.f32.mrb[0].mxu0
      %2963 = vdwg.mxu0
      %2966 = vrot.lane.b32.xlu0 %v2958, 112
      %v2967 = vpop.permute.xlu0 %2966
      %2968 = vrot.lane.b32.xlu0 %v2960, 112
      %v2969 = vpop.permute.xlu0 %2968
      %v2970 = vsel %vm981, %v2967, %v2969
      %v2974 = vsel %vm981, %v2969, %v2967
      %v2975 = vld [vmem:[%s987] sm:$0x3]
      %v2977 = vlaneseq
      %v2978 = vshrl.u32 %v2977, 7
      %v2979 = vsub.s32 0, %v2978
      %v2980 = vrot.slane %v2975, %v2979
      %v2981 = vlaneseq
      %v2982 = vshrl.u32 %v2981, 7
      %v2983 = vsub.s32 1, %v2982
      %v2984 = vrot.slane %v2975, %v2983
      %v2987 = vmul.f32 %v2970, %v2980
      %v2988 = vmul.f32 %v2974, %v2984
      %v2989 = vadd.f32 %v2916, %v2987
      %v2990 = vadd.f32 %v2917, %v2988
      %s2991 = scalar_lea.vmem %s5, 16
      %v2992 = vld [vmem:[%s2991] sm:$0x3]
      %v2994 = vsel %vm559, %v2992, 0
      %2996 = vmatprep.subr.bf16.mxu0 %v2432
      %2997 = vmatpush1.bf16.msra.mxu0 %v2431
      %2998 = vmatprep.subr.bf16.mxu0 0
      %2999 = vmatpush1.bf16.msra.mxu0 0
      %3000 = vmatprep.subr.bf16.mxu0 0
      %3001 = vmatpush1.bf16.msra.mxu0 0
      %3002 = vmatprep.subr.bf16.mxu0 0
      %3003 = vmatpush1.bf16.msra.mxu0 0
      %3004 = vmatprep.subr.bf16.mxu0 0
      %3005 = vmatpush1.bf16.msra.mxu0 0
      %3006 = vmatprep.subr.bf16.mxu0 0
      %3007 = vmatpush1.bf16.msra.mxu0 0
      %3008 = vmatprep.subr.bf16.mxu0 0
      %3009 = vmatpush1.bf16.msra.mxu0 0
      %3010 = vmatprep.subr.bf16.mxu0 0
      %3011 = vmatpush1.bf16.msra.mxu0 0
      %3012 = vmatprep.subr.bf16.mxu0 0
      %3013 = vmatpush1.bf16.msra.mxu0 0
      %3014 = vmatprep.subr.bf16.mxu0 0
      %3015 = vmatpush1.bf16.msra.mxu0 0
      %3016 = vmatprep.subr.bf16.mxu0 0
      %3017 = vmatpush1.bf16.msra.mxu0 0
      %3018 = vmatprep.subr.bf16.mxu0 0
      %3019 = vmatpush1.bf16.msra.mxu0 0
      %3020 = vmatprep.subr.bf16.mxu0 0
      %3021 = vmatpush1.bf16.msra.mxu0 0
      %3022 = vmatprep.subr.bf16.mxu0 0
      %3023 = vmatpush1.bf16.msra.mxu0 0
      %3024 = vmatprep.subr.bf16.mxu0 0
      %3025 = vmatpush1.bf16.msra.mxu0 0
      %3026 = vmatprep.subr.bf16.mxu0 0
      %3027 = vmatpush1.bf16.msra.mxu0 0
      %3028 = vmatprep.mubr.bf16.mxu0 0
      %3029 = vmatmul.mubr.bf16.gmra.mrb[0].mxu0 %v2994
      %v3030 = vpop.f32.mrb[0].mxu0
      %v3031 = vadd.f32 0.0, %v3030
      %v3032 = vpop.f32.mrb[0].mxu0
      %v3033 = vadd.f32 0.0, %v3032
      %v3034 = vpop.f32.mrb[0].mxu0
      %v3035 = vpop.f32.mrb[0].mxu0
      %3036 = vdwg.mxu0
      %3039 = vrot.lane.b32.xlu0 %v3031, 111
      %v3040 = vpop.permute.xlu0 %3039
      %3041 = vrot.lane.b32.xlu0 %v3033, 111
      %v3042 = vpop.permute.xlu0 %3041
      %v3043 = vsel %vm1056, %v3040, %v3042
      %v3047 = vsel %vm1056, %v3042, %v3040
      %v3048 = vld [vmem:[%s1062] sm:$0x3]
      %v3050 = vlaneseq
      %v3051 = vshrl.u32 %v3050, 7
      %v3052 = vsub.s32 0, %v3051
      %v3053 = vrot.slane %v3048, %v3052
      %v3054 = vlaneseq
      %v3055 = vshrl.u32 %v3054, 7
      %v3056 = vsub.s32 1, %v3055
      %v3057 = vrot.slane %v3048, %v3056
      %v3060 = vmul.f32 %v3043, %v3053
      %v3061 = vmul.f32 %v3047, %v3057
      %v3062 = vadd.f32 %v2989, %v3060
      %v3063 = vadd.f32 %v2990, %v3061
      %v3064 = vld [vmem:[%s10] sm:$0xf]
      %3066 = vset.pattern.permute.xlu0 0
      %3067 = vperm.xlu0 %3066, %v3064
      %v3068 = vpop.permute.xlu0 %3067
      %v3070 = vadd.f32 %v3062, %v3068
      %v3071 = vadd.f32 %v3063, %v3068
      %vm3072 = vcmp.ge.f32.partialorder %v3070, 0.0
      %vm3073 = vcmp.ge.f32.partialorder %v3071, 0.0
      %v3074 = vmul.f32 %v3070, 0.2
      %v3075 = vmul.f32 %v3071, 0.2
      %v3076 = vsel %vm3072, %v3070, %v3074
      %v3077 = vsel %vm3073, %v3071, %v3075
      %3078 = vst [vmem:[#allocation2 + $0x20] sm:$0xf] %v3076
      %3079 = vst [vmem:[#allocation2 + $0x28] sm:$0xf] %v3077
      %v3080 = vld [vmem:[#allocation2] sm:$0xff]
      %v3081 = vld [vmem:[#allocation2 + $0x8] sm:$0xff]
      %v3082 = vld [vmem:[#allocation2 + $0x10] sm:$0xff]
      %v3083 = vld [vmem:[#allocation2 + $0x18] sm:$0xff]
      %v3084 = vld [vmem:[#allocation2 + $0x20] sm:$0xf]
      %v3085 = vld [vmem:[#allocation2 + $0x28] sm:$0xf]
      %v3086 = vpack.c.bf16 %v3082, %v3080
      %v3087 = vpack.c.bf16 %v3083, %v3081
      %v3088 = vpack.c.bf16 %v3084, %v3084
      %v3089 = vpack.c.bf16 %v3085, %v3085
      %v3090 = vld [vmem:[%s6] sm:$0x3]
      %vm3091 = vcmask 162816
      %v3093 = vsel %vm3091, %v3090, 0
      %v3096 = vsel %vm430, %v3088, 0
      %v3099 = vsel %vm430, %v3089, 0
      %3101 = vmatprep.subr.bf16.mxu0 %v3087
      %3102 = vmatpush1.bf16.msra.mxu0 %v3086
      %3103 = vmatprep.subr.bf16.mxu0 %v3099
      %3104 = vmatpush1.bf16.msra.mxu0 %v3096
      %3105 = vmatprep.subr.bf16.mxu0 0
      %3106 = vmatpush1.bf16.msra.mxu0 0
      %3107 = vmatprep.subr.bf16.mxu0 0
      %3108 = vmatpush1.bf16.msra.mxu0 0
      %3109 = vmatprep.subr.bf16.mxu0 0
      %3110 = vmatpush1.bf16.msra.mxu0 0
      %3111 = vmatprep.subr.bf16.mxu0 0
      %3112 = vmatpush1.bf16.msra.mxu0 0
      %3113 = vmatprep.subr.bf16.mxu0 0
      %3114 = vmatpush1.bf16.msra.mxu0 0
      %3115 = vmatprep.subr.bf16.mxu0 0
      %3116 = vmatpush1.bf16.msra.mxu0 0
      %3117 = vmatprep.subr.bf16.mxu0 0
      %3118 = vmatpush1.bf16.msra.mxu0 0
      %3119 = vmatprep.subr.bf16.mxu0 0
      %3120 = vmatpush1.bf16.msra.mxu0 0
      %3121 = vmatprep.subr.bf16.mxu0 0
      %3122 = vmatpush1.bf16.msra.mxu0 0
      %3123 = vmatprep.subr.bf16.mxu0 0
      %3124 = vmatpush1.bf16.msra.mxu0 0
      %3125 = vmatprep.subr.bf16.mxu0 0
      %3126 = vmatpush1.bf16.msra.mxu0 0
      %3127 = vmatprep.subr.bf16.mxu0 0
      %3128 = vmatpush1.bf16.msra.mxu0 0
      %3129 = vmatprep.subr.bf16.mxu0 0
      %3130 = vmatpush1.bf16.msra.mxu0 0
      %3131 = vmatprep.subr.bf16.mxu0 0
      %3132 = vmatpush1.bf16.msra.mxu0 0
      %3133 = vmatprep.mubr.bf16.mxu0 0
      %3134 = vmatmul.mubr.bf16.gmra.mrb[0].mxu0 %v3093
      %v3135 = vpop.f32.mrb[0].mxu0
      %v3136 = vadd.f32 0.0, %v3135
      %v3137 = vpop.f32.mrb[0].mxu0
      %v3138 = vadd.f32 0.0, %v3137
      %v3139 = vpop.f32.mrb[0].mxu0
      %v3140 = vpop.f32.mrb[0].mxu0
      %3141 = vdwg.mxu0
      %3143 = vrot.lane.b32.xlu0 %v3138, 17
      %v3144 = vpop.permute.xlu0 %3143
      %3147 = vrot.lane.b32.xlu0 %v3136, 17
      %v3148 = vpop.permute.xlu0 %3147
      %v3149 = vsel %vm485, %v3148, %v3144
      %v3152 = vsel %vm485, %v3144, %v3148
      %v3153 = vld [vmem:[%s1] sm:$0x3]
      %v3155 = vlaneseq
      %v3156 = vshrl.u32 %v3155, 7
      %v3157 = vsub.s32 0, %v3156
      %v3158 = vrot.slane %v3153, %v3157
      %v3159 = vlaneseq
      %v3160 = vshrl.u32 %v3159, 7
      %v3161 = vsub.s32 1, %v3160
      %v3162 = vrot.slane %v3153, %v3161
      %v3165 = vmul.f32 %v3152, %v3158
      %v3166 = vmul.f32 %v3149, %v3162
      %v3167 = vadd.f32 %v3165, 0.0
      %v3168 = vadd.f32 %v3166, 0.0
      %s3169 = scalar_lea.vmem %s6, 2
      %v3170 = vld [vmem:[%s3169] sm:$0x3]
      %v3172 = vsel %vm3091, %v3170, 0
      %3174 = vmatprep.subr.bf16.mxu0 %v3087
      %3175 = vmatpush1.bf16.msra.mxu0 %v3086
      %3176 = vmatprep.subr.bf16.mxu0 %v3099
      %3177 = vmatpush1.bf16.msra.mxu0 %v3096
      %3178 = vmatprep.subr.bf16.mxu0 0
      %3179 = vmatpush1.bf16.msra.mxu0 0
      %3180 = vmatprep.subr.bf16.mxu0 0
      %3181 = vmatpush1.bf16.msra.mxu0 0
      %3182 = vmatprep.subr.bf16.mxu0 0
      %3183 = vmatpush1.bf16.msra.mxu0 0
      %3184 = vmatprep.subr.bf16.mxu0 0
      %3185 = vmatpush1.bf16.msra.mxu0 0
      %3186 = vmatprep.subr.bf16.mxu0 0
      %3187 = vmatpush1.bf16.msra.mxu0 0
      %3188 = vmatprep.subr.bf16.mxu0 0
      %3189 = vmatpush1.bf16.msra.mxu0 0
      %3190 = vmatprep.subr.bf16.mxu0 0
      %3191 = vmatpush1.bf16.msra.mxu0 0
      %3192 = vmatprep.subr.bf16.mxu0 0
      %3193 = vmatpush1.bf16.msra.mxu0 0
      %3194 = vmatprep.subr.bf16.mxu0 0
      %3195 = vmatpush1.bf16.msra.mxu0 0
      %3196 = vmatprep.subr.bf16.mxu0 0
      %3197 = vmatpush1.bf16.msra.mxu0 0
      %3198 = vmatprep.subr.bf16.mxu0 0
      %3199 = vmatpush1.bf16.msra.mxu0 0
      %3200 = vmatprep.subr.bf16.mxu0 0
      %3201 = vmatpush1.bf16.msra.mxu0 0
      %3202 = vmatprep.subr.bf16.mxu0 0
      %3203 = vmatpush1.bf16.msra.mxu0 0
      %3204 = vmatprep.subr.bf16.mxu0 0
      %3205 = vmatpush1.bf16.msra.mxu0 0
      %3206 = vmatprep.mubr.bf16.mxu0 0
      %3207 = vmatmul.mubr.bf16.gmra.mrb[0].mxu0 %v3172
      %v3208 = vpop.f32.mrb[0].mxu0
      %v3209 = vadd.f32 0.0, %v3208
      %v3210 = vpop.f32.mrb[0].mxu0
      %v3211 = vadd.f32 0.0, %v3210
      %v3212 = vpop.f32.mrb[0].mxu0
      %v3213 = vpop.f32.mrb[0].mxu0
      %3214 = vdwg.mxu0
      %3216 = vrot.lane.b32.xlu0 %v3211, 16
      %v3217 = vpop.permute.xlu0 %3216
      %3220 = vrot.lane.b32.xlu0 %v3209, 16
      %v3221 = vpop.permute.xlu0 %3220
      %v3222 = vsel %vm559, %v3221, %v3217
      %v3225 = vsel %vm559, %v3217, %v3221
      %v3226 = vld [vmem:[%s564] sm:$0x3]
      %v3228 = vlaneseq
      %v3229 = vshrl.u32 %v3228, 7
      %v3230 = vsub.s32 0, %v3229
      %v3231 = vrot.slane %v3226, %v3230
      %v3232 = vlaneseq
      %v3233 = vshrl.u32 %v3232, 7
      %v3234 = vsub.s32 1, %v3233
      %v3235 = vrot.slane %v3226, %v3234
      %v3238 = vmul.f32 %v3225, %v3231
      %v3239 = vmul.f32 %v3222, %v3235
      %v3240 = vadd.f32 %v3167, %v3238
      %v3241 = vadd.f32 %v3168, %v3239
      %s3242 = scalar_lea.vmem %s6, 4
      %v3243 = vld [vmem:[%s3242] sm:$0x3]
      %v3245 = vsel %vm3091, %v3243, 0
      %3247 = vmatprep.subr.bf16.mxu0 %v3087
      %3248 = vmatpush1.bf16.msra.mxu0 %v3086
      %3249 = vmatprep.subr.bf16.mxu0 %v3099
      %3250 = vmatpush1.bf16.msra.mxu0 %v3096
      %3251 = vmatprep.subr.bf16.mxu0 0
      %3252 = vmatpush1.bf16.msra.mxu0 0
      %3253 = vmatprep.subr.bf16.mxu0 0
      %3254 = vmatpush1.bf16.msra.mxu0 0
      %3255 = vmatprep.subr.bf16.mxu0 0
      %3256 = vmatpush1.bf16.msra.mxu0 0
      %3257 = vmatprep.subr.bf16.mxu0 0
      %3258 = vmatpush1.bf16.msra.mxu0 0
      %3259 = vmatprep.subr.bf16.mxu0 0
      %3260 = vmatpush1.bf16.msra.mxu0 0
      %3261 = vmatprep.subr.bf16.mxu0 0
      %3262 = vmatpush1.bf16.msra.mxu0 0
      %3263 = vmatprep.subr.bf16.mxu0 0
      %3264 = vmatpush1.bf16.msra.mxu0 0
      %3265 = vmatprep.subr.bf16.mxu0 0
      %3266 = vmatpush1.bf16.msra.mxu0 0
      %3267 = vmatprep.subr.bf16.mxu0 0
      %3268 = vmatpush1.bf16.msra.mxu0 0
      %3269 = vmatprep.subr.bf16.mxu0 0
      %3270 = vmatpush1.bf16.msra.mxu0 0
      %3271 = vmatprep.subr.bf16.mxu0 0
      %3272 = vmatpush1.bf16.msra.mxu0 0
      %3273 = vmatprep.subr.bf16.mxu0 0
      %3274 = vmatpush1.bf16.msra.mxu0 0
      %3275 = vmatprep.subr.bf16.mxu0 0
      %3276 = vmatpush1.bf16.msra.mxu0 0
      %3277 = vmatprep.subr.bf16.mxu0 0
      %3278 = vmatpush1.bf16.msra.mxu0 0
      %3279 = vmatprep.mubr.bf16.mxu0 0
      %3280 = vmatmul.mubr.bf16.gmra.mrb[0].mxu0 %v3245
      %v3281 = vpop.f32.mrb[0].mxu0
      %v3282 = vadd.f32 0.0, %v3281
      %v3283 = vpop.f32.mrb[0].mxu0
      %v3284 = vadd.f32 0.0, %v3283
      %v3285 = vpop.f32.mrb[0].mxu0
      %v3286 = vpop.f32.mrb[0].mxu0
      %3287 = vdwg.mxu0
      %3289 = vrot.lane.b32.xlu0 %v3284, 15
      %v3290 = vpop.permute.xlu0 %3289
      %3293 = vrot.lane.b32.xlu0 %v3282, 15
      %v3294 = vpop.permute.xlu0 %3293
      %v3295 = vsel %vm634, %v3294, %v3290
      %v3298 = vsel %vm634, %v3290, %v3294
      %v3299 = vld [vmem:[%s639] sm:$0x3]
      %v3301 = vlaneseq
      %v3302 = vshrl.u32 %v3301, 7
      %v3303 = vsub.s32 0, %v3302
      %v3304 = vrot.slane %v3299, %v3303
      %v3305 = vlaneseq
      %v3306 = vshrl.u32 %v3305, 7
      %v3307 = vsub.s32 1, %v3306
      %v3308 = vrot.slane %v3299, %v3307
      %v3311 = vmul.f32 %v3298, %v3304
      %v3312 = vmul.f32 %v3295, %v3308
      %v3313 = vadd.f32 %v3240, %v3311
      %v3314 = vadd.f32 %v3241, %v3312
      %s3315 = scalar_lea.vmem %s6, 6
      %v3316 = vld [vmem:[%s3315] sm:$0x3]
      %v3318 = vsel %vm3091, %v3316, 0
      %3320 = vmatprep.subr.bf16.mxu0 %v3087
      %3321 = vmatpush1.bf16.msra.mxu0 %v3086
      %3322 = vmatprep.subr.bf16.mxu0 %v3099
      %3323 = vmatpush1.bf16.msra.mxu0 %v3096
      %3324 = vmatprep.subr.bf16.mxu0 0
      %3325 = vmatpush1.bf16.msra.mxu0 0
      %3326 = vmatprep.subr.bf16.mxu0 0
      %3327 = vmatpush1.bf16.msra.mxu0 0
      %3328 = vmatprep.subr.bf16.mxu0 0
      %3329 = vmatpush1.bf16.msra.mxu0 0
      %3330 = vmatprep.subr.bf16.mxu0 0
      %3331 = vmatpush1.bf16.msra.mxu0 0
      %3332 = vmatprep.subr.bf16.mxu0 0
      %3333 = vmatpush1.bf16.msra.mxu0 0
      %3334 = vmatprep.subr.bf16.mxu0 0
      %3335 = vmatpush1.bf16.msra.mxu0 0
      %3336 = vmatprep.subr.bf16.mxu0 0
      %3337 = vmatpush1.bf16.msra.mxu0 0
      %3338 = vmatprep.subr.bf16.mxu0 0
      %3339 = vmatpush1.bf16.msra.mxu0 0
      %3340 = vmatprep.subr.bf16.mxu0 0
      %3341 = vmatpush1.bf16.msra.mxu0 0
      %3342 = vmatprep.subr.bf16.mxu0 0
      %3343 = vmatpush1.bf16.msra.mxu0 0
      %3344 = vmatprep.subr.bf16.mxu0 0
      %3345 = vmatpush1.bf16.msra.mxu0 0
      %3346 = vmatprep.subr.bf16.mxu0 0
      %3347 = vmatpush1.bf16.msra.mxu0 0
      %3348 = vmatprep.subr.bf16.mxu0 0
      %3349 = vmatpush1.bf16.msra.mxu0 0
      %3350 = vmatprep.subr.bf16.mxu0 0
      %3351 = vmatpush1.bf16.msra.mxu0 0
      %3352 = vmatprep.mubr.bf16.mxu0 0
      %3353 = vmatmul.mubr.bf16.gmra.mrb[0].mxu0 %v3318
      %v3354 = vpop.f32.mrb[0].mxu0
      %v3355 = vadd.f32 0.0, %v3354
      %v3356 = vpop.f32.mrb[0].mxu0
      %v3357 = vadd.f32 0.0, %v3356
      %v3358 = vpop.f32.mrb[0].mxu0
      %v3359 = vpop.f32.mrb[0].mxu0
      %3360 = vdwg.mxu0
      %3362 = vrot.lane.b32.xlu0 %v3357, 1
      %v3363 = vpop.permute.xlu0 %3362
      %3366 = vrot.lane.b32.xlu0 %v3355, 1
      %v3367 = vpop.permute.xlu0 %3366
      %v3368 = vsel %vm709, %v3367, %v3363
      %v3371 = vsel %vm709, %v3363, %v3367
      %v3372 = vld [vmem:[%s714] sm:$0x3]
      %v3374 = vlaneseq
      %v3375 = vshrl.u32 %v3374, 7
      %v3376 = vsub.s32 0, %v3375
      %v3377 = vrot.slane %v3372, %v3376
      %v3378 = vlaneseq
      %v3379 = vshrl.u32 %v3378, 7
      %v3380 = vsub.s32 1, %v3379
      %v3381 = vrot.slane %v3372, %v3380
      %v3384 = vmul.f32 %v3371, %v3377
      %v3385 = vmul.f32 %v3368, %v3381
      %v3386 = vadd.f32 %v3313, %v3384
      %v3387 = vadd.f32 %v3314, %v3385
      %s3388 = scalar_lea.vmem %s6, 8
      %v3389 = vld [vmem:[%s3388] sm:$0x3]
      %v3391 = vsel %vm3091, %v3389, 0
      %3393 = vmatprep.subr.bf16.mxu0 %v3087
      %3394 = vmatpush1.bf16.msra.mxu0 %v3086
      %3395 = vmatprep.subr.bf16.mxu0 %v3099
      %3396 = vmatpush1.bf16.msra.mxu0 %v3096
      %3397 = vmatprep.subr.bf16.mxu0 0
      %3398 = vmatpush1.bf16.msra.mxu0 0
      %3399 = vmatprep.subr.bf16.mxu0 0
      %3400 = vmatpush1.bf16.msra.mxu0 0
      %3401 = vmatprep.subr.bf16.mxu0 0
      %3402 = vmatpush1.bf16.msra.mxu0 0
      %3403 = vmatprep.subr.bf16.mxu0 0
      %3404 = vmatpush1.bf16.msra.mxu0 0
      %3405 = vmatprep.subr.bf16.mxu0 0
      %3406 = vmatpush1.bf16.msra.mxu0 0
      %3407 = vmatprep.subr.bf16.mxu0 0
      %3408 = vmatpush1.bf16.msra.mxu0 0
      %3409 = vmatprep.subr.bf16.mxu0 0
      %3410 = vmatpush1.bf16.msra.mxu0 0
      %3411 = vmatprep.subr.bf16.mxu0 0
      %3412 = vmatpush1.bf16.msra.mxu0 0
      %3413 = vmatprep.subr.bf16.mxu0 0
      %3414 = vmatpush1.bf16.msra.mxu0 0
      %3415 = vmatprep.subr.bf16.mxu0 0
      %3416 = vmatpush1.bf16.msra.mxu0 0
      %3417 = vmatprep.subr.bf16.mxu0 0
      %3418 = vmatpush1.bf16.msra.mxu0 0
      %3419 = vmatprep.subr.bf16.mxu0 0
      %3420 = vmatpush1.bf16.msra.mxu0 0
      %3421 = vmatprep.subr.bf16.mxu0 0
      %3422 = vmatpush1.bf16.msra.mxu0 0
      %3423 = vmatprep.subr.bf16.mxu0 0
      %3424 = vmatpush1.bf16.msra.mxu0 0
      %3425 = vmatprep.mubr.bf16.mxu0 0
      %3426 = vmatmul.mubr.bf16.gmra.mrb[0].mxu0 %v3391
      %v3427 = vpop.f32.mrb[0].mxu0
      %v3428 = vadd.f32 0.0, %v3427
      %v3429 = vpop.f32.mrb[0].mxu0
      %v3430 = vadd.f32 0.0, %v3429
      %v3431 = vpop.f32.mrb[0].mxu0
      %v3432 = vpop.f32.mrb[0].mxu0
      %3433 = vdwg.mxu0
      %v3434 = vadd.f32 %v3386, %v3428
      %v3435 = vadd.f32 %v3387, %v3430
      %s3436 = scalar_lea.vmem %s6, 10
      %v3437 = vld [vmem:[%s3436] sm:$0x3]
      %v3439 = vsel %vm3091, %v3437, 0
      %3441 = vmatprep.subr.bf16.mxu0 %v3087
      %3442 = vmatpush1.bf16.msra.mxu0 %v3086
      %3443 = vmatprep.subr.bf16.mxu0 %v3099
      %3444 = vmatpush1.bf16.msra.mxu0 %v3096
      %3445 = vmatprep.subr.bf16.mxu0 0
      %3446 = vmatpush1.bf16.msra.mxu0 0
      %3447 = vmatprep.subr.bf16.mxu0 0
      %3448 = vmatpush1.bf16.msra.mxu0 0
      %3449 = vmatprep.subr.bf16.mxu0 0
      %3450 = vmatpush1.bf16.msra.mxu0 0
      %3451 = vmatprep.subr.bf16.mxu0 0
      %3452 = vmatpush1.bf16.msra.mxu0 0
      %3453 = vmatprep.subr.bf16.mxu0 0
      %3454 = vmatpush1.bf16.msra.mxu0 0
      %3455 = vmatprep.subr.bf16.mxu0 0
      %3456 = vmatpush1.bf16.msra.mxu0 0
      %3457 = vmatprep.subr.bf16.mxu0 0
      %3458 = vmatpush1.bf16.msra.mxu0 0
      %3459 = vmatprep.subr.bf16.mxu0 0
      %3460 = vmatpush1.bf16.msra.mxu0 0
      %3461 = vmatprep.subr.bf16.mxu0 0
      %3462 = vmatpush1.bf16.msra.mxu0 0
      %3463 = vmatprep.subr.bf16.mxu0 0
      %3464 = vmatpush1.bf16.msra.mxu0 0
      %3465 = vmatprep.subr.bf16.mxu0 0
      %3466 = vmatpush1.bf16.msra.mxu0 0
      %3467 = vmatprep.subr.bf16.mxu0 0
      %3468 = vmatpush1.bf16.msra.mxu0 0
      %3469 = vmatprep.subr.bf16.mxu0 0
      %3470 = vmatpush1.bf16.msra.mxu0 0
      %3471 = vmatprep.subr.bf16.mxu0 0
      %3472 = vmatpush1.bf16.msra.mxu0 0
      %3473 = vmatprep.mubr.bf16.mxu0 0
      %3474 = vmatmul.mubr.bf16.gmra.mrb[0].mxu0 %v3439
      %v3475 = vpop.f32.mrb[0].mxu0
      %v3476 = vadd.f32 0.0, %v3475
      %v3477 = vpop.f32.mrb[0].mxu0
      %v3478 = vadd.f32 0.0, %v3477
      %v3479 = vpop.f32.mrb[0].mxu0
      %v3480 = vpop.f32.mrb[0].mxu0
      %3481 = vdwg.mxu0
      %3484 = vrot.lane.b32.xlu0 %v3476, 127
      %v3485 = vpop.permute.xlu0 %3484
      %3486 = vrot.lane.b32.xlu0 %v3478, 127
      %v3487 = vpop.permute.xlu0 %3486
      %v3488 = vsel %vm831, %v3485, %v3487
      %v3492 = vsel %vm831, %v3487, %v3485
      %v3493 = vld [vmem:[%s837] sm:$0x3]
      %v3495 = vlaneseq
      %v3496 = vshrl.u32 %v3495, 7
      %v3497 = vsub.s32 0, %v3496
      %v3498 = vrot.slane %v3493, %v3497
      %v3499 = vlaneseq
      %v3500 = vshrl.u32 %v3499, 7
      %v3501 = vsub.s32 1, %v3500
      %v3502 = vrot.slane %v3493, %v3501
      %v3505 = vmul.f32 %v3488, %v3498
      %v3506 = vmul.f32 %v3492, %v3502
      %v3507 = vadd.f32 %v3434, %v3505
      %v3508 = vadd.f32 %v3435, %v3506
      %s3509 = scalar_lea.vmem %s6, 12
      %v3510 = vld [vmem:[%s3509] sm:$0x3]
      %v3512 = vsel %vm3091, %v3510, 0
      %3514 = vmatprep.subr.bf16.mxu0 %v3087
      %3515 = vmatpush1.bf16.msra.mxu0 %v3086
      %3516 = vmatprep.subr.bf16.mxu0 %v3099
      %3517 = vmatpush1.bf16.msra.mxu0 %v3096
      %3518 = vmatprep.subr.bf16.mxu0 0
      %3519 = vmatpush1.bf16.msra.mxu0 0
      %3520 = vmatprep.subr.bf16.mxu0 0
      %3521 = vmatpush1.bf16.msra.mxu0 0
      %3522 = vmatprep.subr.bf16.mxu0 0
      %3523 = vmatpush1.bf16.msra.mxu0 0
      %3524 = vmatprep.subr.bf16.mxu0 0
      %3525 = vmatpush1.bf16.msra.mxu0 0
      %3526 = vmatprep.subr.bf16.mxu0 0
      %3527 = vmatpush1.bf16.msra.mxu0 0
      %3528 = vmatprep.subr.bf16.mxu0 0
      %3529 = vmatpush1.bf16.msra.mxu0 0
      %3530 = vmatprep.subr.bf16.mxu0 0
      %3531 = vmatpush1.bf16.msra.mxu0 0
      %3532 = vmatprep.subr.bf16.mxu0 0
      %3533 = vmatpush1.bf16.msra.mxu0 0
      %3534 = vmatprep.subr.bf16.mxu0 0
      %3535 = vmatpush1.bf16.msra.mxu0 0
      %3536 = vmatprep.subr.bf16.mxu0 0
      %3537 = vmatpush1.bf16.msra.mxu0 0
      %3538 = vmatprep.subr.bf16.mxu0 0
      %3539 = vmatpush1.bf16.msra.mxu0 0
      %3540 = vmatprep.subr.bf16.mxu0 0
      %3541 = vmatpush1.bf16.msra.mxu0 0
      %3542 = vmatprep.subr.bf16.mxu0 0
      %3543 = vmatpush1.bf16.msra.mxu0 0
      %3544 = vmatprep.subr.bf16.mxu0 0
      %3545 = vmatpush1.bf16.msra.mxu0 0
      %3546 = vmatprep.mubr.bf16.mxu0 0
      %3547 = vmatmul.mubr.bf16.gmra.mrb[0].mxu0 %v3512
      %v3548 = vpop.f32.mrb[0].mxu0
      %v3549 = vadd.f32 0.0, %v3548
      %v3550 = vpop.f32.mrb[0].mxu0
      %v3551 = vadd.f32 0.0, %v3550
      %v3552 = vpop.f32.mrb[0].mxu0
      %v3553 = vpop.f32.mrb[0].mxu0
      %3554 = vdwg.mxu0
      %3557 = vrot.lane.b32.xlu0 %v3549, 113
      %v3558 = vpop.permute.xlu0 %3557
      %3559 = vrot.lane.b32.xlu0 %v3551, 113
      %v3560 = vpop.permute.xlu0 %3559
      %v3561 = vsel %vm906, %v3558, %v3560
      %v3565 = vsel %vm906, %v3560, %v3558
      %v3566 = vld [vmem:[%s912] sm:$0x3]
      %v3568 = vlaneseq
      %v3569 = vshrl.u32 %v3568, 7
      %v3570 = vsub.s32 0, %v3569
      %v3571 = vrot.slane %v3566, %v3570
      %v3572 = vlaneseq
      %v3573 = vshrl.u32 %v3572, 7
      %v3574 = vsub.s32 1, %v3573
      %v3575 = vrot.slane %v3566, %v3574
      %v3578 = vmul.f32 %v3561, %v3571
      %v3579 = vmul.f32 %v3565, %v3575
      %v3580 = vadd.f32 %v3507, %v3578
      %v3581 = vadd.f32 %v3508, %v3579
      %s3582 = scalar_lea.vmem %s6, 14
      %v3583 = vld [vmem:[%s3582] sm:$0x3]
      %v3585 = vsel %vm3091, %v3583, 0
      %3587 = vmatprep.subr.bf16.mxu0 %v3087
      %3588 = vmatpush1.bf16.msra.mxu0 %v3086
      %3589 = vmatprep.subr.bf16.mxu0 %v3099
      %3590 = vmatpush1.bf16.msra.mxu0 %v3096
      %3591 = vmatprep.subr.bf16.mxu0 0
      %3592 = vmatpush1.bf16.msra.mxu0 0
      %3593 = vmatprep.subr.bf16.mxu0 0
      %3594 = vmatpush1.bf16.msra.mxu0 0
      %3595 = vmatprep.subr.bf16.mxu0 0
      %3596 = vmatpush1.bf16.msra.mxu0 0
      %3597 = vmatprep.subr.bf16.mxu0 0
      %3598 = vmatpush1.bf16.msra.mxu0 0
      %3599 = vmatprep.subr.bf16.mxu0 0
      %3600 = vmatpush1.bf16.msra.mxu0 0
      %3601 = vmatprep.subr.bf16.mxu0 0
      %3602 = vmatpush1.bf16.msra.mxu0 0
      %3603 = vmatprep.subr.bf16.mxu0 0
      %3604 = vmatpush1.bf16.msra.mxu0 0
      %3605 = vmatprep.subr.bf16.mxu0 0
      %3606 = vmatpush1.bf16.msra.mxu0 0
      %3607 = vmatprep.subr.bf16.mxu0 0
      %3608 = vmatpush1.bf16.msra.mxu0 0
      %3609 = vmatprep.subr.bf16.mxu0 0
      %3610 = vmatpush1.bf16.msra.mxu0 0
      %3611 = vmatprep.subr.bf16.mxu0 0
      %3612 = vmatpush1.bf16.msra.mxu0 0
      %3613 = vmatprep.subr.bf16.mxu0 0
      %3614 = vmatpush1.bf16.msra.mxu0 0
      %3615 = vmatprep.subr.bf16.mxu0 0
      %3616 = vmatpush1.bf16.msra.mxu0 0
      %3617 = vmatprep.subr.bf16.mxu0 0
      %3618 = vmatpush1.bf16.msra.mxu0 0
      %3619 = vmatprep.mubr.bf16.mxu0 0
      %3620 = vmatmul.mubr.bf16.gmra.mrb[0].mxu0 %v3585
      %v3621 = vpop.f32.mrb[0].mxu0
      %v3622 = vadd.f32 0.0, %v3621
      %v3623 = vpop.f32.mrb[0].mxu0
      %v3624 = vadd.f32 0.0, %v3623
      %v3625 = vpop.f32.mrb[0].mxu0
      %v3626 = vpop.f32.mrb[0].mxu0
      %3627 = vdwg.mxu0
      %3630 = vrot.lane.b32.xlu0 %v3622, 112
      %v3631 = vpop.permute.xlu0 %3630
      %3632 = vrot.lane.b32.xlu0 %v3624, 112
      %v3633 = vpop.permute.xlu0 %3632
      %v3634 = vsel %vm981, %v3631, %v3633
      %v3638 = vsel %vm981, %v3633, %v3631
      %v3639 = vld [vmem:[%s987] sm:$0x3]
      %v3641 = vlaneseq
      %v3642 = vshrl.u32 %v3641, 7
      %v3643 = vsub.s32 0, %v3642
      %v3644 = vrot.slane %v3639, %v3643
      %v3645 = vlaneseq
      %v3646 = vshrl.u32 %v3645, 7
      %v3647 = vsub.s32 1, %v3646
      %v3648 = vrot.slane %v3639, %v3647
      %v3651 = vmul.f32 %v3634, %v3644
      %v3652 = vmul.f32 %v3638, %v3648
      %v3653 = vadd.f32 %v3580, %v3651
      %v3654 = vadd.f32 %v3581, %v3652
      %s3655 = scalar_lea.vmem %s6, 16
      %v3656 = vld [vmem:[%s3655] sm:$0x3]
      %v3658 = vsel %vm3091, %v3656, 0
      %3660 = vmatprep.subr.bf16.mxu0 %v3087
      %3661 = vmatpush1.bf16.msra.mxu0 %v3086
      %3662 = vmatprep.subr.bf16.mxu0 %v3099
      %3663 = vmatpush1.bf16.msra.mxu0 %v3096
      %3664 = vmatprep.subr.bf16.mxu0 0
      %3665 = vmatpush1.bf16.msra.mxu0 0
      %3666 = vmatprep.subr.bf16.mxu0 0
      %3667 = vmatpush1.bf16.msra.mxu0 0
      %3668 = vmatprep.subr.bf16.mxu0 0
      %3669 = vmatpush1.bf16.msra.mxu0 0
      %3670 = vmatprep.subr.bf16.mxu0 0
      %3671 = vmatpush1.bf16.msra.mxu0 0
      %3672 = vmatprep.subr.bf16.mxu0 0
      %3673 = vmatpush1.bf16.msra.mxu0 0
      %3674 = vmatprep.subr.bf16.mxu0 0
      %3675 = vmatpush1.bf16.msra.mxu0 0
      %3676 = vmatprep.subr.bf16.mxu0 0
      %3677 = vmatpush1.bf16.msra.mxu0 0
      %3678 = vmatprep.subr.bf16.mxu0 0
      %3679 = vmatpush1.bf16.msra.mxu0 0
      %3680 = vmatprep.subr.bf16.mxu0 0
      %3681 = vmatpush1.bf16.msra.mxu0 0
      %3682 = vmatprep.subr.bf16.mxu0 0
      %3683 = vmatpush1.bf16.msra.mxu0 0
      %3684 = vmatprep.subr.bf16.mxu0 0
      %3685 = vmatpush1.bf16.msra.mxu0 0
      %3686 = vmatprep.subr.bf16.mxu0 0
      %3687 = vmatpush1.bf16.msra.mxu0 0
      %3688 = vmatprep.subr.bf16.mxu0 0
      %3689 = vmatpush1.bf16.msra.mxu0 0
      %3690 = vmatprep.subr.bf16.mxu0 0
      %3691 = vmatpush1.bf16.msra.mxu0 0
      %3692 = vmatprep.mubr.bf16.mxu0 0
      %3693 = vmatmul.mubr.bf16.gmra.mrb[0].mxu0 %v3658
      %v3694 = vpop.f32.mrb[0].mxu0
      %v3695 = vadd.f32 0.0, %v3694
      %v3696 = vpop.f32.mrb[0].mxu0
      %v3697 = vadd.f32 0.0, %v3696
      %v3698 = vpop.f32.mrb[0].mxu0
      %v3699 = vpop.f32.mrb[0].mxu0
      %3700 = vdwg.mxu0
      %3703 = vrot.lane.b32.xlu0 %v3695, 111
      %v3704 = vpop.permute.xlu0 %3703
      %3705 = vrot.lane.b32.xlu0 %v3697, 111
      %v3706 = vpop.permute.xlu0 %3705
      %v3707 = vsel %vm1056, %v3704, %v3706
      %v3711 = vsel %vm1056, %v3706, %v3704
      %v3712 = vld [vmem:[%s1062] sm:$0x3]
      %v3714 = vlaneseq
      %v3715 = vshrl.u32 %v3714, 7
      %v3716 = vsub.s32 0, %v3715
      %v3717 = vrot.slane %v3712, %v3716
      %v3718 = vlaneseq
      %v3719 = vshrl.u32 %v3718, 7
      %v3720 = vsub.s32 1, %v3719
      %v3721 = vrot.slane %v3712, %v3720
      %v3724 = vmul.f32 %v3707, %v3717
      %v3725 = vmul.f32 %v3711, %v3721
      %v3726 = vadd.f32 %v3653, %v3724
      %v3727 = vadd.f32 %v3654, %v3725
      %v3728 = vld [vmem:[%s11] sm:$0xf]
      %3730 = vset.pattern.permute.xlu0 0
      %3731 = vperm.xlu0 %3730, %v3728
      %v3732 = vpop.permute.xlu0 %3731
      %v3734 = vadd.f32 %v3726, %v3732
      %v3735 = vadd.f32 %v3727, %v3732
      %v3736 = vmul.f32 %v3734, 0.2
      %v3737 = vmul.f32 %v3735, 0.2
      %v3738 = vadd.f32 %v3736, %v415
      %v3739 = vadd.f32 %v3737, %v417
      %v3742 = vcombine.low %v3738, %v3739
      %3744 = vst [vmem:[%s413] sm:$0xff] %v3742
      %p3745 = scmp.lt.s32.totalorder %s23, 1
      %s3746 = scalar_select %p3745, %s23, 1
      %s3747 = smul.addr %s3746, 2
      %s3748 = smul.addr %s3747, 4
      %s3749 = scalar_lea.vmem %s12, %s3748
      // Predicated region
      $region69: #{rrdb_forward.3} parent=67 // pred_check
        %p3750 = pneg %p298
      $region70: #{rrdb_forward.3} parent=67 // pred_check_branch
        %3752 = sbr.rel (%p3750) target = $region72
      $region71: #{rrdb_forward.3} parent=67 // pred_region
        _
      $region72: #{rrdb_forward.3} parent=67 // pred_fallthru
        _
    $region68: #{rrdb_forward.3} parent=5 // pred_fallthru
      _
    %p3753 = scmp.le.s32.totalorder 2, %s18
    // Predicated region
    $region73: #{rrdb_forward.3} parent=5 // pred_check
      %p3754 = pneg %p3753
    $region74: #{rrdb_forward.3} parent=5 // pred_check_branch
      %3756 = sbr.rel (%p3754) target = $region76
    $region75: #{rrdb_forward.3} parent=5 // pred_region
      %s3757 = ssub.s32 %s18, 2
      // Predicated region
      $region77: #{rrdb_forward.3} parent=75 // pred_check
        %p3758 = pneg %p304
      $region78: #{rrdb_forward.3} parent=75 // pred_check_branch
        %3760 = sbr.rel (%p3758) target = $region80
      $region79: #{rrdb_forward.3} parent=75 // pred_region
        %p3761 = scmp.lt.s32.totalorder %s24, 1
        %s3762 = scalar_select %p3761, %s24, 1
        %s3763 = smul.addr %s3762, 2
        %s3764 = smul.addr %s3763, 4
        %s3765 = scalar_lea.vmem %s12, %s3764
      $region80: #{rrdb_forward.3} parent=75 // pred_fallthru
        _
    $region76: #{rrdb_forward.3} parent=5 // pred_fallthru
      _
  $region6: #{rrdb_forward.3} parent=0 // loop_footer
    %s22 = sadd.s32 1, %s18
  $region7: #{rrdb_forward.3} parent=0 // loop_footer_branch
    %17 = sbr.rel target = $region3
  $region8: #{rrdb_forward.3} parent=0 // loop_exit
    _

// kernel: rrdb_forward.5
$region0: #{rrdb_forward.5}
  #allocation0 [shape = 'u32[]', space=smem, size = 0x4, offset = 0x4, fixed_abs, tag = 'smem constant byte address 0x4 - core index']
  #allocation1 [shape = 'u32[144,128]{1,0:T(1,128)}', space=vmem, size = 0x12000, scoped, tag = 'internal scratch']
  #allocation2 [shape = 'f32[20,256]{1,0:T(8,128)}', space=vmem, size = 0x6000, scoped, tag = 'scratch operand']
  %s0 = inlined_call_operand.vmem [shape: f32[2,4,256], index: 0, kind: input, shape index: {}]
  %s1 = inlined_call_operand.vmem [shape: f32[2,4,256], index: 1, kind: input, shape index: {}]
  %s2 = inlined_call_operand.vmem [shape: f32[9,1,256], index: 2, kind: input, shape index: {}]
  %s3 = inlined_call_operand.vmem [shape: bf16[9,4,4], index: 3, kind: input, shape index: {}]
  %s4 = inlined_call_operand.vmem [shape: bf16[9,4,8], index: 4, kind: input, shape index: {}]
  %s5 = inlined_call_operand.vmem [shape: bf16[9,4,12], index: 5, kind: input, shape index: {}]
  %s6 = inlined_call_operand.vmem [shape: bf16[9,4,16], index: 6, kind: input, shape index: {}]
  %s7 = inlined_call_operand.vmem [shape: bf16[9,4,20], index: 7, kind: input, shape index: {}]
  %s8 = inlined_call_operand.vmem [shape: f32[4,1], index: 8, kind: input, shape index: {}]
  %s9 = inlined_call_operand.vmem [shape: f32[4,1], index: 9, kind: input, shape index: {}]
  %s10 = inlined_call_operand.vmem [shape: f32[4,1], index: 10, kind: input, shape index: {}]
  %s11 = inlined_call_operand.vmem [shape: f32[4,1], index: 11, kind: input, shape index: {}]
  %s12 = inlined_call_operand.vmem [shape: f32[4,1], index: 12, kind: input, shape index: {}]
  %s13 = inlined_call_operand.vmem [shape: f32[2,4,256], index: 13, kind: output, shape index: {}]
  %s14 = sld [smem:[#allocation0]]
  $region85: #{rrdb_forward.5} parent=0
    _
  %s16 = ssub.s32 1, %s14
  %s17 = scalar_select 0, %s16, %s14
  loop: start=0, step=1, limit=4
  $region2: #{rrdb_forward.5} parent=0 // loop_pre_header
    _
  $region3: #{rrdb_forward.5} parent=0 // loop_header
    %s19 = sphi 0, %s23
    %p20 = scmp.ge.s32.totalorder %s19, 4
    %s29 = sphi 0, %s31
    %s32 = sphi 0, %s29
    %s33 = sphi 0, %s32
    %s49 = sphi 0, %s33
    %s55 = sphi 0, %s57
    %s58 = sphi 0, %s55
    %s59 = sphi 0, %s58
    %s75 = sphi 0, %s59
    %s79 = sphi 0, %s79
    %s81 = sphi 0, %s79
    %s82 = sphi 0, %s81
    %s96 = sphi 0, %s82
    %s100 = sphi 0, %s100
    %s102 = sphi 0, %s100
    %s103 = sphi 0, %s102
    %s117 = sphi 0, %s103
    %s121 = sphi 0, %s121
    %s123 = sphi 0, %s121
    %s124 = sphi 0, %s123
    %s138 = sphi 0, %s124
    %s142 = sphi 0, %s142
    %s144 = sphi 0, %s142
    %s145 = sphi 0, %s144
    %s159 = sphi 0, %s145
    %s163 = sphi 0, %s163
    %s165 = sphi 0, %s163
    %s166 = sphi 0, %s165
    %s180 = sphi 0, %s166
    %s184 = sphi 0, %s184
    %s186 = sphi 0, %s184
    %s187 = sphi 0, %s186
    %s201 = sphi 0, %s187
    %s205 = sphi 0, %s205
    %s207 = sphi 0, %s205
    %s208 = sphi 0, %s207
    %s222 = sphi 0, %s208
    %s226 = sphi 0, %s226
    %s228 = sphi 0, %s226
    %s229 = sphi 0, %s228
    %s243 = sphi 0, %s229
    %s247 = sphi 0, %s247
    %s249 = sphi 0, %s247
    %s250 = sphi 0, %s249
    %s264 = sphi 0, %s250
    %s268 = sphi 0, %s268
    %s270 = sphi 0, %s268
    %s271 = sphi 0, %s270
    %s285 = sphi 0, %s271
    %s289 = sphi 0, %s289
    %s291 = sphi 0, %s289
    %s292 = sphi 0, %s291
    %s306 = sphi 0, %s292
    %s312 = sphi 0, %s314
    %s315 = sphi 0, %s312
    %s316 = sphi 0, %s315
    %s332 = sphi 0, %s316
  $region4: #{rrdb_forward.5} parent=0 // loop_header_branch
    %22 = sbr.rel (%p20) target = $region8
  $region5: #{rrdb_forward.5} parent=0 // loop_body
    %s24 = ssub.s32 %s19, 1
    %s25 = ssub.s32 %s19, 2
    %s26 = sadd.s32 %s19, 1
    %s27 = ssub.s32 %s19, %s26
    %p28 = scmp.eq.s32.totalorder %s27, 0
    %s30 = sadd.s32 %s29, 1
    %s31 = scalar_select %p28, %s29, %s30
    %p34 = pneg %p28
    %p35 = scmp.eq.s32.totalorder %s19, 1
    %p36 = por %p34, %p35
    %p37 = scmp.ne.s32.totalorder %s29, %s32
    %p38 = scmp.eq.s32.totalorder %s19, 0
    %p39 = por %p37, %p38
    %p40 = scmp.ne.s32.totalorder %s29, %s32
    %p41 = scmp.eq.s32.totalorder %s24, 1
    %p42 = por %p40, %p41
    %p43 = scmp.ne.s32.totalorder %s32, %s33
    %p44 = scmp.eq.s32.totalorder %s24, 0
    %p45 = por %p43, %p44
    %p46 = scmp.ne.s32.totalorder %s32, %s33
    %p47 = scmp.eq.s32.totalorder %s25, 1
    %p48 = por %p46, %p47
    %p50 = scmp.ne.s32.totalorder %s33, %s49
    %p51 = scmp.eq.s32.totalorder %s25, 0
    %p52 = por %p50, %p51
    %s53 = ssub.s32 %s19, %s26
    %p54 = scmp.eq.s32.totalorder %s53, 0
    %s56 = sadd.s32 %s55, 1
    %s57 = scalar_select %p54, %s55, %s56
    %p60 = pneg %p54
    %p61 = scmp.eq.s32.totalorder %s19, 1
    %p62 = por %p60, %p61
    %p63 = scmp.ne.s32.totalorder %s55, %s58
    %p64 = scmp.eq.s32.totalorder %s19, 0
    %p65 = por %p63, %p64
    %p66 = scmp.ne.s32.totalorder %s55, %s58
    %p67 = scmp.eq.s32.totalorder %s24, 1
    %p68 = por %p66, %p67
    %p69 = scmp.ne.s32.totalorder %s58, %s59
    %p70 = scmp.eq.s32.totalorder %s24, 0
    %p71 = por %p69, %p70
    %p72 = scmp.ne.s32.totalorder %s58, %s59
    %p73 = scmp.eq.s32.totalorder %s25, 1
    %p74 = por %p72, %p73
    %p76 = scmp.ne.s32.totalorder %s59, %s75
    %p77 = scmp.eq.s32.totalorder %s25, 0
    %p78 = por %p76, %p77
    %s80 = sadd.s32 %s79, 1
    %p83 = scmp.eq.s32.totalorder %s19, 1
    %p84 = scmp.ne.s32.totalorder %s79, %s81
    %p85 = scmp.eq.s32.totalorder %s19, 0
    %p86 = por %p84, %p85
    %p87 = scmp.ne.s32.totalorder %s79, %s81
    %p88 = scmp.eq.s32.totalorder %s24, 1
    %p89 = por %p87, %p88
    %p90 = scmp.ne.s32.totalorder %s81, %s82
    %p91 = scmp.eq.s32.totalorder %s24, 0
    %p92 = por %p90, %p91
    %p93 = scmp.ne.s32.totalorder %s81, %s82
    %p94 = scmp.eq.s32.totalorder %s25, 1
    %p95 = por %p93, %p94
    %p97 = scmp.ne.s32.totalorder %s82, %s96
    %p98 = scmp.eq.s32.totalorder %s25, 0
    %p99 = por %p97, %p98
    %s101 = sadd.s32 %s100, 1
    %p104 = scmp.eq.s32.totalorder %s19, 1
    %p105 = scmp.ne.s32.totalorder %s100, %s102
    %p106 = scmp.eq.s32.totalorder %s19, 0
    %p107 = por %p105, %p106
    %p108 = scmp.ne.s32.totalorder %s100, %s102
    %p109 = scmp.eq.s32.totalorder %s24, 1
    %p110 = por %p108, %p109
    %p111 = scmp.ne.s32.totalorder %s102, %s103
    %p112 = scmp.eq.s32.totalorder %s24, 0
    %p113 = por %p111, %p112
    %p114 = scmp.ne.s32.totalorder %s102, %s103
    %p115 = scmp.eq.s32.totalorder %s25, 1
    %p116 = por %p114, %p115
    %p118 = scmp.ne.s32.totalorder %s103, %s117
    %p119 = scmp.eq.s32.totalorder %s25, 0
    %p120 = por %p118, %p119
    %s122 = sadd.s32 %s121, 1
    %p125 = scmp.eq.s32.totalorder %s19, 1
    %p126 = scmp.ne.s32.totalorder %s121, %s123
    %p127 = scmp.eq.s32.totalorder %s19, 0
    %p128 = por %p126, %p127
    %p129 = scmp.ne.s32.totalorder %s121, %s123
    %p130 = scmp.eq.s32.totalorder %s24, 1
    %p131 = por %p129, %p130
    %p132 = scmp.ne.s32.totalorder %s123, %s124
    %p133 = scmp.eq.s32.totalorder %s24, 0
    %p134 = por %p132, %p133
    %p135 = scmp.ne.s32.totalorder %s123, %s124
    %p136 = scmp.eq.s32.totalorder %s25, 1
    %p137 = por %p135, %p136
    %p139 = scmp.ne.s32.totalorder %s124, %s138
    %p140 = scmp.eq.s32.totalorder %s25, 0
    %p141 = por %p139, %p140
    %s143 = sadd.s32 %s142, 1
    %p146 = scmp.eq.s32.totalorder %s19, 1
    %p147 = scmp.ne.s32.totalorder %s142, %s144
    %p148 = scmp.eq.s32.totalorder %s19, 0
    %p149 = por %p147, %p148
    %p150 = scmp.ne.s32.totalorder %s142, %s144
    %p151 = scmp.eq.s32.totalorder %s24, 1
    %p152 = por %p150, %p151
    %p153 = scmp.ne.s32.totalorder %s144, %s145
    %p154 = scmp.eq.s32.totalorder %s24, 0
    %p155 = por %p153, %p154
    %p156 = scmp.ne.s32.totalorder %s144, %s145
    %p157 = scmp.eq.s32.totalorder %s25, 1
    %p158 = por %p156, %p157
    %p160 = scmp.ne.s32.totalorder %s145, %s159
    %p161 = scmp.eq.s32.totalorder %s25, 0
    %p162 = por %p160, %p161
    %s164 = sadd.s32 %s163, 1
    %p167 = scmp.eq.s32.totalorder %s19, 1
    %p168 = scmp.ne.s32.totalorder %s163, %s165
    %p169 = scmp.eq.s32.totalorder %s19, 0
    %p170 = por %p168, %p169
    %p171 = scmp.ne.s32.totalorder %s163, %s165
    %p172 = scmp.eq.s32.totalorder %s24, 1
    %p173 = por %p171, %p172
    %p174 = scmp.ne.s32.totalorder %s165, %s166
    %p175 = scmp.eq.s32.totalorder %s24, 0
    %p176 = por %p174, %p175
    %p177 = scmp.ne.s32.totalorder %s165, %s166
    %p178 = scmp.eq.s32.totalorder %s25, 1
    %p179 = por %p177, %p178
    %p181 = scmp.ne.s32.totalorder %s166, %s180
    %p182 = scmp.eq.s32.totalorder %s25, 0
    %p183 = por %p181, %p182
    %s185 = sadd.s32 %s184, 1
    %p188 = scmp.eq.s32.totalorder %s19, 1
    %p189 = scmp.ne.s32.totalorder %s184, %s186
    %p190 = scmp.eq.s32.totalorder %s19, 0
    %p191 = por %p189, %p190
    %p192 = scmp.ne.s32.totalorder %s184, %s186
    %p193 = scmp.eq.s32.totalorder %s24, 1
    %p194 = por %p192, %p193
    %p195 = scmp.ne.s32.totalorder %s186, %s187
    %p196 = scmp.eq.s32.totalorder %s24, 0
    %p197 = por %p195, %p196
    %p198 = scmp.ne.s32.totalorder %s186, %s187
    %p199 = scmp.eq.s32.totalorder %s25, 1
    %p200 = por %p198, %p199
    %p202 = scmp.ne.s32.totalorder %s187, %s201
    %p203 = scmp.eq.s32.totalorder %s25, 0
    %p204 = por %p202, %p203
    %s206 = sadd.s32 %s205, 1
    %p209 = scmp.eq.s32.totalorder %s19, 1
    %p210 = scmp.ne.s32.totalorder %s205, %s207
    %p211 = scmp.eq.s32.totalorder %s19, 0
    %p212 = por %p210, %p211
    %p213 = scmp.ne.s32.totalorder %s205, %s207
    %p214 = scmp.eq.s32.totalorder %s24, 1
    %p215 = por %p213, %p214
    %p216 = scmp.ne.s32.totalorder %s207, %s208
    %p217 = scmp.eq.s32.totalorder %s24, 0
    %p218 = por %p216, %p217
    %p219 = scmp.ne.s32.totalorder %s207, %s208
    %p220 = scmp.eq.s32.totalorder %s25, 1
    %p221 = por %p219, %p220
    %p223 = scmp.ne.s32.totalorder %s208, %s222
    %p224 = scmp.eq.s32.totalorder %s25, 0
    %p225 = por %p223, %p224
    %s227 = sadd.s32 %s226, 1
    %p230 = scmp.eq.s32.totalorder %s19, 1
    %p231 = scmp.ne.s32.totalorder %s226, %s228
    %p232 = scmp.eq.s32.totalorder %s19, 0
    %p233 = por %p231, %p232
    %p234 = scmp.ne.s32.totalorder %s226, %s228
    %p235 = scmp.eq.s32.totalorder %s24, 1
    %p236 = por %p234, %p235
    %p237 = scmp.ne.s32.totalorder %s228, %s229
    %p238 = scmp.eq.s32.totalorder %s24, 0
    %p239 = por %p237, %p238
    %p240 = scmp.ne.s32.totalorder %s228, %s229
    %p241 = scmp.eq.s32.totalorder %s25, 1
    %p242 = por %p240, %p241
    %p244 = scmp.ne.s32.totalorder %s229, %s243
    %p245 = scmp.eq.s32.totalorder %s25, 0
    %p246 = por %p244, %p245
    %s248 = sadd.s32 %s247, 1
    %p251 = scmp.eq.s32.totalorder %s19, 1
    %p252 = scmp.ne.s32.totalorder %s247, %s249
    %p253 = scmp.eq.s32.totalorder %s19, 0
    %p254 = por %p252, %p253
    %p255 = scmp.ne.s32.totalorder %s247, %s249
    %p256 = scmp.eq.s32.totalorder %s24, 1
    %p257 = por %p255, %p256
    %p258 = scmp.ne.s32.totalorder %s249, %s250
    %p259 = scmp.eq.s32.totalorder %s24, 0
    %p260 = por %p258, %p259
    %p261 = scmp.ne.s32.totalorder %s249, %s250
    %p262 = scmp.eq.s32.totalorder %s25, 1
    %p263 = por %p261, %p262
    %p265 = scmp.ne.s32.totalorder %s250, %s264
    %p266 = scmp.eq.s32.totalorder %s25, 0
    %p267 = por %p265, %p266
    %s269 = sadd.s32 %s268, 1
    %p272 = scmp.eq.s32.totalorder %s19, 1
    %p273 = scmp.ne.s32.totalorder %s268, %s270
    %p274 = scmp.eq.s32.totalorder %s19, 0
    %p275 = por %p273, %p274
    %p276 = scmp.ne.s32.totalorder %s268, %s270
    %p277 = scmp.eq.s32.totalorder %s24, 1
    %p278 = por %p276, %p277
    %p279 = scmp.ne.s32.totalorder %s270, %s271
    %p280 = scmp.eq.s32.totalorder %s24, 0
    %p281 = por %p279, %p280
    %p282 = scmp.ne.s32.totalorder %s270, %s271
    %p283 = scmp.eq.s32.totalorder %s25, 1
    %p284 = por %p282, %p283
    %p286 = scmp.ne.s32.totalorder %s271, %s285
    %p287 = scmp.eq.s32.totalorder %s25, 0
    %p288 = por %p286, %p287
    %s290 = sadd.s32 %s289, 1
    %p293 = scmp.eq.s32.totalorder %s19, 1
    %p294 = scmp.ne.s32.totalorder %s289, %s291
    %p295 = scmp.eq.s32.totalorder %s19, 0
    %p296 = por %p294, %p295
    %p297 = scmp.ne.s32.totalorder %s289, %s291
    %p298 = scmp.eq.s32.totalorder %s24, 1
    %p299 = por %p297, %p298
    %p300 = scmp.ne.s32.totalorder %s291, %s292
    %p301 = scmp.eq.s32.totalorder %s24, 0
    %p302 = por %p300, %p301
    %p303 = scmp.ne.s32.totalorder %s291, %s292
    %p304 = scmp.eq.s32.totalorder %s25, 1
    %p305 = por %p303, %p304
    %p307 = scmp.ne.s32.totalorder %s292, %s306
    %p308 = scmp.eq.s32.totalorder %s25, 0
    %p309 = por %p307, %p308
    %s310 = ssub.s32 %s19, %s26
    %p311 = scmp.eq.s32.totalorder %s310, 0
    %s313 = sadd.s32 %s312, 1
    %s314 = scalar_select %p311, %s312, %s313
    %p317 = pneg %p311
    %p318 = scmp.eq.s32.totalorder %s19, 1
    %p319 = por %p317, %p318
    %p320 = scmp.ne.s32.totalorder %s312, %s315
    %p321 = scmp.eq.s32.totalorder %s19, 0
    %p322 = por %p320, %p321
    %p323 = scmp.ne.s32.totalorder %s312, %s315
    %p324 = scmp.eq.s32.totalorder %s24, 1
    %p325 = por %p323, %p324
    %p326 = scmp.ne.s32.totalorder %s315, %s316
    %p327 = scmp.eq.s32.totalorder %s24, 0
    %p328 = por %p326, %p327
    %p329 = scmp.ne.s32.totalorder %s315, %s316
    %p330 = scmp.eq.s32.totalorder %s25, 1
    %p331 = por %p329, %p330
    %p333 = scmp.ne.s32.totalorder %s316, %s332
    %p334 = scmp.eq.s32.totalorder %s25, 0
    %p335 = por %p333, %p334
    %p336 = scmp.le.s32.totalorder 1, %s19
    %p337 = scmp.lt.s32.totalorder %s19, 3
    %p338 = pnand %p336, %p337
    %p339 = pneg %p338
    // Predicated region
    $region9: #{rrdb_forward.5} parent=5 // pred_check
      _
    $region10: #{rrdb_forward.5} parent=5 // pred_check_branch
      %341 = sbr.rel (%p338) target = $region12
    $region11: #{rrdb_forward.5} parent=5 // pred_region
      %s342 = ssub.s32 %s19, 1
      // Predicated region
      $region13: #{rrdb_forward.5} parent=11 // pred_check
        %p343 = pneg %p92
      $region14: #{rrdb_forward.5} parent=11 // pred_check_branch
        %345 = sbr.rel (%p343) target = $region16
      $region15: #{rrdb_forward.5} parent=11 // pred_region
        _
      $region16: #{rrdb_forward.5} parent=11 // pred_fallthru
        _
      // Predicated region
      $region17: #{rrdb_forward.5} parent=11 // pred_check
        %p346 = pneg %p113
      $region18: #{rrdb_forward.5} parent=11 // pred_check_branch
        %348 = sbr.rel (%p346) target = $region20
      $region19: #{rrdb_forward.5} parent=11 // pred_region
        _
      $region20: #{rrdb_forward.5} parent=11 // pred_fallthru
        _
      // Predicated region
      $region21: #{rrdb_forward.5} parent=11 // pred_check
        %p349 = pneg %p134
      $region22: #{rrdb_forward.5} parent=11 // pred_check_branch
        %351 = sbr.rel (%p349) target = $region24
      $region23: #{rrdb_forward.5} parent=11 // pred_region
        _
      $region24: #{rrdb_forward.5} parent=11 // pred_fallthru
        _
      // Predicated region
      $region25: #{rrdb_forward.5} parent=11 // pred_check
        %p352 = pneg %p155
      $region26: #{rrdb_forward.5} parent=11 // pred_check_branch
        %354 = sbr.rel (%p352) target = $region28
      $region27: #{rrdb_forward.5} parent=11 // pred_region
        _
      $region28: #{rrdb_forward.5} parent=11 // pred_fallthru
        _
      // Predicated region
      $region29: #{rrdb_forward.5} parent=11 // pred_check
        %p355 = pneg %p176
      $region30: #{rrdb_forward.5} parent=11 // pred_check_branch
        %357 = sbr.rel (%p355) target = $region32
      $region31: #{rrdb_forward.5} parent=11 // pred_region
        _
      $region32: #{rrdb_forward.5} parent=11 // pred_fallthru
        _
      // Predicated region
      $region33: #{rrdb_forward.5} parent=11 // pred_check
        %p358 = pneg %p197
      $region34: #{rrdb_forward.5} parent=11 // pred_check_branch
        %360 = sbr.rel (%p358) target = $region36
      $region35: #{rrdb_forward.5} parent=11 // pred_region
        _
      $region36: #{rrdb_forward.5} parent=11 // pred_fallthru
        _
      // Predicated region
      $region37: #{rrdb_forward.5} parent=11 // pred_check
        %p361 = pneg %p218
      $region38: #{rrdb_forward.5} parent=11 // pred_check_branch
        %363 = sbr.rel (%p361) target = $region40
      $region39: #{rrdb_forward.5} parent=11 // pred_region
        _
      $region40: #{rrdb_forward.5} parent=11 // pred_fallthru
        _
      // Predicated region
      $region41: #{rrdb_forward.5} parent=11 // pred_check
        %p364 = pneg %p239
      $region42: #{rrdb_forward.5} parent=11 // pred_check_branch
        %366 = sbr.rel (%p364) target = $region44
      $region43: #{rrdb_forward.5} parent=11 // pred_region
        _
      $region44: #{rrdb_forward.5} parent=11 // pred_fallthru
        _
      // Predicated region
      $region45: #{rrdb_forward.5} parent=11 // pred_check
        %p367 = pneg %p260
      $region46: #{rrdb_forward.5} parent=11 // pred_check_branch
        %369 = sbr.rel (%p367) target = $region48
      $region47: #{rrdb_forward.5} parent=11 // pred_region
        _
      $region48: #{rrdb_forward.5} parent=11 // pred_fallthru
        _
      // Predicated region
      $region49: #{rrdb_forward.5} parent=11 // pred_check
        %p370 = pneg %p281
      $region50: #{rrdb_forward.5} parent=11 // pred_check_branch
        %372 = sbr.rel (%p370) target = $region52
      $region51: #{rrdb_forward.5} parent=11 // pred_region
        _
      $region52: #{rrdb_forward.5} parent=11 // pred_fallthru
        _
      // Predicated region
      $region53: #{rrdb_forward.5} parent=11 // pred_check
        %p373 = pneg %p302
      $region54: #{rrdb_forward.5} parent=11 // pred_check_branch
        %375 = sbr.rel (%p373) target = $region56
      $region55: #{rrdb_forward.5} parent=11 // pred_region
        _
      $region56: #{rrdb_forward.5} parent=11 // pred_fallthru
        _
    $region12: #{rrdb_forward.5} parent=5 // pred_fallthru
      _
    %p376 = scmp.lt.s32.totalorder %s19, 2
    // Predicated region
    $region57: #{rrdb_forward.5} parent=5 // pred_check
      %p377 = pneg %p376
    $region58: #{rrdb_forward.5} parent=5 // pred_check_branch
      %379 = sbr.rel (%p377) target = $region60
    $region59: #{rrdb_forward.5} parent=5 // pred_region
      // Predicated region
      $region61: #{rrdb_forward.5} parent=59 // pred_check
        %p380 = pneg %p39
      $region62: #{rrdb_forward.5} parent=59 // pred_check_branch
        %382 = sbr.rel (%p380) target = $region64
      $region63: #{rrdb_forward.5} parent=59 // pred_region
        %p383 = scmp.lt.s32.totalorder %s19, 1
        %s384 = scalar_select %p383, %s19, 1
        %s385 = smul.addr %s384, 2
        %s386 = smul.addr %s385, 4
        %s387 = scalar_lea.vmem %s0, %s386
      $region64: #{rrdb_forward.5} parent=59 // pred_fallthru
        _
      // Predicated region
      $region65: #{rrdb_forward.5} parent=59 // pred_check
        %p388 = pneg %p65
      $region66: #{rrdb_forward.5} parent=59 // pred_check_branch
        %390 = sbr.rel (%p388) target = $region68
      $region67: #{rrdb_forward.5} parent=59 // pred_region
        %p391 = scmp.lt.s32.totalorder %s19, 1
        %s392 = scalar_select %p391, %s19, 1
        %s393 = smul.addr %s392, 2
        %s394 = smul.addr %s393, 4
        %s395 = scalar_lea.vmem %s1, %s394
      $region68: #{rrdb_forward.5} parent=59 // pred_fallthru
        _
    $region60: #{rrdb_forward.5} parent=5 // pred_fallthru
      _
    %p396 = scmp.le.s32.totalorder 1, %s19
    %p397 = scmp.lt.s32.totalorder %s19, 3
    %p398 = pnand %p396, %p397
    %p399 = pneg %p398
    // Predicated region
    $region69: #{rrdb_forward.5} parent=5 // pred_check
      _
    $region70: #{rrdb_forward.5} parent=5 // pred_check_branch
      %401 = sbr.rel (%p398) target = $region72
    $region71: #{rrdb_forward.5} parent=5 // pred_region
      %s402 = ssub.s32 %s19, 1
      %p403 = scmp.lt.s32.totalorder %s24, 1
      %s404 = scalar_select %p403, %s24, 1
      %s405 = smul.addr %s404, 2
      %s406 = smul.addr %s405, 4
      %s407 = scalar_lea.vmem %s0, %s406
      %p408 = pneg %p45
      %p409 = pneg %p42
      %p410 = scmp.lt.s32.totalorder %s24, 1
      %s411 = scalar_select %p410, %s24, 1
      %s412 = smul.addr %s411, 2
      %s413 = smul.addr %s412, 4
      %s414 = scalar_lea.vmem %s1, %s413
      %p415 = pneg %p71
      %p416 = pneg %p68
      %p417 = pneg %p92
      %p418 = pneg %p89
      %p419 = pneg %p113
      %p420 = pneg %p110
      %p421 = pneg %p134
      %p422 = pneg %p131
      %p423 = pneg %p155
      %p424 = pneg %p152
      %p425 = pneg %p176
      %p426 = pneg %p173
      %p427 = pneg %p197
      %p428 = pneg %p194
      %p429 = pneg %p218
      %p430 = pneg %p215
      %p431 = pneg %p239
      %p432 = pneg %p236
      %p433 = pneg %p260
      %p434 = pneg %p257
      %p435 = pneg %p281
      %p436 = pneg %p278
      %p437 = pneg %p302
      %p438 = pneg %p299
      %p439 = pneg %p328
      %p440 = pneg %p325
      %p441 = scmp.lt.s32.totalorder %s24, 1
      %s442 = scalar_select %p441, %s24, 1
      %s443 = smul.addr %s442, 2
      %s444 = smul.addr %s443, 4
      %s445 = scalar_lea.vmem %s13, %s444
      %p446 = scmp.lt.s32.totalorder %s24, 1
      %s447 = scalar_select %p446, %s24, 1
      %s448 = smul.addr %s447, 2
      %s449 = smul.addr %s448, 4
      %s450 = scalar_lea.vmem %s0, %s449
      %p451 = scmp.lt.s32.totalorder %s24, 1
      %s452 = scalar_select %p451, %s24, 1
      %s453 = smul.addr %s452, 2
      %s454 = smul.addr %s453, 4
      %s455 = scalar_lea.vmem %s1, %s454
      %p456 = scmp.lt.s32.totalorder %s24, 1
      %s457 = scalar_select %p456, %s24, 1
      %s458 = smul.addr %s457, 2
      %s459 = smul.addr %s458, 4
      %s460 = scalar_lea.vmem %s13, %s459
      %v462 = vld [vmem:[%s450] sm:$0xff]
      %v464 = vcombine.high %v462, %v462
      %466 = vst [vmem:[#allocation2] sm:$0xf] %v462
      %467 = vst [vmem:[#allocation2 + $0x8] sm:$0xf] %v464
      %v468 = vld [vmem:[#allocation2] sm:$0xf]
      %v469 = vld [vmem:[#allocation2 + $0x8] sm:$0xf]
      %v470 = vpack.c.bf16 %v468, %v468
      %v471 = vpack.c.bf16 %v469, %v469
      %v472 = vld [vmem:[%s3] sm:$0x3]
      %vm473 = vcmask 31744
      %v475 = vsel %vm473, %v472, 0
      %vm477 = vcmask 1041408
      %v479 = vsel %vm477, %v470, 0
      %v482 = vsel %vm477, %v471, 0
      %484 = vmatprep.subr.bf16.mxu0 %v482
      %485 = vmatpush1.bf16.msra.mxu0 %v479
      %486 = vmatprep.subr.bf16.mxu0 0
      %487 = vmatpush1.bf16.msra.mxu0 0
      %488 = vmatprep.subr.bf16.mxu0 0
      %489 = vmatpush1.bf16.msra.mxu0 0
      %490 = vmatprep.subr.bf16.mxu0 0
      %491 = vmatpush1.bf16.msra.mxu0 0
      %492 = vmatprep.subr.bf16.mxu0 0
      %493 = vmatpush1.bf16.msra.mxu0 0
      %494 = vmatprep.subr.bf16.mxu0 0
      %495 = vmatpush1.bf16.msra.mxu0 0
      %496 = vmatprep.subr.bf16.mxu0 0
      %497 = vmatpush1.bf16.msra.mxu0 0
      %498 = vmatprep.subr.bf16.mxu0 0
      %499 = vmatpush1.bf16.msra.mxu0 0
      %500 = vmatprep.subr.bf16.mxu0 0
      %501 = vmatpush1.bf16.msra.mxu0 0
      %502 = vmatprep.subr.bf16.mxu0 0
      %503 = vmatpush1.bf16.msra.mxu0 0
      %504 = vmatprep.subr.bf16.mxu0 0
      %505 = vmatpush1.bf16.msra.mxu0 0
      %506 = vmatprep.subr.bf16.mxu0 0
      %507 = vmatpush1.bf16.msra.mxu0 0
      %508 = vmatprep.subr.bf16.mxu0 0
      %509 = vmatpush1.bf16.msra.mxu0 0
      %510 = vmatprep.subr.bf16.mxu0 0
      %511 = vmatpush1.bf16.msra.mxu0 0
      %512 = vmatprep.subr.bf16.mxu0 0
      %513 = vmatpush1.bf16.msra.mxu0 0
      %514 = vmatprep.subr.bf16.mxu0 0
      %515 = vmatpush1.bf16.msra.mxu0 0
      %516 = vmatprep.mubr.bf16.mxu0 0
      %517 = vmatmul.mubr.bf16.gmra.mrb[0].mxu0 %v475
      %v518 = vpop.f32.mrb[0].mxu0
      %v519 = vadd.f32 0.0, %v518
      %v520 = vpop.f32.mrb[0].mxu0
      %v521 = vadd.f32 0.0, %v520
      %v522 = vpop.f32.mrb[0].mxu0
      %v523 = vpop.f32.mrb[0].mxu0
      %524 = vdwg.mxu0
      %526 = vrot.lane.b32.xlu0 %v521, 17
      %v527 = vpop.permute.xlu0 %526
      %530 = vrot.lane.b32.xlu0 %v519, 17
      %v531 = vpop.permute.xlu0 %530
      %vm532 = vcmask 138240
      %v533 = vsel %vm532, %v531, %v527
      %v536 = vsel %vm532, %v527, %v531
      %v537 = vld [vmem:[%s2] sm:$0x3]
      %v539 = vlaneseq
      %v540 = vshrl.u32 %v539, 7
      %v541 = vsub.s32 0, %v540
      %v542 = vrot.slane %v537, %v541
      %v543 = vlaneseq
      %v544 = vshrl.u32 %v543, 7
      %v545 = vsub.s32 1, %v544
      %v546 = vrot.slane %v537, %v545
      %v549 = vmul.f32 %v536, %v542
      %v550 = vmul.f32 %v533, %v546
      %v551 = vadd.f32 %v549, 0.0
      %v552 = vadd.f32 %v550, 0.0
      %s553 = scalar_lea.vmem %s3, 2
      %v554 = vld [vmem:[%s553] sm:$0x3]
      %v556 = vsel %vm473, %v554, 0
      %558 = vmatprep.subr.bf16.mxu0 %v482
      %559 = vmatpush1.bf16.msra.mxu0 %v479
      %560 = vmatprep.subr.bf16.mxu0 0
      %561 = vmatpush1.bf16.msra.mxu0 0
      %562 = vmatprep.subr.bf16.mxu0 0
      %563 = vmatpush1.bf16.msra.mxu0 0
      %564 = vmatprep.subr.bf16.mxu0 0
      %565 = vmatpush1.bf16.msra.mxu0 0
      %566 = vmatprep.subr.bf16.mxu0 0
      %567 = vmatpush1.bf16.msra.mxu0 0
      %568 = vmatprep.subr.bf16.mxu0 0
      %569 = vmatpush1.bf16.msra.mxu0 0
      %570 = vmatprep.subr.bf16.mxu0 0
      %571 = vmatpush1.bf16.msra.mxu0 0
      %572 = vmatprep.subr.bf16.mxu0 0
      %573 = vmatpush1.bf16.msra.mxu0 0
      %574 = vmatprep.subr.bf16.mxu0 0
      %575 = vmatpush1.bf16.msra.mxu0 0
      %576 = vmatprep.subr.bf16.mxu0 0
      %577 = vmatpush1.bf16.msra.mxu0 0
      %578 = vmatprep.subr.bf16.mxu0 0
      %579 = vmatpush1.bf16.msra.mxu0 0
      %580 = vmatprep.subr.bf16.mxu0 0
      %581 = vmatpush1.bf16.msra.mxu0 0
      %582 = vmatprep.subr.bf16.mxu0 0
      %583 = vmatpush1.bf16.msra.mxu0 0
      %584 = vmatprep.subr.bf16.mxu0 0
      %585 = vmatpush1.bf16.msra.mxu0 0
      %586 = vmatprep.subr.bf16.mxu0 0
      %587 = vmatpush1.bf16.msra.mxu0 0
      %588 = vmatprep.subr.bf16.mxu0 0
      %589 = vmatpush1.bf16.msra.mxu0 0
      %590 = vmatprep.mubr.bf16.mxu0 0
      %591 = vmatmul.mubr.bf16.gmra.mrb[0].mxu0 %v556
      %v592 = vpop.f32.mrb[0].mxu0
      %v593 = vadd.f32 0.0, %v592
      %v594 = vpop.f32.mrb[0].mxu0
      %v595 = vadd.f32 0.0, %v594
      %v596 = vpop.f32.mrb[0].mxu0
      %v597 = vpop.f32.mrb[0].mxu0
      %598 = vdwg.mxu0
      %600 = vrot.lane.b32.xlu0 %v595, 16
      %v601 = vpop.permute.xlu0 %600
      %604 = vrot.lane.b32.xlu0 %v593, 16
      %v605 = vpop.permute.xlu0 %604
      %vm606 = vcmask 130048
      %v607 = vsel %vm606, %v605, %v601
      %v610 = vsel %vm606, %v601, %v605
      %s611 = scalar_lea.vmem %s2, 2
      %v612 = vld [vmem:[%s611] sm:$0x3]
      %v614 = vlaneseq
      %v615 = vshrl.u32 %v614, 7
      %v616 = vsub.s32 0, %v615
      %v617 = vrot.slane %v612, %v616
      %v618 = vlaneseq
      %v619 = vshrl.u32 %v618, 7
      %v620 = vsub.s32 1, %v619
      %v621 = vrot.slane %v612, %v620
      %v624 = vmul.f32 %v610, %v617
      %v625 = vmul.f32 %v607, %v621
      %v626 = vadd.f32 %v551, %v624
      %v627 = vadd.f32 %v552, %v625
      %s628 = scalar_lea.vmem %s3, 4
      %v629 = vld [vmem:[%s628] sm:$0x3]
      %v631 = vsel %vm473, %v629, 0
      %633 = vmatprep.subr.bf16.mxu0 %v482
      %634 = vmatpush1.bf16.msra.mxu0 %v479
      %635 = vmatprep.subr.bf16.mxu0 0
      %636 = vmatpush1.bf16.msra.mxu0 0
      %637 = vmatprep.subr.bf16.mxu0 0
      %638 = vmatpush1.bf16.msra.mxu0 0
      %639 = vmatprep.subr.bf16.mxu0 0
      %640 = vmatpush1.bf16.msra.mxu0 0
      %641 = vmatprep.subr.bf16.mxu0 0
      %642 = vmatpush1.bf16.msra.mxu0 0
      %643 = vmatprep.subr.bf16.mxu0 0
      %644 = vmatpush1.bf16.msra.mxu0 0
      %645 = vmatprep.subr.bf16.mxu0 0
      %646 = vmatpush1.bf16.msra.mxu0 0
      %647 = vmatprep.subr.bf16.mxu0 0
      %648 = vmatpush1.bf16.msra.mxu0 0
      %649 = vmatprep.subr.bf16.mxu0 0
      %650 = vmatpush1.bf16.msra.mxu0 0
      %651 = vmatprep.subr.bf16.mxu0 0
      %652 = vmatpush1.bf16.msra.mxu0 0
      %653 = vmatprep.subr.bf16.mxu0 0
      %654 = vmatpush1.bf16.msra.mxu0 0
      %655 = vmatprep.subr.bf16.mxu0 0
      %656 = vmatpush1.bf16.msra.mxu0 0
      %657 = vmatprep.subr.bf16.mxu0 0
      %658 = vmatpush1.bf16.msra.mxu0 0
      %659 = vmatprep.subr.bf16.mxu0 0
      %660 = vmatpush1.bf16.msra.mxu0 0
      %661 = vmatprep.subr.bf16.mxu0 0
      %662 = vmatpush1.bf16.msra.mxu0 0
      %663 = vmatprep.subr.bf16.mxu0 0
      %664 = vmatpush1.bf16.msra.mxu0 0
      %665 = vmatprep.mubr.bf16.mxu0 0
      %666 = vmatmul.mubr.bf16.gmra.mrb[0].mxu0 %v631
      %v667 = vpop.f32.mrb[0].mxu0
      %v668 = vadd.f32 0.0, %v667
      %v669 = vpop.f32.mrb[0].mxu0
      %v670 = vadd.f32 0.0, %v669
      %v671 = vpop.f32.mrb[0].mxu0
      %v672 = vpop.f32.mrb[0].mxu0
      %673 = vdwg.mxu0
      %675 = vrot.lane.b32.xlu0 %v670, 15
      %v676 = vpop.permute.xlu0 %675
      %679 = vrot.lane.b32.xlu0 %v668, 15
      %v680 = vpop.permute.xlu0 %679
      %vm681 = vcmask 121856
      %v682 = vsel %vm681, %v680, %v676
      %v685 = vsel %vm681, %v676, %v680
      %s686 = scalar_lea.vmem %s2, 4
      %v687 = vld [vmem:[%s686] sm:$0x3]
      %v689 = vlaneseq
      %v690 = vshrl.u32 %v689, 7
      %v691 = vsub.s32 0, %v690
      %v692 = vrot.slane %v687, %v691
      %v693 = vlaneseq
      %v694 = vshrl.u32 %v693, 7
      %v695 = vsub.s32 1, %v694
      %v696 = vrot.slane %v687, %v695
      %v699 = vmul.f32 %v685, %v692
      %v700 = vmul.f32 %v682, %v696
      %v701 = vadd.f32 %v626, %v699
      %v702 = vadd.f32 %v627, %v700
      %s703 = scalar_lea.vmem %s3, 6
      %v704 = vld [vmem:[%s703] sm:$0x3]
      %v706 = vsel %vm473, %v704, 0
      %708 = vmatprep.subr.bf16.mxu0 %v482
      %709 = vmatpush1.bf16.msra.mxu0 %v479
      %710 = vmatprep.subr.bf16.mxu0 0
      %711 = vmatpush1.bf16.msra.mxu0 0
      %712 = vmatprep.subr.bf16.mxu0 0
      %713 = vmatpush1.bf16.msra.mxu0 0
      %714 = vmatprep.subr.bf16.mxu0 0
      %715 = vmatpush1.bf16.msra.mxu0 0
      %716 = vmatprep.subr.bf16.mxu0 0
      %717 = vmatpush1.bf16.msra.mxu0 0
      %718 = vmatprep.subr.bf16.mxu0 0
      %719 = vmatpush1.bf16.msra.mxu0 0
      %720 = vmatprep.subr.bf16.mxu0 0
      %721 = vmatpush1.bf16.msra.mxu0 0
      %722 = vmatprep.subr.bf16.mxu0 0
      %723 = vmatpush1.bf16.msra.mxu0 0
      %724 = vmatprep.subr.bf16.mxu0 0
      %725 = vmatpush1.bf16.msra.mxu0 0
      %726 = vmatprep.subr.bf16.mxu0 0
      %727 = vmatpush1.bf16.msra.mxu0 0
      %728 = vmatprep.subr.bf16.mxu0 0
      %729 = vmatpush1.bf16.msra.mxu0 0
      %730 = vmatprep.subr.bf16.mxu0 0
      %731 = vmatpush1.bf16.msra.mxu0 0
      %732 = vmatprep.subr.bf16.mxu0 0
      %733 = vmatpush1.bf16.msra.mxu0 0
      %734 = vmatprep.subr.bf16.mxu0 0
      %735 = vmatpush1.bf16.msra.mxu0 0
      %736 = vmatprep.subr.bf16.mxu0 0
      %737 = vmatpush1.bf16.msra.mxu0 0
      %738 = vmatprep.subr.bf16.mxu0 0
      %739 = vmatpush1.bf16.msra.mxu0 0
      %740 = vmatprep.mubr.bf16.mxu0 0
      %741 = vmatmul.mubr.bf16.gmra.mrb[0].mxu0 %v706
      %v742 = vpop.f32.mrb[0].mxu0
      %v743 = vadd.f32 0.0, %v742
      %v744 = vpop.f32.mrb[0].mxu0
      %v745 = vadd.f32 0.0, %v744
      %v746 = vpop.f32.mrb[0].mxu0
      %v747 = vpop.f32.mrb[0].mxu0
      %748 = vdwg.mxu0
      %750 = vrot.lane.b32.xlu0 %v745, 1
      %v751 = vpop.permute.xlu0 %750
      %754 = vrot.lane.b32.xlu0 %v743, 1
      %v755 = vpop.permute.xlu0 %754
      %vm756 = vcmask 7168
      %v757 = vsel %vm756, %v755, %v751
      %v760 = vsel %vm756, %v751, %v755
      %s761 = scalar_lea.vmem %s2, 6
      %v762 = vld [vmem:[%s761] sm:$0x3]
      %v764 = vlaneseq
      %v765 = vshrl.u32 %v764, 7
      %v766 = vsub.s32 0, %v765
      %v767 = vrot.slane %v762, %v766
      %v768 = vlaneseq
      %v769 = vshrl.u32 %v768, 7
      %v770 = vsub.s32 1, %v769
      %v771 = vrot.slane %v762, %v770
      %v774 = vmul.f32 %v760, %v767
      %v775 = vmul.f32 %v757, %v771
      %v776 = vadd.f32 %v701, %v774
      %v777 = vadd.f32 %v702, %v775
      %s778 = scalar_lea.vmem %s3, 8
      %v779 = vld [vmem:[%s778] sm:$0x3]
      %v781 = vsel %vm473, %v779, 0
      %783 = vmatprep.subr.bf16.mxu0 %v482
      %784 = vmatpush1.bf16.msra.mxu0 %v479
      %785 = vmatprep.subr.bf16.mxu0 0
      %786 = vmatpush1.bf16.msra.mxu0 0
      %787 = vmatprep.subr.bf16.mxu0 0
      %788 = vmatpush1.bf16.msra.mxu0 0
      %789 = vmatprep.subr.bf16.mxu0 0
      %790 = vmatpush1.bf16.msra.mxu0 0
      %791 = vmatprep.subr.bf16.mxu0 0
      %792 = vmatpush1.bf16.msra.mxu0 0
      %793 = vmatprep.subr.bf16.mxu0 0
      %794 = vmatpush1.bf16.msra.mxu0 0
      %795 = vmatprep.subr.bf16.mxu0 0
      %796 = vmatpush1.bf16.msra.mxu0 0
      %797 = vmatprep.subr.bf16.mxu0 0
      %798 = vmatpush1.bf16.msra.mxu0 0
      %799 = vmatprep.subr.bf16.mxu0 0
      %800 = vmatpush1.bf16.msra.mxu0 0
      %801 = vmatprep.subr.bf16.mxu0 0
      %802 = vmatpush1.bf16.msra.mxu0 0
      %803 = vmatprep.subr.bf16.mxu0 0
      %804 = vmatpush1.bf16.msra.mxu0 0
      %805 = vmatprep.subr.bf16.mxu0 0
      %806 = vmatpush1.bf16.msra.mxu0 0
      %807 = vmatprep.subr.bf16.mxu0 0
      %808 = vmatpush1.bf16.msra.mxu0 0
      %809 = vmatprep.subr.bf16.mxu0 0
      %810 = vmatpush1.bf16.msra.mxu0 0
      %811 = vmatprep.subr.bf16.mxu0 0
      %812 = vmatpush1.bf16.msra.mxu0 0
      %813 = vmatprep.subr.bf16.mxu0 0
      %814 = vmatpush1.bf16.msra.mxu0 0
      %815 = vmatprep.mubr.bf16.mxu0 0
      %816 = vmatmul.mubr.bf16.gmra.mrb[0].mxu0 %v781
      %v817 = vpop.f32.mrb[0].mxu0
      %v818 = vadd.f32 0.0, %v817
      %v819 = vpop.f32.mrb[0].mxu0
      %v820 = vadd.f32 0.0, %v819
      %v821 = vpop.f32.mrb[0].mxu0
      %v822 = vpop.f32.mrb[0].mxu0
      %823 = vdwg.mxu0
      %v824 = vadd.f32 %v776, %v818
      %v825 = vadd.f32 %v777, %v820
      %s826 = scalar_lea.vmem %s3, 10
      %v827 = vld [vmem:[%s826] sm:$0x3]
      %v829 = vsel %vm473, %v827, 0
      %831 = vmatprep.subr.bf16.mxu0 %v482
      %832 = vmatpush1.bf16.msra.mxu0 %v479
      %833 = vmatprep.subr.bf16.mxu0 0
      %834 = vmatpush1.bf16.msra.mxu0 0
      %835 = vmatprep.subr.bf16.mxu0 0
      %836 = vmatpush1.bf16.msra.mxu0 0
      %837 = vmatprep.subr.bf16.mxu0 0
      %838 = vmatpush1.bf16.msra.mxu0 0
      %839 = vmatprep.subr.bf16.mxu0 0
      %840 = vmatpush1.bf16.msra.mxu0 0
      %841 = vmatprep.subr.bf16.mxu0 0
      %842 = vmatpush1.bf16.msra.mxu0 0
      %843 = vmatprep.subr.bf16.mxu0 0
      %844 = vmatpush1.bf16.msra.mxu0 0
      %845 = vmatprep.subr.bf16.mxu0 0
      %846 = vmatpush1.bf16.msra.mxu0 0
      %847 = vmatprep.subr.bf16.mxu0 0
      %848 = vmatpush1.bf16.msra.mxu0 0
      %849 = vmatprep.subr.bf16.mxu0 0
      %850 = vmatpush1.bf16.msra.mxu0 0
      %851 = vmatprep.subr.bf16.mxu0 0
      %852 = vmatpush1.bf16.msra.mxu0 0
      %853 = vmatprep.subr.bf16.mxu0 0
      %854 = vmatpush1.bf16.msra.mxu0 0
      %855 = vmatprep.subr.bf16.mxu0 0
      %856 = vmatpush1.bf16.msra.mxu0 0
      %857 = vmatprep.subr.bf16.mxu0 0
      %858 = vmatpush1.bf16.msra.mxu0 0
      %859 = vmatprep.subr.bf16.mxu0 0
      %860 = vmatpush1.bf16.msra.mxu0 0
      %861 = vmatprep.subr.bf16.mxu0 0
      %862 = vmatpush1.bf16.msra.mxu0 0
      %863 = vmatprep.mubr.bf16.mxu0 0
      %864 = vmatmul.mubr.bf16.gmra.mrb[0].mxu0 %v829
      %v865 = vpop.f32.mrb[0].mxu0
      %v866 = vadd.f32 0.0, %v865
      %v867 = vpop.f32.mrb[0].mxu0
      %v868 = vadd.f32 0.0, %v867
      %v869 = vpop.f32.mrb[0].mxu0
      %v870 = vpop.f32.mrb[0].mxu0
      %871 = vdwg.mxu0
      %874 = vrot.lane.b32.xlu0 %v866, 127
      %v875 = vpop.permute.xlu0 %874
      %876 = vrot.lane.b32.xlu0 %v868, 127
      %v877 = vpop.permute.xlu0 %876
      %vm878 = vcmask 1039360
      %v879 = vsel %vm878, %v875, %v877
      %v883 = vsel %vm878, %v877, %v875
      %s884 = scalar_lea.vmem %s2, 10
      %v885 = vld [vmem:[%s884] sm:$0x3]
      %v887 = vlaneseq
      %v888 = vshrl.u32 %v887, 7
      %v889 = vsub.s32 0, %v888
      %v890 = vrot.slane %v885, %v889
      %v891 = vlaneseq
      %v892 = vshrl.u32 %v891, 7
      %v893 = vsub.s32 1, %v892
      %v894 = vrot.slane %v885, %v893
      %v897 = vmul.f32 %v879, %v890
      %v898 = vmul.f32 %v883, %v894
      %v899 = vadd.f32 %v824, %v897
      %v900 = vadd.f32 %v825, %v898
      %s901 = scalar_lea.vmem %s3, 12
      %v902 = vld [vmem:[%s901] sm:$0x3]
      %v904 = vsel %vm473, %v902, 0
      %906 = vmatprep.subr.bf16.mxu0 %v482
      %907 = vmatpush1.bf16.msra.mxu0 %v479
      %908 = vmatprep.subr.bf16.mxu0 0
      %909 = vmatpush1.bf16.msra.mxu0 0
      %910 = vmatprep.subr.bf16.mxu0 0
      %911 = vmatpush1.bf16.msra.mxu0 0
      %912 = vmatprep.subr.bf16.mxu0 0
      %913 = vmatpush1.bf16.msra.mxu0 0
      %914 = vmatprep.subr.bf16.mxu0 0
      %915 = vmatpush1.bf16.msra.mxu0 0
      %916 = vmatprep.subr.bf16.mxu0 0
      %917 = vmatpush1.bf16.msra.mxu0 0
      %918 = vmatprep.subr.bf16.mxu0 0
      %919 = vmatpush1.bf16.msra.mxu0 0
      %920 = vmatprep.subr.bf16.mxu0 0
      %921 = vmatpush1.bf16.msra.mxu0 0
      %922 = vmatprep.subr.bf16.mxu0 0
      %923 = vmatpush1.bf16.msra.mxu0 0
      %924 = vmatprep.subr.bf16.mxu0 0
      %925 = vmatpush1.bf16.msra.mxu0 0
      %926 = vmatprep.subr.bf16.mxu0 0
      %927 = vmatpush1.bf16.msra.mxu0 0
      %928 = vmatprep.subr.bf16.mxu0 0
      %929 = vmatpush1.bf16.msra.mxu0 0
      %930 = vmatprep.subr.bf16.mxu0 0
      %931 = vmatpush1.bf16.msra.mxu0 0
      %932 = vmatprep.subr.bf16.mxu0 0
      %933 = vmatpush1.bf16.msra.mxu0 0
      %934 = vmatprep.subr.bf16.mxu0 0
      %935 = vmatpush1.bf16.msra.mxu0 0
      %936 = vmatprep.subr.bf16.mxu0 0
      %937 = vmatpush1.bf16.msra.mxu0 0
      %938 = vmatprep.mubr.bf16.mxu0 0
      %939 = vmatmul.mubr.bf16.gmra.mrb[0].mxu0 %v904
      %v940 = vpop.f32.mrb[0].mxu0
      %v941 = vadd.f32 0.0, %v940
      %v942 = vpop.f32.mrb[0].mxu0
      %v943 = vadd.f32 0.0, %v942
      %v944 = vpop.f32.mrb[0].mxu0
      %v945 = vpop.f32.mrb[0].mxu0
      %946 = vdwg.mxu0
      %949 = vrot.lane.b32.xlu0 %v941, 113
      %v950 = vpop.permute.xlu0 %949
      %951 = vrot.lane.b32.xlu0 %v943, 113
      %v952 = vpop.permute.xlu0 %951
      %vm953 = vcmask 924672
      %v954 = vsel %vm953, %v950, %v952
      %v958 = vsel %vm953, %v952, %v950
      %s959 = scalar_lea.vmem %s2, 12
      %v960 = vld [vmem:[%s959] sm:$0x3]
      %v962 = vlaneseq
      %v963 = vshrl.u32 %v962, 7
      %v964 = vsub.s32 0, %v963
      %v965 = vrot.slane %v960, %v964
      %v966 = vlaneseq
      %v967 = vshrl.u32 %v966, 7
      %v968 = vsub.s32 1, %v967
      %v969 = vrot.slane %v960, %v968
      %v972 = vmul.f32 %v954, %v965
      %v973 = vmul.f32 %v958, %v969
      %v974 = vadd.f32 %v899, %v972
      %v975 = vadd.f32 %v900, %v973
      %s976 = scalar_lea.vmem %s3, 14
      %v977 = vld [vmem:[%s976] sm:$0x3]
      %v979 = vsel %vm473, %v977, 0
      %981 = vmatprep.subr.bf16.mxu0 %v482
      %982 = vmatpush1.bf16.msra.mxu0 %v479
      %983 = vmatprep.subr.bf16.mxu0 0
      %984 = vmatpush1.bf16.msra.mxu0 0
      %985 = vmatprep.subr.bf16.mxu0 0
      %986 = vmatpush1.bf16.msra.mxu0 0
      %987 = vmatprep.subr.bf16.mxu0 0
      %988 = vmatpush1.bf16.msra.mxu0 0
      %989 = vmatprep.subr.bf16.mxu0 0
      %990 = vmatpush1.bf16.msra.mxu0 0
      %991 = vmatprep.subr.bf16.mxu0 0
      %992 = vmatpush1.bf16.msra.mxu0 0
      %993 = vmatprep.subr.bf16.mxu0 0
      %994 = vmatpush1.bf16.msra.mxu0 0
      %995 = vmatprep.subr.bf16.mxu0 0
      %996 = vmatpush1.bf16.msra.mxu0 0
      %997 = vmatprep.subr.bf16.mxu0 0
      %998 = vmatpush1.bf16.msra.mxu0 0
      %999 = vmatprep.subr.bf16.mxu0 0
      %1000 = vmatpush1.bf16.msra.mxu0 0
      %1001 = vmatprep.subr.bf16.mxu0 0
      %1002 = vmatpush1.bf16.msra.mxu0 0
      %1003 = vmatprep.subr.bf16.mxu0 0
      %1004 = vmatpush1.bf16.msra.mxu0 0
      %1005 = vmatprep.subr.bf16.mxu0 0
      %1006 = vmatpush1.bf16.msra.mxu0 0
      %1007 = vmatprep.subr.bf16.mxu0 0
      %1008 = vmatpush1.bf16.msra.mxu0 0
      %1009 = vmatprep.subr.bf16.mxu0 0
      %1010 = vmatpush1.bf16.msra.mxu0 0
      %1011 = vmatprep.subr.bf16.mxu0 0
      %1012 = vmatpush1.bf16.msra.mxu0 0
      %1013 = vmatprep.mubr.bf16.mxu0 0
      %1014 = vmatmul.mubr.bf16.gmra.mrb[0].mxu0 %v979
      %v1015 = vpop.f32.mrb[0].mxu0
      %v1016 = vadd.f32 0.0, %v1015
      %v1017 = vpop.f32.mrb[0].mxu0
      %v1018 = vadd.f32 0.0, %v1017
      %v1019 = vpop.f32.mrb[0].mxu0
      %v1020 = vpop.f32.mrb[0].mxu0
      %1021 = vdwg.mxu0
      %1024 = vrot.lane.b32.xlu0 %v1016, 112
      %v1025 = vpop.permute.xlu0 %1024
      %1026 = vrot.lane.b32.xlu0 %v1018, 112
      %v1027 = vpop.permute.xlu0 %1026
      %vm1028 = vcmask 916480
      %v1029 = vsel %vm1028, %v1025, %v1027
      %v1033 = vsel %vm1028, %v1027, %v1025
      %s1034 = scalar_lea.vmem %s2, 14
      %v1035 = vld [vmem:[%s1034] sm:$0x3]
      %v1037 = vlaneseq
      %v1038 = vshrl.u32 %v1037, 7
      %v1039 = vsub.s32 0, %v1038
      %v1040 = vrot.slane %v1035, %v1039
      %v1041 = vlaneseq
      %v1042 = vshrl.u32 %v1041, 7
      %v1043 = vsub.s32 1, %v1042
      %v1044 = vrot.slane %v1035, %v1043
      %v1047 = vmul.f32 %v1029, %v1040
      %v1048 = vmul.f32 %v1033, %v1044
      %v1049 = vadd.f32 %v974, %v1047
      %v1050 = vadd.f32 %v975, %v1048
      %s1051 = scalar_lea.vmem %s3, 16
      %v1052 = vld [vmem:[%s1051] sm:$0x3]
      %v1054 = vsel %vm473, %v1052, 0
      %1056 = vmatprep.subr.bf16.mxu0 %v482
      %1057 = vmatpush1.bf16.msra.mxu0 %v479
      %1058 = vmatprep.subr.bf16.mxu0 0
      %1059 = vmatpush1.bf16.msra.mxu0 0
      %1060 = vmatprep.subr.bf16.mxu0 0
      %1061 = vmatpush1.bf16.msra.mxu0 0
      %1062 = vmatprep.subr.bf16.mxu0 0
      %1063 = vmatpush1.bf16.msra.mxu0 0
      %1064 = vmatprep.subr.bf16.mxu0 0
      %1065 = vmatpush1.bf16.msra.mxu0 0
      %1066 = vmatprep.subr.bf16.mxu0 0
      %1067 = vmatpush1.bf16.msra.mxu0 0
      %1068 = vmatprep.subr.bf16.mxu0 0
      %1069 = vmatpush1.bf16.msra.mxu0 0
      %1070 = vmatprep.subr.bf16.mxu0 0
      %1071 = vmatpush1.bf16.msra.mxu0 0
      %1072 = vmatprep.subr.bf16.mxu0 0
      %1073 = vmatpush1.bf16.msra.mxu0 0
      %1074 = vmatprep.subr.bf16.mxu0 0
      %1075 = vmatpush1.bf16.msra.mxu0 0
      %1076 = vmatprep.subr.bf16.mxu0 0
      %1077 = vmatpush1.bf16.msra.mxu0 0
      %1078 = vmatprep.subr.bf16.mxu0 0
      %1079 = vmatpush1.bf16.msra.mxu0 0
      %1080 = vmatprep.subr.bf16.mxu0 0
      %1081 = vmatpush1.bf16.msra.mxu0 0
      %1082 = vmatprep.subr.bf16.mxu0 0
      %1083 = vmatpush1.bf16.msra.mxu0 0
      %1084 = vmatprep.subr.bf16.mxu0 0
      %1085 = vmatpush1.bf16.msra.mxu0 0
      %1086 = vmatprep.subr.bf16.mxu0 0
      %1087 = vmatpush1.bf16.msra.mxu0 0
      %1088 = vmatprep.mubr.bf16.mxu0 0
      %1089 = vmatmul.mubr.bf16.gmra.mrb[0].mxu0 %v1054
      %v1090 = vpop.f32.mrb[0].mxu0
      %v1091 = vadd.f32 0.0, %v1090
      %v1092 = vpop.f32.mrb[0].mxu0
      %v1093 = vadd.f32 0.0, %v1092
      %v1094 = vpop.f32.mrb[0].mxu0
      %v1095 = vpop.f32.mrb[0].mxu0
      %1096 = vdwg.mxu0
      %1099 = vrot.lane.b32.xlu0 %v1091, 111
      %v1100 = vpop.permute.xlu0 %1099
      %1101 = vrot.lane.b32.xlu0 %v1093, 111
      %v1102 = vpop.permute.xlu0 %1101
      %vm1103 = vcmask 908288
      %v1104 = vsel %vm1103, %v1100, %v1102
      %v1108 = vsel %vm1103, %v1102, %v1100
      %s1109 = scalar_lea.vmem %s2, 16
      %v1110 = vld [vmem:[%s1109] sm:$0x3]
      %v1112 = vlaneseq
      %v1113 = vshrl.u32 %v1112, 7
      %v1114 = vsub.s32 0, %v1113
      %v1115 = vrot.slane %v1110, %v1114
      %v1116 = vlaneseq
      %v1117 = vshrl.u32 %v1116, 7
      %v1118 = vsub.s32 1, %v1117
      %v1119 = vrot.slane %v1110, %v1118
      %v1122 = vmul.f32 %v1104, %v1115
      %v1123 = vmul.f32 %v1108, %v1119
      %v1124 = vadd.f32 %v1049, %v1122
      %v1125 = vadd.f32 %v1050, %v1123
      %v1126 = vld [vmem:[%s8] sm:$0xf]
      %1128 = vset.pattern.permute.xlu0 0
      %1129 = vperm.xlu0 %1128, %v1126
      %v1130 = vpop.permute.xlu0 %1129
      %v1132 = vadd.f32 %v1124, %v1130
      %v1133 = vadd.f32 %v1125, %v1130
      %vm1134 = vcmp.ge.f32.partialorder %v1132, 0.0
      %vm1135 = vcmp.ge.f32.partialorder %v1133, 0.0
      %v1136 = vmul.f32 %v1132, 0.2
      %v1137 = vmul.f32 %v1133, 0.2
      %v1138 = vsel %vm1134, %v1132, %v1136
      %v1139 = vsel %vm1135, %v1133, %v1137
      %v1142 = vrot.slane %v1138, 4
      %v1143 = vrot.slane %v1139, 4
      %1146 = vst [vmem:[#allocation2] sm:$0xf0] %v1142
      %1147 = vst [vmem:[#allocation2 + $0x8] sm:$0xf0] %v1143
      %v1148 = vld [vmem:[#allocation2] sm:$0xff]
      %v1149 = vld [vmem:[#allocation2 + $0x8] sm:$0xff]
      %v1150 = vpack.c.bf16 %v1148, %v1148
      %v1151 = vpack.c.bf16 %v1149, %v1149
      %v1152 = vld [vmem:[%s4] sm:$0x3]
      %vm1153 = vcmask 64512
      %v1155 = vsel %vm1153, %v1152, 0
      %vm1157 = vcmask 1043456
      %v1159 = vsel %vm1157, %v1150, 0
      %v1162 = vsel %vm1157, %v1151, 0
      %1164 = vmatprep.subr.bf16.mxu0 %v1162
      %1165 = vmatpush1.bf16.msra.mxu0 %v1159
      %1166 = vmatprep.subr.bf16.mxu0 0
      %1167 = vmatpush1.bf16.msra.mxu0 0
      %1168 = vmatprep.subr.bf16.mxu0 0
      %1169 = vmatpush1.bf16.msra.mxu0 0
      %1170 = vmatprep.subr.bf16.mxu0 0
      %1171 = vmatpush1.bf16.msra.mxu0 0
      %1172 = vmatprep.subr.bf16.mxu0 0
      %1173 = vmatpush1.bf16.msra.mxu0 0
      %1174 = vmatprep.subr.bf16.mxu0 0
      %1175 = vmatpush1.bf16.msra.mxu0 0
      %1176 = vmatprep.subr.bf16.mxu0 0
      %1177 = vmatpush1.bf16.msra.mxu0 0
      %1178 = vmatprep.subr.bf16.mxu0 0
      %1179 = vmatpush1.bf16.msra.mxu0 0
      %1180 = vmatprep.subr.bf16.mxu0 0
      %1181 = vmatpush1.bf16.msra.mxu0 0
      %1182 = vmatprep.subr.bf16.mxu0 0
      %1183 = vmatpush1.bf16.msra.mxu0 0
      %1184 = vmatprep.subr.bf16.mxu0 0
      %1185 = vmatpush1.bf16.msra.mxu0 0
      %1186 = vmatprep.subr.bf16.mxu0 0
      %1187 = vmatpush1.bf16.msra.mxu0 0
      %1188 = vmatprep.subr.bf16.mxu0 0
      %1189 = vmatpush1.bf16.msra.mxu0 0
      %1190 = vmatprep.subr.bf16.mxu0 0
      %1191 = vmatpush1.bf16.msra.mxu0 0
      %1192 = vmatprep.subr.bf16.mxu0 0
      %1193 = vmatpush1.bf16.msra.mxu0 0
      %1194 = vmatprep.subr.bf16.mxu0 0
      %1195 = vmatpush1.bf16.msra.mxu0 0
      %1196 = vmatprep.mubr.bf16.mxu0 0
      %1197 = vmatmul.mubr.bf16.gmra.mrb[0].mxu0 %v1155
      %v1198 = vpop.f32.mrb[0].mxu0
      %v1199 = vadd.f32 0.0, %v1198
      %v1200 = vpop.f32.mrb[0].mxu0
      %v1201 = vadd.f32 0.0, %v1200
      %v1202 = vpop.f32.mrb[0].mxu0
      %v1203 = vpop.f32.mrb[0].mxu0
      %1204 = vdwg.mxu0
      %1206 = vrot.lane.b32.xlu0 %v1201, 17
      %v1207 = vpop.permute.xlu0 %1206
      %1210 = vrot.lane.b32.xlu0 %v1199, 17
      %v1211 = vpop.permute.xlu0 %1210
      %v1212 = vsel %vm532, %v1211, %v1207
      %v1215 = vsel %vm532, %v1207, %v1211
      %v1216 = vld [vmem:[%s2] sm:$0x3]
      %v1218 = vlaneseq
      %v1219 = vshrl.u32 %v1218, 7
      %v1220 = vsub.s32 0, %v1219
      %v1221 = vrot.slane %v1216, %v1220
      %v1222 = vlaneseq
      %v1223 = vshrl.u32 %v1222, 7
      %v1224 = vsub.s32 1, %v1223
      %v1225 = vrot.slane %v1216, %v1224
      %v1228 = vmul.f32 %v1215, %v1221
      %v1229 = vmul.f32 %v1212, %v1225
      %v1230 = vadd.f32 %v1228, 0.0
      %v1231 = vadd.f32 %v1229, 0.0
      %s1232 = scalar_lea.vmem %s4, 2
      %v1233 = vld [vmem:[%s1232] sm:$0x3]
      %v1235 = vsel %vm1153, %v1233, 0
      %1237 = vmatprep.subr.bf16.mxu0 %v1162
      %1238 = vmatpush1.bf16.msra.mxu0 %v1159
      %1239 = vmatprep.subr.bf16.mxu0 0
      %1240 = vmatpush1.bf16.msra.mxu0 0
      %1241 = vmatprep.subr.bf16.mxu0 0
      %1242 = vmatpush1.bf16.msra.mxu0 0
      %1243 = vmatprep.subr.bf16.mxu0 0
      %1244 = vmatpush1.bf16.msra.mxu0 0
      %1245 = vmatprep.subr.bf16.mxu0 0
      %1246 = vmatpush1.bf16.msra.mxu0 0
      %1247 = vmatprep.subr.bf16.mxu0 0
      %1248 = vmatpush1.bf16.msra.mxu0 0
      %1249 = vmatprep.subr.bf16.mxu0 0
      %1250 = vmatpush1.bf16.msra.mxu0 0
      %1251 = vmatprep.subr.bf16.mxu0 0
      %1252 = vmatpush1.bf16.msra.mxu0 0
      %1253 = vmatprep.subr.bf16.mxu0 0
      %1254 = vmatpush1.bf16.msra.mxu0 0
      %1255 = vmatprep.subr.bf16.mxu0 0
      %1256 = vmatpush1.bf16.msra.mxu0 0
      %1257 = vmatprep.subr.bf16.mxu0 0
      %1258 = vmatpush1.bf16.msra.mxu0 0
      %1259 = vmatprep.subr.bf16.mxu0 0
      %1260 = vmatpush1.bf16.msra.mxu0 0
      %1261 = vmatprep.subr.bf16.mxu0 0
      %1262 = vmatpush1.bf16.msra.mxu0 0
      %1263 = vmatprep.subr.bf16.mxu0 0
      %1264 = vmatpush1.bf16.msra.mxu0 0
      %1265 = vmatprep.subr.bf16.mxu0 0
      %1266 = vmatpush1.bf16.msra.mxu0 0
      %1267 = vmatprep.subr.bf16.mxu0 0
      %1268 = vmatpush1.bf16.msra.mxu0 0
      %1269 = vmatprep.mubr.bf16.mxu0 0
      %1270 = vmatmul.mubr.bf16.gmra.mrb[0].mxu0 %v1235
      %v1271 = vpop.f32.mrb[0].mxu0
      %v1272 = vadd.f32 0.0, %v1271
      %v1273 = vpop.f32.mrb[0].mxu0
      %v1274 = vadd.f32 0.0, %v1273
      %v1275 = vpop.f32.mrb[0].mxu0
      %v1276 = vpop.f32.mrb[0].mxu0
      %1277 = vdwg.mxu0
      %1279 = vrot.lane.b32.xlu0 %v1274, 16
      %v1280 = vpop.permute.xlu0 %1279
      %1283 = vrot.lane.b32.xlu0 %v1272, 16
      %v1284 = vpop.permute.xlu0 %1283
      %v1285 = vsel %vm606, %v1284, %v1280
      %v1288 = vsel %vm606, %v1280, %v1284
      %v1289 = vld [vmem:[%s611] sm:$0x3]
      %v1291 = vlaneseq
      %v1292 = vshrl.u32 %v1291, 7
      %v1293 = vsub.s32 0, %v1292
      %v1294 = vrot.slane %v1289, %v1293
      %v1295 = vlaneseq
      %v1296 = vshrl.u32 %v1295, 7
      %v1297 = vsub.s32 1, %v1296
      %v1298 = vrot.slane %v1289, %v1297
      %v1301 = vmul.f32 %v1288, %v1294
      %v1302 = vmul.f32 %v1285, %v1298
      %v1303 = vadd.f32 %v1230, %v1301
      %v1304 = vadd.f32 %v1231, %v1302
      %s1305 = scalar_lea.vmem %s4, 4
      %v1306 = vld [vmem:[%s1305] sm:$0x3]
      %v1308 = vsel %vm1153, %v1306, 0
      %1310 = vmatprep.subr.bf16.mxu0 %v1162
      %1311 = vmatpush1.bf16.msra.mxu0 %v1159
      %1312 = vmatprep.subr.bf16.mxu0 0
      %1313 = vmatpush1.bf16.msra.mxu0 0
      %1314 = vmatprep.subr.bf16.mxu0 0
      %1315 = vmatpush1.bf16.msra.mxu0 0
      %1316 = vmatprep.subr.bf16.mxu0 0
      %1317 = vmatpush1.bf16.msra.mxu0 0
      %1318 = vmatprep.subr.bf16.mxu0 0
      %1319 = vmatpush1.bf16.msra.mxu0 0
      %1320 = vmatprep.subr.bf16.mxu0 0
      %1321 = vmatpush1.bf16.msra.mxu0 0
      %1322 = vmatprep.subr.bf16.mxu0 0
      %1323 = vmatpush1.bf16.msra.mxu0 0
      %1324 = vmatprep.subr.bf16.mxu0 0
      %1325 = vmatpush1.bf16.msra.mxu0 0
      %1326 = vmatprep.subr.bf16.mxu0 0
      %1327 = vmatpush1.bf16.msra.mxu0 0
      %1328 = vmatprep.subr.bf16.mxu0 0
      %1329 = vmatpush1.bf16.msra.mxu0 0
      %1330 = vmatprep.subr.bf16.mxu0 0
      %1331 = vmatpush1.bf16.msra.mxu0 0
      %1332 = vmatprep.subr.bf16.mxu0 0
      %1333 = vmatpush1.bf16.msra.mxu0 0
      %1334 = vmatprep.subr.bf16.mxu0 0
      %1335 = vmatpush1.bf16.msra.mxu0 0
      %1336 = vmatprep.subr.bf16.mxu0 0
      %1337 = vmatpush1.bf16.msra.mxu0 0
      %1338 = vmatprep.subr.bf16.mxu0 0
      %1339 = vmatpush1.bf16.msra.mxu0 0
      %1340 = vmatprep.subr.bf16.mxu0 0
      %1341 = vmatpush1.bf16.msra.mxu0 0
      %1342 = vmatprep.mubr.bf16.mxu0 0
      %1343 = vmatmul.mubr.bf16.gmra.mrb[0].mxu0 %v1308
      %v1344 = vpop.f32.mrb[0].mxu0
      %v1345 = vadd.f32 0.0, %v1344
      %v1346 = vpop.f32.mrb[0].mxu0
      %v1347 = vadd.f32 0.0, %v1346
      %v1348 = vpop.f32.mrb[0].mxu0
      %v1349 = vpop.f32.mrb[0].mxu0
      %1350 = vdwg.mxu0
      %1352 = vrot.lane.b32.xlu0 %v1347, 15
      %v1353 = vpop.permute.xlu0 %1352
      %1356 = vrot.lane.b32.xlu0 %v1345, 15
      %v1357 = vpop.permute.xlu0 %1356
      %v1358 = vsel %vm681, %v1357, %v1353
      %v1361 = vsel %vm681, %v1353, %v1357
      %v1362 = vld [vmem:[%s686] sm:$0x3]
      %v1364 = vlaneseq
      %v1365 = vshrl.u32 %v1364, 7
      %v1366 = vsub.s32 0, %v1365
      %v1367 = vrot.slane %v1362, %v1366
      %v1368 = vlaneseq
      %v1369 = vshrl.u32 %v1368, 7
      %v1370 = vsub.s32 1, %v1369
      %v1371 = vrot.slane %v1362, %v1370
      %v1374 = vmul.f32 %v1361, %v1367
      %v1375 = vmul.f32 %v1358, %v1371
      %v1376 = vadd.f32 %v1303, %v1374
      %v1377 = vadd.f32 %v1304, %v1375
      %s1378 = scalar_lea.vmem %s4, 6
      %v1379 = vld [vmem:[%s1378] sm:$0x3]
      %v1381 = vsel %vm1153, %v1379, 0
      %1383 = vmatprep.subr.bf16.mxu0 %v1162
      %1384 = vmatpush1.bf16.msra.mxu0 %v1159
      %1385 = vmatprep.subr.bf16.mxu0 0
      %1386 = vmatpush1.bf16.msra.mxu0 0
      %1387 = vmatprep.subr.bf16.mxu0 0
      %1388 = vmatpush1.bf16.msra.mxu0 0
      %1389 = vmatprep.subr.bf16.mxu0 0
      %1390 = vmatpush1.bf16.msra.mxu0 0
      %1391 = vmatprep.subr.bf16.mxu0 0
      %1392 = vmatpush1.bf16.msra.mxu0 0
      %1393 = vmatprep.subr.bf16.mxu0 0
      %1394 = vmatpush1.bf16.msra.mxu0 0
      %1395 = vmatprep.subr.bf16.mxu0 0
      %1396 = vmatpush1.bf16.msra.mxu0 0
      %1397 = vmatprep.subr.bf16.mxu0 0
      %1398 = vmatpush1.bf16.msra.mxu0 0
      %1399 = vmatprep.subr.bf16.mxu0 0
      %1400 = vmatpush1.bf16.msra.mxu0 0
      %1401 = vmatprep.subr.bf16.mxu0 0
      %1402 = vmatpush1.bf16.msra.mxu0 0
      %1403 = vmatprep.subr.bf16.mxu0 0
      %1404 = vmatpush1.bf16.msra.mxu0 0
      %1405 = vmatprep.subr.bf16.mxu0 0
      %1406 = vmatpush1.bf16.msra.mxu0 0
      %1407 = vmatprep.subr.bf16.mxu0 0
      %1408 = vmatpush1.bf16.msra.mxu0 0
      %1409 = vmatprep.subr.bf16.mxu0 0
      %1410 = vmatpush1.bf16.msra.mxu0 0
      %1411 = vmatprep.subr.bf16.mxu0 0
      %1412 = vmatpush1.bf16.msra.mxu0 0
      %1413 = vmatprep.subr.bf16.mxu0 0
      %1414 = vmatpush1.bf16.msra.mxu0 0
      %1415 = vmatprep.mubr.bf16.mxu0 0
      %1416 = vmatmul.mubr.bf16.gmra.mrb[0].mxu0 %v1381
      %v1417 = vpop.f32.mrb[0].mxu0
      %v1418 = vadd.f32 0.0, %v1417
      %v1419 = vpop.f32.mrb[0].mxu0
      %v1420 = vadd.f32 0.0, %v1419
      %v1421 = vpop.f32.mrb[0].mxu0
      %v1422 = vpop.f32.mrb[0].mxu0
      %1423 = vdwg.mxu0
      %1425 = vrot.lane.b32.xlu0 %v1420, 1
      %v1426 = vpop.permute.xlu0 %1425
      %1429 = vrot.lane.b32.xlu0 %v1418, 1
      %v1430 = vpop.permute.xlu0 %1429
      %v1431 = vsel %vm756, %v1430, %v1426
      %v1434 = vsel %vm756, %v1426, %v1430
      %v1435 = vld [vmem:[%s761] sm:$0x3]
      %v1437 = vlaneseq
      %v1438 = vshrl.u32 %v1437, 7
      %v1439 = vsub.s32 0, %v1438
      %v1440 = vrot.slane %v1435, %v1439
      %v1441 = vlaneseq
      %v1442 = vshrl.u32 %v1441, 7
      %v1443 = vsub.s32 1, %v1442
      %v1444 = vrot.slane %v1435, %v1443
      %v1447 = vmul.f32 %v1434, %v1440
      %v1448 = vmul.f32 %v1431, %v1444
      %v1449 = vadd.f32 %v1376, %v1447
      %v1450 = vadd.f32 %v1377, %v1448
      %s1451 = scalar_lea.vmem %s4, 8
      %v1452 = vld [vmem:[%s1451] sm:$0x3]
      %v1454 = vsel %vm1153, %v1452, 0
      %1456 = vmatprep.subr.bf16.mxu0 %v1162
      %1457 = vmatpush1.bf16.msra.mxu0 %v1159
      %1458 = vmatprep.subr.bf16.mxu0 0
      %1459 = vmatpush1.bf16.msra.mxu0 0
      %1460 = vmatprep.subr.bf16.mxu0 0
      %1461 = vmatpush1.bf16.msra.mxu0 0
      %1462 = vmatprep.subr.bf16.mxu0 0
      %1463 = vmatpush1.bf16.msra.mxu0 0
      %1464 = vmatprep.subr.bf16.mxu0 0
      %1465 = vmatpush1.bf16.msra.mxu0 0
      %1466 = vmatprep.subr.bf16.mxu0 0
      %1467 = vmatpush1.bf16.msra.mxu0 0
      %1468 = vmatprep.subr.bf16.mxu0 0
      %1469 = vmatpush1.bf16.msra.mxu0 0
      %1470 = vmatprep.subr.bf16.mxu0 0
      %1471 = vmatpush1.bf16.msra.mxu0 0
      %1472 = vmatprep.subr.bf16.mxu0 0
      %1473 = vmatpush1.bf16.msra.mxu0 0
      %1474 = vmatprep.subr.bf16.mxu0 0
      %1475 = vmatpush1.bf16.msra.mxu0 0
      %1476 = vmatprep.subr.bf16.mxu0 0
      %1477 = vmatpush1.bf16.msra.mxu0 0
      %1478 = vmatprep.subr.bf16.mxu0 0
      %1479 = vmatpush1.bf16.msra.mxu0 0
      %1480 = vmatprep.subr.bf16.mxu0 0
      %1481 = vmatpush1.bf16.msra.mxu0 0
      %1482 = vmatprep.subr.bf16.mxu0 0
      %1483 = vmatpush1.bf16.msra.mxu0 0
      %1484 = vmatprep.subr.bf16.mxu0 0
      %1485 = vmatpush1.bf16.msra.mxu0 0
      %1486 = vmatprep.subr.bf16.mxu0 0
      %1487 = vmatpush1.bf16.msra.mxu0 0
      %1488 = vmatprep.mubr.bf16.mxu0 0
      %1489 = vmatmul.mubr.bf16.gmra.mrb[0].mxu0 %v1454
      %v1490 = vpop.f32.mrb[0].mxu0
      %v1491 = vadd.f32 0.0, %v1490
      %v1492 = vpop.f32.mrb[0].mxu0
      %v1493 = vadd.f32 0.0, %v1492
      %v1494 = vpop.f32.mrb[0].mxu0
      %v1495 = vpop.f32.mrb[0].mxu0
      %1496 = vdwg.mxu0
      %v1497 = vadd.f32 %v1449, %v1491
      %v1498 = vadd.f32 %v1450, %v1493
      %s1499 = scalar_lea.vmem %s4, 10
      %v1500 = vld [vmem:[%s1499] sm:$0x3]
      %v1502 = vsel %vm1153, %v1500, 0
      %1504 = vmatprep.subr.bf16.mxu0 %v1162
      %1505 = vmatpush1.bf16.msra.mxu0 %v1159
      %1506 = vmatprep.subr.bf16.mxu0 0
      %1507 = vmatpush1.bf16.msra.mxu0 0
      %1508 = vmatprep.subr.bf16.mxu0 0
      %1509 = vmatpush1.bf16.msra.mxu0 0
      %1510 = vmatprep.subr.bf16.mxu0 0
      %1511 = vmatpush1.bf16.msra.mxu0 0
      %1512 = vmatprep.subr.bf16.mxu0 0
      %1513 = vmatpush1.bf16.msra.mxu0 0
      %1514 = vmatprep.subr.bf16.mxu0 0
      %1515 = vmatpush1.bf16.msra.mxu0 0
      %1516 = vmatprep.subr.bf16.mxu0 0
      %1517 = vmatpush1.bf16.msra.mxu0 0
      %1518 = vmatprep.subr.bf16.mxu0 0
      %1519 = vmatpush1.bf16.msra.mxu0 0
      %1520 = vmatprep.subr.bf16.mxu0 0
      %1521 = vmatpush1.bf16.msra.mxu0 0
      %1522 = vmatprep.subr.bf16.mxu0 0
      %1523 = vmatpush1.bf16.msra.mxu0 0
      %1524 = vmatprep.subr.bf16.mxu0 0
      %1525 = vmatpush1.bf16.msra.mxu0 0
      %1526 = vmatprep.subr.bf16.mxu0 0
      %1527 = vmatpush1.bf16.msra.mxu0 0
      %1528 = vmatprep.subr.bf16.mxu0 0
      %1529 = vmatpush1.bf16.msra.mxu0 0
      %1530 = vmatprep.subr.bf16.mxu0 0
      %1531 = vmatpush1.bf16.msra.mxu0 0
      %1532 = vmatprep.subr.bf16.mxu0 0
      %1533 = vmatpush1.bf16.msra.mxu0 0
      %1534 = vmatprep.subr.bf16.mxu0 0
      %1535 = vmatpush1.bf16.msra.mxu0 0
      %1536 = vmatprep.mubr.bf16.mxu0 0
      %1537 = vmatmul.mubr.bf16.gmra.mrb[0].mxu0 %v1502
      %v1538 = vpop.f32.mrb[0].mxu0
      %v1539 = vadd.f32 0.0, %v1538
      %v1540 = vpop.f32.mrb[0].mxu0
      %v1541 = vadd.f32 0.0, %v1540
      %v1542 = vpop.f32.mrb[0].mxu0
      %v1543 = vpop.f32.mrb[0].mxu0
      %1544 = vdwg.mxu0
      %1547 = vrot.lane.b32.xlu0 %v1539, 127
      %v1548 = vpop.permute.xlu0 %1547
      %1549 = vrot.lane.b32.xlu0 %v1541, 127
      %v1550 = vpop.permute.xlu0 %1549
      %v1551 = vsel %vm878, %v1548, %v1550
      %v1555 = vsel %vm878, %v1550, %v1548
      %v1556 = vld [vmem:[%s884] sm:$0x3]
      %v1558 = vlaneseq
      %v1559 = vshrl.u32 %v1558, 7
      %v1560 = vsub.s32 0, %v1559
      %v1561 = vrot.slane %v1556, %v1560
      %v1562 = vlaneseq
      %v1563 = vshrl.u32 %v1562, 7
      %v1564 = vsub.s32 1, %v1563
      %v1565 = vrot.slane %v1556, %v1564
      %v1568 = vmul.f32 %v1551, %v1561
      %v1569 = vmul.f32 %v1555, %v1565
      %v1570 = vadd.f32 %v1497, %v1568
      %v1571 = vadd.f32 %v1498, %v1569
      %s1572 = scalar_lea.vmem %s4, 12
      %v1573 = vld [vmem:[%s1572] sm:$0x3]
      %v1575 = vsel %vm1153, %v1573, 0
      %1577 = vmatprep.subr.bf16.mxu0 %v1162
      %1578 = vmatpush1.bf16.msra.mxu0 %v1159
      %1579 = vmatprep.subr.bf16.mxu0 0
      %1580 = vmatpush1.bf16.msra.mxu0 0
      %1581 = vmatprep.subr.bf16.mxu0 0
      %1582 = vmatpush1.bf16.msra.mxu0 0
      %1583 = vmatprep.subr.bf16.mxu0 0
      %1584 = vmatpush1.bf16.msra.mxu0 0
      %1585 = vmatprep.subr.bf16.mxu0 0
      %1586 = vmatpush1.bf16.msra.mxu0 0
      %1587 = vmatprep.subr.bf16.mxu0 0
      %1588 = vmatpush1.bf16.msra.mxu0 0
      %1589 = vmatprep.subr.bf16.mxu0 0
      %1590 = vmatpush1.bf16.msra.mxu0 0
      %1591 = vmatprep.subr.bf16.mxu0 0
      %1592 = vmatpush1.bf16.msra.mxu0 0
      %1593 = vmatprep.subr.bf16.mxu0 0
      %1594 = vmatpush1.bf16.msra.mxu0 0
      %1595 = vmatprep.subr.bf16.mxu0 0
      %1596 = vmatpush1.bf16.msra.mxu0 0
      %1597 = vmatprep.subr.bf16.mxu0 0
      %1598 = vmatpush1.bf16.msra.mxu0 0
      %1599 = vmatprep.subr.bf16.mxu0 0
      %1600 = vmatpush1.bf16.msra.mxu0 0
      %1601 = vmatprep.subr.bf16.mxu0 0
      %1602 = vmatpush1.bf16.msra.mxu0 0
      %1603 = vmatprep.subr.bf16.mxu0 0
      %1604 = vmatpush1.bf16.msra.mxu0 0
      %1605 = vmatprep.subr.bf16.mxu0 0
      %1606 = vmatpush1.bf16.msra.mxu0 0
      %1607 = vmatprep.subr.bf16.mxu0 0
      %1608 = vmatpush1.bf16.msra.mxu0 0
      %1609 = vmatprep.mubr.bf16.mxu0 0
      %1610 = vmatmul.mubr.bf16.gmra.mrb[0].mxu0 %v1575
      %v1611 = vpop.f32.mrb[0].mxu0
      %v1612 = vadd.f32 0.0, %v1611
      %v1613 = vpop.f32.mrb[0].mxu0
      %v1614 = vadd.f32 0.0, %v1613
      %v1615 = vpop.f32.mrb[0].mxu0
      %v1616 = vpop.f32.mrb[0].mxu0
      %1617 = vdwg.mxu0
      %1620 = vrot.lane.b32.xlu0 %v1612, 113
      %v1621 = vpop.permute.xlu0 %1620
      %1622 = vrot.lane.b32.xlu0 %v1614, 113
      %v1623 = vpop.permute.xlu0 %1622
      %v1624 = vsel %vm953, %v1621, %v1623
      %v1628 = vsel %vm953, %v1623, %v1621
      %v1629 = vld [vmem:[%s959] sm:$0x3]
      %v1631 = vlaneseq
      %v1632 = vshrl.u32 %v1631, 7
      %v1633 = vsub.s32 0, %v1632
      %v1634 = vrot.slane %v1629, %v1633
      %v1635 = vlaneseq
      %v1636 = vshrl.u32 %v1635, 7
      %v1637 = vsub.s32 1, %v1636
      %v1638 = vrot.slane %v1629, %v1637
      %v1641 = vmul.f32 %v1624, %v1634
      %v1642 = vmul.f32 %v1628, %v1638
      %v1643 = vadd.f32 %v1570, %v1641
      %v1644 = vadd.f32 %v1571, %v1642
      %s1645 = scalar_lea.vmem %s4, 14
      %v1646 = vld [vmem:[%s1645] sm:$0x3]
      %v1648 = vsel %vm1153, %v1646, 0
      %1650 = vmatprep.subr.bf16.mxu0 %v1162
      %1651 = vmatpush1.bf16.msra.mxu0 %v1159
      %1652 = vmatprep.subr.bf16.mxu0 0
      %1653 = vmatpush1.bf16.msra.mxu0 0
      %1654 = vmatprep.subr.bf16.mxu0 0
      %1655 = vmatpush1.bf16.msra.mxu0 0
      %1656 = vmatprep.subr.bf16.mxu0 0
      %1657 = vmatpush1.bf16.msra.mxu0 0
      %1658 = vmatprep.subr.bf16.mxu0 0
      %1659 = vmatpush1.bf16.msra.mxu0 0
      %1660 = vmatprep.subr.bf16.mxu0 0
      %1661 = vmatpush1.bf16.msra.mxu0 0
      %1662 = vmatprep.subr.bf16.mxu0 0
      %1663 = vmatpush1.bf16.msra.mxu0 0
      %1664 = vmatprep.subr.bf16.mxu0 0
      %1665 = vmatpush1.bf16.msra.mxu0 0
      %1666 = vmatprep.subr.bf16.mxu0 0
      %1667 = vmatpush1.bf16.msra.mxu0 0
      %1668 = vmatprep.subr.bf16.mxu0 0
      %1669 = vmatpush1.bf16.msra.mxu0 0
      %1670 = vmatprep.subr.bf16.mxu0 0
      %1671 = vmatpush1.bf16.msra.mxu0 0
      %1672 = vmatprep.subr.bf16.mxu0 0
      %1673 = vmatpush1.bf16.msra.mxu0 0
      %1674 = vmatprep.subr.bf16.mxu0 0
      %1675 = vmatpush1.bf16.msra.mxu0 0
      %1676 = vmatprep.subr.bf16.mxu0 0
      %1677 = vmatpush1.bf16.msra.mxu0 0
      %1678 = vmatprep.subr.bf16.mxu0 0
      %1679 = vmatpush1.bf16.msra.mxu0 0
      %1680 = vmatprep.subr.bf16.mxu0 0
      %1681 = vmatpush1.bf16.msra.mxu0 0
      %1682 = vmatprep.mubr.bf16.mxu0 0
      %1683 = vmatmul.mubr.bf16.gmra.mrb[0].mxu0 %v1648
      %v1684 = vpop.f32.mrb[0].mxu0
      %v1685 = vadd.f32 0.0, %v1684
      %v1686 = vpop.f32.mrb[0].mxu0
      %v1687 = vadd.f32 0.0, %v1686
      %v1688 = vpop.f32.mrb[0].mxu0
      %v1689 = vpop.f32.mrb[0].mxu0
      %1690 = vdwg.mxu0
      %1693 = vrot.lane.b32.xlu0 %v1685, 112
      %v1694 = vpop.permute.xlu0 %1693
      %1695 = vrot.lane.b32.xlu0 %v1687, 112
      %v1696 = vpop.permute.xlu0 %1695
      %v1697 = vsel %vm1028, %v1694, %v1696
      %v1701 = vsel %vm1028, %v1696, %v1694
      %v1702 = vld [vmem:[%s1034] sm:$0x3]
      %v1704 = vlaneseq
      %v1705 = vshrl.u32 %v1704, 7
      %v1706 = vsub.s32 0, %v1705
      %v1707 = vrot.slane %v1702, %v1706
      %v1708 = vlaneseq
      %v1709 = vshrl.u32 %v1708, 7
      %v1710 = vsub.s32 1, %v1709
      %v1711 = vrot.slane %v1702, %v1710
      %v1714 = vmul.f32 %v1697, %v1707
      %v1715 = vmul.f32 %v1701, %v1711
      %v1716 = vadd.f32 %v1643, %v1714
      %v1717 = vadd.f32 %v1644, %v1715
      %s1718 = scalar_lea.vmem %s4, 16
      %v1719 = vld [vmem:[%s1718] sm:$0x3]
      %v1721 = vsel %vm1153, %v1719, 0
      %1723 = vmatprep.subr.bf16.mxu0 %v1162
      %1724 = vmatpush1.bf16.msra.mxu0 %v1159
      %1725 = vmatprep.subr.bf16.mxu0 0
      %1726 = vmatpush1.bf16.msra.mxu0 0
      %1727 = vmatprep.subr.bf16.mxu0 0
      %1728 = vmatpush1.bf16.msra.mxu0 0
      %1729 = vmatprep.subr.bf16.mxu0 0
      %1730 = vmatpush1.bf16.msra.mxu0 0
      %1731 = vmatprep.subr.bf16.mxu0 0
      %1732 = vmatpush1.bf16.msra.mxu0 0
      %1733 = vmatprep.subr.bf16.mxu0 0
      %1734 = vmatpush1.bf16.msra.mxu0 0
      %1735 = vmatprep.subr.bf16.mxu0 0
      %1736 = vmatpush1.bf16.msra.mxu0 0
      %1737 = vmatprep.subr.bf16.mxu0 0
      %1738 = vmatpush1.bf16.msra.mxu0 0
      %1739 = vmatprep.subr.bf16.mxu0 0
      %1740 = vmatpush1.bf16.msra.mxu0 0
      %1741 = vmatprep.subr.bf16.mxu0 0
      %1742 = vmatpush1.bf16.msra.mxu0 0
      %1743 = vmatprep.subr.bf16.mxu0 0
      %1744 = vmatpush1.bf16.msra.mxu0 0
      %1745 = vmatprep.subr.bf16.mxu0 0
      %1746 = vmatpush1.bf16.msra.mxu0 0
      %1747 = vmatprep.subr.bf16.mxu0 0
      %1748 = vmatpush1.bf16.msra.mxu0 0
      %1749 = vmatprep.subr.bf16.mxu0 0
      %1750 = vmatpush1.bf16.msra.mxu0 0
      %1751 = vmatprep.subr.bf16.mxu0 0
      %1752 = vmatpush1.bf16.msra.mxu0 0
      %1753 = vmatprep.subr.bf16.mxu0 0
      %1754 = vmatpush1.bf16.msra.mxu0 0
      %1755 = vmatprep.mubr.bf16.mxu0 0
      %1756 = vmatmul.mubr.bf16.gmra.mrb[0].mxu0 %v1721
      %v1757 = vpop.f32.mrb[0].mxu0
      %v1758 = vadd.f32 0.0, %v1757
      %v1759 = vpop.f32.mrb[0].mxu0
      %v1760 = vadd.f32 0.0, %v1759
      %v1761 = vpop.f32.mrb[0].mxu0
      %v1762 = vpop.f32.mrb[0].mxu0
      %1763 = vdwg.mxu0
      %1766 = vrot.lane.b32.xlu0 %v1758, 111
      %v1767 = vpop.permute.xlu0 %1766
      %1768 = vrot.lane.b32.xlu0 %v1760, 111
      %v1769 = vpop.permute.xlu0 %1768
      %v1770 = vsel %vm1103, %v1767, %v1769
      %v1774 = vsel %vm1103, %v1769, %v1767
      %v1775 = vld [vmem:[%s1109] sm:$0x3]
      %v1777 = vlaneseq
      %v1778 = vshrl.u32 %v1777, 7
      %v1779 = vsub.s32 0, %v1778
      %v1780 = vrot.slane %v1775, %v1779
      %v1781 = vlaneseq
      %v1782 = vshrl.u32 %v1781, 7
      %v1783 = vsub.s32 1, %v1782
      %v1784 = vrot.slane %v1775, %v1783
      %v1787 = vmul.f32 %v1770, %v1780
      %v1788 = vmul.f32 %v1774, %v1784
      %v1789 = vadd.f32 %v1716, %v1787
      %v1790 = vadd.f32 %v1717, %v1788
      %v1791 = vld [vmem:[%s9] sm:$0xf]
      %1793 = vset.pattern.permute.xlu0 0
      %1794 = vperm.xlu0 %1793, %v1791
      %v1795 = vpop.permute.xlu0 %1794
      %v1797 = vadd.f32 %v1789, %v1795
      %v1798 = vadd.f32 %v1790, %v1795
      %vm1799 = vcmp.ge.f32.partialorder %v1797, 0.0
      %vm1800 = vcmp.ge.f32.partialorder %v1798, 0.0
      %v1801 = vmul.f32 %v1797, 0.2
      %v1802 = vmul.f32 %v1798, 0.2
      %v1803 = vsel %vm1799, %v1797, %v1801
      %v1804 = vsel %vm1800, %v1798, %v1802
      %1805 = vst [vmem:[#allocation2 + $0x10] sm:$0xf] %v1803
      %1806 = vst [vmem:[#allocation2 + $0x18] sm:$0xf] %v1804
      %v1807 = vld [vmem:[#allocation2] sm:$0xff]
      %v1808 = vld [vmem:[#allocation2 + $0x8] sm:$0xff]
      %v1809 = vld [vmem:[#allocation2 + $0x10] sm:$0xf]
      %v1810 = vld [vmem:[#allocation2 + $0x18] sm:$0xf]
      %v1811 = vpack.c.bf16 %v1809, %v1807
      %v1812 = vpack.c.bf16 %v1810, %v1808
      %v1813 = vld [vmem:[%s5] sm:$0x3]
      %vm1814 = vcmask 97280
      %v1816 = vsel %vm1814, %v1813, 0
      %vm1818 = vcmask 1045504
      %v1820 = vsel %vm1818, %v1811, 0
      %v1823 = vsel %vm1818, %v1812, 0
      %1825 = vmatprep.subr.bf16.mxu0 %v1823
      %1826 = vmatpush1.bf16.msra.mxu0 %v1820
      %1827 = vmatprep.subr.bf16.mxu0 0
      %1828 = vmatpush1.bf16.msra.mxu0 0
      %1829 = vmatprep.subr.bf16.mxu0 0
      %1830 = vmatpush1.bf16.msra.mxu0 0
      %1831 = vmatprep.subr.bf16.mxu0 0
      %1832 = vmatpush1.bf16.msra.mxu0 0
      %1833 = vmatprep.subr.bf16.mxu0 0
      %1834 = vmatpush1.bf16.msra.mxu0 0
      %1835 = vmatprep.subr.bf16.mxu0 0
      %1836 = vmatpush1.bf16.msra.mxu0 0
      %1837 = vmatprep.subr.bf16.mxu0 0
      %1838 = vmatpush1.bf16.msra.mxu0 0
      %1839 = vmatprep.subr.bf16.mxu0 0
      %1840 = vmatpush1.bf16.msra.mxu0 0
      %1841 = vmatprep.subr.bf16.mxu0 0
      %1842 = vmatpush1.bf16.msra.mxu0 0
      %1843 = vmatprep.subr.bf16.mxu0 0
      %1844 = vmatpush1.bf16.msra.mxu0 0
      %1845 = vmatprep.subr.bf16.mxu0 0
      %1846 = vmatpush1.bf16.msra.mxu0 0
      %1847 = vmatprep.subr.bf16.mxu0 0
      %1848 = vmatpush1.bf16.msra.mxu0 0
      %1849 = vmatprep.subr.bf16.mxu0 0
      %1850 = vmatpush1.bf16.msra.mxu0 0
      %1851 = vmatprep.subr.bf16.mxu0 0
      %1852 = vmatpush1.bf16.msra.mxu0 0
      %1853 = vmatprep.subr.bf16.mxu0 0
      %1854 = vmatpush1.bf16.msra.mxu0 0
      %1855 = vmatprep.subr.bf16.mxu0 0
      %1856 = vmatpush1.bf16.msra.mxu0 0
      %1857 = vmatprep.mubr.bf16.mxu0 0
      %1858 = vmatmul.mubr.bf16.gmra.mrb[0].mxu0 %v1816
      %v1859 = vpop.f32.mrb[0].mxu0
      %v1860 = vadd.f32 0.0, %v1859
      %v1861 = vpop.f32.mrb[0].mxu0
      %v1862 = vadd.f32 0.0, %v1861
      %v1863 = vpop.f32.mrb[0].mxu0
      %v1864 = vpop.f32.mrb[0].mxu0
      %1865 = vdwg.mxu0
      %1867 = vrot.lane.b32.xlu0 %v1862, 17
      %v1868 = vpop.permute.xlu0 %1867
      %1871 = vrot.lane.b32.xlu0 %v1860, 17
      %v1872 = vpop.permute.xlu0 %1871
      %v1873 = vsel %vm532, %v1872, %v1868
      %v1876 = vsel %vm532, %v1868, %v1872
      %v1877 = vld [vmem:[%s2] sm:$0x3]
      %v1879 = vlaneseq
      %v1880 = vshrl.u32 %v1879, 7
      %v1881 = vsub.s32 0, %v1880
      %v1882 = vrot.slane %v1877, %v1881
      %v1883 = vlaneseq
      %v1884 = vshrl.u32 %v1883, 7
      %v1885 = vsub.s32 1, %v1884
      %v1886 = vrot.slane %v1877, %v1885
      %v1889 = vmul.f32 %v1876, %v1882
      %v1890 = vmul.f32 %v1873, %v1886
      %v1891 = vadd.f32 %v1889, 0.0
      %v1892 = vadd.f32 %v1890, 0.0
      %s1893 = scalar_lea.vmem %s5, 2
      %v1894 = vld [vmem:[%s1893] sm:$0x3]
      %v1896 = vsel %vm1814, %v1894, 0
      %1898 = vmatprep.subr.bf16.mxu0 %v1823
      %1899 = vmatpush1.bf16.msra.mxu0 %v1820
      %1900 = vmatprep.subr.bf16.mxu0 0
      %1901 = vmatpush1.bf16.msra.mxu0 0
      %1902 = vmatprep.subr.bf16.mxu0 0
      %1903 = vmatpush1.bf16.msra.mxu0 0
      %1904 = vmatprep.subr.bf16.mxu0 0
      %1905 = vmatpush1.bf16.msra.mxu0 0
      %1906 = vmatprep.subr.bf16.mxu0 0
      %1907 = vmatpush1.bf16.msra.mxu0 0
      %1908 = vmatprep.subr.bf16.mxu0 0
      %1909 = vmatpush1.bf16.msra.mxu0 0
      %1910 = vmatprep.subr.bf16.mxu0 0
      %1911 = vmatpush1.bf16.msra.mxu0 0
      %1912 = vmatprep.subr.bf16.mxu0 0
      %1913 = vmatpush1.bf16.msra.mxu0 0
      %1914 = vmatprep.subr.bf16.mxu0 0
      %1915 = vmatpush1.bf16.msra.mxu0 0
      %1916 = vmatprep.subr.bf16.mxu0 0
      %1917 = vmatpush1.bf16.msra.mxu0 0
      %1918 = vmatprep.subr.bf16.mxu0 0
      %1919 = vmatpush1.bf16.msra.mxu0 0
      %1920 = vmatprep.subr.bf16.mxu0 0
      %1921 = vmatpush1.bf16.msra.mxu0 0
      %1922 = vmatprep.subr.bf16.mxu0 0
      %1923 = vmatpush1.bf16.msra.mxu0 0
      %1924 = vmatprep.subr.bf16.mxu0 0
      %1925 = vmatpush1.bf16.msra.mxu0 0
      %1926 = vmatprep.subr.bf16.mxu0 0
      %1927 = vmatpush1.bf16.msra.mxu0 0
      %1928 = vmatprep.subr.bf16.mxu0 0
      %1929 = vmatpush1.bf16.msra.mxu0 0
      %1930 = vmatprep.mubr.bf16.mxu0 0
      %1931 = vmatmul.mubr.bf16.gmra.mrb[0].mxu0 %v1896
      %v1932 = vpop.f32.mrb[0].mxu0
      %v1933 = vadd.f32 0.0, %v1932
      %v1934 = vpop.f32.mrb[0].mxu0
      %v1935 = vadd.f32 0.0, %v1934
      %v1936 = vpop.f32.mrb[0].mxu0
      %v1937 = vpop.f32.mrb[0].mxu0
      %1938 = vdwg.mxu0
      %1940 = vrot.lane.b32.xlu0 %v1935, 16
      %v1941 = vpop.permute.xlu0 %1940
      %1944 = vrot.lane.b32.xlu0 %v1933, 16
      %v1945 = vpop.permute.xlu0 %1944
      %v1946 = vsel %vm606, %v1945, %v1941
      %v1949 = vsel %vm606, %v1941, %v1945
      %v1950 = vld [vmem:[%s611] sm:$0x3]
      %v1952 = vlaneseq
      %v1953 = vshrl.u32 %v1952, 7
      %v1954 = vsub.s32 0, %v1953
      %v1955 = vrot.slane %v1950, %v1954
      %v1956 = vlaneseq
      %v1957 = vshrl.u32 %v1956, 7
      %v1958 = vsub.s32 1, %v1957
      %v1959 = vrot.slane %v1950, %v1958
      %v1962 = vmul.f32 %v1949, %v1955
      %v1963 = vmul.f32 %v1946, %v1959
      %v1964 = vadd.f32 %v1891, %v1962
      %v1965 = vadd.f32 %v1892, %v1963
      %s1966 = scalar_lea.vmem %s5, 4
      %v1967 = vld [vmem:[%s1966] sm:$0x3]
      %v1969 = vsel %vm1814, %v1967, 0
      %1971 = vmatprep.subr.bf16.mxu0 %v1823
      %1972 = vmatpush1.bf16.msra.mxu0 %v1820
      %1973 = vmatprep.subr.bf16.mxu0 0
      %1974 = vmatpush1.bf16.msra.mxu0 0
      %1975 = vmatprep.subr.bf16.mxu0 0
      %1976 = vmatpush1.bf16.msra.mxu0 0
      %1977 = vmatprep.subr.bf16.mxu0 0
      %1978 = vmatpush1.bf16.msra.mxu0 0
      %1979 = vmatprep.subr.bf16.mxu0 0
      %1980 = vmatpush1.bf16.msra.mxu0 0
      %1981 = vmatprep.subr.bf16.mxu0 0
      %1982 = vmatpush1.bf16.msra.mxu0 0
      %1983 = vmatprep.subr.bf16.mxu0 0
      %1984 = vmatpush1.bf16.msra.mxu0 0
      %1985 = vmatprep.subr.bf16.mxu0 0
      %1986 = vmatpush1.bf16.msra.mxu0 0
      %1987 = vmatprep.subr.bf16.mxu0 0
      %1988 = vmatpush1.bf16.msra.mxu0 0
      %1989 = vmatprep.subr.bf16.mxu0 0
      %1990 = vmatpush1.bf16.msra.mxu0 0
      %1991 = vmatprep.subr.bf16.mxu0 0
      %1992 = vmatpush1.bf16.msra.mxu0 0
      %1993 = vmatprep.subr.bf16.mxu0 0
      %1994 = vmatpush1.bf16.msra.mxu0 0
      %1995 = vmatprep.subr.bf16.mxu0 0
      %1996 = vmatpush1.bf16.msra.mxu0 0
      %1997 = vmatprep.subr.bf16.mxu0 0
      %1998 = vmatpush1.bf16.msra.mxu0 0
      %1999 = vmatprep.subr.bf16.mxu0 0
      %2000 = vmatpush1.bf16.msra.mxu0 0
      %2001 = vmatprep.subr.bf16.mxu0 0
      %2002 = vmatpush1.bf16.msra.mxu0 0
      %2003 = vmatprep.mubr.bf16.mxu0 0
      %2004 = vmatmul.mubr.bf16.gmra.mrb[0].mxu0 %v1969
      %v2005 = vpop.f32.mrb[0].mxu0
      %v2006 = vadd.f32 0.0, %v2005
      %v2007 = vpop.f32.mrb[0].mxu0
      %v2008 = vadd.f32 0.0, %v2007
      %v2009 = vpop.f32.mrb[0].mxu0
      %v2010 = vpop.f32.mrb[0].mxu0
      %2011 = vdwg.mxu0
      %2013 = vrot.lane.b32.xlu0 %v2008, 15
      %v2014 = vpop.permute.xlu0 %2013
      %2017 = vrot.lane.b32.xlu0 %v2006, 15
      %v2018 = vpop.permute.xlu0 %2017
      %v2019 = vsel %vm681, %v2018, %v2014
      %v2022 = vsel %vm681, %v2014, %v2018
      %v2023 = vld [vmem:[%s686] sm:$0x3]
      %v2025 = vlaneseq
      %v2026 = vshrl.u32 %v2025, 7
      %v2027 = vsub.s32 0, %v2026
      %v2028 = vrot.slane %v2023, %v2027
      %v2029 = vlaneseq
      %v2030 = vshrl.u32 %v2029, 7
      %v2031 = vsub.s32 1, %v2030
      %v2032 = vrot.slane %v2023, %v2031
      %v2035 = vmul.f32 %v2022, %v2028
      %v2036 = vmul.f32 %v2019, %v2032
      %v2037 = vadd.f32 %v1964, %v2035
      %v2038 = vadd.f32 %v1965, %v2036
      %s2039 = scalar_lea.vmem %s5, 6
      %v2040 = vld [vmem:[%s2039] sm:$0x3]
      %v2042 = vsel %vm1814, %v2040, 0
      %2044 = vmatprep.subr.bf16.mxu0 %v1823
      %2045 = vmatpush1.bf16.msra.mxu0 %v1820
      %2046 = vmatprep.subr.bf16.mxu0 0
      %2047 = vmatpush1.bf16.msra.mxu0 0
      %2048 = vmatprep.subr.bf16.mxu0 0
      %2049 = vmatpush1.bf16.msra.mxu0 0
      %2050 = vmatprep.subr.bf16.mxu0 0
      %2051 = vmatpush1.bf16.msra.mxu0 0
      %2052 = vmatprep.subr.bf16.mxu0 0
      %2053 = vmatpush1.bf16.msra.mxu0 0
      %2054 = vmatprep.subr.bf16.mxu0 0
      %2055 = vmatpush1.bf16.msra.mxu0 0
      %2056 = vmatprep.subr.bf16.mxu0 0
      %2057 = vmatpush1.bf16.msra.mxu0 0
      %2058 = vmatprep.subr.bf16.mxu0 0
      %2059 = vmatpush1.bf16.msra.mxu0 0
      %2060 = vmatprep.subr.bf16.mxu0 0
      %2061 = vmatpush1.bf16.msra.mxu0 0
      %2062 = vmatprep.subr.bf16.mxu0 0
      %2063 = vmatpush1.bf16.msra.mxu0 0
      %2064 = vmatprep.subr.bf16.mxu0 0
      %2065 = vmatpush1.bf16.msra.mxu0 0
      %2066 = vmatprep.subr.bf16.mxu0 0
      %2067 = vmatpush1.bf16.msra.mxu0 0
      %2068 = vmatprep.subr.bf16.mxu0 0
      %2069 = vmatpush1.bf16.msra.mxu0 0
      %2070 = vmatprep.subr.bf16.mxu0 0
      %2071 = vmatpush1.bf16.msra.mxu0 0
      %2072 = vmatprep.subr.bf16.mxu0 0
      %2073 = vmatpush1.bf16.msra.mxu0 0
      %2074 = vmatprep.subr.bf16.mxu0 0
      %2075 = vmatpush1.bf16.msra.mxu0 0
      %2076 = vmatprep.mubr.bf16.mxu0 0
      %2077 = vmatmul.mubr.bf16.gmra.mrb[0].mxu0 %v2042
      %v2078 = vpop.f32.mrb[0].mxu0
      %v2079 = vadd.f32 0.0, %v2078
      %v2080 = vpop.f32.mrb[0].mxu0
      %v2081 = vadd.f32 0.0, %v2080
      %v2082 = vpop.f32.mrb[0].mxu0
      %v2083 = vpop.f32.mrb[0].mxu0
      %2084 = vdwg.mxu0
      %2086 = vrot.lane.b32.xlu0 %v2081, 1
      %v2087 = vpop.permute.xlu0 %2086
      %2090 = vrot.lane.b32.xlu0 %v2079, 1
      %v2091 = vpop.permute.xlu0 %2090
      %v2092 = vsel %vm756, %v2091, %v2087
      %v2095 = vsel %vm756, %v2087, %v2091
      %v2096 = vld [vmem:[%s761] sm:$0x3]
      %v2098 = vlaneseq
      %v2099 = vshrl.u32 %v2098, 7
      %v2100 = vsub.s32 0, %v2099
      %v2101 = vrot.slane %v2096, %v2100
      %v2102 = vlaneseq
      %v2103 = vshrl.u32 %v2102, 7
      %v2104 = vsub.s32 1, %v2103
      %v2105 = vrot.slane %v2096, %v2104
      %v2108 = vmul.f32 %v2095, %v2101
      %v2109 = vmul.f32 %v2092, %v2105
      %v2110 = vadd.f32 %v2037, %v2108
      %v2111 = vadd.f32 %v2038, %v2109
      %s2112 = scalar_lea.vmem %s5, 8
      %v2113 = vld [vmem:[%s2112] sm:$0x3]
      %v2115 = vsel %vm1814, %v2113, 0
      %2117 = vmatprep.subr.bf16.mxu0 %v1823
      %2118 = vmatpush1.bf16.msra.mxu0 %v1820
      %2119 = vmatprep.subr.bf16.mxu0 0
      %2120 = vmatpush1.bf16.msra.mxu0 0
      %2121 = vmatprep.subr.bf16.mxu0 0
      %2122 = vmatpush1.bf16.msra.mxu0 0
      %2123 = vmatprep.subr.bf16.mxu0 0
      %2124 = vmatpush1.bf16.msra.mxu0 0
      %2125 = vmatprep.subr.bf16.mxu0 0
      %2126 = vmatpush1.bf16.msra.mxu0 0
      %2127 = vmatprep.subr.bf16.mxu0 0
      %2128 = vmatpush1.bf16.msra.mxu0 0
      %2129 = vmatprep.subr.bf16.mxu0 0
      %2130 = vmatpush1.bf16.msra.mxu0 0
      %2131 = vmatprep.subr.bf16.mxu0 0
      %2132 = vmatpush1.bf16.msra.mxu0 0
      %2133 = vmatprep.subr.bf16.mxu0 0
      %2134 = vmatpush1.bf16.msra.mxu0 0
      %2135 = vmatprep.subr.bf16.mxu0 0
      %2136 = vmatpush1.bf16.msra.mxu0 0
      %2137 = vmatprep.subr.bf16.mxu0 0
      %2138 = vmatpush1.bf16.msra.mxu0 0
      %2139 = vmatprep.subr.bf16.mxu0 0
      %2140 = vmatpush1.bf16.msra.mxu0 0
      %2141 = vmatprep.subr.bf16.mxu0 0
      %2142 = vmatpush1.bf16.msra.mxu0 0
      %2143 = vmatprep.subr.bf16.mxu0 0
      %2144 = vmatpush1.bf16.msra.mxu0 0
      %2145 = vmatprep.subr.bf16.mxu0 0
      %2146 = vmatpush1.bf16.msra.mxu0 0
      %2147 = vmatprep.subr.bf16.mxu0 0
      %2148 = vmatpush1.bf16.msra.mxu0 0
      %2149 = vmatprep.mubr.bf16.mxu0 0
      %2150 = vmatmul.mubr.bf16.gmra.mrb[0].mxu0 %v2115
      %v2151 = vpop.f32.mrb[0].mxu0
      %v2152 = vadd.f32 0.0, %v2151
      %v2153 = vpop.f32.mrb[0].mxu0
      %v2154 = vadd.f32 0.0, %v2153
      %v2155 = vpop.f32.mrb[0].mxu0
      %v2156 = vpop.f32.mrb[0].mxu0
      %2157 = vdwg.mxu0
      %v2158 = vadd.f32 %v2110, %v2152
      %v2159 = vadd.f32 %v2111, %v2154
      %s2160 = scalar_lea.vmem %s5, 10
      %v2161 = vld [vmem:[%s2160] sm:$0x3]
      %v2163 = vsel %vm1814, %v2161, 0
      %2165 = vmatprep.subr.bf16.mxu0 %v1823
      %2166 = vmatpush1.bf16.msra.mxu0 %v1820
      %2167 = vmatprep.subr.bf16.mxu0 0
      %2168 = vmatpush1.bf16.msra.mxu0 0
      %2169 = vmatprep.subr.bf16.mxu0 0
      %2170 = vmatpush1.bf16.msra.mxu0 0
      %2171 = vmatprep.subr.bf16.mxu0 0
      %2172 = vmatpush1.bf16.msra.mxu0 0
      %2173 = vmatprep.subr.bf16.mxu0 0
      %2174 = vmatpush1.bf16.msra.mxu0 0
      %2175 = vmatprep.subr.bf16.mxu0 0
      %2176 = vmatpush1.bf16.msra.mxu0 0
      %2177 = vmatprep.subr.bf16.mxu0 0
      %2178 = vmatpush1.bf16.msra.mxu0 0
      %2179 = vmatprep.subr.bf16.mxu0 0
      %2180 = vmatpush1.bf16.msra.mxu0 0
      %2181 = vmatprep.subr.bf16.mxu0 0
      %2182 = vmatpush1.bf16.msra.mxu0 0
      %2183 = vmatprep.subr.bf16.mxu0 0
      %2184 = vmatpush1.bf16.msra.mxu0 0
      %2185 = vmatprep.subr.bf16.mxu0 0
      %2186 = vmatpush1.bf16.msra.mxu0 0
      %2187 = vmatprep.subr.bf16.mxu0 0
      %2188 = vmatpush1.bf16.msra.mxu0 0
      %2189 = vmatprep.subr.bf16.mxu0 0
      %2190 = vmatpush1.bf16.msra.mxu0 0
      %2191 = vmatprep.subr.bf16.mxu0 0
      %2192 = vmatpush1.bf16.msra.mxu0 0
      %2193 = vmatprep.subr.bf16.mxu0 0
      %2194 = vmatpush1.bf16.msra.mxu0 0
      %2195 = vmatprep.subr.bf16.mxu0 0
      %2196 = vmatpush1.bf16.msra.mxu0 0
      %2197 = vmatprep.mubr.bf16.mxu0 0
      %2198 = vmatmul.mubr.bf16.gmra.mrb[0].mxu0 %v2163
      %v2199 = vpop.f32.mrb[0].mxu0
      %v2200 = vadd.f32 0.0, %v2199
      %v2201 = vpop.f32.mrb[0].mxu0
      %v2202 = vadd.f32 0.0, %v2201
      %v2203 = vpop.f32.mrb[0].mxu0
      %v2204 = vpop.f32.mrb[0].mxu0
      %2205 = vdwg.mxu0
      %2208 = vrot.lane.b32.xlu0 %v2200, 127
      %v2209 = vpop.permute.xlu0 %2208
      %2210 = vrot.lane.b32.xlu0 %v2202, 127
      %v2211 = vpop.permute.xlu0 %2210
      %v2212 = vsel %vm878, %v2209, %v2211
      %v2216 = vsel %vm878, %v2211, %v2209
      %v2217 = vld [vmem:[%s884] sm:$0x3]
      %v2219 = vlaneseq
      %v2220 = vshrl.u32 %v2219, 7
      %v2221 = vsub.s32 0, %v2220
      %v2222 = vrot.slane %v2217, %v2221
      %v2223 = vlaneseq
      %v2224 = vshrl.u32 %v2223, 7
      %v2225 = vsub.s32 1, %v2224
      %v2226 = vrot.slane %v2217, %v2225
      %v2229 = vmul.f32 %v2212, %v2222
      %v2230 = vmul.f32 %v2216, %v2226
      %v2231 = vadd.f32 %v2158, %v2229
      %v2232 = vadd.f32 %v2159, %v2230
      %s2233 = scalar_lea.vmem %s5, 12
      %v2234 = vld [vmem:[%s2233] sm:$0x3]
      %v2236 = vsel %vm1814, %v2234, 0
      %2238 = vmatprep.subr.bf16.mxu0 %v1823
      %2239 = vmatpush1.bf16.msra.mxu0 %v1820
      %2240 = vmatprep.subr.bf16.mxu0 0
      %2241 = vmatpush1.bf16.msra.mxu0 0
      %2242 = vmatprep.subr.bf16.mxu0 0
      %2243 = vmatpush1.bf16.msra.mxu0 0
      %2244 = vmatprep.subr.bf16.mxu0 0
      %2245 = vmatpush1.bf16.msra.mxu0 0
      %2246 = vmatprep.subr.bf16.mxu0 0
      %2247 = vmatpush1.bf16.msra.mxu0 0
      %2248 = vmatprep.subr.bf16.mxu0 0
      %2249 = vmatpush1.bf16.msra.mxu0 0
      %2250 = vmatprep.subr.bf16.mxu0 0
      %2251 = vmatpush1.bf16.msra.mxu0 0
      %2252 = vmatprep.subr.bf16.mxu0 0
      %2253 = vmatpush1.bf16.msra.mxu0 0
      %2254 = vmatprep.subr.bf16.mxu0 0
      %2255 = vmatpush1.bf16.msra.mxu0 0
      %2256 = vmatprep.subr.bf16.mxu0 0
      %2257 = vmatpush1.bf16.msra.mxu0 0
      %2258 = vmatprep.subr.bf16.mxu0 0
      %2259 = vmatpush1.bf16.msra.mxu0 0
      %2260 = vmatprep.subr.bf16.mxu0 0
      %2261 = vmatpush1.bf16.msra.mxu0 0
      %2262 = vmatprep.subr.bf16.mxu0 0
      %2263 = vmatpush1.bf16.msra.mxu0 0
      %2264 = vmatprep.subr.bf16.mxu0 0
      %2265 = vmatpush1.bf16.msra.mxu0 0
      %2266 = vmatprep.subr.bf16.mxu0 0
      %2267 = vmatpush1.bf16.msra.mxu0 0
      %2268 = vmatprep.subr.bf16.mxu0 0
      %2269 = vmatpush1.bf16.msra.mxu0 0
      %2270 = vmatprep.mubr.bf16.mxu0 0
      %2271 = vmatmul.mubr.bf16.gmra.mrb[0].mxu0 %v2236
      %v2272 = vpop.f32.mrb[0].mxu0
      %v2273 = vadd.f32 0.0, %v2272
      %v2274 = vpop.f32.mrb[0].mxu0
      %v2275 = vadd.f32 0.0, %v2274
      %v2276 = vpop.f32.mrb[0].mxu0
      %v2277 = vpop.f32.mrb[0].mxu0
      %2278 = vdwg.mxu0
      %2281 = vrot.lane.b32.xlu0 %v2273, 113
      %v2282 = vpop.permute.xlu0 %2281
      %2283 = vrot.lane.b32.xlu0 %v2275, 113
      %v2284 = vpop.permute.xlu0 %2283
      %v2285 = vsel %vm953, %v2282, %v2284
      %v2289 = vsel %vm953, %v2284, %v2282
      %v2290 = vld [vmem:[%s959] sm:$0x3]
      %v2292 = vlaneseq
      %v2293 = vshrl.u32 %v2292, 7
      %v2294 = vsub.s32 0, %v2293
      %v2295 = vrot.slane %v2290, %v2294
      %v2296 = vlaneseq
      %v2297 = vshrl.u32 %v2296, 7
      %v2298 = vsub.s32 1, %v2297
      %v2299 = vrot.slane %v2290, %v2298
      %v2302 = vmul.f32 %v2285, %v2295
      %v2303 = vmul.f32 %v2289, %v2299
      %v2304 = vadd.f32 %v2231, %v2302
      %v2305 = vadd.f32 %v2232, %v2303
      %s2306 = scalar_lea.vmem %s5, 14
      %v2307 = vld [vmem:[%s2306] sm:$0x3]
      %v2309 = vsel %vm1814, %v2307, 0
      %2311 = vmatprep.subr.bf16.mxu0 %v1823
      %2312 = vmatpush1.bf16.msra.mxu0 %v1820
      %2313 = vmatprep.subr.bf16.mxu0 0
      %2314 = vmatpush1.bf16.msra.mxu0 0
      %2315 = vmatprep.subr.bf16.mxu0 0
      %2316 = vmatpush1.bf16.msra.mxu0 0
      %2317 = vmatprep.subr.bf16.mxu0 0
      %2318 = vmatpush1.bf16.msra.mxu0 0
      %2319 = vmatprep.subr.bf16.mxu0 0
      %2320 = vmatpush1.bf16.msra.mxu0 0
      %2321 = vmatprep.subr.bf16.mxu0 0
      %2322 = vmatpush1.bf16.msra.mxu0 0
      %2323 = vmatprep.subr.bf16.mxu0 0
      %2324 = vmatpush1.bf16.msra.mxu0 0
      %2325 = vmatprep.subr.bf16.mxu0 0
      %2326 = vmatpush1.bf16.msra.mxu0 0
      %2327 = vmatprep.subr.bf16.mxu0 0
      %2328 = vmatpush1.bf16.msra.mxu0 0
      %2329 = vmatprep.subr.bf16.mxu0 0
      %2330 = vmatpush1.bf16.msra.mxu0 0
      %2331 = vmatprep.subr.bf16.mxu0 0
      %2332 = vmatpush1.bf16.msra.mxu0 0
      %2333 = vmatprep.subr.bf16.mxu0 0
      %2334 = vmatpush1.bf16.msra.mxu0 0
      %2335 = vmatprep.subr.bf16.mxu0 0
      %2336 = vmatpush1.bf16.msra.mxu0 0
      %2337 = vmatprep.subr.bf16.mxu0 0
      %2338 = vmatpush1.bf16.msra.mxu0 0
      %2339 = vmatprep.subr.bf16.mxu0 0
      %2340 = vmatpush1.bf16.msra.mxu0 0
      %2341 = vmatprep.subr.bf16.mxu0 0
      %2342 = vmatpush1.bf16.msra.mxu0 0
      %2343 = vmatprep.mubr.bf16.mxu0 0
      %2344 = vmatmul.mubr.bf16.gmra.mrb[0].mxu0 %v2309
      %v2345 = vpop.f32.mrb[0].mxu0
      %v2346 = vadd.f32 0.0, %v2345
      %v2347 = vpop.f32.mrb[0].mxu0
      %v2348 = vadd.f32 0.0, %v2347
      %v2349 = vpop.f32.mrb[0].mxu0
      %v2350 = vpop.f32.mrb[0].mxu0
      %2351 = vdwg.mxu0
      %2354 = vrot.lane.b32.xlu0 %v2346, 112
      %v2355 = vpop.permute.xlu0 %2354
      %2356 = vrot.lane.b32.xlu0 %v2348, 112
      %v2357 = vpop.permute.xlu0 %2356
      %v2358 = vsel %vm1028, %v2355, %v2357
      %v2362 = vsel %vm1028, %v2357, %v2355
      %v2363 = vld [vmem:[%s1034] sm:$0x3]
      %v2365 = vlaneseq
      %v2366 = vshrl.u32 %v2365, 7
      %v2367 = vsub.s32 0, %v2366
      %v2368 = vrot.slane %v2363, %v2367
      %v2369 = vlaneseq
      %v2370 = vshrl.u32 %v2369, 7
      %v2371 = vsub.s32 1, %v2370
      %v2372 = vrot.slane %v2363, %v2371
      %v2375 = vmul.f32 %v2358, %v2368
      %v2376 = vmul.f32 %v2362, %v2372
      %v2377 = vadd.f32 %v2304, %v2375
      %v2378 = vadd.f32 %v2305, %v2376
      %s2379 = scalar_lea.vmem %s5, 16
      %v2380 = vld [vmem:[%s2379] sm:$0x3]
      %v2382 = vsel %vm1814, %v2380, 0
      %2384 = vmatprep.subr.bf16.mxu0 %v1823
      %2385 = vmatpush1.bf16.msra.mxu0 %v1820
      %2386 = vmatprep.subr.bf16.mxu0 0
      %2387 = vmatpush1.bf16.msra.mxu0 0
      %2388 = vmatprep.subr.bf16.mxu0 0
      %2389 = vmatpush1.bf16.msra.mxu0 0
      %2390 = vmatprep.subr.bf16.mxu0 0
      %2391 = vmatpush1.bf16.msra.mxu0 0
      %2392 = vmatprep.subr.bf16.mxu0 0
      %2393 = vmatpush1.bf16.msra.mxu0 0
      %2394 = vmatprep.subr.bf16.mxu0 0
      %2395 = vmatpush1.bf16.msra.mxu0 0
      %2396 = vmatprep.subr.bf16.mxu0 0
      %2397 = vmatpush1.bf16.msra.mxu0 0
      %2398 = vmatprep.subr.bf16.mxu0 0
      %2399 = vmatpush1.bf16.msra.mxu0 0
      %2400 = vmatprep.subr.bf16.mxu0 0
      %2401 = vmatpush1.bf16.msra.mxu0 0
      %2402 = vmatprep.subr.bf16.mxu0 0
      %2403 = vmatpush1.bf16.msra.mxu0 0
      %2404 = vmatprep.subr.bf16.mxu0 0
      %2405 = vmatpush1.bf16.msra.mxu0 0
      %2406 = vmatprep.subr.bf16.mxu0 0
      %2407 = vmatpush1.bf16.msra.mxu0 0
      %2408 = vmatprep.subr.bf16.mxu0 0
      %2409 = vmatpush1.bf16.msra.mxu0 0
      %2410 = vmatprep.subr.bf16.mxu0 0
      %2411 = vmatpush1.bf16.msra.mxu0 0
      %2412 = vmatprep.subr.bf16.mxu0 0
      %2413 = vmatpush1.bf16.msra.mxu0 0
      %2414 = vmatprep.subr.bf16.mxu0 0
      %2415 = vmatpush1.bf16.msra.mxu0 0
      %2416 = vmatprep.mubr.bf16.mxu0 0
      %2417 = vmatmul.mubr.bf16.gmra.mrb[0].mxu0 %v2382
      %v2418 = vpop.f32.mrb[0].mxu0
      %v2419 = vadd.f32 0.0, %v2418
      %v2420 = vpop.f32.mrb[0].mxu0
      %v2421 = vadd.f32 0.0, %v2420
      %v2422 = vpop.f32.mrb[0].mxu0
      %v2423 = vpop.f32.mrb[0].mxu0
      %2424 = vdwg.mxu0
      %2427 = vrot.lane.b32.xlu0 %v2419, 111
      %v2428 = vpop.permute.xlu0 %2427
      %2429 = vrot.lane.b32.xlu0 %v2421, 111
      %v2430 = vpop.permute.xlu0 %2429
      %v2431 = vsel %vm1103, %v2428, %v2430
      %v2435 = vsel %vm1103, %v2430, %v2428
      %v2436 = vld [vmem:[%s1109] sm:$0x3]
      %v2438 = vlaneseq
      %v2439 = vshrl.u32 %v2438, 7
      %v2440 = vsub.s32 0, %v2439
      %v2441 = vrot.slane %v2436, %v2440
      %v2442 = vlaneseq
      %v2443 = vshrl.u32 %v2442, 7
      %v2444 = vsub.s32 1, %v2443
      %v2445 = vrot.slane %v2436, %v2444
      %v2448 = vmul.f32 %v2431, %v2441
      %v2449 = vmul.f32 %v2435, %v2445
      %v2450 = vadd.f32 %v2377, %v2448
      %v2451 = vadd.f32 %v2378, %v2449
      %v2452 = vld [vmem:[%s10] sm:$0xf]
      %2454 = vset.pattern.permute.xlu0 0
      %2455 = vperm.xlu0 %2454, %v2452
      %v2456 = vpop.permute.xlu0 %2455
      %v2458 = vadd.f32 %v2450, %v2456
      %v2459 = vadd.f32 %v2451, %v2456
      %vm2460 = vcmp.ge.f32.partialorder %v2458, 0.0
      %vm2461 = vcmp.ge.f32.partialorder %v2459, 0.0
      %v2462 = vmul.f32 %v2458, 0.2
      %v2463 = vmul.f32 %v2459, 0.2
      %v2464 = vsel %vm2460, %v2458, %v2462
      %v2465 = vsel %vm2461, %v2459, %v2463
      %v2468 = vrot.slane %v2464, 4
      %v2469 = vrot.slane %v2465, 4
      %2472 = vst [vmem:[#allocation2 + $0x10] sm:$0xf0] %v2468
      %2473 = vst [vmem:[#allocation2 + $0x18] sm:$0xf0] %v2469
      %v2474 = vld [vmem:[#allocation2] sm:$0xff]
      %v2475 = vld [vmem:[#allocation2 + $0x8] sm:$0xff]
      %v2476 = vld [vmem:[#allocation2 + $0x10] sm:$0xff]
      %v2477 = vld [vmem:[#allocation2 + $0x18] sm:$0xff]
      %v2478 = vpack.c.bf16 %v2476, %v2474
      %v2479 = vpack.c.bf16 %v2477, %v2475
      %v2480 = vld [vmem:[%s6] sm:$0x3]
      %v2482 = vsel %vm606, %v2480, 0
      %2484 = vmatprep.subr.bf16.mxu0 %v2479
      %2485 = vmatpush1.bf16.msra.mxu0 %v2478
      %2486 = vmatprep.subr.bf16.mxu0 0
      %2487 = vmatpush1.bf16.msra.mxu0 0
      %2488 = vmatprep.subr.bf16.mxu0 0
      %2489 = vmatpush1.bf16.msra.mxu0 0
      %2490 = vmatprep.subr.bf16.mxu0 0
      %2491 = vmatpush1.bf16.msra.mxu0 0
      %2492 = vmatprep.subr.bf16.mxu0 0
      %2493 = vmatpush1.bf16.msra.mxu0 0
      %2494 = vmatprep.subr.bf16.mxu0 0
      %2495 = vmatpush1.bf16.msra.mxu0 0
      %2496 = vmatprep.subr.bf16.mxu0 0
      %2497 = vmatpush1.bf16.msra.mxu0 0
      %2498 = vmatprep.subr.bf16.mxu0 0
      %2499 = vmatpush1.bf16.msra.mxu0 0
      %2500 = vmatprep.subr.bf16.mxu0 0
      %2501 = vmatpush1.bf16.msra.mxu0 0
      %2502 = vmatprep.subr.bf16.mxu0 0
      %2503 = vmatpush1.bf16.msra.mxu0 0
      %2504 = vmatprep.subr.bf16.mxu0 0
      %2505 = vmatpush1.bf16.msra.mxu0 0
      %2506 = vmatprep.subr.bf16.mxu0 0
      %2507 = vmatpush1.bf16.msra.mxu0 0
      %2508 = vmatprep.subr.bf16.mxu0 0
      %2509 = vmatpush1.bf16.msra.mxu0 0
      %2510 = vmatprep.subr.bf16.mxu0 0
      %2511 = vmatpush1.bf16.msra.mxu0 0
      %2512 = vmatprep.subr.bf16.mxu0 0
      %2513 = vmatpush1.bf16.msra.mxu0 0
      %2514 = vmatprep.subr.bf16.mxu0 0
      %2515 = vmatpush1.bf16.msra.mxu0 0
      %2516 = vmatprep.mubr.bf16.mxu0 0
      %2517 = vmatmul.mubr.bf16.gmra.mrb[0].mxu0 %v2482
      %v2518 = vpop.f32.mrb[0].mxu0
      %v2519 = vadd.f32 0.0, %v2518
      %v2520 = vpop.f32.mrb[0].mxu0
      %v2521 = vadd.f32 0.0, %v2520
      %v2522 = vpop.f32.mrb[0].mxu0
      %v2523 = vpop.f32.mrb[0].mxu0
      %2524 = vdwg.mxu0
      %2526 = vrot.lane.b32.xlu0 %v2521, 17
      %v2527 = vpop.permute.xlu0 %2526
      %2530 = vrot.lane.b32.xlu0 %v2519, 17
      %v2531 = vpop.permute.xlu0 %2530
      %v2532 = vsel %vm532, %v2531, %v2527
      %v2535 = vsel %vm532, %v2527, %v2531
      %v2536 = vld [vmem:[%s2] sm:$0x3]
      %v2538 = vlaneseq
      %v2539 = vshrl.u32 %v2538, 7
      %v2540 = vsub.s32 0, %v2539
      %v2541 = vrot.slane %v2536, %v2540
      %v2542 = vlaneseq
      %v2543 = vshrl.u32 %v2542, 7
      %v2544 = vsub.s32 1, %v2543
      %v2545 = vrot.slane %v2536, %v2544
      %v2548 = vmul.f32 %v2535, %v2541
      %v2549 = vmul.f32 %v2532, %v2545
      %v2550 = vadd.f32 %v2548, 0.0
      %v2551 = vadd.f32 %v2549, 0.0
      %s2552 = scalar_lea.vmem %s6, 2
      %v2553 = vld [vmem:[%s2552] sm:$0x3]
      %v2555 = vsel %vm606, %v2553, 0
      %2557 = vmatprep.subr.bf16.mxu0 %v2479
      %2558 = vmatpush1.bf16.msra.mxu0 %v2478
      %2559 = vmatprep.subr.bf16.mxu0 0
      %2560 = vmatpush1.bf16.msra.mxu0 0
      %2561 = vmatprep.subr.bf16.mxu0 0
      %2562 = vmatpush1.bf16.msra.mxu0 0
      %2563 = vmatprep.subr.bf16.mxu0 0
      %2564 = vmatpush1.bf16.msra.mxu0 0
      %2565 = vmatprep.subr.bf16.mxu0 0
      %2566 = vmatpush1.bf16.msra.mxu0 0
      %2567 = vmatprep.subr.bf16.mxu0 0
      %2568 = vmatpush1.bf16.msra.mxu0 0
      %2569 = vmatprep.subr.bf16.mxu0 0
      %2570 = vmatpush1.bf16.msra.mxu0 0
      %2571 = vmatprep.subr.bf16.mxu0 0
      %2572 = vmatpush1.bf16.msra.mxu0 0
      %2573 = vmatprep.subr.bf16.mxu0 0
      %2574 = vmatpush1.bf16.msra.mxu0 0
      %2575 = vmatprep.subr.bf16.mxu0 0
      %2576 = vmatpush1.bf16.msra.mxu0 0
      %2577 = vmatprep.subr.bf16.mxu0 0
      %2578 = vmatpush1.bf16.msra.mxu0 0
      %2579 = vmatprep.subr.bf16.mxu0 0
      %2580 = vmatpush1.bf16.msra.mxu0 0
      %2581 = vmatprep.subr.bf16.mxu0 0
      %2582 = vmatpush1.bf16.msra.mxu0 0
      %2583 = vmatprep.subr.bf16.mxu0 0
      %2584 = vmatpush1.bf16.msra.mxu0 0
      %2585 = vmatprep.subr.bf16.mxu0 0
      %2586 = vmatpush1.bf16.msra.mxu0 0
      %2587 = vmatprep.subr.bf16.mxu0 0
      %2588 = vmatpush1.bf16.msra.mxu0 0
      %2589 = vmatprep.mubr.bf16.mxu0 0
      %2590 = vmatmul.mubr.bf16.gmra.mrb[0].mxu0 %v2555
      %v2591 = vpop.f32.mrb[0].mxu0
      %v2592 = vadd.f32 0.0, %v2591
      %v2593 = vpop.f32.mrb[0].mxu0
      %v2594 = vadd.f32 0.0, %v2593
      %v2595 = vpop.f32.mrb[0].mxu0
      %v2596 = vpop.f32.mrb[0].mxu0
      %2597 = vdwg.mxu0
      %2599 = vrot.lane.b32.xlu0 %v2594, 16
      %v2600 = vpop.permute.xlu0 %2599
      %2603 = vrot.lane.b32.xlu0 %v2592, 16
      %v2604 = vpop.permute.xlu0 %2603
      %v2605 = vsel %vm606, %v2604, %v2600
      %v2608 = vsel %vm606, %v2600, %v2604
      %v2609 = vld [vmem:[%s611] sm:$0x3]
      %v2611 = vlaneseq
      %v2612 = vshrl.u32 %v2611, 7
      %v2613 = vsub.s32 0, %v2612
      %v2614 = vrot.slane %v2609, %v2613
      %v2615 = vlaneseq
      %v2616 = vshrl.u32 %v2615, 7
      %v2617 = vsub.s32 1, %v2616
      %v2618 = vrot.slane %v2609, %v2617
      %v2621 = vmul.f32 %v2608, %v2614
      %v2622 = vmul.f32 %v2605, %v2618
      %v2623 = vadd.f32 %v2550, %v2621
      %v2624 = vadd.f32 %v2551, %v2622
      %s2625 = scalar_lea.vmem %s6, 4
      %v2626 = vld [vmem:[%s2625] sm:$0x3]
      %v2628 = vsel %vm606, %v2626, 0
      %2630 = vmatprep.subr.bf16.mxu0 %v2479
      %2631 = vmatpush1.bf16.msra.mxu0 %v2478
      %2632 = vmatprep.subr.bf16.mxu0 0
      %2633 = vmatpush1.bf16.msra.mxu0 0
      %2634 = vmatprep.subr.bf16.mxu0 0
      %2635 = vmatpush1.bf16.msra.mxu0 0
      %2636 = vmatprep.subr.bf16.mxu0 0
      %2637 = vmatpush1.bf16.msra.mxu0 0
      %2638 = vmatprep.subr.bf16.mxu0 0
      %2639 = vmatpush1.bf16.msra.mxu0 0
      %2640 = vmatprep.subr.bf16.mxu0 0
      %2641 = vmatpush1.bf16.msra.mxu0 0
      %2642 = vmatprep.subr.bf16.mxu0 0
      %2643 = vmatpush1.bf16.msra.mxu0 0
      %2644 = vmatprep.subr.bf16.mxu0 0
      %2645 = vmatpush1.bf16.msra.mxu0 0
      %2646 = vmatprep.subr.bf16.mxu0 0
      %2647 = vmatpush1.bf16.msra.mxu0 0
      %2648 = vmatprep.subr.bf16.mxu0 0
      %2649 = vmatpush1.bf16.msra.mxu0 0
      %2650 = vmatprep.subr.bf16.mxu0 0
      %2651 = vmatpush1.bf16.msra.mxu0 0
      %2652 = vmatprep.subr.bf16.mxu0 0
      %2653 = vmatpush1.bf16.msra.mxu0 0
      %2654 = vmatprep.subr.bf16.mxu0 0
      %2655 = vmatpush1.bf16.msra.mxu0 0
      %2656 = vmatprep.subr.bf16.mxu0 0
      %2657 = vmatpush1.bf16.msra.mxu0 0
      %2658 = vmatprep.subr.bf16.mxu0 0
      %2659 = vmatpush1.bf16.msra.mxu0 0
      %2660 = vmatprep.subr.bf16.mxu0 0
      %2661 = vmatpush1.bf16.msra.mxu0 0
      %2662 = vmatprep.mubr.bf16.mxu0 0
      %2663 = vmatmul.mubr.bf16.gmra.mrb[0].mxu0 %v2628
      %v2664 = vpop.f32.mrb[0].mxu0
      %v2665 = vadd.f32 0.0, %v2664
      %v2666 = vpop.f32.mrb[0].mxu0
      %v2667 = vadd.f32 0.0, %v2666
      %v2668 = vpop.f32.mrb[0].mxu0
      %v2669 = vpop.f32.mrb[0].mxu0
      %2670 = vdwg.mxu0
      %2672 = vrot.lane.b32.xlu0 %v2667, 15
      %v2673 = vpop.permute.xlu0 %2672
      %2676 = vrot.lane.b32.xlu0 %v2665, 15
      %v2677 = vpop.permute.xlu0 %2676
      %v2678 = vsel %vm681, %v2677, %v2673
      %v2681 = vsel %vm681, %v2673, %v2677
      %v2682 = vld [vmem:[%s686] sm:$0x3]
      %v2684 = vlaneseq
      %v2685 = vshrl.u32 %v2684, 7
      %v2686 = vsub.s32 0, %v2685
      %v2687 = vrot.slane %v2682, %v2686
      %v2688 = vlaneseq
      %v2689 = vshrl.u32 %v2688, 7
      %v2690 = vsub.s32 1, %v2689
      %v2691 = vrot.slane %v2682, %v2690
      %v2694 = vmul.f32 %v2681, %v2687
      %v2695 = vmul.f32 %v2678, %v2691
      %v2696 = vadd.f32 %v2623, %v2694
      %v2697 = vadd.f32 %v2624, %v2695
      %s2698 = scalar_lea.vmem %s6, 6
      %v2699 = vld [vmem:[%s2698] sm:$0x3]
      %v2701 = vsel %vm606, %v2699, 0
      %2703 = vmatprep.subr.bf16.mxu0 %v2479
      %2704 = vmatpush1.bf16.msra.mxu0 %v2478
      %2705 = vmatprep.subr.bf16.mxu0 0
      %2706 = vmatpush1.bf16.msra.mxu0 0
      %2707 = vmatprep.subr.bf16.mxu0 0
      %2708 = vmatpush1.bf16.msra.mxu0 0
      %2709 = vmatprep.subr.bf16.mxu0 0
      %2710 = vmatpush1.bf16.msra.mxu0 0
      %2711 = vmatprep.subr.bf16.mxu0 0
      %2712 = vmatpush1.bf16.msra.mxu0 0
      %2713 = vmatprep.subr.bf16.mxu0 0
      %2714 = vmatpush1.bf16.msra.mxu0 0
      %2715 = vmatprep.subr.bf16.mxu0 0
      %2716 = vmatpush1.bf16.msra.mxu0 0
      %2717 = vmatprep.subr.bf16.mxu0 0
      %2718 = vmatpush1.bf16.msra.mxu0 0
      %2719 = vmatprep.subr.bf16.mxu0 0
      %2720 = vmatpush1.bf16.msra.mxu0 0
      %2721 = vmatprep.subr.bf16.mxu0 0
      %2722 = vmatpush1.bf16.msra.mxu0 0
      %2723 = vmatprep.subr.bf16.mxu0 0
      %2724 = vmatpush1.bf16.msra.mxu0 0
      %2725 = vmatprep.subr.bf16.mxu0 0
      %2726 = vmatpush1.bf16.msra.mxu0 0
      %2727 = vmatprep.subr.bf16.mxu0 0
      %2728 = vmatpush1.bf16.msra.mxu0 0
      %2729 = vmatprep.subr.bf16.mxu0 0
      %2730 = vmatpush1.bf16.msra.mxu0 0
      %2731 = vmatprep.subr.bf16.mxu0 0
      %2732 = vmatpush1.bf16.msra.mxu0 0
      %2733 = vmatprep.subr.bf16.mxu0 0
      %2734 = vmatpush1.bf16.msra.mxu0 0
      %2735 = vmatprep.mubr.bf16.mxu0 0
      %2736 = vmatmul.mubr.bf16.gmra.mrb[0].mxu0 %v2701
      %v2737 = vpop.f32.mrb[0].mxu0
      %v2738 = vadd.f32 0.0, %v2737
      %v2739 = vpop.f32.mrb[0].mxu0
      %v2740 = vadd.f32 0.0, %v2739
      %v2741 = vpop.f32.mrb[0].mxu0
      %v2742 = vpop.f32.mrb[0].mxu0
      %2743 = vdwg.mxu0
      %2745 = vrot.lane.b32.xlu0 %v2740, 1
      %v2746 = vpop.permute.xlu0 %2745
      %2749 = vrot.lane.b32.xlu0 %v2738, 1
      %v2750 = vpop.permute.xlu0 %2749
      %v2751 = vsel %vm756, %v2750, %v2746
      %v2754 = vsel %vm756, %v2746, %v2750
      %v2755 = vld [vmem:[%s761] sm:$0x3]
      %v2757 = vlaneseq
      %v2758 = vshrl.u32 %v2757, 7
      %v2759 = vsub.s32 0, %v2758
      %v2760 = vrot.slane %v2755, %v2759
      %v2761 = vlaneseq
      %v2762 = vshrl.u32 %v2761, 7
      %v2763 = vsub.s32 1, %v2762
      %v2764 = vrot.slane %v2755, %v2763
      %v2767 = vmul.f32 %v2754, %v2760
      %v2768 = vmul.f32 %v2751, %v2764
      %v2769 = vadd.f32 %v2696, %v2767
      %v2770 = vadd.f32 %v2697, %v2768
      %s2771 = scalar_lea.vmem %s6, 8
      %v2772 = vld [vmem:[%s2771] sm:$0x3]
      %v2774 = vsel %vm606, %v2772, 0
      %2776 = vmatprep.subr.bf16.mxu0 %v2479
      %2777 = vmatpush1.bf16.msra.mxu0 %v2478
      %2778 = vmatprep.subr.bf16.mxu0 0
      %2779 = vmatpush1.bf16.msra.mxu0 0
      %2780 = vmatprep.subr.bf16.mxu0 0
      %2781 = vmatpush1.bf16.msra.mxu0 0
      %2782 = vmatprep.subr.bf16.mxu0 0
      %2783 = vmatpush1.bf16.msra.mxu0 0
      %2784 = vmatprep.subr.bf16.mxu0 0
      %2785 = vmatpush1.bf16.msra.mxu0 0
      %2786 = vmatprep.subr.bf16.mxu0 0
      %2787 = vmatpush1.bf16.msra.mxu0 0
      %2788 = vmatprep.subr.bf16.mxu0 0
      %2789 = vmatpush1.bf16.msra.mxu0 0
      %2790 = vmatprep.subr.bf16.mxu0 0
      %2791 = vmatpush1.bf16.msra.mxu0 0
      %2792 = vmatprep.subr.bf16.mxu0 0
      %2793 = vmatpush1.bf16.msra.mxu0 0
      %2794 = vmatprep.subr.bf16.mxu0 0
      %2795 = vmatpush1.bf16.msra.mxu0 0
      %2796 = vmatprep.subr.bf16.mxu0 0
      %2797 = vmatpush1.bf16.msra.mxu0 0
      %2798 = vmatprep.subr.bf16.mxu0 0
      %2799 = vmatpush1.bf16.msra.mxu0 0
      %2800 = vmatprep.subr.bf16.mxu0 0
      %2801 = vmatpush1.bf16.msra.mxu0 0
      %2802 = vmatprep.subr.bf16.mxu0 0
      %2803 = vmatpush1.bf16.msra.mxu0 0
      %2804 = vmatprep.subr.bf16.mxu0 0
      %2805 = vmatpush1.bf16.msra.mxu0 0
      %2806 = vmatprep.subr.bf16.mxu0 0
      %2807 = vmatpush1.bf16.msra.mxu0 0
      %2808 = vmatprep.mubr.bf16.mxu0 0
      %2809 = vmatmul.mubr.bf16.gmra.mrb[0].mxu0 %v2774
      %v2810 = vpop.f32.mrb[0].mxu0
      %v2811 = vadd.f32 0.0, %v2810
      %v2812 = vpop.f32.mrb[0].mxu0
      %v2813 = vadd.f32 0.0, %v2812
      %v2814 = vpop.f32.mrb[0].mxu0
      %v2815 = vpop.f32.mrb[0].mxu0
      %2816 = vdwg.mxu0
      %v2817 = vadd.f32 %v2769, %v2811
      %v2818 = vadd.f32 %v2770, %v2813
      %s2819 = scalar_lea.vmem %s6, 10
      %v2820 = vld [vmem:[%s2819] sm:$0x3]
      %v2822 = vsel %vm606, %v2820, 0
      %2824 = vmatprep.subr.bf16.mxu0 %v2479
      %2825 = vmatpush1.bf16.msra.mxu0 %v2478
      %2826 = vmatprep.subr.bf16.mxu0 0
      %2827 = vmatpush1.bf16.msra.mxu0 0
      %2828 = vmatprep.subr.bf16.mxu0 0
      %2829 = vmatpush1.bf16.msra.mxu0 0
      %2830 = vmatprep.subr.bf16.mxu0 0
      %2831 = vmatpush1.bf16.msra.mxu0 0
      %2832 = vmatprep.subr.bf16.mxu0 0
      %2833 = vmatpush1.bf16.msra.mxu0 0
      %2834 = vmatprep.subr.bf16.mxu0 0
      %2835 = vmatpush1.bf16.msra.mxu0 0
      %2836 = vmatprep.subr.bf16.mxu0 0
      %2837 = vmatpush1.bf16.msra.mxu0 0
      %2838 = vmatprep.subr.bf16.mxu0 0
      %2839 = vmatpush1.bf16.msra.mxu0 0
      %2840 = vmatprep.subr.bf16.mxu0 0
      %2841 = vmatpush1.bf16.msra.mxu0 0
      %2842 = vmatprep.subr.bf16.mxu0 0
      %2843 = vmatpush1.bf16.msra.mxu0 0
      %2844 = vmatprep.subr.bf16.mxu0 0
      %2845 = vmatpush1.bf16.msra.mxu0 0
      %2846 = vmatprep.subr.bf16.mxu0 0
      %2847 = vmatpush1.bf16.msra.mxu0 0
      %2848 = vmatprep.subr.bf16.mxu0 0
      %2849 = vmatpush1.bf16.msra.mxu0 0
      %2850 = vmatprep.subr.bf16.mxu0 0
      %2851 = vmatpush1.bf16.msra.mxu0 0
      %2852 = vmatprep.subr.bf16.mxu0 0
      %2853 = vmatpush1.bf16.msra.mxu0 0
      %2854 = vmatprep.subr.bf16.mxu0 0
      %2855 = vmatpush1.bf16.msra.mxu0 0
      %2856 = vmatprep.mubr.bf16.mxu0 0
      %2857 = vmatmul.mubr.bf16.gmra.mrb[0].mxu0 %v2822
      %v2858 = vpop.f32.mrb[0].mxu0
      %v2859 = vadd.f32 0.0, %v2858
      %v2860 = vpop.f32.mrb[0].mxu0
      %v2861 = vadd.f32 0.0, %v2860
      %v2862 = vpop.f32.mrb[0].mxu0
      %v2863 = vpop.f32.mrb[0].mxu0
      %2864 = vdwg.mxu0
      %2867 = vrot.lane.b32.xlu0 %v2859, 127
      %v2868 = vpop.permute.xlu0 %2867
      %2869 = vrot.lane.b32.xlu0 %v2861, 127
      %v2870 = vpop.permute.xlu0 %2869
      %v2871 = vsel %vm878, %v2868, %v2870
      %v2875 = vsel %vm878, %v2870, %v2868
      %v2876 = vld [vmem:[%s884] sm:$0x3]
      %v2878 = vlaneseq
      %v2879 = vshrl.u32 %v2878, 7
      %v2880 = vsub.s32 0, %v2879
      %v2881 = vrot.slane %v2876, %v2880
      %v2882 = vlaneseq
      %v2883 = vshrl.u32 %v2882, 7
      %v2884 = vsub.s32 1, %v2883
      %v2885 = vrot.slane %v2876, %v2884
      %v2888 = vmul.f32 %v2871, %v2881
      %v2889 = vmul.f32 %v2875, %v2885
      %v2890 = vadd.f32 %v2817, %v2888
      %v2891 = vadd.f32 %v2818, %v2889
      %s2892 = scalar_lea.vmem %s6, 12
      %v2893 = vld [vmem:[%s2892] sm:$0x3]
      %v2895 = vsel %vm606, %v2893, 0
      %2897 = vmatprep.subr.bf16.mxu0 %v2479
      %2898 = vmatpush1.bf16.msra.mxu0 %v2478
      %2899 = vmatprep.subr.bf16.mxu0 0
      %2900 = vmatpush1.bf16.msra.mxu0 0
      %2901 = vmatprep.subr.bf16.mxu0 0
      %2902 = vmatpush1.bf16.msra.mxu0 0
      %2903 = vmatprep.subr.bf16.mxu0 0
      %2904 = vmatpush1.bf16.msra.mxu0 0
      %2905 = vmatprep.subr.bf16.mxu0 0
      %2906 = vmatpush1.bf16.msra.mxu0 0
      %2907 = vmatprep.subr.bf16.mxu0 0
      %2908 = vmatpush1.bf16.msra.mxu0 0
      %2909 = vmatprep.subr.bf16.mxu0 0
      %2910 = vmatpush1.bf16.msra.mxu0 0
      %2911 = vmatprep.subr.bf16.mxu0 0
      %2912 = vmatpush1.bf16.msra.mxu0 0
      %2913 = vmatprep.subr.bf16.mxu0 0
      %2914 = vmatpush1.bf16.msra.mxu0 0
      %2915 = vmatprep.subr.bf16.mxu0 0
      %2916 = vmatpush1.bf16.msra.mxu0 0
      %2917 = vmatprep.subr.bf16.mxu0 0
      %2918 = vmatpush1.bf16.msra.mxu0 0
      %2919 = vmatprep.subr.bf16.mxu0 0
      %2920 = vmatpush1.bf16.msra.mxu0 0
      %2921 = vmatprep.subr.bf16.mxu0 0
      %2922 = vmatpush1.bf16.msra.mxu0 0
      %2923 = vmatprep.subr.bf16.mxu0 0
      %2924 = vmatpush1.bf16.msra.mxu0 0
      %2925 = vmatprep.subr.bf16.mxu0 0
      %2926 = vmatpush1.bf16.msra.mxu0 0
      %2927 = vmatprep.subr.bf16.mxu0 0
      %2928 = vmatpush1.bf16.msra.mxu0 0
      %2929 = vmatprep.mubr.bf16.mxu0 0
      %2930 = vmatmul.mubr.bf16.gmra.mrb[0].mxu0 %v2895
      %v2931 = vpop.f32.mrb[0].mxu0
      %v2932 = vadd.f32 0.0, %v2931
      %v2933 = vpop.f32.mrb[0].mxu0
      %v2934 = vadd.f32 0.0, %v2933
      %v2935 = vpop.f32.mrb[0].mxu0
      %v2936 = vpop.f32.mrb[0].mxu0
      %2937 = vdwg.mxu0
      %2940 = vrot.lane.b32.xlu0 %v2932, 113
      %v2941 = vpop.permute.xlu0 %2940
      %2942 = vrot.lane.b32.xlu0 %v2934, 113
      %v2943 = vpop.permute.xlu0 %2942
      %v2944 = vsel %vm953, %v2941, %v2943
      %v2948 = vsel %vm953, %v2943, %v2941
      %v2949 = vld [vmem:[%s959] sm:$0x3]
      %v2951 = vlaneseq
      %v2952 = vshrl.u32 %v2951, 7
      %v2953 = vsub.s32 0, %v2952
      %v2954 = vrot.slane %v2949, %v2953
      %v2955 = vlaneseq
      %v2956 = vshrl.u32 %v2955, 7
      %v2957 = vsub.s32 1, %v2956
      %v2958 = vrot.slane %v2949, %v2957
      %v2961 = vmul.f32 %v2944, %v2954
      %v2962 = vmul.f32 %v2948, %v2958
      %v2963 = vadd.f32 %v2890, %v2961
      %v2964 = vadd.f32 %v2891, %v2962
      %s2965 = scalar_lea.vmem %s6, 14
      %v2966 = vld [vmem:[%s2965] sm:$0x3]
      %v2968 = vsel %vm606, %v2966, 0
      %2970 = vmatprep.subr.bf16.mxu0 %v2479
      %2971 = vmatpush1.bf16.msra.mxu0 %v2478
      %2972 = vmatprep.subr.bf16.mxu0 0
      %2973 = vmatpush1.bf16.msra.mxu0 0
      %2974 = vmatprep.subr.bf16.mxu0 0
      %2975 = vmatpush1.bf16.msra.mxu0 0
      %2976 = vmatprep.subr.bf16.mxu0 0
      %2977 = vmatpush1.bf16.msra.mxu0 0
      %2978 = vmatprep.subr.bf16.mxu0 0
      %2979 = vmatpush1.bf16.msra.mxu0 0
      %2980 = vmatprep.subr.bf16.mxu0 0
      %2981 = vmatpush1.bf16.msra.mxu0 0
      %2982 = vmatprep.subr.bf16.mxu0 0
      %2983 = vmatpush1.bf16.msra.mxu0 0
      %2984 = vmatprep.subr.bf16.mxu0 0
      %2985 = vmatpush1.bf16.msra.mxu0 0
      %2986 = vmatprep.subr.bf16.mxu0 0
      %2987 = vmatpush1.bf16.msra.mxu0 0
      %2988 = vmatprep.subr.bf16.mxu0 0
      %2989 = vmatpush1.bf16.msra.mxu0 0
      %2990 = vmatprep.subr.bf16.mxu0 0
      %2991 = vmatpush1.bf16.msra.mxu0 0
      %2992 = vmatprep.subr.bf16.mxu0 0
      %2993 = vmatpush1.bf16.msra.mxu0 0
      %2994 = vmatprep.subr.bf16.mxu0 0
      %2995 = vmatpush1.bf16.msra.mxu0 0
      %2996 = vmatprep.subr.bf16.mxu0 0
      %2997 = vmatpush1.bf16.msra.mxu0 0
      %2998 = vmatprep.subr.bf16.mxu0 0
      %2999 = vmatpush1.bf16.msra.mxu0 0
      %3000 = vmatprep.subr.bf16.mxu0 0
      %3001 = vmatpush1.bf16.msra.mxu0 0
      %3002 = vmatprep.mubr.bf16.mxu0 0
      %3003 = vmatmul.mubr.bf16.gmra.mrb[0].mxu0 %v2968
      %v3004 = vpop.f32.mrb[0].mxu0
      %v3005 = vadd.f32 0.0, %v3004
      %v3006 = vpop.f32.mrb[0].mxu0
      %v3007 = vadd.f32 0.0, %v3006
      %v3008 = vpop.f32.mrb[0].mxu0
      %v3009 = vpop.f32.mrb[0].mxu0
      %3010 = vdwg.mxu0
      %3013 = vrot.lane.b32.xlu0 %v3005, 112
      %v3014 = vpop.permute.xlu0 %3013
      %3015 = vrot.lane.b32.xlu0 %v3007, 112
      %v3016 = vpop.permute.xlu0 %3015
      %v3017 = vsel %vm1028, %v3014, %v3016
      %v3021 = vsel %vm1028, %v3016, %v3014
      %v3022 = vld [vmem:[%s1034] sm:$0x3]
      %v3024 = vlaneseq
      %v3025 = vshrl.u32 %v3024, 7
      %v3026 = vsub.s32 0, %v3025
      %v3027 = vrot.slane %v3022, %v3026
      %v3028 = vlaneseq
      %v3029 = vshrl.u32 %v3028, 7
      %v3030 = vsub.s32 1, %v3029
      %v3031 = vrot.slane %v3022, %v3030
      %v3034 = vmul.f32 %v3017, %v3027
      %v3035 = vmul.f32 %v3021, %v3031
      %v3036 = vadd.f32 %v2963, %v3034
      %v3037 = vadd.f32 %v2964, %v3035
      %s3038 = scalar_lea.vmem %s6, 16
      %v3039 = vld [vmem:[%s3038] sm:$0x3]
      %v3041 = vsel %vm606, %v3039, 0
      %3043 = vmatprep.subr.bf16.mxu0 %v2479
      %3044 = vmatpush1.bf16.msra.mxu0 %v2478
      %3045 = vmatprep.subr.bf16.mxu0 0
      %3046 = vmatpush1.bf16.msra.mxu0 0
      %3047 = vmatprep.subr.bf16.mxu0 0
      %3048 = vmatpush1.bf16.msra.mxu0 0
      %3049 = vmatprep.subr.bf16.mxu0 0
      %3050 = vmatpush1.bf16.msra.mxu0 0
      %3051 = vmatprep.subr.bf16.mxu0 0
      %3052 = vmatpush1.bf16.msra.mxu0 0
      %3053 = vmatprep.subr.bf16.mxu0 0
      %3054 = vmatpush1.bf16.msra.mxu0 0
      %3055 = vmatprep.subr.bf16.mxu0 0
      %3056 = vmatpush1.bf16.msra.mxu0 0
      %3057 = vmatprep.subr.bf16.mxu0 0
      %3058 = vmatpush1.bf16.msra.mxu0 0
      %3059 = vmatprep.subr.bf16.mxu0 0
      %3060 = vmatpush1.bf16.msra.mxu0 0
      %3061 = vmatprep.subr.bf16.mxu0 0
      %3062 = vmatpush1.bf16.msra.mxu0 0
      %3063 = vmatprep.subr.bf16.mxu0 0
      %3064 = vmatpush1.bf16.msra.mxu0 0
      %3065 = vmatprep.subr.bf16.mxu0 0
      %3066 = vmatpush1.bf16.msra.mxu0 0
      %3067 = vmatprep.subr.bf16.mxu0 0
      %3068 = vmatpush1.bf16.msra.mxu0 0
      %3069 = vmatprep.subr.bf16.mxu0 0
      %3070 = vmatpush1.bf16.msra.mxu0 0
      %3071 = vmatprep.subr.bf16.mxu0 0
      %3072 = vmatpush1.bf16.msra.mxu0 0
      %3073 = vmatprep.subr.bf16.mxu0 0
      %3074 = vmatpush1.bf16.msra.mxu0 0
      %3075 = vmatprep.mubr.bf16.mxu0 0
      %3076 = vmatmul.mubr.bf16.gmra.mrb[0].mxu0 %v3041
      %v3077 = vpop.f32.mrb[0].mxu0
      %v3078 = vadd.f32 0.0, %v3077
      %v3079 = vpop.f32.mrb[0].mxu0
      %v3080 = vadd.f32 0.0, %v3079
      %v3081 = vpop.f32.mrb[0].mxu0
      %v3082 = vpop.f32.mrb[0].mxu0
      %3083 = vdwg.mxu0
      %3086 = vrot.lane.b32.xlu0 %v3078, 111
      %v3087 = vpop.permute.xlu0 %3086
      %3088 = vrot.lane.b32.xlu0 %v3080, 111
      %v3089 = vpop.permute.xlu0 %3088
      %v3090 = vsel %vm1103, %v3087, %v3089
      %v3094 = vsel %vm1103, %v3089, %v3087
      %v3095 = vld [vmem:[%s1109] sm:$0x3]
      %v3097 = vlaneseq
      %v3098 = vshrl.u32 %v3097, 7
      %v3099 = vsub.s32 0, %v3098
      %v3100 = vrot.slane %v3095, %v3099
      %v3101 = vlaneseq
      %v3102 = vshrl.u32 %v3101, 7
      %v3103 = vsub.s32 1, %v3102
      %v3104 = vrot.slane %v3095, %v3103
      %v3107 = vmul.f32 %v3090, %v3100
      %v3108 = vmul.f32 %v3094, %v3104
      %v3109 = vadd.f32 %v3036, %v3107
      %v3110 = vadd.f32 %v3037, %v3108
      %v3111 = vld [vmem:[%s11] sm:$0xf]
      %3113 = vset.pattern.permute.xlu0 0
      %3114 = vperm.xlu0 %3113, %v3111
      %v3115 = vpop.permute.xlu0 %3114
      %v3117 = vadd.f32 %v3109, %v3115
      %v3118 = vadd.f32 %v3110, %v3115
      %vm3119 = vcmp.ge.f32.partialorder %v3117, 0.0
      %vm3120 = vcmp.ge.f32.partialorder %v3118, 0.0
      %v3121 = vmul.f32 %v3117, 0.2
      %v3122 = vmul.f32 %v3118, 0.2
      %v3123 = vsel %vm3119, %v3117, %v3121
      %v3124 = vsel %vm3120, %v3118, %v3122
      %3125 = vst [vmem:[#allocation2 + $0x20] sm:$0xf] %v3123
      %3126 = vst [vmem:[#allocation2 + $0x28] sm:$0xf] %v3124
      %v3127 = vld [vmem:[#allocation2] sm:$0xff]
      %v3128 = vld [vmem:[#allocation2 + $0x8] sm:$0xff]
      %v3129 = vld [vmem:[#allocation2 + $0x10] sm:$0xff]
      %v3130 = vld [vmem:[#allocation2 + $0x18] sm:$0xff]
      %v3131 = vld [vmem:[#allocation2 + $0x20] sm:$0xf]
      %v3132 = vld [vmem:[#allocation2 + $0x28] sm:$0xf]
      %v3133 = vpack.c.bf16 %v3129, %v3127
      %v3134 = vpack.c.bf16 %v3130, %v3128
      %v3135 = vpack.c.bf16 %v3131, %v3131
      %v3136 = vpack.c.bf16 %v3132, %v3132
      %v3137 = vld [vmem:[%s7] sm:$0x3]
      %vm3138 = vcmask 162816
      %v3140 = vsel %vm3138, %v3137, 0
      %v3143 = vsel %vm477, %v3135, 0
      %v3146 = vsel %vm477, %v3136, 0
      %3148 = vmatprep.subr.bf16.mxu0 %v3134
      %3149 = vmatpush1.bf16.msra.mxu0 %v3133
      %3150 = vmatprep.subr.bf16.mxu0 %v3146
      %3151 = vmatpush1.bf16.msra.mxu0 %v3143
      %3152 = vmatprep.subr.bf16.mxu0 0
      %3153 = vmatpush1.bf16.msra.mxu0 0
      %3154 = vmatprep.subr.bf16.mxu0 0
      %3155 = vmatpush1.bf16.msra.mxu0 0
      %3156 = vmatprep.subr.bf16.mxu0 0
      %3157 = vmatpush1.bf16.msra.mxu0 0
      %3158 = vmatprep.subr.bf16.mxu0 0
      %3159 = vmatpush1.bf16.msra.mxu0 0
      %3160 = vmatprep.subr.bf16.mxu0 0
      %3161 = vmatpush1.bf16.msra.mxu0 0
      %3162 = vmatprep.subr.bf16.mxu0 0
      %3163 = vmatpush1.bf16.msra.mxu0 0
      %3164 = vmatprep.subr.bf16.mxu0 0
      %3165 = vmatpush1.bf16.msra.mxu0 0
      %3166 = vmatprep.subr.bf16.mxu0 0
      %3167 = vmatpush1.bf16.msra.mxu0 0
      %3168 = vmatprep.subr.bf16.mxu0 0
      %3169 = vmatpush1.bf16.msra.mxu0 0
      %3170 = vmatprep.subr.bf16.mxu0 0
      %3171 = vmatpush1.bf16.msra.mxu0 0
      %3172 = vmatprep.subr.bf16.mxu0 0
      %3173 = vmatpush1.bf16.msra.mxu0 0
      %3174 = vmatprep.subr.bf16.mxu0 0
      %3175 = vmatpush1.bf16.msra.mxu0 0
      %3176 = vmatprep.subr.bf16.mxu0 0
      %3177 = vmatpush1.bf16.msra.mxu0 0
      %3178 = vmatprep.subr.bf16.mxu0 0
      %3179 = vmatpush1.bf16.msra.mxu0 0
      %3180 = vmatprep.mubr.bf16.mxu0 0
      %3181 = vmatmul.mubr.bf16.gmra.mrb[0].mxu0 %v3140
      %v3182 = vpop.f32.mrb[0].mxu0
      %v3183 = vadd.f32 0.0, %v3182
      %v3184 = vpop.f32.mrb[0].mxu0
      %v3185 = vadd.f32 0.0, %v3184
      %v3186 = vpop.f32.mrb[0].mxu0
      %v3187 = vpop.f32.mrb[0].mxu0
      %3188 = vdwg.mxu0
      %3190 = vrot.lane.b32.xlu0 %v3185, 17
      %v3191 = vpop.permute.xlu0 %3190
      %3194 = vrot.lane.b32.xlu0 %v3183, 17
      %v3195 = vpop.permute.xlu0 %3194
      %v3196 = vsel %vm532, %v3195, %v3191
      %v3199 = vsel %vm532, %v3191, %v3195
      %v3200 = vld [vmem:[%s2] sm:$0x3]
      %v3202 = vlaneseq
      %v3203 = vshrl.u32 %v3202, 7
      %v3204 = vsub.s32 0, %v3203
      %v3205 = vrot.slane %v3200, %v3204
      %v3206 = vlaneseq
      %v3207 = vshrl.u32 %v3206, 7
      %v3208 = vsub.s32 1, %v3207
      %v3209 = vrot.slane %v3200, %v3208
      %v3212 = vmul.f32 %v3199, %v3205
      %v3213 = vmul.f32 %v3196, %v3209
      %v3214 = vadd.f32 %v3212, 0.0
      %v3215 = vadd.f32 %v3213, 0.0
      %s3216 = scalar_lea.vmem %s7, 2
      %v3217 = vld [vmem:[%s3216] sm:$0x3]
      %v3219 = vsel %vm3138, %v3217, 0
      %3221 = vmatprep.subr.bf16.mxu0 %v3134
      %3222 = vmatpush1.bf16.msra.mxu0 %v3133
      %3223 = vmatprep.subr.bf16.mxu0 %v3146
      %3224 = vmatpush1.bf16.msra.mxu0 %v3143
      %3225 = vmatprep.subr.bf16.mxu0 0
      %3226 = vmatpush1.bf16.msra.mxu0 0
      %3227 = vmatprep.subr.bf16.mxu0 0
      %3228 = vmatpush1.bf16.msra.mxu0 0
      %3229 = vmatprep.subr.bf16.mxu0 0
      %3230 = vmatpush1.bf16.msra.mxu0 0
      %3231 = vmatprep.subr.bf16.mxu0 0
      %3232 = vmatpush1.bf16.msra.mxu0 0
      %3233 = vmatprep.subr.bf16.mxu0 0
      %3234 = vmatpush1.bf16.msra.mxu0 0
      %3235 = vmatprep.subr.bf16.mxu0 0
      %3236 = vmatpush1.bf16.msra.mxu0 0
      %3237 = vmatprep.subr.bf16.mxu0 0
      %3238 = vmatpush1.bf16.msra.mxu0 0
      %3239 = vmatprep.subr.bf16.mxu0 0
      %3240 = vmatpush1.bf16.msra.mxu0 0
      %3241 = vmatprep.subr.bf16.mxu0 0
      %3242 = vmatpush1.bf16.msra.mxu0 0
      %3243 = vmatprep.subr.bf16.mxu0 0
      %3244 = vmatpush1.bf16.msra.mxu0 0
      %3245 = vmatprep.subr.bf16.mxu0 0
      %3246 = vmatpush1.bf16.msra.mxu0 0
      %3247 = vmatprep.subr.bf16.mxu0 0
      %3248 = vmatpush1.bf16.msra.mxu0 0
      %3249 = vmatprep.subr.bf16.mxu0 0
      %3250 = vmatpush1.bf16.msra.mxu0 0
      %3251 = vmatprep.subr.bf16.mxu0 0
      %3252 = vmatpush1.bf16.msra.mxu0 0
      %3253 = vmatprep.mubr.bf16.mxu0 0
      %3254 = vmatmul.mubr.bf16.gmra.mrb[0].mxu0 %v3219
      %v3255 = vpop.f32.mrb[0].mxu0
      %v3256 = vadd.f32 0.0, %v3255
      %v3257 = vpop.f32.mrb[0].mxu0
      %v3258 = vadd.f32 0.0, %v3257
      %v3259 = vpop.f32.mrb[0].mxu0
      %v3260 = vpop.f32.mrb[0].mxu0
      %3261 = vdwg.mxu0
      %3263 = vrot.lane.b32.xlu0 %v3258, 16
      %v3264 = vpop.permute.xlu0 %3263
      %3267 = vrot.lane.b32.xlu0 %v3256, 16
      %v3268 = vpop.permute.xlu0 %3267
      %v3269 = vsel %vm606, %v3268, %v3264
      %v3272 = vsel %vm606, %v3264, %v3268
      %v3273 = vld [vmem:[%s611] sm:$0x3]
      %v3275 = vlaneseq
      %v3276 = vshrl.u32 %v3275, 7
      %v3277 = vsub.s32 0, %v3276
      %v3278 = vrot.slane %v3273, %v3277
      %v3279 = vlaneseq
      %v3280 = vshrl.u32 %v3279, 7
      %v3281 = vsub.s32 1, %v3280
      %v3282 = vrot.slane %v3273, %v3281
      %v3285 = vmul.f32 %v3272, %v3278
      %v3286 = vmul.f32 %v3269, %v3282
      %v3287 = vadd.f32 %v3214, %v3285
      %v3288 = vadd.f32 %v3215, %v3286
      %s3289 = scalar_lea.vmem %s7, 4
      %v3290 = vld [vmem:[%s3289] sm:$0x3]
      %v3292 = vsel %vm3138, %v3290, 0
      %3294 = vmatprep.subr.bf16.mxu0 %v3134
      %3295 = vmatpush1.bf16.msra.mxu0 %v3133
      %3296 = vmatprep.subr.bf16.mxu0 %v3146
      %3297 = vmatpush1.bf16.msra.mxu0 %v3143
      %3298 = vmatprep.subr.bf16.mxu0 0
      %3299 = vmatpush1.bf16.msra.mxu0 0
      %3300 = vmatprep.subr.bf16.mxu0 0
      %3301 = vmatpush1.bf16.msra.mxu0 0
      %3302 = vmatprep.subr.bf16.mxu0 0
      %3303 = vmatpush1.bf16.msra.mxu0 0
      %3304 = vmatprep.subr.bf16.mxu0 0
      %3305 = vmatpush1.bf16.msra.mxu0 0
      %3306 = vmatprep.subr.bf16.mxu0 0
      %3307 = vmatpush1.bf16.msra.mxu0 0
      %3308 = vmatprep.subr.bf16.mxu0 0
      %3309 = vmatpush1.bf16.msra.mxu0 0
      %3310 = vmatprep.subr.bf16.mxu0 0
      %3311 = vmatpush1.bf16.msra.mxu0 0
      %3312 = vmatprep.subr.bf16.mxu0 0
      %3313 = vmatpush1.bf16.msra.mxu0 0
      %3314 = vmatprep.subr.bf16.mxu0 0
      %3315 = vmatpush1.bf16.msra.mxu0 0
      %3316 = vmatprep.subr.bf16.mxu0 0
      %3317 = vmatpush1.bf16.msra.mxu0 0
      %3318 = vmatprep.subr.bf16.mxu0 0
      %3319 = vmatpush1.bf16.msra.mxu0 0
      %3320 = vmatprep.subr.bf16.mxu0 0
      %3321 = vmatpush1.bf16.msra.mxu0 0
      %3322 = vmatprep.subr.bf16.mxu0 0
      %3323 = vmatpush1.bf16.msra.mxu0 0
      %3324 = vmatprep.subr.bf16.mxu0 0
      %3325 = vmatpush1.bf16.msra.mxu0 0
      %3326 = vmatprep.mubr.bf16.mxu0 0
      %3327 = vmatmul.mubr.bf16.gmra.mrb[0].mxu0 %v3292
      %v3328 = vpop.f32.mrb[0].mxu0
      %v3329 = vadd.f32 0.0, %v3328
      %v3330 = vpop.f32.mrb[0].mxu0
      %v3331 = vadd.f32 0.0, %v3330
      %v3332 = vpop.f32.mrb[0].mxu0
      %v3333 = vpop.f32.mrb[0].mxu0
      %3334 = vdwg.mxu0
      %3336 = vrot.lane.b32.xlu0 %v3331, 15
      %v3337 = vpop.permute.xlu0 %3336
      %3340 = vrot.lane.b32.xlu0 %v3329, 15
      %v3341 = vpop.permute.xlu0 %3340
      %v3342 = vsel %vm681, %v3341, %v3337
      %v3345 = vsel %vm681, %v3337, %v3341
      %v3346 = vld [vmem:[%s686] sm:$0x3]
      %v3348 = vlaneseq
      %v3349 = vshrl.u32 %v3348, 7
      %v3350 = vsub.s32 0, %v3349
      %v3351 = vrot.slane %v3346, %v3350
      %v3352 = vlaneseq
      %v3353 = vshrl.u32 %v3352, 7
      %v3354 = vsub.s32 1, %v3353
      %v3355 = vrot.slane %v3346, %v3354
      %v3358 = vmul.f32 %v3345, %v3351
      %v3359 = vmul.f32 %v3342, %v3355
      %v3360 = vadd.f32 %v3287, %v3358
      %v3361 = vadd.f32 %v3288, %v3359
      %s3362 = scalar_lea.vmem %s7, 6
      %v3363 = vld [vmem:[%s3362] sm:$0x3]
      %v3365 = vsel %vm3138, %v3363, 0
      %3367 = vmatprep.subr.bf16.mxu0 %v3134
      %3368 = vmatpush1.bf16.msra.mxu0 %v3133
      %3369 = vmatprep.subr.bf16.mxu0 %v3146
      %3370 = vmatpush1.bf16.msra.mxu0 %v3143
      %3371 = vmatprep.subr.bf16.mxu0 0
      %3372 = vmatpush1.bf16.msra.mxu0 0
      %3373 = vmatprep.subr.bf16.mxu0 0
      %3374 = vmatpush1.bf16.msra.mxu0 0
      %3375 = vmatprep.subr.bf16.mxu0 0
      %3376 = vmatpush1.bf16.msra.mxu0 0
      %3377 = vmatprep.subr.bf16.mxu0 0
      %3378 = vmatpush1.bf16.msra.mxu0 0
      %3379 = vmatprep.subr.bf16.mxu0 0
      %3380 = vmatpush1.bf16.msra.mxu0 0
      %3381 = vmatprep.subr.bf16.mxu0 0
      %3382 = vmatpush1.bf16.msra.mxu0 0
      %3383 = vmatprep.subr.bf16.mxu0 0
      %3384 = vmatpush1.bf16.msra.mxu0 0
      %3385 = vmatprep.subr.bf16.mxu0 0
      %3386 = vmatpush1.bf16.msra.mxu0 0
      %3387 = vmatprep.subr.bf16.mxu0 0
      %3388 = vmatpush1.bf16.msra.mxu0 0
      %3389 = vmatprep.subr.bf16.mxu0 0
      %3390 = vmatpush1.bf16.msra.mxu0 0
      %3391 = vmatprep.subr.bf16.mxu0 0
      %3392 = vmatpush1.bf16.msra.mxu0 0
      %3393 = vmatprep.subr.bf16.mxu0 0
      %3394 = vmatpush1.bf16.msra.mxu0 0
      %3395 = vmatprep.subr.bf16.mxu0 0
      %3396 = vmatpush1.bf16.msra.mxu0 0
      %3397 = vmatprep.subr.bf16.mxu0 0
      %3398 = vmatpush1.bf16.msra.mxu0 0
      %3399 = vmatprep.mubr.bf16.mxu0 0
      %3400 = vmatmul.mubr.bf16.gmra.mrb[0].mxu0 %v3365
      %v3401 = vpop.f32.mrb[0].mxu0
      %v3402 = vadd.f32 0.0, %v3401
      %v3403 = vpop.f32.mrb[0].mxu0
      %v3404 = vadd.f32 0.0, %v3403
      %v3405 = vpop.f32.mrb[0].mxu0
      %v3406 = vpop.f32.mrb[0].mxu0
      %3407 = vdwg.mxu0
      %3409 = vrot.lane.b32.xlu0 %v3404, 1
      %v3410 = vpop.permute.xlu0 %3409
      %3413 = vrot.lane.b32.xlu0 %v3402, 1
      %v3414 = vpop.permute.xlu0 %3413
      %v3415 = vsel %vm756, %v3414, %v3410
      %v3418 = vsel %vm756, %v3410, %v3414
      %v3419 = vld [vmem:[%s761] sm:$0x3]
      %v3421 = vlaneseq
      %v3422 = vshrl.u32 %v3421, 7
      %v3423 = vsub.s32 0, %v3422
      %v3424 = vrot.slane %v3419, %v3423
      %v3425 = vlaneseq
      %v3426 = vshrl.u32 %v3425, 7
      %v3427 = vsub.s32 1, %v3426
      %v3428 = vrot.slane %v3419, %v3427
      %v3431 = vmul.f32 %v3418, %v3424
      %v3432 = vmul.f32 %v3415, %v3428
      %v3433 = vadd.f32 %v3360, %v3431
      %v3434 = vadd.f32 %v3361, %v3432
      %s3435 = scalar_lea.vmem %s7, 8
      %v3436 = vld [vmem:[%s3435] sm:$0x3]
      %v3438 = vsel %vm3138, %v3436, 0
      %3440 = vmatprep.subr.bf16.mxu0 %v3134
      %3441 = vmatpush1.bf16.msra.mxu0 %v3133
      %3442 = vmatprep.subr.bf16.mxu0 %v3146
      %3443 = vmatpush1.bf16.msra.mxu0 %v3143
      %3444 = vmatprep.subr.bf16.mxu0 0
      %3445 = vmatpush1.bf16.msra.mxu0 0
      %3446 = vmatprep.subr.bf16.mxu0 0
      %3447 = vmatpush1.bf16.msra.mxu0 0
      %3448 = vmatprep.subr.bf16.mxu0 0
      %3449 = vmatpush1.bf16.msra.mxu0 0
      %3450 = vmatprep.subr.bf16.mxu0 0
      %3451 = vmatpush1.bf16.msra.mxu0 0
      %3452 = vmatprep.subr.bf16.mxu0 0
      %3453 = vmatpush1.bf16.msra.mxu0 0
      %3454 = vmatprep.subr.bf16.mxu0 0
      %3455 = vmatpush1.bf16.msra.mxu0 0
      %3456 = vmatprep.subr.bf16.mxu0 0
      %3457 = vmatpush1.bf16.msra.mxu0 0
      %3458 = vmatprep.subr.bf16.mxu0 0
      %3459 = vmatpush1.bf16.msra.mxu0 0
      %3460 = vmatprep.subr.bf16.mxu0 0
      %3461 = vmatpush1.bf16.msra.mxu0 0
      %3462 = vmatprep.subr.bf16.mxu0 0
      %3463 = vmatpush1.bf16.msra.mxu0 0
      %3464 = vmatprep.subr.bf16.mxu0 0
      %3465 = vmatpush1.bf16.msra.mxu0 0
      %3466 = vmatprep.subr.bf16.mxu0 0
      %3467 = vmatpush1.bf16.msra.mxu0 0
      %3468 = vmatprep.subr.bf16.mxu0 0
      %3469 = vmatpush1.bf16.msra.mxu0 0
      %3470 = vmatprep.subr.bf16.mxu0 0
      %3471 = vmatpush1.bf16.msra.mxu0 0
      %3472 = vmatprep.mubr.bf16.mxu0 0
      %3473 = vmatmul.mubr.bf16.gmra.mrb[0].mxu0 %v3438
      %v3474 = vpop.f32.mrb[0].mxu0
      %v3475 = vadd.f32 0.0, %v3474
      %v3476 = vpop.f32.mrb[0].mxu0
      %v3477 = vadd.f32 0.0, %v3476
      %v3478 = vpop.f32.mrb[0].mxu0
      %v3479 = vpop.f32.mrb[0].mxu0
      %3480 = vdwg.mxu0
      %v3481 = vadd.f32 %v3433, %v3475
      %v3482 = vadd.f32 %v3434, %v3477
      %s3483 = scalar_lea.vmem %s7, 10
      %v3484 = vld [vmem:[%s3483] sm:$0x3]
      %v3486 = vsel %vm3138, %v3484, 0
      %3488 = vmatprep.subr.bf16.mxu0 %v3134
      %3489 = vmatpush1.bf16.msra.mxu0 %v3133
      %3490 = vmatprep.subr.bf16.mxu0 %v3146
      %3491 = vmatpush1.bf16.msra.mxu0 %v3143
      %3492 = vmatprep.subr.bf16.mxu0 0
      %3493 = vmatpush1.bf16.msra.mxu0 0
      %3494 = vmatprep.subr.bf16.mxu0 0
      %3495 = vmatpush1.bf16.msra.mxu0 0
      %3496 = vmatprep.subr.bf16.mxu0 0
      %3497 = vmatpush1.bf16.msra.mxu0 0
      %3498 = vmatprep.subr.bf16.mxu0 0
      %3499 = vmatpush1.bf16.msra.mxu0 0
      %3500 = vmatprep.subr.bf16.mxu0 0
      %3501 = vmatpush1.bf16.msra.mxu0 0
      %3502 = vmatprep.subr.bf16.mxu0 0
      %3503 = vmatpush1.bf16.msra.mxu0 0
      %3504 = vmatprep.subr.bf16.mxu0 0
      %3505 = vmatpush1.bf16.msra.mxu0 0
      %3506 = vmatprep.subr.bf16.mxu0 0
      %3507 = vmatpush1.bf16.msra.mxu0 0
      %3508 = vmatprep.subr.bf16.mxu0 0
      %3509 = vmatpush1.bf16.msra.mxu0 0
      %3510 = vmatprep.subr.bf16.mxu0 0
      %3511 = vmatpush1.bf16.msra.mxu0 0
      %3512 = vmatprep.subr.bf16.mxu0 0
      %3513 = vmatpush1.bf16.msra.mxu0 0
      %3514 = vmatprep.subr.bf16.mxu0 0
      %3515 = vmatpush1.bf16.msra.mxu0 0
      %3516 = vmatprep.subr.bf16.mxu0 0
      %3517 = vmatpush1.bf16.msra.mxu0 0
      %3518 = vmatprep.subr.bf16.mxu0 0
      %3519 = vmatpush1.bf16.msra.mxu0 0
      %3520 = vmatprep.mubr.bf16.mxu0 0
      %3521 = vmatmul.mubr.bf16.gmra.mrb[0].mxu0 %v3486
      %v3522 = vpop.f32.mrb[0].mxu0
      %v3523 = vadd.f32 0.0, %v3522
      %v3524 = vpop.f32.mrb[0].mxu0
      %v3525 = vadd.f32 0.0, %v3524
      %v3526 = vpop.f32.mrb[0].mxu0
      %v3527 = vpop.f32.mrb[0].mxu0
      %3528 = vdwg.mxu0
      %3531 = vrot.lane.b32.xlu0 %v3523, 127
      %v3532 = vpop.permute.xlu0 %3531
      %3533 = vrot.lane.b32.xlu0 %v3525, 127
      %v3534 = vpop.permute.xlu0 %3533
      %v3535 = vsel %vm878, %v3532, %v3534
      %v3539 = vsel %vm878, %v3534, %v3532
      %v3540 = vld [vmem:[%s884] sm:$0x3]
      %v3542 = vlaneseq
      %v3543 = vshrl.u32 %v3542, 7
      %v3544 = vsub.s32 0, %v3543
      %v3545 = vrot.slane %v3540, %v3544
      %v3546 = vlaneseq
      %v3547 = vshrl.u32 %v3546, 7
      %v3548 = vsub.s32 1, %v3547
      %v3549 = vrot.slane %v3540, %v3548
      %v3552 = vmul.f32 %v3535, %v3545
      %v3553 = vmul.f32 %v3539, %v3549
      %v3554 = vadd.f32 %v3481, %v3552
      %v3555 = vadd.f32 %v3482, %v3553
      %s3556 = scalar_lea.vmem %s7, 12
      %v3557 = vld [vmem:[%s3556] sm:$0x3]
      %v3559 = vsel %vm3138, %v3557, 0
      %3561 = vmatprep.subr.bf16.mxu0 %v3134
      %3562 = vmatpush1.bf16.msra.mxu0 %v3133
      %3563 = vmatprep.subr.bf16.mxu0 %v3146
      %3564 = vmatpush1.bf16.msra.mxu0 %v3143
      %3565 = vmatprep.subr.bf16.mxu0 0
      %3566 = vmatpush1.bf16.msra.mxu0 0
      %3567 = vmatprep.subr.bf16.mxu0 0
      %3568 = vmatpush1.bf16.msra.mxu0 0
      %3569 = vmatprep.subr.bf16.mxu0 0
      %3570 = vmatpush1.bf16.msra.mxu0 0
      %3571 = vmatprep.subr.bf16.mxu0 0
      %3572 = vmatpush1.bf16.msra.mxu0 0
      %3573 = vmatprep.subr.bf16.mxu0 0
      %3574 = vmatpush1.bf16.msra.mxu0 0
      %3575 = vmatprep.subr.bf16.mxu0 0
      %3576 = vmatpush1.bf16.msra.mxu0 0
      %3577 = vmatprep.subr.bf16.mxu0 0
      %3578 = vmatpush1.bf16.msra.mxu0 0
      %3579 = vmatprep.subr.bf16.mxu0 0
      %3580 = vmatpush1.bf16.msra.mxu0 0
      %3581 = vmatprep.subr.bf16.mxu0 0
      %3582 = vmatpush1.bf16.msra.mxu0 0
      %3583 = vmatprep.subr.bf16.mxu0 0
      %3584 = vmatpush1.bf16.msra.mxu0 0
      %3585 = vmatprep.subr.bf16.mxu0 0
      %3586 = vmatpush1.bf16.msra.mxu0 0
      %3587 = vmatprep.subr.bf16.mxu0 0
      %3588 = vmatpush1.bf16.msra.mxu0 0
      %3589 = vmatprep.subr.bf16.mxu0 0
      %3590 = vmatpush1.bf16.msra.mxu0 0
      %3591 = vmatprep.subr.bf16.mxu0 0
      %3592 = vmatpush1.bf16.msra.mxu0 0
      %3593 = vmatprep.mubr.bf16.mxu0 0
      %3594 = vmatmul.mubr.bf16.gmra.mrb[0].mxu0 %v3559
      %v3595 = vpop.f32.mrb[0].mxu0
      %v3596 = vadd.f32 0.0, %v3595
      %v3597 = vpop.f32.mrb[0].mxu0
      %v3598 = vadd.f32 0.0, %v3597
      %v3599 = vpop.f32.mrb[0].mxu0
      %v3600 = vpop.f32.mrb[0].mxu0
      %3601 = vdwg.mxu0
      %3604 = vrot.lane.b32.xlu0 %v3596, 113
      %v3605 = vpop.permute.xlu0 %3604
      %3606 = vrot.lane.b32.xlu0 %v3598, 113
      %v3607 = vpop.permute.xlu0 %3606
      %v3608 = vsel %vm953, %v3605, %v3607
      %v3612 = vsel %vm953, %v3607, %v3605
      %v3613 = vld [vmem:[%s959] sm:$0x3]
      %v3615 = vlaneseq
      %v3616 = vshrl.u32 %v3615, 7
      %v3617 = vsub.s32 0, %v3616
      %v3618 = vrot.slane %v3613, %v3617
      %v3619 = vlaneseq
      %v3620 = vshrl.u32 %v3619, 7
      %v3621 = vsub.s32 1, %v3620
      %v3622 = vrot.slane %v3613, %v3621
      %v3625 = vmul.f32 %v3608, %v3618
      %v3626 = vmul.f32 %v3612, %v3622
      %v3627 = vadd.f32 %v3554, %v3625
      %v3628 = vadd.f32 %v3555, %v3626
      %s3629 = scalar_lea.vmem %s7, 14
      %v3630 = vld [vmem:[%s3629] sm:$0x3]
      %v3632 = vsel %vm3138, %v3630, 0
      %3634 = vmatprep.subr.bf16.mxu0 %v3134
      %3635 = vmatpush1.bf16.msra.mxu0 %v3133
      %3636 = vmatprep.subr.bf16.mxu0 %v3146
      %3637 = vmatpush1.bf16.msra.mxu0 %v3143
      %3638 = vmatprep.subr.bf16.mxu0 0
      %3639 = vmatpush1.bf16.msra.mxu0 0
      %3640 = vmatprep.subr.bf16.mxu0 0
      %3641 = vmatpush1.bf16.msra.mxu0 0
      %3642 = vmatprep.subr.bf16.mxu0 0
      %3643 = vmatpush1.bf16.msra.mxu0 0
      %3644 = vmatprep.subr.bf16.mxu0 0
      %3645 = vmatpush1.bf16.msra.mxu0 0
      %3646 = vmatprep.subr.bf16.mxu0 0
      %3647 = vmatpush1.bf16.msra.mxu0 0
      %3648 = vmatprep.subr.bf16.mxu0 0
      %3649 = vmatpush1.bf16.msra.mxu0 0
      %3650 = vmatprep.subr.bf16.mxu0 0
      %3651 = vmatpush1.bf16.msra.mxu0 0
      %3652 = vmatprep.subr.bf16.mxu0 0
      %3653 = vmatpush1.bf16.msra.mxu0 0
      %3654 = vmatprep.subr.bf16.mxu0 0
      %3655 = vmatpush1.bf16.msra.mxu0 0
      %3656 = vmatprep.subr.bf16.mxu0 0
      %3657 = vmatpush1.bf16.msra.mxu0 0
      %3658 = vmatprep.subr.bf16.mxu0 0
      %3659 = vmatpush1.bf16.msra.mxu0 0
      %3660 = vmatprep.subr.bf16.mxu0 0
      %3661 = vmatpush1.bf16.msra.mxu0 0
      %3662 = vmatprep.subr.bf16.mxu0 0
      %3663 = vmatpush1.bf16.msra.mxu0 0
      %3664 = vmatprep.subr.bf16.mxu0 0
      %3665 = vmatpush1.bf16.msra.mxu0 0
      %3666 = vmatprep.mubr.bf16.mxu0 0
      %3667 = vmatmul.mubr.bf16.gmra.mrb[0].mxu0 %v3632
      %v3668 = vpop.f32.mrb[0].mxu0
      %v3669 = vadd.f32 0.0, %v3668
      %v3670 = vpop.f32.mrb[0].mxu0
      %v3671 = vadd.f32 0.0, %v3670
      %v3672 = vpop.f32.mrb[0].mxu0
      %v3673 = vpop.f32.mrb[0].mxu0
      %3674 = vdwg.mxu0
      %3677 = vrot.lane.b32.xlu0 %v3669, 112
      %v3678 = vpop.permute.xlu0 %3677
      %3679 = vrot.lane.b32.xlu0 %v3671, 112
      %v3680 = vpop.permute.xlu0 %3679
      %v3681 = vsel %vm1028, %v3678, %v3680
      %v3685 = vsel %vm1028, %v3680, %v3678
      %v3686 = vld [vmem:[%s1034] sm:$0x3]
      %v3688 = vlaneseq
      %v3689 = vshrl.u32 %v3688, 7
      %v3690 = vsub.s32 0, %v3689
      %v3691 = vrot.slane %v3686, %v3690
      %v3692 = vlaneseq
      %v3693 = vshrl.u32 %v3692, 7
      %v3694 = vsub.s32 1, %v3693
      %v3695 = vrot.slane %v3686, %v3694
      %v3698 = vmul.f32 %v3681, %v3691
      %v3699 = vmul.f32 %v3685, %v3695
      %v3700 = vadd.f32 %v3627, %v3698
      %v3701 = vadd.f32 %v3628, %v3699
      %s3702 = scalar_lea.vmem %s7, 16
      %v3703 = vld [vmem:[%s3702] sm:$0x3]
      %v3705 = vsel %vm3138, %v3703, 0
      %3707 = vmatprep.subr.bf16.mxu0 %v3134
      %3708 = vmatpush1.bf16.msra.mxu0 %v3133
      %3709 = vmatprep.subr.bf16.mxu0 %v3146
      %3710 = vmatpush1.bf16.msra.mxu0 %v3143
      %3711 = vmatprep.subr.bf16.mxu0 0
      %3712 = vmatpush1.bf16.msra.mxu0 0
      %3713 = vmatprep.subr.bf16.mxu0 0
      %3714 = vmatpush1.bf16.msra.mxu0 0
      %3715 = vmatprep.subr.bf16.mxu0 0
      %3716 = vmatpush1.bf16.msra.mxu0 0
      %3717 = vmatprep.subr.bf16.mxu0 0
      %3718 = vmatpush1.bf16.msra.mxu0 0
      %3719 = vmatprep.subr.bf16.mxu0 0
      %3720 = vmatpush1.bf16.msra.mxu0 0
      %3721 = vmatprep.subr.bf16.mxu0 0
      %3722 = vmatpush1.bf16.msra.mxu0 0
      %3723 = vmatprep.subr.bf16.mxu0 0
      %3724 = vmatpush1.bf16.msra.mxu0 0
      %3725 = vmatprep.subr.bf16.mxu0 0
      %3726 = vmatpush1.bf16.msra.mxu0 0
      %3727 = vmatprep.subr.bf16.mxu0 0
      %3728 = vmatpush1.bf16.msra.mxu0 0
      %3729 = vmatprep.subr.bf16.mxu0 0
      %3730 = vmatpush1.bf16.msra.mxu0 0
      %3731 = vmatprep.subr.bf16.mxu0 0
      %3732 = vmatpush1.bf16.msra.mxu0 0
      %3733 = vmatprep.subr.bf16.mxu0 0
      %3734 = vmatpush1.bf16.msra.mxu0 0
      %3735 = vmatprep.subr.bf16.mxu0 0
      %3736 = vmatpush1.bf16.msra.mxu0 0
      %3737 = vmatprep.subr.bf16.mxu0 0
      %3738 = vmatpush1.bf16.msra.mxu0 0
      %3739 = vmatprep.mubr.bf16.mxu0 0
      %3740 = vmatmul.mubr.bf16.gmra.mrb[0].mxu0 %v3705
      %v3741 = vpop.f32.mrb[0].mxu0
      %v3742 = vadd.f32 0.0, %v3741
      %v3743 = vpop.f32.mrb[0].mxu0
      %v3744 = vadd.f32 0.0, %v3743
      %v3745 = vpop.f32.mrb[0].mxu0
      %v3746 = vpop.f32.mrb[0].mxu0
      %3747 = vdwg.mxu0
      %3750 = vrot.lane.b32.xlu0 %v3742, 111
      %v3751 = vpop.permute.xlu0 %3750
      %3752 = vrot.lane.b32.xlu0 %v3744, 111
      %v3753 = vpop.permute.xlu0 %3752
      %v3754 = vsel %vm1103, %v3751, %v3753
      %v3758 = vsel %vm1103, %v3753, %v3751
      %v3759 = vld [vmem:[%s1109] sm:$0x3]
      %v3761 = vlaneseq
      %v3762 = vshrl.u32 %v3761, 7
      %v3763 = vsub.s32 0, %v3762
      %v3764 = vrot.slane %v3759, %v3763
      %v3765 = vlaneseq
      %v3766 = vshrl.u32 %v3765, 7
      %v3767 = vsub.s32 1, %v3766
      %v3768 = vrot.slane %v3759, %v3767
      %v3771 = vmul.f32 %v3754, %v3764
      %v3772 = vmul.f32 %v3758, %v3768
      %v3773 = vadd.f32 %v3700, %v3771
      %v3774 = vadd.f32 %v3701, %v3772
      %v3775 = vld [vmem:[%s12] sm:$0xf]
      %3777 = vset.pattern.permute.xlu0 0
      %3778 = vperm.xlu0 %3777, %v3775
      %v3779 = vpop.permute.xlu0 %3778
      %v3781 = vadd.f32 %v3773, %v3779
      %v3782 = vadd.f32 %v3774, %v3779
      %v3783 = vmul.f32 %v3781, 0.2
      %v3784 = vmul.f32 %v3782, 0.2
      %v3785 = vadd.f32 %v3783, %v462
      %v3786 = vadd.f32 %v3784, %v464
      %v3787 = vmul.f32 %v3785, 0.2
      %v3788 = vmul.f32 %v3786, 0.2
      %v3789 = vld [vmem:[%s455] sm:$0xff]
      %v3791 = vcombine.high %v3789, %v3789
      %v3793 = vadd.f32 %v3787, %v3789
      %v3794 = vadd.f32 %v3788, %v3791
      %v3797 = vcombine.low %v3793, %v3794
      %3799 = vst [vmem:[%s460] sm:$0xff] %v3797
      %p3800 = scmp.lt.s32.totalorder %s24, 1
      %s3801 = scalar_select %p3800, %s24, 1
      %s3802 = smul.addr %s3801, 2
      %s3803 = smul.addr %s3802, 4
      %s3804 = scalar_lea.vmem %s13, %s3803
      // Predicated region
      $region73: #{rrdb_forward.5} parent=71 // pred_check
        %p3805 = pneg %p325
      $region74: #{rrdb_forward.5} parent=71 // pred_check_branch
        %3807 = sbr.rel (%p3805) target = $region76
      $region75: #{rrdb_forward.5} parent=71 // pred_region
        _
      $region76: #{rrdb_forward.5} parent=71 // pred_fallthru
        _
    $region72: #{rrdb_forward.5} parent=5 // pred_fallthru
      _
    %p3808 = scmp.le.s32.totalorder 2, %s19
    // Predicated region
    $region77: #{rrdb_forward.5} parent=5 // pred_check
      %p3809 = pneg %p3808
    $region78: #{rrdb_forward.5} parent=5 // pred_check_branch
      %3811 = sbr.rel (%p3809) target = $region80
    $region79: #{rrdb_forward.5} parent=5 // pred_region
      %s3812 = ssub.s32 %s19, 2
      // Predicated region
      $region81: #{rrdb_forward.5} parent=79 // pred_check
        %p3813 = pneg %p331
      $region82: #{rrdb_forward.5} parent=79 // pred_check_branch
        %3815 = sbr.rel (%p3813) target = $region84
      $region83: #{rrdb_forward.5} parent=79 // pred_region
        %p3816 = scmp.lt.s32.totalorder %s25, 1
        %s3817 = scalar_select %p3816, %s25, 1
        %s3818 = smul.addr %s3817, 2
        %s3819 = smul.addr %s3818, 4
        %s3820 = scalar_lea.vmem %s13, %s3819
      $region84: #{rrdb_forward.5} parent=79 // pred_fallthru
        _
    $region80: #{rrdb_forward.5} parent=5 // pred_fallthru
      _
  $region6: #{rrdb_forward.5} parent=0 // loop_footer
    %s23 = sadd.s32 1, %s19
  $region7: #{rrdb_forward.5} parent=0 // loop_footer_branch
    %18 = sbr.rel target = $region3
  $region8: #{rrdb_forward.5} parent=0 // loop_exit
    _

</llo_original>
